<compile_context>
chip_gen: v6e
topology: v6e:2x2x1
jax: 0.10.0
libtpu: 0.0.40
codegen_flags: <defaults>
</compile_context>

<pallas_src>
import functools
import numpy as np
import jax
import jax.numpy as jnp
from jax.experimental import pallas as pl
from jax.experimental.pallas import tpu as pltpu

NEG_INF = -1e30
LN_EPS = 1e-5
LEAKY_SLOPE = 0.01


# ----------------------------------------------------------------------------
# In-kernel helpers
# ----------------------------------------------------------------------------
def _mm(a, b):
    """bf16 MXU matmul with f32 accumulation."""
    return jnp.dot(a.astype(jnp.bfloat16), b.astype(jnp.bfloat16),
                   preferred_element_type=jnp.float32)


def _ln(y, g, b):
    """LayerNorm over the last dim (stats kept in f32)."""
    mu = jnp.mean(y, axis=-1, keepdims=True)
    var = jnp.mean((y - mu) ** 2, axis=-1, keepdims=True)
    return (y - mu) * jax.lax.rsqrt(var + LN_EPS) * g + b


def _attention(q, k, v, bias, wo, nheads):
    """Batch-folded (block-diagonal) multi-head attention, fully 2D.

    q: (Mq, E), k/v: (Mk, E), bias: (Mq, Mk) additive (0 / -1e30) encoding both the
    block-diagonal batch structure and (optionally) causality.  wo: (E, E) output
    projection (its bias is added by the caller).  Returns (Mq, E) f32.
    """
    Mq, E = q.shape
    dh = E // nheads
    scale = 1.0 / float(np.sqrt(dh))
    out = None
    for h in range(nheads):
        sl = slice(h * dh, (h + 1) * dh)
        # scores = q_h @ k_h^T  (bf16 in, f32 out)
        s = jax.lax.dot_general(
            q[:, sl].astype(jnp.bfloat16), k[:, sl].astype(jnp.bfloat16),
            dimension_numbers=(((1,), (1,)), ((), ())),
            preferred_element_type=jnp.float32)
        s = s * scale + bias
        s = s - jnp.max(s, axis=-1, keepdims=True)
        p = jnp.exp(s)
        p = p * pl.reciprocal(jnp.sum(p, axis=-1, keepdims=True), approx=True)
        oh = jnp.dot(p.astype(jnp.bfloat16), v[:, sl].astype(jnp.bfloat16),
                     preferred_element_type=jnp.float32)
        # accumulate the per-head slice of the output projection (no concat)
        proj = jnp.dot(oh.astype(jnp.bfloat16), wo[sl, :].astype(jnp.bfloat16),
                       preferred_element_type=jnp.float32)
        out = proj if out is None else out + proj
    return out


# ----------------------------------------------------------------------------
# Fused layer kernels
# ----------------------------------------------------------------------------
def _enc_layer_kernel(x_ref, bias_ref,
                      wqkv_ref, bqkv_ref, wo_ref, bo_ref,
                      ln1g_ref, ln1b_ref, w1_ref, b1_ref, w2_ref, b2_ref,
                      ln2g_ref, ln2b_ref, o_ref, *, nheads):
    # Post-norm TransformerEncoderLayer (dropout=0, relu), all stages fused.
    x = x_ref[...]                                   # (M, E) f32
    E = x.shape[1]
    qkv = _mm(x, wqkv_ref[...]) + bqkv_ref[...]      # (M, 3E)
    a = _attention(qkv[:, 0:E], qkv[:, E:2 * E], qkv[:, 2 * E:3 * E],
                   bias_ref[...], wo_ref[...], nheads) + bo_ref[...]
    x1 = _ln(x + a, ln1g_ref[...], ln1b_ref[...])
    h = jnp.maximum(_mm(x1, w1_ref[...]) + b1_ref[...], 0.0)
    h = _mm(h, w2_ref[...]) + b2_ref[...]
    o_ref[...] = _ln(x1 + h, ln2g_ref[...], ln2b_ref[...])


def _dec_layer_kernel(x_ref, m_ref, sbias_ref, cbias_ref,
                      s_wqkv, s_bqkv, s_wo, s_bo, ln1g, ln1b,
                      c_wq, c_bq, c_wkv, c_bkv, c_wo, c_bo, ln2g, ln2b,
                      w1, b1, w2, b2, ln3g, ln3b, o_ref, *, nheads):
    # Post-norm TransformerDecoderLayer (dropout=0, relu), all stages fused.
    x = x_ref[...]                                   # (Mq, E)
    mem = m_ref[...]                                 # (Mk, E)
    E = x.shape[1]

    # masked self-attention
    qkv = _mm(x, s_wqkv[...]) + s_bqkv[...]
    a = _attention(qkv[:, 0:E], qkv[:, E:2 * E], qkv[:, 2 * E:3 * E],
                   sbias_ref[...], s_wo[...], nheads) + s_bo[...]
    x1 = _ln(x + a, ln1g[...], ln1b[...])

    # cross-attention (fused KV projection on memory)
    qc = _mm(x1, c_wq[...]) + c_bq[...]
    kv = _mm(mem, c_wkv[...]) + c_bkv[...]
    a2 = _attention(qc, kv[:, 0:E], kv[:, E:2 * E],
                    cbias_ref[...], c_wo[...], nheads) + c_bo[...]
    x2 = _ln(x1 + a2, ln2g[...], ln2b[...])

    # FFN
    h = jnp.maximum(_mm(x2, w1[...]) + b1[...], 0.0)
    h = _mm(h, w2[...]) + b2[...]
    o_ref[...] = _ln(x2 + h, ln3g[...], ln3b[...])


def _qp_kernel(x_ref, w0, b0, w1, b1, w2, b2, w3, b3, w4row, b4, pred_ref):
    # 5-layer quality-predictor MLP (Linear+LeakyReLU x4, then Linear(V,1)), fused.
    h = x_ref[...]                                   # (B*T, V)
    for w, bb in ((w0, b0), (w1, b1), (w2, b2), (w3, b3)):
        h = _mm(h, w[...]) + bb[...]
        h = jnp.where(h > 0.0, h, LEAKY_SLOPE * h)   # LeakyReLU(0.01)
    # final Linear(V, 1): lane reduce (VPU mul + XLU reduce) -> (B*T, 1)
    pred_ref[...] = jnp.sum(h * w4row[...], axis=-1, keepdims=True) + b4[...]


# ----------------------------------------------------------------------------
# Wrappers (pallas_call plumbing)
# ----------------------------------------------------------------------------
def _const_spec(arr):
    shape = tuple(arr.shape)
    zeros = (0,) * len(shape)
    return pl.BlockSpec(shape, lambda i, _z=zeros: _z)


def _num_blocks(n_batch, row_counts):
    """Use 2 'parallel' grid blocks (v7x megacore) when the blocking stays (8,*)-legal."""
    if n_batch % 2 == 0 and all(((n_batch // 2) * rc) % 8 == 0 for rc in row_counts):
        return 2
    return 1


def _block_bias(n_batch, s_q, s_k, causal):
    """Additive attention bias for batch-folded 2D attention (0 / -1e30)."""
    r = np.arange(n_batch * s_q)
    c = np.arange(n_batch * s_k)
    valid = (r[:, None] // s_q) == (c[None, :] // s_k)
    if causal:
        valid = valid & ((c[None, :] % s_k) <= (r[:, None] % s_q))
    return jnp.asarray(np.where(valid, 0.0, NEG_INF).astype(np.float32))


def encoder_layer(x2d, seq_len, p, nheads):
    M, E = x2d.shape
    n_batch = M // seq_len
    nb = _num_blocks(n_batch, [seq_len])
    bb = n_batch // nb
    rows = bb * seq_len
    bias = _block_bias(bb, seq_len, seq_len, causal=False)
    weights = [p["attn"]["wqkv"], p["attn"]["bqkv"], p["attn"]["wo"], p["attn"]["bo"],
               p["ln1_g"], p["ln1_b"], p["w1"], p["b1"], p["w2"], p["b2"],
               p["ln2_g"], p["ln2_b"]]
    return pl.pallas_call(
        functools.partial(_enc_layer_kernel, nheads=nheads),
        grid=(nb,),
        in_specs=[pl.BlockSpec((rows, E), lambda i: (i, 0)),
                  _const_spec(bias)] + [_const_spec(a) for a in weights],
        out_specs=pl.BlockSpec((rows, E), lambda i: (i, 0)),
        out_shape=jax.ShapeDtypeStruct((M, E), jnp.float32),
        compiler_params=pltpu.CompilerParams(dimension_semantics=("parallel",)),
    )(x2d, bias, *weights)


def decoder_layer(x2d, mem2d, tgt_len, mem_len, p, nheads):
    Mq, E = x2d.shape
    n_batch = Mq // tgt_len
    nb = _num_blocks(n_batch, [tgt_len, mem_len])
    bb = n_batch // nb
    q_rows = bb * tgt_len
    k_rows = bb * mem_len
    sbias = _block_bias(bb, tgt_len, tgt_len, causal=True)     # causal self-attn mask
    cbias = _block_bias(bb, tgt_len, mem_len, causal=False)    # block-diag cross-attn
    weights = [p["self_attn"]["wqkv"], p["self_attn"]["bqkv"],
               p["self_attn"]["wo"], p["self_attn"]["bo"],
               p["ln1_g"], p["ln1_b"],
               p["cross_attn"]["wq"], p["cross_attn"]["bq"],
               p["cross_attn"]["wkv"], p["cross_attn"]["bkv"],
               p["cross_attn"]["wo"], p["cross_attn"]["bo"],
               p["ln2_g"], p["ln2_b"],
               p["w1"], p["b1"], p["w2"], p["b2"],
               p["ln3_g"], p["ln3_b"]]
    return pl.pallas_call(
        functools.partial(_dec_layer_kernel, nheads=nheads),
        grid=(nb,),
        in_specs=[pl.BlockSpec((q_rows, E), lambda i: (i, 0)),
                  pl.BlockSpec((k_rows, E), lambda i: (i, 0)),
                  _const_spec(sbias), _const_spec(cbias)] + [_const_spec(a) for a in weights],
        out_specs=pl.BlockSpec((q_rows, E), lambda i: (i, 0)),
        out_shape=jax.ShapeDtypeStruct((Mq, E), jnp.float32),
        compiler_params=pltpu.CompilerParams(dimension_semantics=("parallel",)),
    )(x2d, mem2d, sbias, cbias, *weights)


def quality_predict(batched2d, qp, B, T):
    R, _ = batched2d.shape               # R = B*T
    pred = pl.pallas_call(
        _qp_kernel,
        out_shape=jax.ShapeDtypeStruct((R, 1), jnp.float32),
    )(batched2d, qp["w0"], qp["b0"], qp["w1"], qp["b1"], qp["w2"], qp["b2"],
      qp["w3"], qp["b3"], qp["w4"], qp["b4"])
    # O(B*T)-element epilogue stays in plain JAX (same as the PyTorch view/cumsum/
    # fliplr + 'l2' metric scaling): q = fliplr(cumsum(pred^2)), db = 10*log10(1/q).
    q = jnp.flip(jnp.cumsum(jnp.square(pred.reshape(B, T)), axis=1), axis=1)
    db = 10.0 * jnp.log10(1.0 / q)
    return q, db


# ----------------------------------------------------------------------------
# Parameter init (deterministic, synthetic) -- fused QKV / KV layouts
# ----------------------------------------------------------------------------
def _dense(key, fan_in, fan_out):
    w = 0.05 * jax.random.normal(key, (fan_in, fan_out), jnp.float32)
    b = jnp.zeros((1, fan_out), jnp.float32)
    return w, b


def _self_attn_init(key, E):
    ks = jax.random.split(key, 4)
    wq, _ = _dense(ks[0], E, E)
    wk, _ = _dense(ks[1], E, E)
    wv, _ = _dense(ks[2], E, E)
    wo, bo = _dense(ks[3], E, E)
    return dict(wqkv=jnp.concatenate([wq, wk, wv], axis=1),
                bqkv=jnp.zeros((1, 3 * E), jnp.float32), wo=wo, bo=bo)


def _cross_attn_init(key, E):
    ks = jax.random.split(key, 4)
    wq, bq = _dense(ks[0], E, E)
    wk, _ = _dense(ks[1], E, E)
    wv, _ = _dense(ks[2], E, E)
    wo, bo = _dense(ks[3], E, E)
    return dict(wq=wq, bq=bq, wkv=jnp.concatenate([wk, wv], axis=1),
                bkv=jnp.zeros((1, 2 * E), jnp.float32), wo=wo, bo=bo)


def _enc_layer_init(key, E, ff):
    ks = jax.random.split(key, 3)
    w1, b1 = _dense(ks[1], E, ff)
    w2, b2 = _dense(ks[2], ff, E)
    ones = jnp.ones((1, E), jnp.float32)
    zeros = jnp.zeros((1, E), jnp.float32)
    return dict(attn=_self_attn_init(ks[0], E),
                ln1_g=ones, ln1_b=zeros, w1=w1, b1=b1, w2=w2, b2=b2,
                ln2_g=ones, ln2_b=zeros)


def _dec_layer_init(key, E, ff):
    ks = jax.random.split(key, 4)
    w1, b1 = _dense(ks[2], E, ff)
    w2, b2 = _dense(ks[3], ff, E)
    ones = jnp.ones((1, E), jnp.float32)
    zeros = jnp.zeros((1, E), jnp.float32)
    return dict(self_attn=_self_attn_init(ks[0], E),
                cross_attn=_cross_attn_init(ks[1], E),
                ln1_g=ones, ln1_b=zeros, ln2_g=ones, ln2_b=zeros,
                ln3_g=ones, ln3_b=zeros, w1=w1, b1=b1, w2=w2, b2=b2)


def _qp_init(key, V):
    ks = jax.random.split(key, 5)
    qp = {}
    for i in range(4):
        qp[f"w{i}"], qp[f"b{i}"] = _dense(ks[i], V, V)
    # final Linear(V, 1) stored as a (1, V) row vector -> in-kernel lane reduce
    qp["w4"] = 0.05 * jax.random.normal(ks[4], (1, V), jnp.float32)
    qp["b4"] = jnp.zeros((1, 1), jnp.float32)
    return qp


def init_vct_params(key, cfg):
    E, ff, V = cfg["c_out"], cfg["tf_ff"], cfg["vals_per_token"]
    n_sep, n_joint, n_dec = cfg["tf_layers"]
    keys = jax.random.split(key, n_sep + n_joint + n_dec + 1)
    it = iter(keys)
    params = {
        "enc_sep": [_enc_layer_init(next(it), E, ff) for _ in range(n_sep)],
        "enc_joint": [_enc_layer_init(next(it), E, ff) for _ in range(n_joint)],
        "dec": [_dec_layer_init(next(it), E, ff) for _ in range(n_dec)],
        "qp": _qp_init(next(it), V),
    }
    return params


# ----------------------------------------------------------------------------
# Forward pass (use_entropy=False, loss='l2')
# ----------------------------------------------------------------------------
def vct_predictor_forward(int_tokens, prev_tokens, params, cfg):
    c_out, c_win = cfg["c_out"], cfg["c_win"]
    nph, npw = cfg["nph"], cfg["npw"]
    nheads = cfg["tf_heads"]
    T = c_win * c_win

    B = int_tokens.shape[0] // (nph * npw)
    n_prev = prev_tokens.shape[0] // B
    Lp = prev_tokens.shape[1] // (nph * npw)          # tokens per patch (= p_win**2)
    Sk = n_prev * Lp                                  # joint / memory sequence length

    # --- separate (per-patch) encoder: batch = B*n_prev*nph*npw, seq = Lp ---
    x = prev_tokens.reshape(-1, c_out)
    for lp in params["enc_sep"]:
        x = encoder_layer(x, Lp, lp, nheads)

    # --- joint (temporal) encoder: batch = B*nph*npw, seq = n_prev*Lp ---
    x = x.reshape(B, n_prev, nph, npw, Lp, c_out)
    x = jnp.transpose(x, (0, 2, 3, 1, 4, 5)).reshape(-1, c_out)
    for lp in params["enc_joint"]:
        x = encoder_layer(x, Sk, lp, nheads)
    memory = x                                        # (B*nph*npw*Sk, c_out)

    # --- masked transformer decoder: tgt seq = c_win**2 ---
    y = int_tokens.reshape(-1, c_out)                 # (B*nph*npw*T, c_out)
    for lp in params["dec"]:
        y = decoder_layer(y, memory, T, Sk, lp, nheads)

    # --- regroup per c_win-step token (plain-JAX glue, as in PyTorch) ---
    restored = y.reshape(B, nph, npw, T, c_out)
    batched = jnp.transpose(restored, (0, 3, 1, 2, 4)).reshape(B * T, nph * npw * c_out)

    # --- fused quality-predictor MLP, then cumsum/fliplr + 'l2' metric scaling ---
    q_pred, psnr = quality_predict(batched, params["qp"], B, T)
    return q_pred, psnr


# ----------------------------------------------------------------------------
# Main
# ----------------------------------------------------------------------------
if __name__ == "__main__":
    # Module hyperparameters (small, consistent with VCTPredictor.__init__)
    c_out, H, W = 16, 4, 4                 # feat_dims
    c_win, p_win = 2, 4
    tf_layers = (1, 1, 1)
    tf_heads, tf_ff = 2, 32
    nph, npw = H // c_win, W // c_win      # get_pad(4,4,2) -> no padding -> 2, 2
    vals_per_token = nph * npw * c_out     # 64

    cfg = dict(c_out=c_out, c_win=c_win, nph=nph, npw=npw,
               tf_heads=tf_heads, tf_ff=tf_ff, tf_layers=tf_layers,
               vals_per_token=vals_per_token)

    B = 2
    n_prev = 2
    key = jax.random.PRNGKey(0)
    k_int, k_prev, k_par = jax.random.split(key, 3)

    # int_tokens : (B*nph*npw, c_win**2, c_out); prev_tokens : (B*n_prev, nph*npw*p_win**2, c_out)
    int_tokens = jax.random.normal(
        k_int, (B * nph * npw, c_win * c_win, c_out), jnp.float32)
    prev_tokens = jax.random.normal(
        k_prev, (B * n_prev, nph * npw * p_win * p_win, c_out), jnp.float32)

    params = init_vct_params(k_par, cfg)

    fwd = jax.jit(functools.partial(vct_predictor_forward, cfg=cfg))
    q_pred, psnr = fwd(int_tokens, prev_tokens, params)
    jax.block_until_ready(q_pred)
    jax.block_until_ready(psnr)
    assert q_pred.shape == (B, c_win * c_win) and psnr.shape == (B, c_win * c_win)
    print("KERNEL_OK")
</pallas_src>

<mosaic_0001>
module attributes {stable_mosaic.version = 11 : i64} {
  func.func @_enc_layer_kernel(%arg0: i32, %arg1: memref<128x16xf32, #tpu.memory_space<vmem>>, %arg2: memref<128x128xf32, #tpu.memory_space<vmem>>, %arg3: memref<16x48xf32, #tpu.memory_space<vmem>>, %arg4: memref<1x48xf32, #tpu.memory_space<vmem>>, %arg5: memref<16x16xf32, #tpu.memory_space<vmem>>, %arg6: memref<1x16xf32, #tpu.memory_space<vmem>>, %arg7: memref<1x16xf32, #tpu.memory_space<vmem>>, %arg8: memref<1x16xf32, #tpu.memory_space<vmem>>, %arg9: memref<16x32xf32, #tpu.memory_space<vmem>>, %arg10: memref<1x32xf32, #tpu.memory_space<vmem>>, %arg11: memref<32x16xf32, #tpu.memory_space<vmem>>, %arg12: memref<1x16xf32, #tpu.memory_space<vmem>>, %arg13: memref<1x16xf32, #tpu.memory_space<vmem>>, %arg14: memref<1x16xf32, #tpu.memory_space<vmem>>, %arg15: memref<128x16xf32, #tpu.memory_space<vmem>>) attributes {dimension_semantics = [#tpu.dimension_semantics<parallel>], iteration_bounds = array<i64: 2>, scalar_prefetch = 0 : i64, scratch_operands = 0 : i64, tpu.core_type = #tpu.core_type<tc>, window_params = [{transform_indices = @transform_0, window_bounds = array<i64: 128, 16>}, {pipeline_mode = #tpu.pipeline_mode<synchronous>, transform_indices = @transform_1, window_bounds = array<i64: 128, 128>}, {pipeline_mode = #tpu.pipeline_mode<synchronous>, transform_indices = @transform_2, window_bounds = array<i64: 16, 48>}, {pipeline_mode = #tpu.pipeline_mode<synchronous>, transform_indices = @transform_3, window_bounds = array<i64: 1, 48>}, {pipeline_mode = #tpu.pipeline_mode<synchronous>, transform_indices = @transform_4, window_bounds = array<i64: 16, 16>}, {pipeline_mode = #tpu.pipeline_mode<synchronous>, transform_indices = @transform_5, window_bounds = array<i64: 1, 16>}, {pipeline_mode = #tpu.pipeline_mode<synchronous>, transform_indices = @transform_6, window_bounds = array<i64: 1, 16>}, {pipeline_mode = #tpu.pipeline_mode<synchronous>, transform_indices = @transform_7, window_bounds = array<i64: 1, 16>}, {pipeline_mode = #tpu.pipeline_mode<synchronous>, transform_indices = @transform_8, window_bounds = array<i64: 16, 32>}, {pipeline_mode = #tpu.pipeline_mode<synchronous>, transform_indices = @transform_9, window_bounds = array<i64: 1, 32>}, {pipeline_mode = #tpu.pipeline_mode<synchronous>, transform_indices = @transform_10, window_bounds = array<i64: 32, 16>}, {pipeline_mode = #tpu.pipeline_mode<synchronous>, transform_indices = @transform_11, window_bounds = array<i64: 1, 16>}, {pipeline_mode = #tpu.pipeline_mode<synchronous>, transform_indices = @transform_12, window_bounds = array<i64: 1, 16>}, {pipeline_mode = #tpu.pipeline_mode<synchronous>, transform_indices = @transform_13, window_bounds = array<i64: 1, 16>}, {transform_indices = @transform_14, window_bounds = array<i64: 128, 16>}]} {
    %c0 = arith.constant 0 : index
    %c0_0 = arith.constant 0 : index
    %0 = vector.load %arg1[%c0, %c0_0] : memref<128x16xf32, #tpu.memory_space<vmem>>, vector<128x16xf32>
    %c0_1 = arith.constant 0 : index
    %c0_2 = arith.constant 0 : index
    %1 = vector.load %arg3[%c0_1, %c0_2] : memref<16x48xf32, #tpu.memory_space<vmem>>, vector<16x48xf32>
    %2 = arith.truncf %0 : vector<128x16xf32> to vector<128x16xbf16>
    %3 = arith.truncf %1 : vector<16x48xf32> to vector<16x48xbf16>
    %cst = arith.constant dense<0.000000e+00> : vector<128x48xf32>
    %4 = tpu.matmul %2, %3, %cst {dimension_numbers = #tpu.dot_dimension_numbers<[1], [0], [0], [1], [0, 0, 1, 1], [], []>} : vector<128x16xbf16>, vector<16x48xbf16>, vector<128x48xf32> -> vector<128x48xf32>
    %c0_3 = arith.constant 0 : index
    %c0_4 = arith.constant 0 : index
    %5 = vector.load %arg4[%c0_3, %c0_4] : memref<1x48xf32, #tpu.memory_space<vmem>>, vector<1x48xf32>
    %6 = vector.broadcast %5 : vector<1x48xf32> to vector<128x48xf32>
    %7 = arith.addf %4, %6 : vector<128x48xf32>
    %8 = vector.extract_strided_slice %7 {offsets = [0, 0], sizes = [128, 16], strides = [1, 1]} : vector<128x48xf32> to vector<128x16xf32>
    %9 = vector.extract_strided_slice %7 {offsets = [0, 16], sizes = [128, 16], strides = [1, 1]} : vector<128x48xf32> to vector<128x16xf32>
    %10 = vector.extract_strided_slice %7 {offsets = [0, 32], sizes = [128, 16], strides = [1, 1]} : vector<128x48xf32> to vector<128x16xf32>
    %c0_5 = arith.constant 0 : index
    %c0_6 = arith.constant 0 : index
    %11 = vector.load %arg2[%c0_5, %c0_6] : memref<128x128xf32, #tpu.memory_space<vmem>>, vector<128x128xf32>
    %c0_7 = arith.constant 0 : index
    %c0_8 = arith.constant 0 : index
    %12 = vector.load %arg5[%c0_7, %c0_8] : memref<16x16xf32, #tpu.memory_space<vmem>>, vector<16x16xf32>
    %13 = vector.extract_strided_slice %8 {offsets = [0, 0], sizes = [128, 8], strides = [1, 1]} : vector<128x16xf32> to vector<128x8xf32>
    %14 = arith.truncf %13 : vector<128x8xf32> to vector<128x8xbf16>
    %15 = vector.extract_strided_slice %9 {offsets = [0, 0], sizes = [128, 8], strides = [1, 1]} : vector<128x16xf32> to vector<128x8xf32>
    %16 = arith.truncf %15 : vector<128x8xf32> to vector<128x8xbf16>
    %cst_9 = arith.constant dense<0.000000e+00> : vector<128x128xf32>
    %17 = tpu.matmul %14, %16, %cst_9 {dimension_numbers = #tpu.dot_dimension_numbers<[1], [1], [0], [0], [0, 0, 1, 0], [], []>} : vector<128x8xbf16>, vector<128x8xbf16>, vector<128x128xf32> -> vector<128x128xf32>
    %cst_10 = arith.constant 0.353553385 : f32
    %18 = vector.broadcast %cst_10 : f32 to vector<128x128xf32>
    %19 = arith.mulf %17, %18 : vector<128x128xf32>
    %20 = arith.addf %19, %11 : vector<128x128xf32>
    %cst_11 = arith.constant dense<0xFF800000> : vector<128xf32>
    %21 = vector.multi_reduction <maximumf>, %20, %cst_11 [1] : vector<128x128xf32> to vector<128xf32>
    %22 = vector.shape_cast %21 : vector<128xf32> to vector<128x1xf32>
    %23 = vector.broadcast %22 : vector<128x1xf32> to vector<128x128xf32>
    %24 = arith.subf %20, %23 : vector<128x128xf32>
    %25 = math.exp %24 : vector<128x128xf32>
    %cst_12 = arith.constant dense<0.000000e+00> : vector<128xf32>
    %26 = vector.multi_reduction <add>, %25, %cst_12 [1] : vector<128x128xf32> to vector<128xf32>
    %27 = vector.shape_cast %26 : vector<128xf32> to vector<128x1xf32>
    %28 = tpu.reciprocal %27 {approx = true} : vector<128x1xf32> -> vector<128x1xf32>
    %29 = vector.broadcast %28 : vector<128x1xf32> to vector<128x128xf32>
    %30 = arith.mulf %25, %29 : vector<128x128xf32>
    %31 = arith.truncf %30 : vector<128x128xf32> to vector<128x128xbf16>
    %32 = vector.extract_strided_slice %10 {offsets = [0, 0], sizes = [128, 8], strides = [1, 1]} : vector<128x16xf32> to vector<128x8xf32>
    %33 = arith.truncf %32 : vector<128x8xf32> to vector<128x8xbf16>
    %cst_13 = arith.constant dense<0.000000e+00> : vector<128x8xf32>
    %34 = tpu.matmul %31, %33, %cst_13 {dimension_numbers = #tpu.dot_dimension_numbers<[1], [0], [0], [1], [0, 0, 1, 1], [], []>} : vector<128x128xbf16>, vector<128x8xbf16>, vector<128x8xf32> -> vector<128x8xf32>
    %35 = arith.truncf %34 : vector<128x8xf32> to vector<128x8xbf16>
    %36 = vector.extract_strided_slice %12 {offsets = [0, 0], sizes = [8, 16], strides = [1, 1]} : vector<16x16xf32> to vector<8x16xf32>
    %37 = arith.truncf %36 : vector<8x16xf32> to vector<8x16xbf16>
    %cst_14 = arith.constant dense<0.000000e+00> : vector<128x16xf32>
    %38 = tpu.matmul %35, %37, %cst_14 {dimension_numbers = #tpu.dot_dimension_numbers<[1], [0], [0], [1], [0, 0, 1, 1], [], []>} : vector<128x8xbf16>, vector<8x16xbf16>, vector<128x16xf32> -> vector<128x16xf32>
    %39 = vector.extract_strided_slice %8 {offsets = [0, 8], sizes = [128, 8], strides = [1, 1]} : vector<128x16xf32> to vector<128x8xf32>
    %40 = arith.truncf %39 : vector<128x8xf32> to vector<128x8xbf16>
    %41 = vector.extract_strided_slice %9 {offsets = [0, 8], sizes = [128, 8], strides = [1, 1]} : vector<128x16xf32> to vector<128x8xf32>
    %42 = arith.truncf %41 : vector<128x8xf32> to vector<128x8xbf16>
    %cst_15 = arith.constant dense<0.000000e+00> : vector<128x128xf32>
    %43 = tpu.matmul %40, %42, %cst_15 {dimension_numbers = #tpu.dot_dimension_numbers<[1], [1], [0], [0], [0, 0, 1, 0], [], []>} : vector<128x8xbf16>, vector<128x8xbf16>, vector<128x128xf32> -> vector<128x128xf32>
    %cst_16 = arith.constant 0.353553385 : f32
    %44 = vector.broadcast %cst_16 : f32 to vector<128x128xf32>
    %45 = arith.mulf %43, %44 : vector<128x128xf32>
    %46 = arith.addf %45, %11 : vector<128x128xf32>
    %cst_17 = arith.constant dense<0xFF800000> : vector<128xf32>
    %47 = vector.multi_reduction <maximumf>, %46, %cst_17 [1] : vector<128x128xf32> to vector<128xf32>
    %48 = vector.shape_cast %47 : vector<128xf32> to vector<128x1xf32>
    %49 = vector.broadcast %48 : vector<128x1xf32> to vector<128x128xf32>
    %50 = arith.subf %46, %49 : vector<128x128xf32>
    %51 = math.exp %50 : vector<128x128xf32>
    %cst_18 = arith.constant dense<0.000000e+00> : vector<128xf32>
    %52 = vector.multi_reduction <add>, %51, %cst_18 [1] : vector<128x128xf32> to vector<128xf32>
    %53 = vector.shape_cast %52 : vector<128xf32> to vector<128x1xf32>
    %54 = tpu.reciprocal %53 {approx = true} : vector<128x1xf32> -> vector<128x1xf32>
    %55 = vector.broadcast %54 : vector<128x1xf32> to vector<128x128xf32>
    %56 = arith.mulf %51, %55 : vector<128x128xf32>
    %57 = arith.truncf %56 : vector<128x128xf32> to vector<128x128xbf16>
    %58 = vector.extract_strided_slice %10 {offsets = [0, 8], sizes = [128, 8], strides = [1, 1]} : vector<128x16xf32> to vector<128x8xf32>
    %59 = arith.truncf %58 : vector<128x8xf32> to vector<128x8xbf16>
    %cst_19 = arith.constant dense<0.000000e+00> : vector<128x8xf32>
    %60 = tpu.matmul %57, %59, %cst_19 {dimension_numbers = #tpu.dot_dimension_numbers<[1], [0], [0], [1], [0, 0, 1, 1], [], []>} : vector<128x128xbf16>, vector<128x8xbf16>, vector<128x8xf32> -> vector<128x8xf32>
    %61 = arith.truncf %60 : vector<128x8xf32> to vector<128x8xbf16>
    %62 = vector.extract_strided_slice %12 {offsets = [8, 0], sizes = [8, 16], strides = [1, 1]} : vector<16x16xf32> to vector<8x16xf32>
    %63 = arith.truncf %62 : vector<8x16xf32> to vector<8x16xbf16>
    %cst_20 = arith.constant dense<0.000000e+00> : vector<128x16xf32>
    %64 = tpu.matmul %61, %63, %cst_20 {dimension_numbers = #tpu.dot_dimension_numbers<[1], [0], [0], [1], [0, 0, 1, 1], [], []>} : vector<128x8xbf16>, vector<8x16xbf16>, vector<128x16xf32> -> vector<128x16xf32>
    %65 = arith.addf %38, %64 : vector<128x16xf32>
    %c0_21 = arith.constant 0 : index
    %c0_22 = arith.constant 0 : index
    %66 = vector.load %arg6[%c0_21, %c0_22] : memref<1x16xf32, #tpu.memory_space<vmem>>, vector<1x16xf32>
    %67 = vector.broadcast %66 : vector<1x16xf32> to vector<128x16xf32>
    %68 = arith.addf %65, %67 : vector<128x16xf32>
    %69 = arith.addf %0, %68 : vector<128x16xf32>
    %c0_23 = arith.constant 0 : index
    %c0_24 = arith.constant 0 : index
    %70 = vector.load %arg7[%c0_23, %c0_24] : memref<1x16xf32, #tpu.memory_space<vmem>>, vector<1x16xf32>
    %c0_25 = arith.constant 0 : index
    %c0_26 = arith.constant 0 : index
    %71 = vector.load %arg8[%c0_25, %c0_26] : memref<1x16xf32, #tpu.memory_space<vmem>>, vector<1x16xf32>
    %cst_27 = arith.constant dense<0.000000e+00> : vector<128xf32>
    %72 = vector.multi_reduction <add>, %69, %cst_27 [1] : vector<128x16xf32> to vector<128xf32>
    %73 = vector.shape_cast %72 : vector<128xf32> to vector<128x1xf32>
    %cst_28 = arith.constant 1.600000e+01 : f32
    %74 = vector.broadcast %cst_28 : f32 to vector<128x1xf32>
    %75 = arith.divf %73, %74 : vector<128x1xf32>
    %76 = vector.broadcast %75 : vector<128x1xf32> to vector<128x16xf32>
    %77 = arith.subf %69, %76 : vector<128x16xf32>
    %78 = arith.mulf %77, %77 : vector<128x16xf32>
    %cst_29 = arith.constant dense<0.000000e+00> : vector<128xf32>
    %79 = vector.multi_reduction <add>, %78, %cst_29 [1] : vector<128x16xf32> to vector<128xf32>
    %80 = vector.shape_cast %79 : vector<128xf32> to vector<128x1xf32>
    %cst_30 = arith.constant 1.600000e+01 : f32
    %81 = vector.broadcast %cst_30 : f32 to vector<128x1xf32>
    %82 = arith.divf %80, %81 : vector<128x1xf32>
    %83 = vector.broadcast %75 : vector<128x1xf32> to vector<128x16xf32>
    %84 = arith.subf %69, %83 : vector<128x16xf32>
    %cst_31 = arith.constant 9.99999974E-6 : f32
    %85 = vector.broadcast %cst_31 : f32 to vector<128x1xf32>
    %86 = arith.addf %82, %85 : vector<128x1xf32>
    %87 = math.rsqrt %86 : vector<128x1xf32>
    %88 = vector.broadcast %87 : vector<128x1xf32> to vector<128x16xf32>
    %89 = arith.mulf %84, %88 : vector<128x16xf32>
    %90 = vector.broadcast %70 : vector<1x16xf32> to vector<128x16xf32>
    %91 = arith.mulf %89, %90 : vector<128x16xf32>
    %92 = vector.broadcast %71 : vector<1x16xf32> to vector<128x16xf32>
    %93 = arith.addf %91, %92 : vector<128x16xf32>
    %c0_32 = arith.constant 0 : index
    %c0_33 = arith.constant 0 : index
    %94 = vector.load %arg9[%c0_32, %c0_33] : memref<16x32xf32, #tpu.memory_space<vmem>>, vector<16x32xf32>
    %95 = arith.truncf %93 : vector<128x16xf32> to vector<128x16xbf16>
    %96 = arith.truncf %94 : vector<16x32xf32> to vector<16x32xbf16>
    %cst_34 = arith.constant dense<0.000000e+00> : vector<128x32xf32>
    %97 = tpu.matmul %95, %96, %cst_34 {dimension_numbers = #tpu.dot_dimension_numbers<[1], [0], [0], [1], [0, 0, 1, 1], [], []>} : vector<128x16xbf16>, vector<16x32xbf16>, vector<128x32xf32> -> vector<128x32xf32>
    %c0_35 = arith.constant 0 : index
    %c0_36 = arith.constant 0 : index
    %98 = vector.load %arg10[%c0_35, %c0_36] : memref<1x32xf32, #tpu.memory_space<vmem>>, vector<1x32xf32>
    %99 = vector.broadcast %98 : vector<1x32xf32> to vector<128x32xf32>
    %100 = arith.addf %97, %99 : vector<128x32xf32>
    %cst_37 = arith.constant 0.000000e+00 : f32
    %101 = vector.broadcast %cst_37 : f32 to vector<128x32xf32>
    %102 = arith.maximumf %100, %101 : vector<128x32xf32>
    %c0_38 = arith.constant 0 : index
    %c0_39 = arith.constant 0 : index
    %103 = vector.load %arg11[%c0_38, %c0_39] : memref<32x16xf32, #tpu.memory_space<vmem>>, vector<32x16xf32>
    %104 = arith.truncf %102 : vector<128x32xf32> to vector<128x32xbf16>
    %105 = arith.truncf %103 : vector<32x16xf32> to vector<32x16xbf16>
    %cst_40 = arith.constant dense<0.000000e+00> : vector<128x16xf32>
    %106 = tpu.matmul %104, %105, %cst_40 {dimension_numbers = #tpu.dot_dimension_numbers<[1], [0], [0], [1], [0, 0, 1, 1], [], []>} : vector<128x32xbf16>, vector<32x16xbf16>, vector<128x16xf32> -> vector<128x16xf32>
    %c0_41 = arith.constant 0 : index
    %c0_42 = arith.constant 0 : index
    %107 = vector.load %arg12[%c0_41, %c0_42] : memref<1x16xf32, #tpu.memory_space<vmem>>, vector<1x16xf32>
    %108 = vector.broadcast %107 : vector<1x16xf32> to vector<128x16xf32>
    %109 = arith.addf %106, %108 : vector<128x16xf32>
    %110 = arith.addf %93, %109 : vector<128x16xf32>
    %c0_43 = arith.constant 0 : index
    %c0_44 = arith.constant 0 : index
    %111 = vector.load %arg13[%c0_43, %c0_44] : memref<1x16xf32, #tpu.memory_space<vmem>>, vector<1x16xf32>
    %c0_45 = arith.constant 0 : index
    %c0_46 = arith.constant 0 : index
    %112 = vector.load %arg14[%c0_45, %c0_46] : memref<1x16xf32, #tpu.memory_space<vmem>>, vector<1x16xf32>
    %cst_47 = arith.constant dense<0.000000e+00> : vector<128xf32>
    %113 = vector.multi_reduction <add>, %110, %cst_47 [1] : vector<128x16xf32> to vector<128xf32>
    %114 = vector.shape_cast %113 : vector<128xf32> to vector<128x1xf32>
    %cst_48 = arith.constant 1.600000e+01 : f32
    %115 = vector.broadcast %cst_48 : f32 to vector<128x1xf32>
    %116 = arith.divf %114, %115 : vector<128x1xf32>
    %117 = vector.broadcast %116 : vector<128x1xf32> to vector<128x16xf32>
    %118 = arith.subf %110, %117 : vector<128x16xf32>
    %119 = arith.mulf %118, %118 : vector<128x16xf32>
    %cst_49 = arith.constant dense<0.000000e+00> : vector<128xf32>
    %120 = vector.multi_reduction <add>, %119, %cst_49 [1] : vector<128x16xf32> to vector<128xf32>
    %121 = vector.shape_cast %120 : vector<128xf32> to vector<128x1xf32>
    %cst_50 = arith.constant 1.600000e+01 : f32
    %122 = vector.broadcast %cst_50 : f32 to vector<128x1xf32>
    %123 = arith.divf %121, %122 : vector<128x1xf32>
    %124 = vector.broadcast %116 : vector<128x1xf32> to vector<128x16xf32>
    %125 = arith.subf %110, %124 : vector<128x16xf32>
    %cst_51 = arith.constant 9.99999974E-6 : f32
    %126 = vector.broadcast %cst_51 : f32 to vector<128x1xf32>
    %127 = arith.addf %123, %126 : vector<128x1xf32>
    %128 = math.rsqrt %127 : vector<128x1xf32>
    %129 = vector.broadcast %128 : vector<128x1xf32> to vector<128x16xf32>
    %130 = arith.mulf %125, %129 : vector<128x16xf32>
    %131 = vector.broadcast %111 : vector<1x16xf32> to vector<128x16xf32>
    %132 = arith.mulf %130, %131 : vector<128x16xf32>
    %133 = vector.broadcast %112 : vector<1x16xf32> to vector<128x16xf32>
    %134 = arith.addf %132, %133 : vector<128x16xf32>
    %c0_52 = arith.constant 0 : index
    %c0_53 = arith.constant 0 : index
    %135 = vector.load %arg15[%c0_52, %c0_53] : memref<128x16xf32, #tpu.memory_space<vmem>>, vector<128x16xf32>
    tpu.vector_store %arg15[%c0_52, %c0_53], %134 {strides = array<i32>} : memref<128x16xf32, #tpu.memory_space<vmem>>, vector<128x16xf32>,
    return
  }
  func.func @transform_0(%arg0: i32) -> (i32, i32) {
    %c0_i32 = arith.constant 0 : i32
    %c0_i32_0 = arith.constant 0 : i32
    return %arg0, %c0_i32 : i32, i32
  }
  func.func @transform_1(%arg0: i32) -> (i32, i32) {
    %c0_i32 = arith.constant 0 : i32
    %c0_i32_0 = arith.constant 0 : i32
    %c0_i32_1 = arith.constant 0 : i32
    return %c0_i32, %c0_i32_0 : i32, i32
  }
  func.func @transform_2(%arg0: i32) -> (i32, i32) {
    %c0_i32 = arith.constant 0 : i32
    %c0_i32_0 = arith.constant 0 : i32
    %c0_i32_1 = arith.constant 0 : i32
    return %c0_i32, %c0_i32_0 : i32, i32
  }
  func.func @transform_3(%arg0: i32) -> (i32, i32) {
    %c0_i32 = arith.constant 0 : i32
    %c0_i32_0 = arith.constant 0 : i32
    %c0_i32_1 = arith.constant 0 : i32
    return %c0_i32, %c0_i32_0 : i32, i32
  }
  func.func @transform_4(%arg0: i32) -> (i32, i32) {
    %c0_i32 = arith.constant 0 : i32
    %c0_i32_0 = arith.constant 0 : i32
    %c0_i32_1 = arith.constant 0 : i32
    return %c0_i32, %c0_i32_0 : i32, i32
  }
  func.func @transform_5(%arg0: i32) -> (i32, i32) {
    %c0_i32 = arith.constant 0 : i32
    %c0_i32_0 = arith.constant 0 : i32
    %c0_i32_1 = arith.constant 0 : i32
    return %c0_i32, %c0_i32_0 : i32, i32
  }
  func.func @transform_6(%arg0: i32) -> (i32, i32) {
    %c0_i32 = arith.constant 0 : i32
    %c0_i32_0 = arith.constant 0 : i32
    %c0_i32_1 = arith.constant 0 : i32
    return %c0_i32, %c0_i32_0 : i32, i32
  }
  func.func @transform_7(%arg0: i32) -> (i32, i32) {
    %c0_i32 = arith.constant 0 : i32
    %c0_i32_0 = arith.constant 0 : i32
    %c0_i32_1 = arith.constant 0 : i32
    return %c0_i32, %c0_i32_0 : i32, i32
  }
  func.func @transform_8(%arg0: i32) -> (i32, i32) {
    %c0_i32 = arith.constant 0 : i32
    %c0_i32_0 = arith.constant 0 : i32
    %c0_i32_1 = arith.constant 0 : i32
    return %c0_i32, %c0_i32_0 : i32, i32
  }
  func.func @transform_9(%arg0: i32) -> (i32, i32) {
    %c0_i32 = arith.constant 0 : i32
    %c0_i32_0 = arith.constant 0 : i32
    %c0_i32_1 = arith.constant 0 : i32
    return %c0_i32, %c0_i32_0 : i32, i32
  }
  func.func @transform_10(%arg0: i32) -> (i32, i32) {
    %c0_i32 = arith.constant 0 : i32
    %c0_i32_0 = arith.constant 0 : i32
    %c0_i32_1 = arith.constant 0 : i32
    return %c0_i32, %c0_i32_0 : i32, i32
  }
  func.func @transform_11(%arg0: i32) -> (i32, i32) {
    %c0_i32 = arith.constant 0 : i32
    %c0_i32_0 = arith.constant 0 : i32
    %c0_i32_1 = arith.constant 0 : i32
    return %c0_i32, %c0_i32_0 : i32, i32
  }
  func.func @transform_12(%arg0: i32) -> (i32, i32) {
    %c0_i32 = arith.constant 0 : i32
    %c0_i32_0 = arith.constant 0 : i32
    %c0_i32_1 = arith.constant 0 : i32
    return %c0_i32, %c0_i32_0 : i32, i32
  }
  func.func @transform_13(%arg0: i32) -> (i32, i32) {
    %c0_i32 = arith.constant 0 : i32
    %c0_i32_0 = arith.constant 0 : i32
    %c0_i32_1 = arith.constant 0 : i32
    return %c0_i32, %c0_i32_0 : i32, i32
  }
  func.func @transform_14(%arg0: i32) -> (i32, i32) {
    %c0_i32 = arith.constant 0 : i32
    %c0_i32_0 = arith.constant 0 : i32
    return %arg0, %c0_i32 : i32, i32
  }
}

module attributes {stable_mosaic.version = 11 : i64} {
  func.func @_dec_layer_kernel(%arg0: i32, %arg1: memref<16x16xf32, #tpu.memory_space<vmem>>, %arg2: memref<128x16xf32, #tpu.memory_space<vmem>>, %arg3: memref<16x16xf32, #tpu.memory_space<vmem>>, %arg4: memref<16x128xf32, #tpu.memory_space<vmem>>, %arg5: memref<16x48xf32, #tpu.memory_space<vmem>>, %arg6: memref<1x48xf32, #tpu.memory_space<vmem>>, %arg7: memref<16x16xf32, #tpu.memory_space<vmem>>, %arg8: memref<1x16xf32, #tpu.memory_space<vmem>>, %arg9: memref<1x16xf32, #tpu.memory_space<vmem>>, %arg10: memref<1x16xf32, #tpu.memory_space<vmem>>, %arg11: memref<16x16xf32, #tpu.memory_space<vmem>>, %arg12: memref<1x16xf32, #tpu.memory_space<vmem>>, %arg13: memref<16x32xf32, #tpu.memory_space<vmem>>, %arg14: memref<1x32xf32, #tpu.memory_space<vmem>>, %arg15: memref<16x16xf32, #tpu.memory_space<vmem>>, %arg16: memref<1x16xf32, #tpu.memory_space<vmem>>, %arg17: memref<1x16xf32, #tpu.memory_space<vmem>>, %arg18: memref<1x16xf32, #tpu.memory_space<vmem>>, %arg19: memref<16x32xf32, #tpu.memory_space<vmem>>, %arg20: memref<1x32xf32, #tpu.memory_space<vmem>>, %arg21: memref<32x16xf32, #tpu.memory_space<vmem>>, %arg22: memref<1x16xf32, #tpu.memory_space<vmem>>, %arg23: memref<1x16xf32, #tpu.memory_space<vmem>>, %arg24: memref<1x16xf32, #tpu.memory_space<vmem>>, %arg25: memref<16x16xf32, #tpu.memory_space<vmem>>) attributes {dimension_semantics = [#tpu.dimension_semantics<parallel>], iteration_bounds = array<i64: 2>, scalar_prefetch = 0 : i64, scratch_operands = 0 : i64, tpu.core_type = #tpu.core_type<tc>, window_params = [{transform_indices = @transform_0, window_bounds = array<i64: 16, 16>}, {transform_indices = @transform_1, window_bounds = array<i64: 128, 16>}, {pipeline_mode = #tpu.pipeline_mode<synchronous>, transform_indices = @transform_2, window_bounds = array<i64: 16, 16>}, {pipeline_mode = #tpu.pipeline_mode<synchronous>, transform_indices = @transform_3, window_bounds = array<i64: 16, 128>}, {pipeline_mode = #tpu.pipeline_mode<synchronous>, transform_indices = @transform_4, window_bounds = array<i64: 16, 48>}, {pipeline_mode = #tpu.pipeline_mode<synchronous>, transform_indices = @transform_5, window_bounds = array<i64: 1, 48>}, {pipeline_mode = #tpu.pipeline_mode<synchronous>, transform_indices = @transform_6, window_bounds = array<i64: 16, 16>}, {pipeline_mode = #tpu.pipeline_mode<synchronous>, transform_indices = @transform_7, window_bounds = array<i64: 1, 16>}, {pipeline_mode = #tpu.pipeline_mode<synchronous>, transform_indices = @transform_8, window_bounds = array<i64: 1, 16>}, {pipeline_mode = #tpu.pipeline_mode<synchronous>, transform_indices = @transform_9, window_bounds = array<i64: 1, 16>}, {pipeline_mode = #tpu.pipeline_mode<synchronous>, transform_indices = @transform_10, window_bounds = array<i64: 16, 16>}, {pipeline_mode = #tpu.pipeline_mode<synchronous>, transform_indices = @transform_11, window_bounds = array<i64: 1, 16>}, {pipeline_mode = #tpu.pipeline_mode<synchronous>, transform_indices = @transform_12, window_bounds = array<i64: 16, 32>}, {pipeline_mode = #tpu.pipeline_mode<synchronous>, transform_indices = @transform_13, window_bounds = array<i64: 1, 32>}, {pipeline_mode = #tpu.pipeline_mode<synchronous>, transform_indices = @transform_14, window_bounds = array<i64: 16, 16>}, {pipeline_mode = #tpu.pipeline_mode<synchronous>, transform_indices = @transform_15, window_bounds = array<i64: 1, 16>}, {pipeline_mode = #tpu.pipeline_mode<synchronous>, transform_indices = @transform_16, window_bounds = array<i64: 1, 16>}, {pipeline_mode = #tpu.pipeline_mode<synchronous>, transform_indices = @transform_17, window_bounds = array<i64: 1, 16>}, {pipeline_mode = #tpu.pipeline_mode<synchronous>, transform_indices = @transform_18, window_bounds = array<i64: 16, 32>}, {pipeline_mode = #tpu.pipeline_mode<synchronous>, transform_indices = @transform_19, window_bounds = array<i64: 1, 32>}, {pipeline_mode = #tpu.pipeline_mode<synchronous>, transform_indices = @transform_20, window_bounds = array<i64: 32, 16>}, {pipeline_mode = #tpu.pipeline_mode<synchronous>, transform_indices = @transform_21, window_bounds = array<i64: 1, 16>}, {pipeline_mode = #tpu.pipeline_mode<synchronous>, transform_indices = @transform_22, window_bounds = array<i64: 1, 16>}, {pipeline_mode = #tpu.pipeline_mode<synchronous>, transform_indices = @transform_23, window_bounds = array<i64: 1, 16>}, {transform_indices = @transform_24, window_bounds = array<i64: 16, 16>}]} {
    %c0 = arith.constant 0 : index
    %c0_0 = arith.constant 0 : index
    %0 = vector.load %arg1[%c0, %c0_0] : memref<16x16xf32, #tpu.memory_space<vmem>>, vector<16x16xf32>
    %c0_1 = arith.constant 0 : index
    %c0_2 = arith.constant 0 : index
    %1 = vector.load %arg2[%c0_1, %c0_2] : memref<128x16xf32, #tpu.memory_space<vmem>>, vector<128x16xf32>
    %c0_3 = arith.constant 0 : index
    %c0_4 = arith.constant 0 : index
    %2 = vector.load %arg5[%c0_3, %c0_4] : memref<16x48xf32, #tpu.memory_space<vmem>>, vector<16x48xf32>
    %3 = arith.truncf %0 : vector<16x16xf32> to vector<16x16xbf16>
    %4 = arith.truncf %2 : vector<16x48xf32> to vector<16x48xbf16>
    %cst = arith.constant dense<0.000000e+00> : vector<16x48xf32>
    %5 = tpu.matmul %3, %4, %cst {dimension_numbers = #tpu.dot_dimension_numbers<[1], [0], [0], [1], [0, 0, 1, 1], [], []>} : vector<16x16xbf16>, vector<16x48xbf16>, vector<16x48xf32> -> vector<16x48xf32>
    %c0_5 = arith.constant 0 : index
    %c0_6 = arith.constant 0 : index
    %6 = vector.load %arg6[%c0_5, %c0_6] : memref<1x48xf32, #tpu.memory_space<vmem>>, vector<1x48xf32>
    %7 = vector.broadcast %6 : vector<1x48xf32> to vector<16x48xf32>
    %8 = arith.addf %5, %7 : vector<16x48xf32>
    %9 = vector.extract_strided_slice %8 {offsets = [0, 0], sizes = [16, 16], strides = [1, 1]} : vector<16x48xf32> to vector<16x16xf32>
    %10 = vector.extract_strided_slice %8 {offsets = [0, 16], sizes = [16, 16], strides = [1, 1]} : vector<16x48xf32> to vector<16x16xf32>
    %11 = vector.extract_strided_slice %8 {offsets = [0, 32], sizes = [16, 16], strides = [1, 1]} : vector<16x48xf32> to vector<16x16xf32>
    %c0_7 = arith.constant 0 : index
    %c0_8 = arith.constant 0 : index
    %12 = vector.load %arg3[%c0_7, %c0_8] : memref<16x16xf32, #tpu.memory_space<vmem>>, vector<16x16xf32>
    %c0_9 = arith.constant 0 : index
    %c0_10 = arith.constant 0 : index
    %13 = vector.load %arg7[%c0_9, %c0_10] : memref<16x16xf32, #tpu.memory_space<vmem>>, vector<16x16xf32>
    %14 = vector.extract_strided_slice %9 {offsets = [0, 0], sizes = [16, 8], strides = [1, 1]} : vector<16x16xf32> to vector<16x8xf32>
    %15 = arith.truncf %14 : vector<16x8xf32> to vector<16x8xbf16>
    %16 = vector.extract_strided_slice %10 {offsets = [0, 0], sizes = [16, 8], strides = [1, 1]} : vector<16x16xf32> to vector<16x8xf32>
    %17 = arith.truncf %16 : vector<16x8xf32> to vector<16x8xbf16>
    %cst_11 = arith.constant dense<0.000000e+00> : vector<16x16xf32>
    %18 = tpu.matmul %15, %17, %cst_11 {dimension_numbers = #tpu.dot_dimension_numbers<[1], [1], [0], [0], [0, 0, 1, 0], [], []>} : vector<16x8xbf16>, vector<16x8xbf16>, vector<16x16xf32> -> vector<16x16xf32>
    %cst_12 = arith.constant 0.353553385 : f32
    %19 = vector.broadcast %cst_12 : f32 to vector<16x16xf32>
    %20 = arith.mulf %18, %19 : vector<16x16xf32>
    %21 = arith.addf %20, %12 : vector<16x16xf32>
    %cst_13 = arith.constant dense<0xFF800000> : vector<16xf32>
    %22 = vector.multi_reduction <maximumf>, %21, %cst_13 [1] : vector<16x16xf32> to vector<16xf32>
    %23 = vector.shape_cast %22 : vector<16xf32> to vector<16x1xf32>
    %24 = vector.broadcast %23 : vector<16x1xf32> to vector<16x16xf32>
    %25 = arith.subf %21, %24 : vector<16x16xf32>
    %26 = math.exp %25 : vector<16x16xf32>
    %cst_14 = arith.constant dense<0.000000e+00> : vector<16xf32>
    %27 = vector.multi_reduction <add>, %26, %cst_14 [1] : vector<16x16xf32> to vector<16xf32>
    %28 = vector.shape_cast %27 : vector<16xf32> to vector<16x1xf32>
    %29 = tpu.reciprocal %28 {approx = true} : vector<16x1xf32> -> vector<16x1xf32>
    %30 = vector.broadcast %29 : vector<16x1xf32> to vector<16x16xf32>
    %31 = arith.mulf %26, %30 : vector<16x16xf32>
    %32 = arith.truncf %31 : vector<16x16xf32> to vector<16x16xbf16>
    %33 = vector.extract_strided_slice %11 {offsets = [0, 0], sizes = [16, 8], strides = [1, 1]} : vector<16x16xf32> to vector<16x8xf32>
    %34 = arith.truncf %33 : vector<16x8xf32> to vector<16x8xbf16>
    %cst_15 = arith.constant dense<0.000000e+00> : vector<16x8xf32>
    %35 = tpu.matmul %32, %34, %cst_15 {dimension_numbers = #tpu.dot_dimension_numbers<[1], [0], [0], [1], [0, 0, 1, 1], [], []>} : vector<16x16xbf16>, vector<16x8xbf16>, vector<16x8xf32> -> vector<16x8xf32>
    %36 = arith.truncf %35 : vector<16x8xf32> to vector<16x8xbf16>
    %37 = vector.extract_strided_slice %13 {offsets = [0, 0], sizes = [8, 16], strides = [1, 1]} : vector<16x16xf32> to vector<8x16xf32>
    %38 = arith.truncf %37 : vector<8x16xf32> to vector<8x16xbf16>
    %cst_16 = arith.constant dense<0.000000e+00> : vector<16x16xf32>
    %39 = tpu.matmul %36, %38, %cst_16 {dimension_numbers = #tpu.dot_dimension_numbers<[1], [0], [0], [1], [0, 0, 1, 1], [], []>} : vector<16x8xbf16>, vector<8x16xbf16>, vector<16x16xf32> -> vector<16x16xf32>
    %40 = vector.extract_strided_slice %9 {offsets = [0, 8], sizes = [16, 8], strides = [1, 1]} : vector<16x16xf32> to vector<16x8xf32>
    %41 = arith.truncf %40 : vector<16x8xf32> to vector<16x8xbf16>
    %42 = vector.extract_strided_slice %10 {offsets = [0, 8], sizes = [16, 8], strides = [1, 1]} : vector<16x16xf32> to vector<16x8xf32>
    %43 = arith.truncf %42 : vector<16x8xf32> to vector<16x8xbf16>
    %cst_17 = arith.constant dense<0.000000e+00> : vector<16x16xf32>
    %44 = tpu.matmul %41, %43, %cst_17 {dimension_numbers = #tpu.dot_dimension_numbers<[1], [1], [0], [0], [0, 0, 1, 0], [], []>} : vector<16x8xbf16>, vector<16x8xbf16>, vector<16x16xf32> -> vector<16x16xf32>
    %cst_18 = arith.constant 0.353553385 : f32
    %45 = vector.broadcast %cst_18 : f32 to vector<16x16xf32>
    %46 = arith.mulf %44, %45 : vector<16x16xf32>
    %47 = arith.addf %46, %12 : vector<16x16xf32>
    %cst_19 = arith.constant dense<0xFF800000> : vector<16xf32>
    %48 = vector.multi_reduction <maximumf>, %47, %cst_19 [1] : vector<16x16xf32> to vector<16xf32>
    %49 = vector.shape_cast %48 : vector<16xf32> to vector<16x1xf32>
    %50 = vector.broadcast %49 : vector<16x1xf32> to vector<16x16xf32>
    %51 = arith.subf %47, %50 : vector<16x16xf32>
    %52 = math.exp %51 : vector<16x16xf32>
    %cst_20 = arith.constant dense<0.000000e+00> : vector<16xf32>
    %53 = vector.multi_reduction <add>, %52, %cst_20 [1] : vector<16x16xf32> to vector<16xf32>
    %54 = vector.shape_cast %53 : vector<16xf32> to vector<16x1xf32>
    %55 = tpu.reciprocal %54 {approx = true} : vector<16x1xf32> -> vector<16x1xf32>
    %56 = vector.broadcast %55 : vector<16x1xf32> to vector<16x16xf32>
    %57 = arith.mulf %52, %56 : vector<16x16xf32>
    %58 = arith.truncf %57 : vector<16x16xf32> to vector<16x16xbf16>
    %59 = vector.extract_strided_slice %11 {offsets = [0, 8], sizes = [16, 8], strides = [1, 1]} : vector<16x16xf32> to vector<16x8xf32>
    %60 = arith.truncf %59 : vector<16x8xf32> to vector<16x8xbf16>
    %cst_21 = arith.constant dense<0.000000e+00> : vector<16x8xf32>
    %61 = tpu.matmul %58, %60, %cst_21 {dimension_numbers = #tpu.dot_dimension_numbers<[1], [0], [0], [1], [0, 0, 1, 1], [], []>} : vector<16x16xbf16>, vector<16x8xbf16>, vector<16x8xf32> -> vector<16x8xf32>
    %62 = arith.truncf %61 : vector<16x8xf32> to vector<16x8xbf16>
    %63 = vector.extract_strided_slice %13 {offsets = [8, 0], sizes = [8, 16], strides = [1, 1]} : vector<16x16xf32> to vector<8x16xf32>
    %64 = arith.truncf %63 : vector<8x16xf32> to vector<8x16xbf16>
    %cst_22 = arith.constant dense<0.000000e+00> : vector<16x16xf32>
    %65 = tpu.matmul %62, %64, %cst_22 {dimension_numbers = #tpu.dot_dimension_numbers<[1], [0], [0], [1], [0, 0, 1, 1], [], []>} : vector<16x8xbf16>, vector<8x16xbf16>, vector<16x16xf32> -> vector<16x16xf32>
    %66 = arith.addf %39, %65 : vector<16x16xf32>
    %c0_23 = arith.constant 0 : index
    %c0_24 = arith.constant 0 : index
    %67 = vector.load %arg8[%c0_23, %c0_24] : memref<1x16xf32, #tpu.memory_space<vmem>>, vector<1x16xf32>
    %68 = vector.broadcast %67 : vector<1x16xf32> to vector<16x16xf32>
    %69 = arith.addf %66, %68 : vector<16x16xf32>
    %70 = arith.addf %0, %69 : vector<16x16xf32>
    %c0_25 = arith.constant 0 : index
    %c0_26 = arith.constant 0 : index
    %71 = vector.load %arg9[%c0_25, %c0_26] : memref<1x16xf32, #tpu.memory_space<vmem>>, vector<1x16xf32>
    %c0_27 = arith.constant 0 : index
    %c0_28 = arith.constant 0 : index
    %72 = vector.load %arg10[%c0_27, %c0_28] : memref<1x16xf32, #tpu.memory_space<vmem>>, vector<1x16xf32>
    %cst_29 = arith.constant dense<0.000000e+00> : vector<16xf32>
    %73 = vector.multi_reduction <add>, %70, %cst_29 [1] : vector<16x16xf32> to vector<16xf32>
    %74 = vector.shape_cast %73 : vector<16xf32> to vector<16x1xf32>
    %cst_30 = arith.constant 1.600000e+01 : f32
    %75 = vector.broadcast %cst_30 : f32 to vector<16x1xf32>
    %76 = arith.divf %74, %75 : vector<16x1xf32>
    %77 = vector.broadcast %76 : vector<16x1xf32> to vector<16x16xf32>
    %78 = arith.subf %70, %77 : vector<16x16xf32>
    %79 = arith.mulf %78, %78 : vector<16x16xf32>
    %cst_31 = arith.constant dense<0.000000e+00> : vector<16xf32>
    %80 = vector.multi_reduction <add>, %79, %cst_31 [1] : vector<16x16xf32> to vector<16xf32>
    %81 = vector.shape_cast %80 : vector<16xf32> to vector<16x1xf32>
    %cst_32 = arith.constant 1.600000e+01 : f32
    %82 = vector.broadcast %cst_32 : f32 to vector<16x1xf32>
    %83 = arith.divf %81, %82 : vector<16x1xf32>
    %84 = vector.broadcast %76 : vector<16x1xf32> to vector<16x16xf32>
    %85 = arith.subf %70, %84 : vector<16x16xf32>
    %cst_33 = arith.constant 9.99999974E-6 : f32
    %86 = vector.broadcast %cst_33 : f32 to vector<16x1xf32>
    %87 = arith.addf %83, %86 : vector<16x1xf32>
    %88 = math.rsqrt %87 : vector<16x1xf32>
    %89 = vector.broadcast %88 : vector<16x1xf32> to vector<16x16xf32>
    %90 = arith.mulf %85, %89 : vector<16x16xf32>
    %91 = vector.broadcast %71 : vector<1x16xf32> to vector<16x16xf32>
    %92 = arith.mulf %90, %91 : vector<16x16xf32>
    %93 = vector.broadcast %72 : vector<1x16xf32> to vector<16x16xf32>
    %94 = arith.addf %92, %93 : vector<16x16xf32>
    %c0_34 = arith.constant 0 : index
    %c0_35 = arith.constant 0 : index
    %95 = vector.load %arg11[%c0_34, %c0_35] : memref<16x16xf32, #tpu.memory_space<vmem>>, vector<16x16xf32>
    %96 = arith.truncf %94 : vector<16x16xf32> to vector<16x16xbf16>
    %97 = arith.truncf %95 : vector<16x16xf32> to vector<16x16xbf16>
    %cst_36 = arith.constant dense<0.000000e+00> : vector<16x16xf32>
    %98 = tpu.matmul %96, %97, %cst_36 {dimension_numbers = #tpu.dot_dimension_numbers<[1], [0], [0], [1], [0, 0, 1, 1], [], []>} : vector<16x16xbf16>, vector<16x16xbf16>, vector<16x16xf32> -> vector<16x16xf32>
    %c0_37 = arith.constant 0 : index
    %c0_38 = arith.constant 0 : index
    %99 = vector.load %arg12[%c0_37, %c0_38] : memref<1x16xf32, #tpu.memory_space<vmem>>, vector<1x16xf32>
    %100 = vector.broadcast %99 : vector<1x16xf32> to vector<16x16xf32>
    %101 = arith.addf %98, %100 : vector<16x16xf32>
    %c0_39 = arith.constant 0 : index
    %c0_40 = arith.constant 0 : index
    %102 = vector.load %arg13[%c0_39, %c0_40] : memref<16x32xf32, #tpu.memory_space<vmem>>, vector<16x32xf32>
    %103 = arith.truncf %1 : vector<128x16xf32> to vector<128x16xbf16>
    %104 = arith.truncf %102 : vector<16x32xf32> to vector<16x32xbf16>
    %cst_41 = arith.constant dense<0.000000e+00> : vector<128x32xf32>
    %105 = tpu.matmul %103, %104, %cst_41 {dimension_numbers = #tpu.dot_dimension_numbers<[1], [0], [0], [1], [0, 0, 1, 1], [], []>} : vector<128x16xbf16>, vector<16x32xbf16>, vector<128x32xf32> -> vector<128x32xf32>
    %c0_42 = arith.constant 0 : index
    %c0_43 = arith.constant 0 : index
    %106 = vector.load %arg14[%c0_42, %c0_43] : memref<1x32xf32, #tpu.memory_space<vmem>>, vector<1x32xf32>
    %107 = vector.broadcast %106 : vector<1x32xf32> to vector<128x32xf32>
    %108 = arith.addf %105, %107 : vector<128x32xf32>
    %109 = vector.extract_strided_slice %108 {offsets = [0, 0], sizes = [128, 16], strides = [1, 1]} : vector<128x32xf32> to vector<128x16xf32>
    %110 = vector.extract_strided_slice %108 {offsets = [0, 16], sizes = [128, 16], strides = [1, 1]} : vector<128x32xf32> to vector<128x16xf32>
    %c0_44 = arith.constant 0 : index
    %c0_45 = arith.constant 0 : index
    %111 = vector.load %arg4[%c0_44, %c0_45] : memref<16x128xf32, #tpu.memory_space<vmem>>, vector<16x128xf32>
    %c0_46 = arith.constant 0 : index
    %c0_47 = arith.constant 0 : index
    %112 = vector.load %arg15[%c0_46, %c0_47] : memref<16x16xf32, #tpu.memory_space<vmem>>, vector<16x16xf32>
    %113 = vector.extract_strided_slice %101 {offsets = [0, 0], sizes = [16, 8], strides = [1, 1]} : vector<16x16xf32> to vector<16x8xf32>
    %114 = arith.truncf %113 : vector<16x8xf32> to vector<16x8xbf16>
    %115 = vector.extract_strided_slice %109 {offsets = [0, 0], sizes = [128, 8], strides = [1, 1]} : vector<128x16xf32> to vector<128x8xf32>
    %116 = arith.truncf %115 : vector<128x8xf32> to vector<128x8xbf16>
    %cst_48 = arith.constant dense<0.000000e+00> : vector<16x128xf32>
    %117 = tpu.matmul %114, %116, %cst_48 {dimension_numbers = #tpu.dot_dimension_numbers<[1], [1], [0], [0], [0, 0, 1, 0], [], []>} : vector<16x8xbf16>, vector<128x8xbf16>, vector<16x128xf32> -> vector<16x128xf32>
    %cst_49 = arith.constant 0.353553385 : f32
    %118 = vector.broadcast %cst_49 : f32 to vector<16x128xf32>
    %119 = arith.mulf %117, %118 : vector<16x128xf32>
    %120 = arith.addf %119, %111 : vector<16x128xf32>
    %cst_50 = arith.constant dense<0xFF800000> : vector<16xf32>
    %121 = vector.multi_reduction <maximumf>, %120, %cst_50 [1] : vector<16x128xf32> to vector<16xf32>
    %122 = vector.shape_cast %121 : vector<16xf32> to vector<16x1xf32>
    %123 = vector.broadcast %122 : vector<16x1xf32> to vector<16x128xf32>
    %124 = arith.subf %120, %123 : vector<16x128xf32>
    %125 = math.exp %124 : vector<16x128xf32>
    %cst_51 = arith.constant dense<0.000000e+00> : vector<16xf32>
    %126 = vector.multi_reduction <add>, %125, %cst_51 [1] : vector<16x128xf32> to vector<16xf32>
    %127 = vector.shape_cast %126 : vector<16xf32> to vector<16x1xf32>
    %128 = tpu.reciprocal %127 {approx = true} : vector<16x1xf32> -> vector<16x1xf32>
    %129 = vector.broadcast %128 : vector<16x1xf32> to vector<16x128xf32>
    %130 = arith.mulf %125, %129 : vector<16x128xf32>
    %131 = arith.truncf %130 : vector<16x128xf32> to vector<16x128xbf16>
    %132 = vector.extract_strided_slice %110 {offsets = [0, 0], sizes = [128, 8], strides = [1, 1]} : vector<128x16xf32> to vector<128x8xf32>
    %133 = arith.truncf %132 : vector<128x8xf32> to vector<128x8xbf16>
    %cst_52 = arith.constant dense<0.000000e+00> : vector<16x8xf32>
    %134 = tpu.matmul %131, %133, %cst_52 {dimension_numbers = #tpu.dot_dimension_numbers<[1], [0], [0], [1], [0, 0, 1, 1], [], []>} : vector<16x128xbf16>, vector<128x8xbf16>, vector<16x8xf32> -> vector<16x8xf32>
    %135 = arith.truncf %134 : vector<16x8xf32> to vector<16x8xbf16>
    %136 = vector.extract_strided_slice %112 {offsets = [0, 0], sizes = [8, 16], strides = [1, 1]} : vector<16x16xf32> to vector<8x16xf32>
    %137 = arith.truncf %136 : vector<8x16xf32> to vector<8x16xbf16>
    %cst_53 = arith.constant dense<0.000000e+00> : vector<16x16xf32>
    %138 = tpu.matmul %135, %137, %cst_53 {dimension_numbers = #tpu.dot_dimension_numbers<[1], [0], [0], [1], [0, 0, 1, 1], [], []>} : vector<16x8xbf16>, vector<8x16xbf16>, vector<16x16xf32> -> vector<16x16xf32>
    %139 = vector.extract_strided_slice %101 {offsets = [0, 8], sizes = [16, 8], strides = [1, 1]} : vector<16x16xf32> to vector<16x8xf32>
    %140 = arith.truncf %139 : vector<16x8xf32> to vector<16x8xbf16>
    %141 = vector.extract_strided_slice %109 {offsets = [0, 8], sizes = [128, 8], strides = [1, 1]} : vector<128x16xf32> to vector<128x8xf32>
    %142 = arith.truncf %141 : vector<128x8xf32> to vector<128x8xbf16>
    %cst_54 = arith.constant dense<0.000000e+00> : vector<16x128xf32>
    %143 = tpu.matmul %140, %142, %cst_54 {dimension_numbers = #tpu.dot_dimension_numbers<[1], [1], [0], [0], [0, 0, 1, 0], [], []>} : vector<16x8xbf16>, vector<128x8xbf16>, vector<16x128xf32> -> vector<16x128xf32>
    %cst_55 = arith.constant 0.353553385 : f32
    %144 = vector.broadcast %cst_55 : f32 to vector<16x128xf32>
    %145 = arith.mulf %143, %144 : vector<16x128xf32>
    %146 = arith.addf %145, %111 : vector<16x128xf32>
    %cst_56 = arith.constant dense<0xFF800000> : vector<16xf32>
    %147 = vector.multi_reduction <maximumf>, %146, %cst_56 [1] : vector<16x128xf32> to vector<16xf32>
    %148 = vector.shape_cast %147 : vector<16xf32> to vector<16x1xf32>
    %149 = vector.broadcast %148 : vector<16x1xf32> to vector<16x128xf32>
    %150 = arith.subf %146, %149 : vector<16x128xf32>
    %151 = math.exp %150 : vector<16x128xf32>
    %cst_57 = arith.constant dense<0.000000e+00> : vector<16xf32>
    %152 = vector.multi_reduction <add>, %151, %cst_57 [1] : vector<16x128xf32> to vector<16xf32>
    %153 = vector.shape_cast %152 : vector<16xf32> to vector<16x1xf32>
    %154 = tpu.reciprocal %153 {approx = true} : vector<16x1xf32> -> vector<16x1xf32>
    %155 = vector.broadcast %154 : vector<16x1xf32> to vector<16x128xf32>
    %156 = arith.mulf %151, %155 : vector<16x128xf32>
    %157 = arith.truncf %156 : vector<16x128xf32> to vector<16x128xbf16>
    %158 = vector.extract_strided_slice %110 {offsets = [0, 8], sizes = [128, 8], strides = [1, 1]} : vector<128x16xf32> to vector<128x8xf32>
    %159 = arith.truncf %158 : vector<128x8xf32> to vector<128x8xbf16>
    %cst_58 = arith.constant dense<0.000000e+00> : vector<16x8xf32>
    %160 = tpu.matmul %157, %159, %cst_58 {dimension_numbers = #tpu.dot_dimension_numbers<[1], [0], [0], [1], [0, 0, 1, 1], [], []>} : vector<16x128xbf16>, vector<128x8xbf16>, vector<16x8xf32> -> vector<16x8xf32>
    %161 = arith.truncf %160 : vector<16x8xf32> to vector<16x8xbf16>
    %162 = vector.extract_strided_slice %112 {offsets = [8, 0], sizes = [8, 16], strides = [1, 1]} : vector<16x16xf32> to vector<8x16xf32>
    %163 = arith.truncf %162 : vector<8x16xf32> to vector<8x16xbf16>
    %cst_59 = arith.constant dense<0.000000e+00> : vector<16x16xf32>
    %164 = tpu.matmul %161, %163, %cst_59 {dimension_numbers = #tpu.dot_dimension_numbers<[1], [0], [0], [1], [0, 0, 1, 1], [], []>} : vector<16x8xbf16>, vector<8x16xbf16>, vector<16x16xf32> -> vector<16x16xf32>
    %165 = arith.addf %138, %164 : vector<16x16xf32>
    %c0_60 = arith.constant 0 : index
    %c0_61 = arith.constant 0 : index
    %166 = vector.load %arg16[%c0_60, %c0_61] : memref<1x16xf32, #tpu.memory_space<vmem>>, vector<1x16xf32>
    %167 = vector.broadcast %166 : vector<1x16xf32> to vector<16x16xf32>
    %168 = arith.addf %165, %167 : vector<16x16xf32>
    %169 = arith.addf %94, %168 : vector<16x16xf32>
    %c0_62 = arith.constant 0 : index
    %c0_63 = arith.constant 0 : index
    %170 = vector.load %arg17[%c0_62, %c0_63] : memref<1x16xf32, #tpu.memory_space<vmem>>, vector<1x16xf32>
    %c0_64 = arith.constant 0 : index
    %c0_65 = arith.constant 0 : index
    %171 = vector.load %arg18[%c0_64, %c0_65] : memref<1x16xf32, #tpu.memory_space<vmem>>, vector<1x16xf32>
    %cst_66 = arith.constant dense<0.000000e+00> : vector<16xf32>
    %172 = vector.multi_reduction <add>, %169, %cst_66 [1] : vector<16x16xf32> to vector<16xf32>
    %173 = vector.shape_cast %172 : vector<16xf32> to vector<16x1xf32>
    %cst_67 = arith.constant 1.600000e+01 : f32
    %174 = vector.broadcast %cst_67 : f32 to vector<16x1xf32>
    %175 = arith.divf %173, %174 : vector<16x1xf32>
    %176 = vector.broadcast %175 : vector<16x1xf32> to vector<16x16xf32>
    %177 = arith.subf %169, %176 : vector<16x16xf32>
    %178 = arith.mulf %177, %177 : vector<16x16xf32>
    %cst_68 = arith.constant dense<0.000000e+00> : vector<16xf32>
    %179 = vector.multi_reduction <add>, %178, %cst_68 [1] : vector<16x16xf32> to vector<16xf32>
    %180 = vector.shape_cast %179 : vector<16xf32> to vector<16x1xf32>
    %cst_69 = arith.constant 1.600000e+01 : f32
    %181 = vector.broadcast %cst_69 : f32 to vector<16x1xf32>
    %182 = arith.divf %180, %181 : vector<16x1xf32>
    %183 = vector.broadcast %175 : vector<16x1xf32> to vector<16x16xf32>
    %184 = arith.subf %169, %183 : vector<16x16xf32>
    %cst_70 = arith.constant 9.99999974E-6 : f32
    %185 = vector.broadcast %cst_70 : f32 to vector<16x1xf32>
    %186 = arith.addf %182, %185 : vector<16x1xf32>
    %187 = math.rsqrt %186 : vector<16x1xf32>
    %188 = vector.broadcast %187 : vector<16x1xf32> to vector<16x16xf32>
    %189 = arith.mulf %184, %188 : vector<16x16xf32>
    %190 = vector.broadcast %170 : vector<1x16xf32> to vector<16x16xf32>
    %191 = arith.mulf %189, %190 : vector<16x16xf32>
    %192 = vector.broadcast %171 : vector<1x16xf32> to vector<16x16xf32>
    %193 = arith.addf %191, %192 : vector<16x16xf32>
    %c0_71 = arith.constant 0 : index
    %c0_72 = arith.constant 0 : index
    %194 = vector.load %arg19[%c0_71, %c0_72] : memref<16x32xf32, #tpu.memory_space<vmem>>, vector<16x32xf32>
    %195 = arith.truncf %193 : vector<16x16xf32> to vector<16x16xbf16>
    %196 = arith.truncf %194 : vector<16x32xf32> to vector<16x32xbf16>
    %cst_73 = arith.constant dense<0.000000e+00> : vector<16x32xf32>
    %197 = tpu.matmul %195, %196, %cst_73 {dimension_numbers = #tpu.dot_dimension_numbers<[1], [0], [0], [1], [0, 0, 1, 1], [], []>} : vector<16x16xbf16>, vector<16x32xbf16>, vector<16x32xf32> -> vector<16x32xf32>
    %c0_74 = arith.constant 0 : index
    %c0_75 = arith.constant 0 : index
    %198 = vector.load %arg20[%c0_74, %c0_75] : memref<1x32xf32, #tpu.memory_space<vmem>>, vector<1x32xf32>
    %199 = vector.broadcast %198 : vector<1x32xf32> to vector<16x32xf32>
    %200 = arith.addf %197, %199 : vector<16x32xf32>
    %cst_76 = arith.constant 0.000000e+00 : f32
    %201 = vector.broadcast %cst_76 : f32 to vector<16x32xf32>
    %202 = arith.maximumf %200, %201 : vector<16x32xf32>
    %c0_77 = arith.constant 0 : index
    %c0_78 = arith.constant 0 : index
    %203 = vector.load %arg21[%c0_77, %c0_78] : memref<32x16xf32, #tpu.memory_space<vmem>>, vector<32x16xf32>
    %204 = arith.truncf %202 : vector<16x32xf32> to vector<16x32xbf16>
    %205 = arith.truncf %203 : vector<32x16xf32> to vector<32x16xbf16>
    %cst_79 = arith.constant dense<0.000000e+00> : vector<16x16xf32>
    %206 = tpu.matmul %204, %205, %cst_79 {dimension_numbers = #tpu.dot_dimension_numbers<[1], [0], [0], [1], [0, 0, 1, 1], [], []>} : vector<16x32xbf16>, vector<32x16xbf16>, vector<16x16xf32> -> vector<16x16xf32>
    %c0_80 = arith.constant 0 : index
    %c0_81 = arith.constant 0 : index
    %207 = vector.load %arg22[%c0_80, %c0_81] : memref<1x16xf32, #tpu.memory_space<vmem>>, vector<1x16xf32>
    %208 = vector.broadcast %207 : vector<1x16xf32> to vector<16x16xf32>
    %209 = arith.addf %206, %208 : vector<16x16xf32>
    %210 = arith.addf %193, %209 : vector<16x16xf32>
    %c0_82 = arith.constant 0 : index
    %c0_83 = arith.constant 0 : index
    %211 = vector.load %arg23[%c0_82, %c0_83] : memref<1x16xf32, #tpu.memory_space<vmem>>, vector<1x16xf32>
    %c0_84 = arith.constant 0 : index
    %c0_85 = arith.constant 0 : index
    %212 = vector.load %arg24[%c0_84, %c0_85] : memref<1x16xf32, #tpu.memory_space<vmem>>, vector<1x16xf32>
    %cst_86 = arith.constant dense<0.000000e+00> : vector<16xf32>
    %213 = vector.multi_reduction <add>, %210, %cst_86 [1] : vector<16x16xf32> to vector<16xf32>
    %214 = vector.shape_cast %213 : vector<16xf32> to vector<16x1xf32>
    %cst_87 = arith.constant 1.600000e+01 : f32
    %215 = vector.broadcast %cst_87 : f32 to vector<16x1xf32>
    %216 = arith.divf %214, %215 : vector<16x1xf32>
    %217 = vector.broadcast %216 : vector<16x1xf32> to vector<16x16xf32>
    %218 = arith.subf %210, %217 : vector<16x16xf32>
    %219 = arith.mulf %218, %218 : vector<16x16xf32>
    %cst_88 = arith.constant dense<0.000000e+00> : vector<16xf32>
    %220 = vector.multi_reduction <add>, %219, %cst_88 [1] : vector<16x16xf32> to vector<16xf32>
    %221 = vector.shape_cast %220 : vector<16xf32> to vector<16x1xf32>
    %cst_89 = arith.constant 1.600000e+01 : f32
    %222 = vector.broadcast %cst_89 : f32 to vector<16x1xf32>
    %223 = arith.divf %221, %222 : vector<16x1xf32>
    %224 = vector.broadcast %216 : vector<16x1xf32> to vector<16x16xf32>
    %225 = arith.subf %210, %224 : vector<16x16xf32>
    %cst_90 = arith.constant 9.99999974E-6 : f32
    %226 = vector.broadcast %cst_90 : f32 to vector<16x1xf32>
    %227 = arith.addf %223, %226 : vector<16x1xf32>
    %228 = math.rsqrt %227 : vector<16x1xf32>
    %229 = vector.broadcast %228 : vector<16x1xf32> to vector<16x16xf32>
    %230 = arith.mulf %225, %229 : vector<16x16xf32>
    %231 = vector.broadcast %211 : vector<1x16xf32> to vector<16x16xf32>
    %232 = arith.mulf %230, %231 : vector<16x16xf32>
    %233 = vector.broadcast %212 : vector<1x16xf32> to vector<16x16xf32>
    %234 = arith.addf %232, %233 : vector<16x16xf32>
    %c0_91 = arith.constant 0 : index
    %c0_92 = arith.constant 0 : index
    %235 = vector.load %arg25[%c0_91, %c0_92] : memref<16x16xf32, #tpu.memory_space<vmem>>, vector<16x16xf32>
    tpu.vector_store %arg25[%c0_91, %c0_92], %234 {strides = array<i32>} : memref<16x16xf32, #tpu.memory_space<vmem>>, vector<16x16xf32>,
    return
  }
  func.func @transform_0(%arg0: i32) -> (i32, i32) {
    %c0_i32 = arith.constant 0 : i32
    %c0_i32_0 = arith.constant 0 : i32
    return %arg0, %c0_i32 : i32, i32
  }
  func.func @transform_1(%arg0: i32) -> (i32, i32) {
    %c0_i32 = arith.constant 0 : i32
    %c0_i32_0 = arith.constant 0 : i32
    return %arg0, %c0_i32 : i32, i32
  }
  func.func @transform_2(%arg0: i32) -> (i32, i32) {
    %c0_i32 = arith.constant 0 : i32
    %c0_i32_0 = arith.constant 0 : i32
    %c0_i32_1 = arith.constant 0 : i32
    return %c0_i32, %c0_i32_0 : i32, i32
  }
  func.func @transform_3(%arg0: i32) -> (i32, i32) {
    %c0_i32 = arith.constant 0 : i32
    %c0_i32_0 = arith.constant 0 : i32
    %c0_i32_1 = arith.constant 0 : i32
    return %c0_i32, %c0_i32_0 : i32, i32
  }
  func.func @transform_4(%arg0: i32) -> (i32, i32) {
    %c0_i32 = arith.constant 0 : i32
    %c0_i32_0 = arith.constant 0 : i32
    %c0_i32_1 = arith.constant 0 : i32
    return %c0_i32, %c0_i32_0 : i32, i32
  }
  func.func @transform_5(%arg0: i32) -> (i32, i32) {
    %c0_i32 = arith.constant 0 : i32
    %c0_i32_0 = arith.constant 0 : i32
    %c0_i32_1 = arith.constant 0 : i32
    return %c0_i32, %c0_i32_0 : i32, i32
  }
  func.func @transform_6(%arg0: i32) -> (i32, i32) {
    %c0_i32 = arith.constant 0 : i32
    %c0_i32_0 = arith.constant 0 : i32
    %c0_i32_1 = arith.constant 0 : i32
    return %c0_i32, %c0_i32_0 : i32, i32
  }
  func.func @transform_7(%arg0: i32) -> (i32, i32) {
    %c0_i32 = arith.constant 0 : i32
    %c0_i32_0 = arith.constant 0 : i32
    %c0_i32_1 = arith.constant 0 : i32
    return %c0_i32, %c0_i32_0 : i32, i32
  }
  func.func @transform_8(%arg0: i32) -> (i32, i32) {
    %c0_i32 = arith.constant 0 : i32
    %c0_i32_0 = arith.constant 0 : i32
    %c0_i32_1 = arith.constant 0 : i32
    return %c0_i32, %c0_i32_0 : i32, i32
  }
  func.func @transform_9(%arg0: i32) -> (i32, i32) {
    %c0_i32 = arith.constant 0 : i32
    %c0_i32_0 = arith.constant 0 : i32
    %c0_i32_1 = arith.constant 0 : i32
    return %c0_i32, %c0_i32_0 : i32, i32
  }
  func.func @transform_10(%arg0: i32) -> (i32, i32) {
    %c0_i32 = arith.constant 0 : i32
    %c0_i32_0 = arith.constant 0 : i32
    %c0_i32_1 = arith.constant 0 : i32
    return %c0_i32, %c0_i32_0 : i32, i32
  }
  func.func @transform_11(%arg0: i32) -> (i32, i32) {
    %c0_i32 = arith.constant 0 : i32
    %c0_i32_0 = arith.constant 0 : i32
    %c0_i32_1 = arith.constant 0 : i32
    return %c0_i32, %c0_i32_0 : i32, i32
  }
  func.func @transform_12(%arg0: i32) -> (i32, i32) {
    %c0_i32 = arith.constant 0 : i32
    %c0_i32_0 = arith.constant 0 : i32
    %c0_i32_1 = arith.constant 0 : i32
    return %c0_i32, %c0_i32_0 : i32, i32
  }
  func.func @transform_13(%arg0: i32) -> (i32, i32) {
    %c0_i32 = arith.constant 0 : i32
    %c0_i32_0 = arith.constant 0 : i32
    %c0_i32_1 = arith.constant 0 : i32
    return %c0_i32, %c0_i32_0 : i32, i32
  }
  func.func @transform_14(%arg0: i32) -> (i32, i32) {
    %c0_i32 = arith.constant 0 : i32
    %c0_i32_0 = arith.constant 0 : i32
    %c0_i32_1 = arith.constant 0 : i32
    return %c0_i32, %c0_i32_0 : i32, i32
  }
  func.func @transform_15(%arg0: i32) -> (i32, i32) {
    %c0_i32 = arith.constant 0 : i32
    %c0_i32_0 = arith.constant 0 : i32
    %c0_i32_1 = arith.constant 0 : i32
    return %c0_i32, %c0_i32_0 : i32, i32
  }
  func.func @transform_16(%arg0: i32) -> (i32, i32) {
    %c0_i32 = arith.constant 0 : i32
    %c0_i32_0 = arith.constant 0 : i32
    %c0_i32_1 = arith.constant 0 : i32
    return %c0_i32, %c0_i32_0 : i32, i32
  }
  func.func @transform_17(%arg0: i32) -> (i32, i32) {
    %c0_i32 = arith.constant 0 : i32
    %c0_i32_0 = arith.constant 0 : i32
    %c0_i32_1 = arith.constant 0 : i32
    return %c0_i32, %c0_i32_0 : i32, i32
  }
  func.func @transform_18(%arg0: i32) -> (i32, i32) {
    %c0_i32 = arith.constant 0 : i32
    %c0_i32_0 = arith.constant 0 : i32
    %c0_i32_1 = arith.constant 0 : i32
    return %c0_i32, %c0_i32_0 : i32, i32
  }
  func.func @transform_19(%arg0: i32) -> (i32, i32) {
    %c0_i32 = arith.constant 0 : i32
    %c0_i32_0 = arith.constant 0 : i32
    %c0_i32_1 = arith.constant 0 : i32
    return %c0_i32, %c0_i32_0 : i32, i32
  }
  func.func @transform_20(%arg0: i32) -> (i32, i32) {
    %c0_i32 = arith.constant 0 : i32
    %c0_i32_0 = arith.constant 0 : i32
    %c0_i32_1 = arith.constant 0 : i32
    return %c0_i32, %c0_i32_0 : i32, i32
  }
  func.func @transform_21(%arg0: i32) -> (i32, i32) {
    %c0_i32 = arith.constant 0 : i32
    %c0_i32_0 = arith.constant 0 : i32
    %c0_i32_1 = arith.constant 0 : i32
    return %c0_i32, %c0_i32_0 : i32, i32
  }
  func.func @transform_22(%arg0: i32) -> (i32, i32) {
    %c0_i32 = arith.constant 0 : i32
    %c0_i32_0 = arith.constant 0 : i32
    %c0_i32_1 = arith.constant 0 : i32
    return %c0_i32, %c0_i32_0 : i32, i32
  }
  func.func @transform_23(%arg0: i32) -> (i32, i32) {
    %c0_i32 = arith.constant 0 : i32
    %c0_i32_0 = arith.constant 0 : i32
    %c0_i32_1 = arith.constant 0 : i32
    return %c0_i32, %c0_i32_0 : i32, i32
  }
  func.func @transform_24(%arg0: i32) -> (i32, i32) {
    %c0_i32 = arith.constant 0 : i32
    %c0_i32_0 = arith.constant 0 : i32
    return %arg0, %c0_i32 : i32, i32
  }
}

module attributes {stable_mosaic.version = 11 : i64} {
  func.func @_qp_kernel(%arg0: memref<8x64xf32, #tpu.memory_space<vmem>>, %arg1: memref<64x64xf32, #tpu.memory_space<vmem>>, %arg2: memref<1x64xf32, #tpu.memory_space<vmem>>, %arg3: memref<64x64xf32, #tpu.memory_space<vmem>>, %arg4: memref<1x64xf32, #tpu.memory_space<vmem>>, %arg5: memref<64x64xf32, #tpu.memory_space<vmem>>, %arg6: memref<1x64xf32, #tpu.memory_space<vmem>>, %arg7: memref<64x64xf32, #tpu.memory_space<vmem>>, %arg8: memref<1x64xf32, #tpu.memory_space<vmem>>, %arg9: memref<1x64xf32, #tpu.memory_space<vmem>>, %arg10: memref<1x1xf32, #tpu.memory_space<vmem>>, %arg11: memref<8x1xf32, #tpu.memory_space<vmem>>) attributes {dimension_semantics = [], scalar_prefetch = 0 : i64, scratch_operands = 0 : i64, tpu.core_type = #tpu.core_type<tc>} {
    %c0 = arith.constant 0 : index
    %c0_0 = arith.constant 0 : index
    %0 = vector.load %arg0[%c0, %c0_0] : memref<8x64xf32, #tpu.memory_space<vmem>>, vector<8x64xf32>
    %c0_1 = arith.constant 0 : index
    %c0_2 = arith.constant 0 : index
    %1 = vector.load %arg1[%c0_1, %c0_2] : memref<64x64xf32, #tpu.memory_space<vmem>>, vector<64x64xf32>
    %2 = arith.truncf %0 : vector<8x64xf32> to vector<8x64xbf16>
    %3 = arith.truncf %1 : vector<64x64xf32> to vector<64x64xbf16>
    %cst = arith.constant dense<0.000000e+00> : vector<8x64xf32>
    %4 = tpu.matmul %2, %3, %cst {dimension_numbers = #tpu.dot_dimension_numbers<[1], [0], [0], [1], [0, 0, 1, 1], [], []>} : vector<8x64xbf16>, vector<64x64xbf16>, vector<8x64xf32> -> vector<8x64xf32>
    %c0_3 = arith.constant 0 : index
    %c0_4 = arith.constant 0 : index
    %5 = vector.load %arg2[%c0_3, %c0_4] : memref<1x64xf32, #tpu.memory_space<vmem>>, vector<1x64xf32>
    %6 = vector.broadcast %5 : vector<1x64xf32> to vector<8x64xf32>
    %7 = arith.addf %4, %6 : vector<8x64xf32>
    %cst_5 = arith.constant 0.000000e+00 : f32
    %8 = vector.broadcast %cst_5 : f32 to vector<8x64xf32>
    %9 = arith.cmpf ogt, %7, %8 : vector<8x64xf32>
    %cst_6 = arith.constant 0.00999999977 : f32
    %10 = vector.broadcast %cst_6 : f32 to vector<8x64xf32>
    %11 = arith.mulf %10, %7 : vector<8x64xf32>
    %12 = arith.select %9, %7, %11 : vector<8x64xi1>, vector<8x64xf32>
    %c0_7 = arith.constant 0 : index
    %c0_8 = arith.constant 0 : index
    %13 = vector.load %arg3[%c0_7, %c0_8] : memref<64x64xf32, #tpu.memory_space<vmem>>, vector<64x64xf32>
    %14 = arith.truncf %12 : vector<8x64xf32> to vector<8x64xbf16>
    %15 = arith.truncf %13 : vector<64x64xf32> to vector<64x64xbf16>
    %cst_9 = arith.constant dense<0.000000e+00> : vector<8x64xf32>
    %16 = tpu.matmul %14, %15, %cst_9 {dimension_numbers = #tpu.dot_dimension_numbers<[1], [0], [0], [1], [0, 0, 1, 1], [], []>} : vector<8x64xbf16>, vector<64x64xbf16>, vector<8x64xf32> -> vector<8x64xf32>
    %c0_10 = arith.constant 0 : index
    %c0_11 = arith.constant 0 : index
    %17 = vector.load %arg4[%c0_10, %c0_11] : memref<1x64xf32, #tpu.memory_space<vmem>>, vector<1x64xf32>
    %18 = vector.broadcast %17 : vector<1x64xf32> to vector<8x64xf32>
    %19 = arith.addf %16, %18 : vector<8x64xf32>
    %cst_12 = arith.constant 0.000000e+00 : f32
    %20 = vector.broadcast %cst_12 : f32 to vector<8x64xf32>
    %21 = arith.cmpf ogt, %19, %20 : vector<8x64xf32>
    %cst_13 = arith.constant 0.00999999977 : f32
    %22 = vector.broadcast %cst_13 : f32 to vector<8x64xf32>
    %23 = arith.mulf %22, %19 : vector<8x64xf32>
    %24 = arith.select %21, %19, %23 : vector<8x64xi1>, vector<8x64xf32>
    %c0_14 = arith.constant 0 : index
    %c0_15 = arith.constant 0 : index
    %25 = vector.load %arg5[%c0_14, %c0_15] : memref<64x64xf32, #tpu.memory_space<vmem>>, vector<64x64xf32>
    %26 = arith.truncf %24 : vector<8x64xf32> to vector<8x64xbf16>
    %27 = arith.truncf %25 : vector<64x64xf32> to vector<64x64xbf16>
    %cst_16 = arith.constant dense<0.000000e+00> : vector<8x64xf32>
    %28 = tpu.matmul %26, %27, %cst_16 {dimension_numbers = #tpu.dot_dimension_numbers<[1], [0], [0], [1], [0, 0, 1, 1], [], []>} : vector<8x64xbf16>, vector<64x64xbf16>, vector<8x64xf32> -> vector<8x64xf32>
    %c0_17 = arith.constant 0 : index
    %c0_18 = arith.constant 0 : index
    %29 = vector.load %arg6[%c0_17, %c0_18] : memref<1x64xf32, #tpu.memory_space<vmem>>, vector<1x64xf32>
    %30 = vector.broadcast %29 : vector<1x64xf32> to vector<8x64xf32>
    %31 = arith.addf %28, %30 : vector<8x64xf32>
    %cst_19 = arith.constant 0.000000e+00 : f32
    %32 = vector.broadcast %cst_19 : f32 to vector<8x64xf32>
    %33 = arith.cmpf ogt, %31, %32 : vector<8x64xf32>
    %cst_20 = arith.constant 0.00999999977 : f32
    %34 = vector.broadcast %cst_20 : f32 to vector<8x64xf32>
    %35 = arith.mulf %34, %31 : vector<8x64xf32>
    %36 = arith.select %33, %31, %35 : vector<8x64xi1>, vector<8x64xf32>
    %c0_21 = arith.constant 0 : index
    %c0_22 = arith.constant 0 : index
    %37 = vector.load %arg7[%c0_21, %c0_22] : memref<64x64xf32, #tpu.memory_space<vmem>>, vector<64x64xf32>
    %38 = arith.truncf %36 : vector<8x64xf32> to vector<8x64xbf16>
    %39 = arith.truncf %37 : vector<64x64xf32> to vector<64x64xbf16>
    %cst_23 = arith.constant dense<0.000000e+00> : vector<8x64xf32>
    %40 = tpu.matmul %38, %39, %cst_23 {dimension_numbers = #tpu.dot_dimension_numbers<[1], [0], [0], [1], [0, 0, 1, 1], [], []>} : vector<8x64xbf16>, vector<64x64xbf16>, vector<8x64xf32> -> vector<8x64xf32>
    %c0_24 = arith.constant 0 : index
    %c0_25 = arith.constant 0 : index
    %41 = vector.load %arg8[%c0_24, %c0_25] : memref<1x64xf32, #tpu.memory_space<vmem>>, vector<1x64xf32>
    %42 = vector.broadcast %41 : vector<1x64xf32> to vector<8x64xf32>
    %43 = arith.addf %40, %42 : vector<8x64xf32>
    %cst_26 = arith.constant 0.000000e+00 : f32
    %44 = vector.broadcast %cst_26 : f32 to vector<8x64xf32>
    %45 = arith.cmpf ogt, %43, %44 : vector<8x64xf32>
    %cst_27 = arith.constant 0.00999999977 : f32
    %46 = vector.broadcast %cst_27 : f32 to vector<8x64xf32>
    %47 = arith.mulf %46, %43 : vector<8x64xf32>
    %48 = arith.select %45, %43, %47 : vector<8x64xi1>, vector<8x64xf32>
    %c0_28 = arith.constant 0 : index
    %c0_29 = arith.constant 0 : index
    %49 = vector.load %arg9[%c0_28, %c0_29] : memref<1x64xf32, #tpu.memory_space<vmem>>, vector<1x64xf32>
    %50 = vector.broadcast %49 : vector<1x64xf32> to vector<8x64xf32>
    %51 = arith.mulf %48, %50 : vector<8x64xf32>
    %cst_30 = arith.constant dense<0.000000e+00> : vector<8xf32>
    %52 = vector.multi_reduction <add>, %51, %cst_30 [1] : vector<8x64xf32> to vector<8xf32>
    %53 = vector.shape_cast %52 : vector<8xf32> to vector<8x1xf32>
    %c0_31 = arith.constant 0 : index
    %c0_32 = arith.constant 0 : index
    %54 = vector.load %arg10[%c0_31, %c0_32] : memref<1x1xf32, #tpu.memory_space<vmem>>, vector<1x1xf32>
    %55 = vector.broadcast %54 : vector<1x1xf32> to vector<8x1xf32>
    %56 = arith.addf %53, %55 : vector<8x1xf32>
    %c0_33 = arith.constant 0 : index
    %c0_34 = arith.constant 0 : index
    %57 = vector.load %arg11[%c0_33, %c0_34] : memref<8x1xf32, #tpu.memory_space<vmem>>, vector<8x1xf32>
    tpu.vector_store %arg11[%c0_33, %c0_34], %56 {strides = array<i32>} : memref<8x1xf32, #tpu.memory_space<vmem>>, vector<8x1xf32>,
    return
  }
}

</mosaic_0001>

<llo_original>
// kernel: vct_predictor_forward.7
$region0: #{vct_predictor_forward.7}
  #allocation0 [shape = 'u32[]', space=smem, size = 0x4, offset = 0x4, fixed_abs, tag = 'smem constant byte address 0x4 - core index']
  #allocation1 [shape = 'u32[144,128]{1,0:T(1,128)}', space=vmem, size = 0x12000, scoped, tag = 'internal scratch']
  #allocation2 [shape = 'f32[1,1]{1,0:T(1,128)S(1)}', space=vmem, size = 0x200, scoped, tag = 'scoped memory for vct_predictor_forward.7']
  %s0 = inlined_call_operand.vmem [shape: f32[8,64], index: 0, kind: input, shape index: {}]
  %s1 = inlined_call_operand.vmem [shape: f32[64,64], index: 1, kind: input, shape index: {}]
  %s2 = inlined_call_operand.vmem [shape: f32[1,64], index: 2, kind: input, shape index: {}]
  %s3 = inlined_call_operand.vmem [shape: f32[64,64], index: 3, kind: input, shape index: {}]
  %s4 = inlined_call_operand.vmem [shape: f32[1,64], index: 4, kind: input, shape index: {}]
  %s5 = inlined_call_operand.vmem [shape: f32[64,64], index: 5, kind: input, shape index: {}]
  %s6 = inlined_call_operand.vmem [shape: f32[1,64], index: 6, kind: input, shape index: {}]
  %s7 = inlined_call_operand.vmem [shape: f32[64,64], index: 7, kind: input, shape index: {}]
  %s8 = inlined_call_operand.vmem [shape: f32[1,64], index: 8, kind: input, shape index: {}]
  %s9 = inlined_call_operand.vmem [shape: f32[1,64], index: 9, kind: input, shape index: {}]
  %s10 = inlined_call_operand.<no memory space> [shape: f32[1,1], index: 10, kind: input, shape index: {}]
  %s11 = inlined_call_operand.vmem [shape: f32[8,1], index: 11, kind: output, shape index: {}]
  %s12 = sld [smem:[#allocation0]]
  $region54: #{vct_predictor_forward.7} parent=0
    _
  %s14 = ssub.s32 1, %s12
  %s15 = scalar_select 0, %s14, %s12
  %v16 = vstv %s10
  %17 = vst [vmem:[#allocation2] sm:$0x1] %v16
  // Predicated region
  $region2: #{vct_predictor_forward.7} parent=0 // pred_check
    _
  $region3: #{vct_predictor_forward.7} parent=0 // pred_check_branch
    %19 = sbr.rel (0) target = $region5
  $region4: #{vct_predictor_forward.7} parent=0 // pred_region
    _
  $region5: #{vct_predictor_forward.7} parent=0 // pred_fallthru
    _
  // Predicated region
  $region6: #{vct_predictor_forward.7} parent=0 // pred_check
    _
  $region7: #{vct_predictor_forward.7} parent=0 // pred_check_branch
    %21 = sbr.rel (0) target = $region9
  $region8: #{vct_predictor_forward.7} parent=0 // pred_region
    _
  $region9: #{vct_predictor_forward.7} parent=0 // pred_fallthru
    _
  // Predicated region
  $region10: #{vct_predictor_forward.7} parent=0 // pred_check
    _
  $region11: #{vct_predictor_forward.7} parent=0 // pred_check_branch
    %23 = sbr.rel (0) target = $region13
  $region12: #{vct_predictor_forward.7} parent=0 // pred_region
    _
  $region13: #{vct_predictor_forward.7} parent=0 // pred_fallthru
    _
  // Predicated region
  $region14: #{vct_predictor_forward.7} parent=0 // pred_check
    _
  $region15: #{vct_predictor_forward.7} parent=0 // pred_check_branch
    %25 = sbr.rel (0) target = $region17
  $region16: #{vct_predictor_forward.7} parent=0 // pred_region
    _
  $region17: #{vct_predictor_forward.7} parent=0 // pred_fallthru
    _
  // Predicated region
  $region18: #{vct_predictor_forward.7} parent=0 // pred_check
    _
  $region19: #{vct_predictor_forward.7} parent=0 // pred_check_branch
    %27 = sbr.rel (0) target = $region21
  $region20: #{vct_predictor_forward.7} parent=0 // pred_region
    _
  $region21: #{vct_predictor_forward.7} parent=0 // pred_fallthru
    _
  // Predicated region
  $region22: #{vct_predictor_forward.7} parent=0 // pred_check
    _
  $region23: #{vct_predictor_forward.7} parent=0 // pred_check_branch
    %29 = sbr.rel (0) target = $region25
  $region24: #{vct_predictor_forward.7} parent=0 // pred_region
    _
  $region25: #{vct_predictor_forward.7} parent=0 // pred_fallthru
    _
  // Predicated region
  $region26: #{vct_predictor_forward.7} parent=0 // pred_check
    _
  $region27: #{vct_predictor_forward.7} parent=0 // pred_check_branch
    %31 = sbr.rel (0) target = $region29
  $region28: #{vct_predictor_forward.7} parent=0 // pred_region
    _
  $region29: #{vct_predictor_forward.7} parent=0 // pred_fallthru
    _
  // Predicated region
  $region30: #{vct_predictor_forward.7} parent=0 // pred_check
    _
  $region31: #{vct_predictor_forward.7} parent=0 // pred_check_branch
    %33 = sbr.rel (0) target = $region33
  $region32: #{vct_predictor_forward.7} parent=0 // pred_region
    _
  $region33: #{vct_predictor_forward.7} parent=0 // pred_fallthru
    _
  // Predicated region
  $region34: #{vct_predictor_forward.7} parent=0 // pred_check
    _
  $region35: #{vct_predictor_forward.7} parent=0 // pred_check_branch
    %35 = sbr.rel (0) target = $region37
  $region36: #{vct_predictor_forward.7} parent=0 // pred_region
    _
  $region37: #{vct_predictor_forward.7} parent=0 // pred_fallthru
    _
  // Predicated region
  $region38: #{vct_predictor_forward.7} parent=0 // pred_check
    _
  $region39: #{vct_predictor_forward.7} parent=0 // pred_check_branch
    %37 = sbr.rel (0) target = $region41
  $region40: #{vct_predictor_forward.7} parent=0 // pred_region
    _
  $region41: #{vct_predictor_forward.7} parent=0 // pred_fallthru
    _
  // Predicated region
  $region42: #{vct_predictor_forward.7} parent=0 // pred_check
    _
  $region43: #{vct_predictor_forward.7} parent=0 // pred_check_branch
    %39 = sbr.rel (0) target = $region45
  $region44: #{vct_predictor_forward.7} parent=0 // pred_region
    _
  $region45: #{vct_predictor_forward.7} parent=0 // pred_fallthru
    _
  %v41 = vld [vmem:[%s0] sm:$0xff]
  %v42 = vld [vmem:[%s1] sm:$0xff]
  %v43 = vld [vmem:[%s1 + $0x8] sm:$0xff]
  %v44 = vld [vmem:[%s1 + $0x10] sm:$0xff]
  %v45 = vld [vmem:[%s1 + $0x18] sm:$0xff]
  %v46 = vld [vmem:[%s1 + $0x20] sm:$0xff]
  %v47 = vld [vmem:[%s1 + $0x28] sm:$0xff]
  %v48 = vld [vmem:[%s1 + $0x30] sm:$0xff]
  %v49 = vld [vmem:[%s1 + $0x38] sm:$0xff]
  %v50 = vpack.c.bf16 %v41, %v41
  %v51 = vpack.c.bf16 %v43, %v42
  %v52 = vpack.c.bf16 %v45, %v44
  %v53 = vpack.c.bf16 %v47, %v46
  %v54 = vpack.c.bf16 %v49, %v48
  %v55 = vld [vmem:[%s2] sm:$0x1]
  %v57 = vlaneseq
  %v58 = vshrl.u32 %v57, 7
  %v59 = vsub.s32 0, %v58
  %v60 = vrot.slane %v55, %v59
  %vm62 = vcmask 523264
  %v64 = vsel %vm62, %v50, 0
  %66 = vmatprep.subr.bf16.mxu0 0
  %67 = vmatpush1.bf16.msra.mxu0 0
  %68 = vmatprep.subr.bf16.mxu0 0
  %69 = vmatpush1.bf16.msra.mxu0 0
  %70 = vmatprep.subr.bf16.mxu0 0
  %71 = vmatpush1.bf16.msra.mxu0 0
  %72 = vmatprep.subr.bf16.mxu0 0
  %73 = vmatpush1.bf16.msra.mxu0 0
  %74 = vmatprep.subr.bf16.mxu0 0
  %75 = vmatpush1.bf16.msra.mxu0 %v54
  %76 = vmatprep.subr.bf16.mxu0 0
  %77 = vmatpush1.bf16.msra.mxu0 %v53
  %78 = vmatprep.subr.bf16.mxu0 0
  %79 = vmatpush1.bf16.msra.mxu0 %v52
  %80 = vmatprep.subr.bf16.mxu0 0
  %81 = vmatpush1.bf16.msra.mxu0 %v51
  %82 = vmatprep.subr.bf16.mxu0 0
  %83 = vmatpush2.bf16.msra.mxu0 0
  %84 = vmatprep.subr.bf16.mxu0 0
  %85 = vmatpush2.bf16.msra.mxu0 0
  %86 = vmatprep.subr.bf16.mxu0 0
  %87 = vmatpush2.bf16.msra.mxu0 0
  %88 = vmatprep.subr.bf16.mxu0 0
  %89 = vmatpush2.bf16.msra.mxu0 0
  %90 = vmatprep.subr.bf16.mxu0 0
  %91 = vmatpush2.bf16.msra.mxu0 0
  %92 = vmatprep.subr.bf16.mxu0 0
  %93 = vmatpush2.bf16.msra.mxu0 0
  %94 = vmatprep.subr.bf16.mxu0 0
  %95 = vmatpush2.bf16.msra.mxu0 0
  %96 = vmatprep.subr.bf16.mxu0 0
  %97 = vmatpush2.bf16.msra.mxu0 0
  %98 = vmatprep.mubr.bf16.mxu0 0
  %99 = vmatmul.mubr.bf16.gmra.mxu0 %v64
  %v100 = vpop.f32.mrf.mxu0
  %v101 = vadd.f32 %v60, %v100
  %v102 = vpop.f32.mrf.mxu0
  %v103 = vpop.f32.mrf.mxu0
  %v104 = vpop.f32.mrf.mxu0
  %105 = vdwg.mxu0
  %vm106 = vcmp.gt.f32.partialorder %v101, 0.0
  %v107 = vmul.f32 %v101, 0.01
  %v108 = vsel %vm106, %v101, %v107
  %v109 = vld [vmem:[%s3] sm:$0xff]
  %v110 = vld [vmem:[%s3 + $0x8] sm:$0xff]
  %v111 = vld [vmem:[%s3 + $0x10] sm:$0xff]
  %v112 = vld [vmem:[%s3 + $0x18] sm:$0xff]
  %v113 = vld [vmem:[%s3 + $0x20] sm:$0xff]
  %v114 = vld [vmem:[%s3 + $0x28] sm:$0xff]
  %v115 = vld [vmem:[%s3 + $0x30] sm:$0xff]
  %v116 = vld [vmem:[%s3 + $0x38] sm:$0xff]
  %v117 = vpack.c.bf16 %v108, %v108
  %v118 = vpack.c.bf16 %v110, %v109
  %v119 = vpack.c.bf16 %v112, %v111
  %v120 = vpack.c.bf16 %v114, %v113
  %v121 = vpack.c.bf16 %v116, %v115
  %v122 = vld [vmem:[%s4] sm:$0x1]
  %v124 = vlaneseq
  %v125 = vshrl.u32 %v124, 7
  %v126 = vsub.s32 0, %v125
  %v127 = vrot.slane %v122, %v126
  %v130 = vsel %vm62, %v117, 0
  %132 = vmatprep.subr.bf16.mxu0 0
  %133 = vmatpush1.bf16.msra.mxu0 0
  %134 = vmatprep.subr.bf16.mxu0 0
  %135 = vmatpush1.bf16.msra.mxu0 0
  %136 = vmatprep.subr.bf16.mxu0 0
  %137 = vmatpush1.bf16.msra.mxu0 0
  %138 = vmatprep.subr.bf16.mxu0 0
  %139 = vmatpush1.bf16.msra.mxu0 0
  %140 = vmatprep.subr.bf16.mxu0 0
  %141 = vmatpush1.bf16.msra.mxu0 %v121
  %142 = vmatprep.subr.bf16.mxu0 0
  %143 = vmatpush1.bf16.msra.mxu0 %v120
  %144 = vmatprep.subr.bf16.mxu0 0
  %145 = vmatpush1.bf16.msra.mxu0 %v119
  %146 = vmatprep.subr.bf16.mxu0 0
  %147 = vmatpush1.bf16.msra.mxu0 %v118
  %148 = vmatprep.subr.bf16.mxu0 0
  %149 = vmatpush2.bf16.msra.mxu0 0
  %150 = vmatprep.subr.bf16.mxu0 0
  %151 = vmatpush2.bf16.msra.mxu0 0
  %152 = vmatprep.subr.bf16.mxu0 0
  %153 = vmatpush2.bf16.msra.mxu0 0
  %154 = vmatprep.subr.bf16.mxu0 0
  %155 = vmatpush2.bf16.msra.mxu0 0
  %156 = vmatprep.subr.bf16.mxu0 0
  %157 = vmatpush2.bf16.msra.mxu0 0
  %158 = vmatprep.subr.bf16.mxu0 0
  %159 = vmatpush2.bf16.msra.mxu0 0
  %160 = vmatprep.subr.bf16.mxu0 0
  %161 = vmatpush2.bf16.msra.mxu0 0
  %162 = vmatprep.subr.bf16.mxu0 0
  %163 = vmatpush2.bf16.msra.mxu0 0
  %164 = vmatprep.mubr.bf16.mxu0 0
  %165 = vmatmul.mubr.bf16.gmra.mxu0 %v130
  %v166 = vpop.f32.mrf.mxu0
  %v167 = vadd.f32 %v127, %v166
  %v168 = vpop.f32.mrf.mxu0
  %v169 = vpop.f32.mrf.mxu0
  %v170 = vpop.f32.mrf.mxu0
  %171 = vdwg.mxu0
  %vm172 = vcmp.gt.f32.partialorder %v167, 0.0
  %v173 = vmul.f32 %v167, 0.01
  %v174 = vsel %vm172, %v167, %v173
  %v175 = vld [vmem:[%s5] sm:$0xff]
  %v176 = vld [vmem:[%s5 + $0x8] sm:$0xff]
  %v177 = vld [vmem:[%s5 + $0x10] sm:$0xff]
  %v178 = vld [vmem:[%s5 + $0x18] sm:$0xff]
  %v179 = vld [vmem:[%s5 + $0x20] sm:$0xff]
  %v180 = vld [vmem:[%s5 + $0x28] sm:$0xff]
  %v181 = vld [vmem:[%s5 + $0x30] sm:$0xff]
  %v182 = vld [vmem:[%s5 + $0x38] sm:$0xff]
  %v183 = vpack.c.bf16 %v174, %v174
  %v184 = vpack.c.bf16 %v176, %v175
  %v185 = vpack.c.bf16 %v178, %v177
  %v186 = vpack.c.bf16 %v180, %v179
  %v187 = vpack.c.bf16 %v182, %v181
  %v188 = vld [vmem:[%s6] sm:$0x1]
  %v190 = vlaneseq
  %v191 = vshrl.u32 %v190, 7
  %v192 = vsub.s32 0, %v191
  %v193 = vrot.slane %v188, %v192
  %v196 = vsel %vm62, %v183, 0
  %198 = vmatprep.subr.bf16.mxu0 0
  %199 = vmatpush1.bf16.msra.mxu0 0
  %200 = vmatprep.subr.bf16.mxu0 0
  %201 = vmatpush1.bf16.msra.mxu0 0
  %202 = vmatprep.subr.bf16.mxu0 0
  %203 = vmatpush1.bf16.msra.mxu0 0
  %204 = vmatprep.subr.bf16.mxu0 0
  %205 = vmatpush1.bf16.msra.mxu0 0
  %206 = vmatprep.subr.bf16.mxu0 0
  %207 = vmatpush1.bf16.msra.mxu0 %v187
  %208 = vmatprep.subr.bf16.mxu0 0
  %209 = vmatpush1.bf16.msra.mxu0 %v186
  %210 = vmatprep.subr.bf16.mxu0 0
  %211 = vmatpush1.bf16.msra.mxu0 %v185
  %212 = vmatprep.subr.bf16.mxu0 0
  %213 = vmatpush1.bf16.msra.mxu0 %v184
  %214 = vmatprep.subr.bf16.mxu0 0
  %215 = vmatpush2.bf16.msra.mxu0 0
  %216 = vmatprep.subr.bf16.mxu0 0
  %217 = vmatpush2.bf16.msra.mxu0 0
  %218 = vmatprep.subr.bf16.mxu0 0
  %219 = vmatpush2.bf16.msra.mxu0 0
  %220 = vmatprep.subr.bf16.mxu0 0
  %221 = vmatpush2.bf16.msra.mxu0 0
  %222 = vmatprep.subr.bf16.mxu0 0
  %223 = vmatpush2.bf16.msra.mxu0 0
  %224 = vmatprep.subr.bf16.mxu0 0
  %225 = vmatpush2.bf16.msra.mxu0 0
  %226 = vmatprep.subr.bf16.mxu0 0
  %227 = vmatpush2.bf16.msra.mxu0 0
  %228 = vmatprep.subr.bf16.mxu0 0
  %229 = vmatpush2.bf16.msra.mxu0 0
  %230 = vmatprep.mubr.bf16.mxu0 0
  %231 = vmatmul.mubr.bf16.gmra.mxu0 %v196
  %v232 = vpop.f32.mrf.mxu0
  %v233 = vadd.f32 %v193, %v232
  %v234 = vpop.f32.mrf.mxu0
  %v235 = vpop.f32.mrf.mxu0
  %v236 = vpop.f32.mrf.mxu0
  %237 = vdwg.mxu0
  %vm238 = vcmp.gt.f32.partialorder %v233, 0.0
  %v239 = vmul.f32 %v233, 0.01
  %v240 = vsel %vm238, %v233, %v239
  %v241 = vld [vmem:[%s7] sm:$0xff]
  %v242 = vld [vmem:[%s7 + $0x8] sm:$0xff]
  %v243 = vld [vmem:[%s7 + $0x10] sm:$0xff]
  %v244 = vld [vmem:[%s7 + $0x18] sm:$0xff]
  %v245 = vld [vmem:[%s7 + $0x20] sm:$0xff]
  %v246 = vld [vmem:[%s7 + $0x28] sm:$0xff]
  %v247 = vld [vmem:[%s7 + $0x30] sm:$0xff]
  %v248 = vld [vmem:[%s7 + $0x38] sm:$0xff]
  %v249 = vpack.c.bf16 %v240, %v240
  %v250 = vpack.c.bf16 %v242, %v241
  %v251 = vpack.c.bf16 %v244, %v243
  %v252 = vpack.c.bf16 %v246, %v245
  %v253 = vpack.c.bf16 %v248, %v247
  %v254 = vld [vmem:[%s8] sm:$0x1]
  %v256 = vlaneseq
  %v257 = vshrl.u32 %v256, 7
  %v258 = vsub.s32 0, %v257
  %v259 = vrot.slane %v254, %v258
  %v262 = vsel %vm62, %v249, 0
  %264 = vmatprep.subr.bf16.mxu0 0
  %265 = vmatpush1.bf16.msra.mxu0 0
  %266 = vmatprep.subr.bf16.mxu0 0
  %267 = vmatpush1.bf16.msra.mxu0 0
  %268 = vmatprep.subr.bf16.mxu0 0
  %269 = vmatpush1.bf16.msra.mxu0 0
  %270 = vmatprep.subr.bf16.mxu0 0
  %271 = vmatpush1.bf16.msra.mxu0 0
  %272 = vmatprep.subr.bf16.mxu0 0
  %273 = vmatpush1.bf16.msra.mxu0 %v253
  %274 = vmatprep.subr.bf16.mxu0 0
  %275 = vmatpush1.bf16.msra.mxu0 %v252
  %276 = vmatprep.subr.bf16.mxu0 0
  %277 = vmatpush1.bf16.msra.mxu0 %v251
  %278 = vmatprep.subr.bf16.mxu0 0
  %279 = vmatpush1.bf16.msra.mxu0 %v250
  %280 = vmatprep.subr.bf16.mxu0 0
  %281 = vmatpush2.bf16.msra.mxu0 0
  %282 = vmatprep.subr.bf16.mxu0 0
  %283 = vmatpush2.bf16.msra.mxu0 0
  %284 = vmatprep.subr.bf16.mxu0 0
  %285 = vmatpush2.bf16.msra.mxu0 0
  %286 = vmatprep.subr.bf16.mxu0 0
  %287 = vmatpush2.bf16.msra.mxu0 0
  %288 = vmatprep.subr.bf16.mxu0 0
  %289 = vmatpush2.bf16.msra.mxu0 0
  %290 = vmatprep.subr.bf16.mxu0 0
  %291 = vmatpush2.bf16.msra.mxu0 0
  %292 = vmatprep.subr.bf16.mxu0 0
  %293 = vmatpush2.bf16.msra.mxu0 0
  %294 = vmatprep.subr.bf16.mxu0 0
  %295 = vmatpush2.bf16.msra.mxu0 0
  %296 = vmatprep.mubr.bf16.mxu0 0
  %297 = vmatmul.mubr.bf16.gmra.mxu0 %v262
  %v298 = vpop.f32.mrf.mxu0
  %v299 = vadd.f32 %v259, %v298
  %v300 = vpop.f32.mrf.mxu0
  %v301 = vpop.f32.mrf.mxu0
  %v302 = vpop.f32.mrf.mxu0
  %303 = vdwg.mxu0
  %vm304 = vcmp.gt.f32.partialorder %v299, 0.0
  %v305 = vmul.f32 %v299, 0.01
  %v306 = vsel %vm304, %v299, %v305
  %v307 = vld [vmem:[%s9] sm:$0x1]
  %v309 = vlaneseq
  %v310 = vshrl.u32 %v309, 7
  %v311 = vsub.s32 0, %v310
  %v312 = vrot.slane %v307, %v311
  %v314 = vmul.f32 %v306, %v312
  %v315 = vsel %vm62, %v314, 0.0
  %316 = vadd.xlane.f32.xlu0 %v315
  %v317 = vpop.xlane.xlu0 %316
  %v318 = vld [vmem:[#allocation2] sm:$0x1]
  %v320 = vlaneseq
  %v321 = vshrl.u32 %v320, 7
  %v322 = vsub.s32 0, %v321
  %v323 = vrot.slane %v318, %v322
  %v325 = vadd.f32 %v317, %v323
  %vm326 = vcmask 7168
  %327 = vst.msk [vmem:[%s11] sm:$0xff] %vm326, %v325
  // Predicated region
  $region46: #{vct_predictor_forward.7} parent=0 // pred_check
    _
  $region47: #{vct_predictor_forward.7} parent=0 // pred_check_branch
    %329 = sbr.rel (0) target = $region49
  $region48: #{vct_predictor_forward.7} parent=0 // pred_region
    _
  $region49: #{vct_predictor_forward.7} parent=0 // pred_fallthru
    _
  // Predicated region
  $region50: #{vct_predictor_forward.7} parent=0 // pred_check
    _
  $region51: #{vct_predictor_forward.7} parent=0 // pred_check_branch
    %331 = sbr.rel (0) target = $region53
  $region52: #{vct_predictor_forward.7} parent=0 // pred_region
    _
  $region53: #{vct_predictor_forward.7} parent=0 // pred_fallthru
    _

// kernel: vct_predictor_forward.6
$region0: #{vct_predictor_forward.6}
  #allocation0 [shape = 'u32[]', space=smem, size = 0x4, offset = 0x4, fixed_abs, tag = 'smem constant byte address 0x4 - core index']
  #allocation1 [shape = 'u32[144,128]{1,0:T(1,128)}', space=vmem, size = 0x12000, scoped, tag = 'internal scratch']
  %s0 = inlined_call_operand.vmem [shape: f32[32,16], index: 0, kind: input, shape index: {}]
  %s1 = inlined_call_operand.vmem [shape: f32[256,16], index: 1, kind: input, shape index: {}]
  %s2 = inlined_call_operand.vmem [shape: f32[16,16], index: 2, kind: input, shape index: {}]
  %s3 = inlined_call_operand.vmem [shape: f32[16,128], index: 3, kind: input, shape index: {}]
  %s4 = inlined_call_operand.vmem [shape: f32[16,48], index: 4, kind: input, shape index: {}]
  %s5 = inlined_call_operand.vmem [shape: f32[1,48], index: 5, kind: input, shape index: {}]
  %s6 = inlined_call_operand.vmem [shape: f32[16,16], index: 6, kind: input, shape index: {}]
  %s7 = inlined_call_operand.vmem [shape: f32[1,16], index: 7, kind: input, shape index: {}]
  %s8 = inlined_call_operand.vmem [shape: f32[1,16], index: 8, kind: input, shape index: {}]
  %s9 = inlined_call_operand.vmem [shape: f32[1,16], index: 9, kind: input, shape index: {}]
  %s10 = inlined_call_operand.vmem [shape: f32[16,16], index: 10, kind: input, shape index: {}]
  %s11 = inlined_call_operand.vmem [shape: f32[1,16], index: 11, kind: input, shape index: {}]
  %s12 = inlined_call_operand.vmem [shape: f32[16,32], index: 12, kind: input, shape index: {}]
  %s13 = inlined_call_operand.vmem [shape: f32[1,32], index: 13, kind: input, shape index: {}]
  %s14 = inlined_call_operand.vmem [shape: f32[16,16], index: 14, kind: input, shape index: {}]
  %s15 = inlined_call_operand.vmem [shape: f32[1,16], index: 15, kind: input, shape index: {}]
  %s16 = inlined_call_operand.vmem [shape: f32[1,16], index: 16, kind: input, shape index: {}]
  %s17 = inlined_call_operand.vmem [shape: f32[1,16], index: 17, kind: input, shape index: {}]
  %s18 = inlined_call_operand.vmem [shape: f32[16,32], index: 18, kind: input, shape index: {}]
  %s19 = inlined_call_operand.vmem [shape: f32[1,32], index: 19, kind: input, shape index: {}]
  %s20 = inlined_call_operand.vmem [shape: f32[32,16], index: 20, kind: input, shape index: {}]
  %s21 = inlined_call_operand.vmem [shape: f32[1,16], index: 21, kind: input, shape index: {}]
  %s22 = inlined_call_operand.vmem [shape: f32[1,16], index: 22, kind: input, shape index: {}]
  %s23 = inlined_call_operand.vmem [shape: f32[1,16], index: 23, kind: input, shape index: {}]
  %s24 = inlined_call_operand.vmem [shape: f32[32,16], index: 24, kind: output, shape index: {}]
  %s25 = sld [smem:[#allocation0]]
  $region129: #{vct_predictor_forward.6} parent=0
    _
  %s27 = ssub.s32 1, %s25
  %s28 = scalar_select 0, %s27, %s25
  loop: start=0, step=1, limit=4
  $region2: #{vct_predictor_forward.6} parent=0 // loop_pre_header
    _
  $region3: #{vct_predictor_forward.6} parent=0 // loop_header
    %s30 = sphi 0, %s34
    %p31 = scmp.ge.s32.totalorder %s30, 4
    %s40 = sphi 0, %s42
    %s43 = sphi 0, %s40
    %s44 = sphi 0, %s43
    %s60 = sphi 0, %s44
    %s66 = sphi 0, %s68
    %s69 = sphi 0, %s66
    %s70 = sphi 0, %s69
    %s86 = sphi 0, %s70
    %s90 = sphi 0, %s90
    %s92 = sphi 0, %s90
    %s93 = sphi 0, %s92
    %s107 = sphi 0, %s93
    %s111 = sphi 0, %s111
    %s113 = sphi 0, %s111
    %s114 = sphi 0, %s113
    %s128 = sphi 0, %s114
    %s132 = sphi 0, %s132
    %s134 = sphi 0, %s132
    %s135 = sphi 0, %s134
    %s149 = sphi 0, %s135
    %s153 = sphi 0, %s153
    %s155 = sphi 0, %s153
    %s156 = sphi 0, %s155
    %s170 = sphi 0, %s156
    %s174 = sphi 0, %s174
    %s176 = sphi 0, %s174
    %s177 = sphi 0, %s176
    %s191 = sphi 0, %s177
    %s195 = sphi 0, %s195
    %s197 = sphi 0, %s195
    %s198 = sphi 0, %s197
    %s212 = sphi 0, %s198
    %s216 = sphi 0, %s216
    %s218 = sphi 0, %s216
    %s219 = sphi 0, %s218
    %s233 = sphi 0, %s219
    %s237 = sphi 0, %s237
    %s239 = sphi 0, %s237
    %s240 = sphi 0, %s239
    %s254 = sphi 0, %s240
    %s258 = sphi 0, %s258
    %s260 = sphi 0, %s258
    %s261 = sphi 0, %s260
    %s275 = sphi 0, %s261
    %s279 = sphi 0, %s279
    %s281 = sphi 0, %s279
    %s282 = sphi 0, %s281
    %s296 = sphi 0, %s282
    %s300 = sphi 0, %s300
    %s302 = sphi 0, %s300
    %s303 = sphi 0, %s302
    %s317 = sphi 0, %s303
    %s321 = sphi 0, %s321
    %s323 = sphi 0, %s321
    %s324 = sphi 0, %s323
    %s338 = sphi 0, %s324
    %s342 = sphi 0, %s342
    %s344 = sphi 0, %s342
    %s345 = sphi 0, %s344
    %s359 = sphi 0, %s345
    %s363 = sphi 0, %s363
    %s365 = sphi 0, %s363
    %s366 = sphi 0, %s365
    %s380 = sphi 0, %s366
    %s384 = sphi 0, %s384
    %s386 = sphi 0, %s384
    %s387 = sphi 0, %s386
    %s401 = sphi 0, %s387
    %s405 = sphi 0, %s405
    %s407 = sphi 0, %s405
    %s408 = sphi 0, %s407
    %s422 = sphi 0, %s408
    %s426 = sphi 0, %s426
    %s428 = sphi 0, %s426
    %s429 = sphi 0, %s428
    %s443 = sphi 0, %s429
    %s447 = sphi 0, %s447
    %s449 = sphi 0, %s447
    %s450 = sphi 0, %s449
    %s464 = sphi 0, %s450
    %s468 = sphi 0, %s468
    %s470 = sphi 0, %s468
    %s471 = sphi 0, %s470
    %s485 = sphi 0, %s471
    %s489 = sphi 0, %s489
    %s491 = sphi 0, %s489
    %s492 = sphi 0, %s491
    %s506 = sphi 0, %s492
    %s510 = sphi 0, %s510
    %s512 = sphi 0, %s510
    %s513 = sphi 0, %s512
    %s527 = sphi 0, %s513
    %s531 = sphi 0, %s531
    %s533 = sphi 0, %s531
    %s534 = sphi 0, %s533
    %s548 = sphi 0, %s534
    %s554 = sphi 0, %s556
    %s557 = sphi 0, %s554
    %s558 = sphi 0, %s557
    %s574 = sphi 0, %s558
  $region4: #{vct_predictor_forward.6} parent=0 // loop_header_branch
    %33 = sbr.rel (%p31) target = $region8
  $region5: #{vct_predictor_forward.6} parent=0 // loop_body
    %s35 = ssub.s32 %s30, 1
    %s36 = ssub.s32 %s30, 2
    %s37 = sadd.s32 %s30, 1
    %s38 = ssub.s32 %s30, %s37
    %p39 = scmp.eq.s32.totalorder %s38, 0
    %s41 = sadd.s32 %s40, 1
    %s42 = scalar_select %p39, %s40, %s41
    %p45 = pneg %p39
    %p46 = scmp.eq.s32.totalorder %s30, 1
    %p47 = por %p45, %p46
    %p48 = scmp.ne.s32.totalorder %s40, %s43
    %p49 = scmp.eq.s32.totalorder %s30, 0
    %p50 = por %p48, %p49
    %p51 = scmp.ne.s32.totalorder %s40, %s43
    %p52 = scmp.eq.s32.totalorder %s35, 1
    %p53 = por %p51, %p52
    %p54 = scmp.ne.s32.totalorder %s43, %s44
    %p55 = scmp.eq.s32.totalorder %s35, 0
    %p56 = por %p54, %p55
    %p57 = scmp.ne.s32.totalorder %s43, %s44
    %p58 = scmp.eq.s32.totalorder %s36, 1
    %p59 = por %p57, %p58
    %p61 = scmp.ne.s32.totalorder %s44, %s60
    %p62 = scmp.eq.s32.totalorder %s36, 0
    %p63 = por %p61, %p62
    %s64 = ssub.s32 %s30, %s37
    %p65 = scmp.eq.s32.totalorder %s64, 0
    %s67 = sadd.s32 %s66, 1
    %s68 = scalar_select %p65, %s66, %s67
    %p71 = pneg %p65
    %p72 = scmp.eq.s32.totalorder %s30, 1
    %p73 = por %p71, %p72
    %p74 = scmp.ne.s32.totalorder %s66, %s69
    %p75 = scmp.eq.s32.totalorder %s30, 0
    %p76 = por %p74, %p75
    %p77 = scmp.ne.s32.totalorder %s66, %s69
    %p78 = scmp.eq.s32.totalorder %s35, 1
    %p79 = por %p77, %p78
    %p80 = scmp.ne.s32.totalorder %s69, %s70
    %p81 = scmp.eq.s32.totalorder %s35, 0
    %p82 = por %p80, %p81
    %p83 = scmp.ne.s32.totalorder %s69, %s70
    %p84 = scmp.eq.s32.totalorder %s36, 1
    %p85 = por %p83, %p84
    %p87 = scmp.ne.s32.totalorder %s70, %s86
    %p88 = scmp.eq.s32.totalorder %s36, 0
    %p89 = por %p87, %p88
    %s91 = sadd.s32 %s90, 1
    %p94 = scmp.eq.s32.totalorder %s30, 1
    %p95 = scmp.ne.s32.totalorder %s90, %s92
    %p96 = scmp.eq.s32.totalorder %s30, 0
    %p97 = por %p95, %p96
    %p98 = scmp.ne.s32.totalorder %s90, %s92
    %p99 = scmp.eq.s32.totalorder %s35, 1
    %p100 = por %p98, %p99
    %p101 = scmp.ne.s32.totalorder %s92, %s93
    %p102 = scmp.eq.s32.totalorder %s35, 0
    %p103 = por %p101, %p102
    %p104 = scmp.ne.s32.totalorder %s92, %s93
    %p105 = scmp.eq.s32.totalorder %s36, 1
    %p106 = por %p104, %p105
    %p108 = scmp.ne.s32.totalorder %s93, %s107
    %p109 = scmp.eq.s32.totalorder %s36, 0
    %p110 = por %p108, %p109
    %s112 = sadd.s32 %s111, 1
    %p115 = scmp.eq.s32.totalorder %s30, 1
    %p116 = scmp.ne.s32.totalorder %s111, %s113
    %p117 = scmp.eq.s32.totalorder %s30, 0
    %p118 = por %p116, %p117
    %p119 = scmp.ne.s32.totalorder %s111, %s113
    %p120 = scmp.eq.s32.totalorder %s35, 1
    %p121 = por %p119, %p120
    %p122 = scmp.ne.s32.totalorder %s113, %s114
    %p123 = scmp.eq.s32.totalorder %s35, 0
    %p124 = por %p122, %p123
    %p125 = scmp.ne.s32.totalorder %s113, %s114
    %p126 = scmp.eq.s32.totalorder %s36, 1
    %p127 = por %p125, %p126
    %p129 = scmp.ne.s32.totalorder %s114, %s128
    %p130 = scmp.eq.s32.totalorder %s36, 0
    %p131 = por %p129, %p130
    %s133 = sadd.s32 %s132, 1
    %p136 = scmp.eq.s32.totalorder %s30, 1
    %p137 = scmp.ne.s32.totalorder %s132, %s134
    %p138 = scmp.eq.s32.totalorder %s30, 0
    %p139 = por %p137, %p138
    %p140 = scmp.ne.s32.totalorder %s132, %s134
    %p141 = scmp.eq.s32.totalorder %s35, 1
    %p142 = por %p140, %p141
    %p143 = scmp.ne.s32.totalorder %s134, %s135
    %p144 = scmp.eq.s32.totalorder %s35, 0
    %p145 = por %p143, %p144
    %p146 = scmp.ne.s32.totalorder %s134, %s135
    %p147 = scmp.eq.s32.totalorder %s36, 1
    %p148 = por %p146, %p147
    %p150 = scmp.ne.s32.totalorder %s135, %s149
    %p151 = scmp.eq.s32.totalorder %s36, 0
    %p152 = por %p150, %p151
    %s154 = sadd.s32 %s153, 1
    %p157 = scmp.eq.s32.totalorder %s30, 1
    %p158 = scmp.ne.s32.totalorder %s153, %s155
    %p159 = scmp.eq.s32.totalorder %s30, 0
    %p160 = por %p158, %p159
    %p161 = scmp.ne.s32.totalorder %s153, %s155
    %p162 = scmp.eq.s32.totalorder %s35, 1
    %p163 = por %p161, %p162
    %p164 = scmp.ne.s32.totalorder %s155, %s156
    %p165 = scmp.eq.s32.totalorder %s35, 0
    %p166 = por %p164, %p165
    %p167 = scmp.ne.s32.totalorder %s155, %s156
    %p168 = scmp.eq.s32.totalorder %s36, 1
    %p169 = por %p167, %p168
    %p171 = scmp.ne.s32.totalorder %s156, %s170
    %p172 = scmp.eq.s32.totalorder %s36, 0
    %p173 = por %p171, %p172
    %s175 = sadd.s32 %s174, 1
    %p178 = scmp.eq.s32.totalorder %s30, 1
    %p179 = scmp.ne.s32.totalorder %s174, %s176
    %p180 = scmp.eq.s32.totalorder %s30, 0
    %p181 = por %p179, %p180
    %p182 = scmp.ne.s32.totalorder %s174, %s176
    %p183 = scmp.eq.s32.totalorder %s35, 1
    %p184 = por %p182, %p183
    %p185 = scmp.ne.s32.totalorder %s176, %s177
    %p186 = scmp.eq.s32.totalorder %s35, 0
    %p187 = por %p185, %p186
    %p188 = scmp.ne.s32.totalorder %s176, %s177
    %p189 = scmp.eq.s32.totalorder %s36, 1
    %p190 = por %p188, %p189
    %p192 = scmp.ne.s32.totalorder %s177, %s191
    %p193 = scmp.eq.s32.totalorder %s36, 0
    %p194 = por %p192, %p193
    %s196 = sadd.s32 %s195, 1
    %p199 = scmp.eq.s32.totalorder %s30, 1
    %p200 = scmp.ne.s32.totalorder %s195, %s197
    %p201 = scmp.eq.s32.totalorder %s30, 0
    %p202 = por %p200, %p201
    %p203 = scmp.ne.s32.totalorder %s195, %s197
    %p204 = scmp.eq.s32.totalorder %s35, 1
    %p205 = por %p203, %p204
    %p206 = scmp.ne.s32.totalorder %s197, %s198
    %p207 = scmp.eq.s32.totalorder %s35, 0
    %p208 = por %p206, %p207
    %p209 = scmp.ne.s32.totalorder %s197, %s198
    %p210 = scmp.eq.s32.totalorder %s36, 1
    %p211 = por %p209, %p210
    %p213 = scmp.ne.s32.totalorder %s198, %s212
    %p214 = scmp.eq.s32.totalorder %s36, 0
    %p215 = por %p213, %p214
    %s217 = sadd.s32 %s216, 1
    %p220 = scmp.eq.s32.totalorder %s30, 1
    %p221 = scmp.ne.s32.totalorder %s216, %s218
    %p222 = scmp.eq.s32.totalorder %s30, 0
    %p223 = por %p221, %p222
    %p224 = scmp.ne.s32.totalorder %s216, %s218
    %p225 = scmp.eq.s32.totalorder %s35, 1
    %p226 = por %p224, %p225
    %p227 = scmp.ne.s32.totalorder %s218, %s219
    %p228 = scmp.eq.s32.totalorder %s35, 0
    %p229 = por %p227, %p228
    %p230 = scmp.ne.s32.totalorder %s218, %s219
    %p231 = scmp.eq.s32.totalorder %s36, 1
    %p232 = por %p230, %p231
    %p234 = scmp.ne.s32.totalorder %s219, %s233
    %p235 = scmp.eq.s32.totalorder %s36, 0
    %p236 = por %p234, %p235
    %s238 = sadd.s32 %s237, 1
    %p241 = scmp.eq.s32.totalorder %s30, 1
    %p242 = scmp.ne.s32.totalorder %s237, %s239
    %p243 = scmp.eq.s32.totalorder %s30, 0
    %p244 = por %p242, %p243
    %p245 = scmp.ne.s32.totalorder %s237, %s239
    %p246 = scmp.eq.s32.totalorder %s35, 1
    %p247 = por %p245, %p246
    %p248 = scmp.ne.s32.totalorder %s239, %s240
    %p249 = scmp.eq.s32.totalorder %s35, 0
    %p250 = por %p248, %p249
    %p251 = scmp.ne.s32.totalorder %s239, %s240
    %p252 = scmp.eq.s32.totalorder %s36, 1
    %p253 = por %p251, %p252
    %p255 = scmp.ne.s32.totalorder %s240, %s254
    %p256 = scmp.eq.s32.totalorder %s36, 0
    %p257 = por %p255, %p256
    %s259 = sadd.s32 %s258, 1
    %p262 = scmp.eq.s32.totalorder %s30, 1
    %p263 = scmp.ne.s32.totalorder %s258, %s260
    %p264 = scmp.eq.s32.totalorder %s30, 0
    %p265 = por %p263, %p264
    %p266 = scmp.ne.s32.totalorder %s258, %s260
    %p267 = scmp.eq.s32.totalorder %s35, 1
    %p268 = por %p266, %p267
    %p269 = scmp.ne.s32.totalorder %s260, %s261
    %p270 = scmp.eq.s32.totalorder %s35, 0
    %p271 = por %p269, %p270
    %p272 = scmp.ne.s32.totalorder %s260, %s261
    %p273 = scmp.eq.s32.totalorder %s36, 1
    %p274 = por %p272, %p273
    %p276 = scmp.ne.s32.totalorder %s261, %s275
    %p277 = scmp.eq.s32.totalorder %s36, 0
    %p278 = por %p276, %p277
    %s280 = sadd.s32 %s279, 1
    %p283 = scmp.eq.s32.totalorder %s30, 1
    %p284 = scmp.ne.s32.totalorder %s279, %s281
    %p285 = scmp.eq.s32.totalorder %s30, 0
    %p286 = por %p284, %p285
    %p287 = scmp.ne.s32.totalorder %s279, %s281
    %p288 = scmp.eq.s32.totalorder %s35, 1
    %p289 = por %p287, %p288
    %p290 = scmp.ne.s32.totalorder %s281, %s282
    %p291 = scmp.eq.s32.totalorder %s35, 0
    %p292 = por %p290, %p291
    %p293 = scmp.ne.s32.totalorder %s281, %s282
    %p294 = scmp.eq.s32.totalorder %s36, 1
    %p295 = por %p293, %p294
    %p297 = scmp.ne.s32.totalorder %s282, %s296
    %p298 = scmp.eq.s32.totalorder %s36, 0
    %p299 = por %p297, %p298
    %s301 = sadd.s32 %s300, 1
    %p304 = scmp.eq.s32.totalorder %s30, 1
    %p305 = scmp.ne.s32.totalorder %s300, %s302
    %p306 = scmp.eq.s32.totalorder %s30, 0
    %p307 = por %p305, %p306
    %p308 = scmp.ne.s32.totalorder %s300, %s302
    %p309 = scmp.eq.s32.totalorder %s35, 1
    %p310 = por %p308, %p309
    %p311 = scmp.ne.s32.totalorder %s302, %s303
    %p312 = scmp.eq.s32.totalorder %s35, 0
    %p313 = por %p311, %p312
    %p314 = scmp.ne.s32.totalorder %s302, %s303
    %p315 = scmp.eq.s32.totalorder %s36, 1
    %p316 = por %p314, %p315
    %p318 = scmp.ne.s32.totalorder %s303, %s317
    %p319 = scmp.eq.s32.totalorder %s36, 0
    %p320 = por %p318, %p319
    %s322 = sadd.s32 %s321, 1
    %p325 = scmp.eq.s32.totalorder %s30, 1
    %p326 = scmp.ne.s32.totalorder %s321, %s323
    %p327 = scmp.eq.s32.totalorder %s30, 0
    %p328 = por %p326, %p327
    %p329 = scmp.ne.s32.totalorder %s321, %s323
    %p330 = scmp.eq.s32.totalorder %s35, 1
    %p331 = por %p329, %p330
    %p332 = scmp.ne.s32.totalorder %s323, %s324
    %p333 = scmp.eq.s32.totalorder %s35, 0
    %p334 = por %p332, %p333
    %p335 = scmp.ne.s32.totalorder %s323, %s324
    %p336 = scmp.eq.s32.totalorder %s36, 1
    %p337 = por %p335, %p336
    %p339 = scmp.ne.s32.totalorder %s324, %s338
    %p340 = scmp.eq.s32.totalorder %s36, 0
    %p341 = por %p339, %p340
    %s343 = sadd.s32 %s342, 1
    %p346 = scmp.eq.s32.totalorder %s30, 1
    %p347 = scmp.ne.s32.totalorder %s342, %s344
    %p348 = scmp.eq.s32.totalorder %s30, 0
    %p349 = por %p347, %p348
    %p350 = scmp.ne.s32.totalorder %s342, %s344
    %p351 = scmp.eq.s32.totalorder %s35, 1
    %p352 = por %p350, %p351
    %p353 = scmp.ne.s32.totalorder %s344, %s345
    %p354 = scmp.eq.s32.totalorder %s35, 0
    %p355 = por %p353, %p354
    %p356 = scmp.ne.s32.totalorder %s344, %s345
    %p357 = scmp.eq.s32.totalorder %s36, 1
    %p358 = por %p356, %p357
    %p360 = scmp.ne.s32.totalorder %s345, %s359
    %p361 = scmp.eq.s32.totalorder %s36, 0
    %p362 = por %p360, %p361
    %s364 = sadd.s32 %s363, 1
    %p367 = scmp.eq.s32.totalorder %s30, 1
    %p368 = scmp.ne.s32.totalorder %s363, %s365
    %p369 = scmp.eq.s32.totalorder %s30, 0
    %p370 = por %p368, %p369
    %p371 = scmp.ne.s32.totalorder %s363, %s365
    %p372 = scmp.eq.s32.totalorder %s35, 1
    %p373 = por %p371, %p372
    %p374 = scmp.ne.s32.totalorder %s365, %s366
    %p375 = scmp.eq.s32.totalorder %s35, 0
    %p376 = por %p374, %p375
    %p377 = scmp.ne.s32.totalorder %s365, %s366
    %p378 = scmp.eq.s32.totalorder %s36, 1
    %p379 = por %p377, %p378
    %p381 = scmp.ne.s32.totalorder %s366, %s380
    %p382 = scmp.eq.s32.totalorder %s36, 0
    %p383 = por %p381, %p382
    %s385 = sadd.s32 %s384, 1
    %p388 = scmp.eq.s32.totalorder %s30, 1
    %p389 = scmp.ne.s32.totalorder %s384, %s386
    %p390 = scmp.eq.s32.totalorder %s30, 0
    %p391 = por %p389, %p390
    %p392 = scmp.ne.s32.totalorder %s384, %s386
    %p393 = scmp.eq.s32.totalorder %s35, 1
    %p394 = por %p392, %p393
    %p395 = scmp.ne.s32.totalorder %s386, %s387
    %p396 = scmp.eq.s32.totalorder %s35, 0
    %p397 = por %p395, %p396
    %p398 = scmp.ne.s32.totalorder %s386, %s387
    %p399 = scmp.eq.s32.totalorder %s36, 1
    %p400 = por %p398, %p399
    %p402 = scmp.ne.s32.totalorder %s387, %s401
    %p403 = scmp.eq.s32.totalorder %s36, 0
    %p404 = por %p402, %p403
    %s406 = sadd.s32 %s405, 1
    %p409 = scmp.eq.s32.totalorder %s30, 1
    %p410 = scmp.ne.s32.totalorder %s405, %s407
    %p411 = scmp.eq.s32.totalorder %s30, 0
    %p412 = por %p410, %p411
    %p413 = scmp.ne.s32.totalorder %s405, %s407
    %p414 = scmp.eq.s32.totalorder %s35, 1
    %p415 = por %p413, %p414
    %p416 = scmp.ne.s32.totalorder %s407, %s408
    %p417 = scmp.eq.s32.totalorder %s35, 0
    %p418 = por %p416, %p417
    %p419 = scmp.ne.s32.totalorder %s407, %s408
    %p420 = scmp.eq.s32.totalorder %s36, 1
    %p421 = por %p419, %p420
    %p423 = scmp.ne.s32.totalorder %s408, %s422
    %p424 = scmp.eq.s32.totalorder %s36, 0
    %p425 = por %p423, %p424
    %s427 = sadd.s32 %s426, 1
    %p430 = scmp.eq.s32.totalorder %s30, 1
    %p431 = scmp.ne.s32.totalorder %s426, %s428
    %p432 = scmp.eq.s32.totalorder %s30, 0
    %p433 = por %p431, %p432
    %p434 = scmp.ne.s32.totalorder %s426, %s428
    %p435 = scmp.eq.s32.totalorder %s35, 1
    %p436 = por %p434, %p435
    %p437 = scmp.ne.s32.totalorder %s428, %s429
    %p438 = scmp.eq.s32.totalorder %s35, 0
    %p439 = por %p437, %p438
    %p440 = scmp.ne.s32.totalorder %s428, %s429
    %p441 = scmp.eq.s32.totalorder %s36, 1
    %p442 = por %p440, %p441
    %p444 = scmp.ne.s32.totalorder %s429, %s443
    %p445 = scmp.eq.s32.totalorder %s36, 0
    %p446 = por %p444, %p445
    %s448 = sadd.s32 %s447, 1
    %p451 = scmp.eq.s32.totalorder %s30, 1
    %p452 = scmp.ne.s32.totalorder %s447, %s449
    %p453 = scmp.eq.s32.totalorder %s30, 0
    %p454 = por %p452, %p453
    %p455 = scmp.ne.s32.totalorder %s447, %s449
    %p456 = scmp.eq.s32.totalorder %s35, 1
    %p457 = por %p455, %p456
    %p458 = scmp.ne.s32.totalorder %s449, %s450
    %p459 = scmp.eq.s32.totalorder %s35, 0
    %p460 = por %p458, %p459
    %p461 = scmp.ne.s32.totalorder %s449, %s450
    %p462 = scmp.eq.s32.totalorder %s36, 1
    %p463 = por %p461, %p462
    %p465 = scmp.ne.s32.totalorder %s450, %s464
    %p466 = scmp.eq.s32.totalorder %s36, 0
    %p467 = por %p465, %p466
    %s469 = sadd.s32 %s468, 1
    %p472 = scmp.eq.s32.totalorder %s30, 1
    %p473 = scmp.ne.s32.totalorder %s468, %s470
    %p474 = scmp.eq.s32.totalorder %s30, 0
    %p475 = por %p473, %p474
    %p476 = scmp.ne.s32.totalorder %s468, %s470
    %p477 = scmp.eq.s32.totalorder %s35, 1
    %p478 = por %p476, %p477
    %p479 = scmp.ne.s32.totalorder %s470, %s471
    %p480 = scmp.eq.s32.totalorder %s35, 0
    %p481 = por %p479, %p480
    %p482 = scmp.ne.s32.totalorder %s470, %s471
    %p483 = scmp.eq.s32.totalorder %s36, 1
    %p484 = por %p482, %p483
    %p486 = scmp.ne.s32.totalorder %s471, %s485
    %p487 = scmp.eq.s32.totalorder %s36, 0
    %p488 = por %p486, %p487
    %s490 = sadd.s32 %s489, 1
    %p493 = scmp.eq.s32.totalorder %s30, 1
    %p494 = scmp.ne.s32.totalorder %s489, %s491
    %p495 = scmp.eq.s32.totalorder %s30, 0
    %p496 = por %p494, %p495
    %p497 = scmp.ne.s32.totalorder %s489, %s491
    %p498 = scmp.eq.s32.totalorder %s35, 1
    %p499 = por %p497, %p498
    %p500 = scmp.ne.s32.totalorder %s491, %s492
    %p501 = scmp.eq.s32.totalorder %s35, 0
    %p502 = por %p500, %p501
    %p503 = scmp.ne.s32.totalorder %s491, %s492
    %p504 = scmp.eq.s32.totalorder %s36, 1
    %p505 = por %p503, %p504
    %p507 = scmp.ne.s32.totalorder %s492, %s506
    %p508 = scmp.eq.s32.totalorder %s36, 0
    %p509 = por %p507, %p508
    %s511 = sadd.s32 %s510, 1
    %p514 = scmp.eq.s32.totalorder %s30, 1
    %p515 = scmp.ne.s32.totalorder %s510, %s512
    %p516 = scmp.eq.s32.totalorder %s30, 0
    %p517 = por %p515, %p516
    %p518 = scmp.ne.s32.totalorder %s510, %s512
    %p519 = scmp.eq.s32.totalorder %s35, 1
    %p520 = por %p518, %p519
    %p521 = scmp.ne.s32.totalorder %s512, %s513
    %p522 = scmp.eq.s32.totalorder %s35, 0
    %p523 = por %p521, %p522
    %p524 = scmp.ne.s32.totalorder %s512, %s513
    %p525 = scmp.eq.s32.totalorder %s36, 1
    %p526 = por %p524, %p525
    %p528 = scmp.ne.s32.totalorder %s513, %s527
    %p529 = scmp.eq.s32.totalorder %s36, 0
    %p530 = por %p528, %p529
    %s532 = sadd.s32 %s531, 1
    %p535 = scmp.eq.s32.totalorder %s30, 1
    %p536 = scmp.ne.s32.totalorder %s531, %s533
    %p537 = scmp.eq.s32.totalorder %s30, 0
    %p538 = por %p536, %p537
    %p539 = scmp.ne.s32.totalorder %s531, %s533
    %p540 = scmp.eq.s32.totalorder %s35, 1
    %p541 = por %p539, %p540
    %p542 = scmp.ne.s32.totalorder %s533, %s534
    %p543 = scmp.eq.s32.totalorder %s35, 0
    %p544 = por %p542, %p543
    %p545 = scmp.ne.s32.totalorder %s533, %s534
    %p546 = scmp.eq.s32.totalorder %s36, 1
    %p547 = por %p545, %p546
    %p549 = scmp.ne.s32.totalorder %s534, %s548
    %p550 = scmp.eq.s32.totalorder %s36, 0
    %p551 = por %p549, %p550
    %s552 = ssub.s32 %s30, %s37
    %p553 = scmp.eq.s32.totalorder %s552, 0
    %s555 = sadd.s32 %s554, 1
    %s556 = scalar_select %p553, %s554, %s555
    %p559 = pneg %p553
    %p560 = scmp.eq.s32.totalorder %s30, 1
    %p561 = por %p559, %p560
    %p562 = scmp.ne.s32.totalorder %s554, %s557
    %p563 = scmp.eq.s32.totalorder %s30, 0
    %p564 = por %p562, %p563
    %p565 = scmp.ne.s32.totalorder %s554, %s557
    %p566 = scmp.eq.s32.totalorder %s35, 1
    %p567 = por %p565, %p566
    %p568 = scmp.ne.s32.totalorder %s557, %s558
    %p569 = scmp.eq.s32.totalorder %s35, 0
    %p570 = por %p568, %p569
    %p571 = scmp.ne.s32.totalorder %s557, %s558
    %p572 = scmp.eq.s32.totalorder %s36, 1
    %p573 = por %p571, %p572
    %p575 = scmp.ne.s32.totalorder %s558, %s574
    %p576 = scmp.eq.s32.totalorder %s36, 0
    %p577 = por %p575, %p576
    %p578 = scmp.le.s32.totalorder 1, %s30
    %p579 = scmp.lt.s32.totalorder %s30, 3
    %p580 = pnand %p578, %p579
    %p581 = pneg %p580
    // Predicated region
    $region9: #{vct_predictor_forward.6} parent=5 // pred_check
      _
    $region10: #{vct_predictor_forward.6} parent=5 // pred_check_branch
      %583 = sbr.rel (%p580) target = $region12
    $region11: #{vct_predictor_forward.6} parent=5 // pred_region
      %s584 = ssub.s32 %s30, 1
      // Predicated region
      $region13: #{vct_predictor_forward.6} parent=11 // pred_check
        %p585 = pneg %p103
      $region14: #{vct_predictor_forward.6} parent=11 // pred_check_branch
        %587 = sbr.rel (%p585) target = $region16
      $region15: #{vct_predictor_forward.6} parent=11 // pred_region
        _
      $region16: #{vct_predictor_forward.6} parent=11 // pred_fallthru
        _
      // Predicated region
      $region17: #{vct_predictor_forward.6} parent=11 // pred_check
        %p588 = pneg %p124
      $region18: #{vct_predictor_forward.6} parent=11 // pred_check_branch
        %590 = sbr.rel (%p588) target = $region20
      $region19: #{vct_predictor_forward.6} parent=11 // pred_region
        _
      $region20: #{vct_predictor_forward.6} parent=11 // pred_fallthru
        _
      // Predicated region
      $region21: #{vct_predictor_forward.6} parent=11 // pred_check
        %p591 = pneg %p145
      $region22: #{vct_predictor_forward.6} parent=11 // pred_check_branch
        %593 = sbr.rel (%p591) target = $region24
      $region23: #{vct_predictor_forward.6} parent=11 // pred_region
        _
      $region24: #{vct_predictor_forward.6} parent=11 // pred_fallthru
        _
      // Predicated region
      $region25: #{vct_predictor_forward.6} parent=11 // pred_check
        %p594 = pneg %p166
      $region26: #{vct_predictor_forward.6} parent=11 // pred_check_branch
        %596 = sbr.rel (%p594) target = $region28
      $region27: #{vct_predictor_forward.6} parent=11 // pred_region
        _
      $region28: #{vct_predictor_forward.6} parent=11 // pred_fallthru
        _
      // Predicated region
      $region29: #{vct_predictor_forward.6} parent=11 // pred_check
        %p597 = pneg %p187
      $region30: #{vct_predictor_forward.6} parent=11 // pred_check_branch
        %599 = sbr.rel (%p597) target = $region32
      $region31: #{vct_predictor_forward.6} parent=11 // pred_region
        _
      $region32: #{vct_predictor_forward.6} parent=11 // pred_fallthru
        _
      // Predicated region
      $region33: #{vct_predictor_forward.6} parent=11 // pred_check
        %p600 = pneg %p208
      $region34: #{vct_predictor_forward.6} parent=11 // pred_check_branch
        %602 = sbr.rel (%p600) target = $region36
      $region35: #{vct_predictor_forward.6} parent=11 // pred_region
        _
      $region36: #{vct_predictor_forward.6} parent=11 // pred_fallthru
        _
      // Predicated region
      $region37: #{vct_predictor_forward.6} parent=11 // pred_check
        %p603 = pneg %p229
      $region38: #{vct_predictor_forward.6} parent=11 // pred_check_branch
        %605 = sbr.rel (%p603) target = $region40
      $region39: #{vct_predictor_forward.6} parent=11 // pred_region
        _
      $region40: #{vct_predictor_forward.6} parent=11 // pred_fallthru
        _
      // Predicated region
      $region41: #{vct_predictor_forward.6} parent=11 // pred_check
        %p606 = pneg %p250
      $region42: #{vct_predictor_forward.6} parent=11 // pred_check_branch
        %608 = sbr.rel (%p606) target = $region44
      $region43: #{vct_predictor_forward.6} parent=11 // pred_region
        _
      $region44: #{vct_predictor_forward.6} parent=11 // pred_fallthru
        _
      // Predicated region
      $region45: #{vct_predictor_forward.6} parent=11 // pred_check
        %p609 = pneg %p271
      $region46: #{vct_predictor_forward.6} parent=11 // pred_check_branch
        %611 = sbr.rel (%p609) target = $region48
      $region47: #{vct_predictor_forward.6} parent=11 // pred_region
        _
      $region48: #{vct_predictor_forward.6} parent=11 // pred_fallthru
        _
      // Predicated region
      $region49: #{vct_predictor_forward.6} parent=11 // pred_check
        %p612 = pneg %p292
      $region50: #{vct_predictor_forward.6} parent=11 // pred_check_branch
        %614 = sbr.rel (%p612) target = $region52
      $region51: #{vct_predictor_forward.6} parent=11 // pred_region
        _
      $region52: #{vct_predictor_forward.6} parent=11 // pred_fallthru
        _
      // Predicated region
      $region53: #{vct_predictor_forward.6} parent=11 // pred_check
        %p615 = pneg %p313
      $region54: #{vct_predictor_forward.6} parent=11 // pred_check_branch
        %617 = sbr.rel (%p615) target = $region56
      $region55: #{vct_predictor_forward.6} parent=11 // pred_region
        _
      $region56: #{vct_predictor_forward.6} parent=11 // pred_fallthru
        _
      // Predicated region
      $region57: #{vct_predictor_forward.6} parent=11 // pred_check
        %p618 = pneg %p334
      $region58: #{vct_predictor_forward.6} parent=11 // pred_check_branch
        %620 = sbr.rel (%p618) target = $region60
      $region59: #{vct_predictor_forward.6} parent=11 // pred_region
        _
      $region60: #{vct_predictor_forward.6} parent=11 // pred_fallthru
        _
      // Predicated region
      $region61: #{vct_predictor_forward.6} parent=11 // pred_check
        %p621 = pneg %p355
      $region62: #{vct_predictor_forward.6} parent=11 // pred_check_branch
        %623 = sbr.rel (%p621) target = $region64
      $region63: #{vct_predictor_forward.6} parent=11 // pred_region
        _
      $region64: #{vct_predictor_forward.6} parent=11 // pred_fallthru
        _
      // Predicated region
      $region65: #{vct_predictor_forward.6} parent=11 // pred_check
        %p624 = pneg %p376
      $region66: #{vct_predictor_forward.6} parent=11 // pred_check_branch
        %626 = sbr.rel (%p624) target = $region68
      $region67: #{vct_predictor_forward.6} parent=11 // pred_region
        _
      $region68: #{vct_predictor_forward.6} parent=11 // pred_fallthru
        _
      // Predicated region
      $region69: #{vct_predictor_forward.6} parent=11 // pred_check
        %p627 = pneg %p397
      $region70: #{vct_predictor_forward.6} parent=11 // pred_check_branch
        %629 = sbr.rel (%p627) target = $region72
      $region71: #{vct_predictor_forward.6} parent=11 // pred_region
        _
      $region72: #{vct_predictor_forward.6} parent=11 // pred_fallthru
        _
      // Predicated region
      $region73: #{vct_predictor_forward.6} parent=11 // pred_check
        %p630 = pneg %p418
      $region74: #{vct_predictor_forward.6} parent=11 // pred_check_branch
        %632 = sbr.rel (%p630) target = $region76
      $region75: #{vct_predictor_forward.6} parent=11 // pred_region
        _
      $region76: #{vct_predictor_forward.6} parent=11 // pred_fallthru
        _
      // Predicated region
      $region77: #{vct_predictor_forward.6} parent=11 // pred_check
        %p633 = pneg %p439
      $region78: #{vct_predictor_forward.6} parent=11 // pred_check_branch
        %635 = sbr.rel (%p633) target = $region80
      $region79: #{vct_predictor_forward.6} parent=11 // pred_region
        _
      $region80: #{vct_predictor_forward.6} parent=11 // pred_fallthru
        _
      // Predicated region
      $region81: #{vct_predictor_forward.6} parent=11 // pred_check
        %p636 = pneg %p460
      $region82: #{vct_predictor_forward.6} parent=11 // pred_check_branch
        %638 = sbr.rel (%p636) target = $region84
      $region83: #{vct_predictor_forward.6} parent=11 // pred_region
        _
      $region84: #{vct_predictor_forward.6} parent=11 // pred_fallthru
        _
      // Predicated region
      $region85: #{vct_predictor_forward.6} parent=11 // pred_check
        %p639 = pneg %p481
      $region86: #{vct_predictor_forward.6} parent=11 // pred_check_branch
        %641 = sbr.rel (%p639) target = $region88
      $region87: #{vct_predictor_forward.6} parent=11 // pred_region
        _
      $region88: #{vct_predictor_forward.6} parent=11 // pred_fallthru
        _
      // Predicated region
      $region89: #{vct_predictor_forward.6} parent=11 // pred_check
        %p642 = pneg %p502
      $region90: #{vct_predictor_forward.6} parent=11 // pred_check_branch
        %644 = sbr.rel (%p642) target = $region92
      $region91: #{vct_predictor_forward.6} parent=11 // pred_region
        _
      $region92: #{vct_predictor_forward.6} parent=11 // pred_fallthru
        _
      // Predicated region
      $region93: #{vct_predictor_forward.6} parent=11 // pred_check
        %p645 = pneg %p523
      $region94: #{vct_predictor_forward.6} parent=11 // pred_check_branch
        %647 = sbr.rel (%p645) target = $region96
      $region95: #{vct_predictor_forward.6} parent=11 // pred_region
        _
      $region96: #{vct_predictor_forward.6} parent=11 // pred_fallthru
        _
      // Predicated region
      $region97: #{vct_predictor_forward.6} parent=11 // pred_check
        %p648 = pneg %p544
      $region98: #{vct_predictor_forward.6} parent=11 // pred_check_branch
        %650 = sbr.rel (%p648) target = $region100
      $region99: #{vct_predictor_forward.6} parent=11 // pred_region
        _
      $region100: #{vct_predictor_forward.6} parent=11 // pred_fallthru
        _
    $region12: #{vct_predictor_forward.6} parent=5 // pred_fallthru
      _
    %p651 = scmp.lt.s32.totalorder %s30, 2
    // Predicated region
    $region101: #{vct_predictor_forward.6} parent=5 // pred_check
      %p652 = pneg %p651
    $region102: #{vct_predictor_forward.6} parent=5 // pred_check_branch
      %654 = sbr.rel (%p652) target = $region104
    $region103: #{vct_predictor_forward.6} parent=5 // pred_region
      // Predicated region
      $region105: #{vct_predictor_forward.6} parent=103 // pred_check
        %p655 = pneg %p50
      $region106: #{vct_predictor_forward.6} parent=103 // pred_check_branch
        %657 = sbr.rel (%p655) target = $region108
      $region107: #{vct_predictor_forward.6} parent=103 // pred_region
        %s658 = smul.u32 2, %s30
        %p659 = scmp.lt.s32.totalorder %s658, 3
        %s660 = scalar_select %p659, %s658, 3
        %s661 = smul.addr %s660, 8
        %s662 = scalar_lea.vmem %s0, %s661
        %s663 = smul.u32 2, %s30
      $region108: #{vct_predictor_forward.6} parent=103 // pred_fallthru
        _
      // Predicated region
      $region109: #{vct_predictor_forward.6} parent=103 // pred_check
        %p664 = pneg %p76
      $region110: #{vct_predictor_forward.6} parent=103 // pred_check_branch
        %666 = sbr.rel (%p664) target = $region112
      $region111: #{vct_predictor_forward.6} parent=103 // pred_region
        %s667 = smul.u32 16, %s30
        %p668 = scmp.lt.s32.totalorder %s667, 31
        %s669 = scalar_select %p668, %s667, 31
        %s670 = smul.addr %s669, 8
        %s671 = scalar_lea.vmem %s1, %s670
        %s672 = smul.u32 16, %s30
      $region112: #{vct_predictor_forward.6} parent=103 // pred_fallthru
        _
    $region104: #{vct_predictor_forward.6} parent=5 // pred_fallthru
      _
    %p673 = scmp.le.s32.totalorder 1, %s30
    %p674 = scmp.lt.s32.totalorder %s30, 3
    %p675 = pnand %p673, %p674
    %p676 = pneg %p675
    // Predicated region
    $region113: #{vct_predictor_forward.6} parent=5 // pred_check
      _
    $region114: #{vct_predictor_forward.6} parent=5 // pred_check_branch
      %678 = sbr.rel (%p675) target = $region116
    $region115: #{vct_predictor_forward.6} parent=5 // pred_region
      %s679 = ssub.s32 %s30, 1
      %s680 = smul.u32 2, %s35
      %p681 = scmp.lt.s32.totalorder %s680, 3
      %s682 = scalar_select %p681, %s680, 3
      %s683 = smul.addr %s682, 8
      %s684 = scalar_lea.vmem %s0, %s683
      %p685 = pneg %p56
      %p686 = pneg %p53
      %s687 = smul.u32 16, %s35
      %p688 = scmp.lt.s32.totalorder %s687, 31
      %s689 = scalar_select %p688, %s687, 31
      %s690 = smul.addr %s689, 8
      %s691 = scalar_lea.vmem %s1, %s690
      %p692 = pneg %p82
      %p693 = pneg %p79
      %p694 = pneg %p103
      %p695 = pneg %p100
      %p696 = pneg %p124
      %p697 = pneg %p121
      %p698 = pneg %p145
      %p699 = pneg %p142
      %p700 = pneg %p166
      %p701 = pneg %p163
      %p702 = pneg %p187
      %p703 = pneg %p184
      %p704 = pneg %p208
      %p705 = pneg %p205
      %p706 = pneg %p229
      %p707 = pneg %p226
      %p708 = pneg %p250
      %p709 = pneg %p247
      %p710 = pneg %p271
      %p711 = pneg %p268
      %p712 = pneg %p292
      %p713 = pneg %p289
      %p714 = pneg %p313
      %p715 = pneg %p310
      %p716 = pneg %p334
      %p717 = pneg %p331
      %p718 = pneg %p355
      %p719 = pneg %p352
      %p720 = pneg %p376
      %p721 = pneg %p373
      %p722 = pneg %p397
      %p723 = pneg %p394
      %p724 = pneg %p418
      %p725 = pneg %p415
      %p726 = pneg %p439
      %p727 = pneg %p436
      %p728 = pneg %p460
      %p729 = pneg %p457
      %p730 = pneg %p481
      %p731 = pneg %p478
      %p732 = pneg %p502
      %p733 = pneg %p499
      %p734 = pneg %p523
      %p735 = pneg %p520
      %p736 = pneg %p544
      %p737 = pneg %p541
      %p738 = pneg %p570
      %p739 = pneg %p567
      %s740 = smul.u32 2, %s35
      %p741 = scmp.lt.s32.totalorder %s740, 3
      %s742 = scalar_select %p741, %s740, 3
      %s743 = smul.addr %s742, 8
      %s744 = scalar_lea.vmem %s24, %s743
      %s745 = smul.u32 2, %s35
      %p746 = scmp.lt.s32.totalorder %s745, 3
      %s747 = scalar_select %p746, %s745, 3
      %s748 = smul.addr %s747, 8
      %s749 = scalar_lea.vmem %s0, %s748
      %s750 = smul.u32 2, %s35
      %s751 = smul.u32 16, %s35
      %p752 = scmp.lt.s32.totalorder %s751, 31
      %s753 = scalar_select %p752, %s751, 31
      %s754 = smul.addr %s753, 8
      %s755 = scalar_lea.vmem %s1, %s754
      %s756 = smul.u32 16, %s35
      %s757 = smul.u32 2, %s35
      %p758 = scmp.lt.s32.totalorder %s757, 3
      %s759 = scalar_select %p758, %s757, 3
      %s760 = smul.addr %s759, 8
      %s761 = scalar_lea.vmem %s24, %s760
      %s762 = smul.u32 2, %s35
      %v764 = vld [vmem:[%s749] sm:$0xff]
      %v765 = vld [vmem:[%s749 + $0x8] sm:$0xff]
      %v766 = vld [vmem:[%s755] sm:$0xff]
      %v767 = vld [vmem:[%s755 + $0x8] sm:$0xff]
      %v768 = vld [vmem:[%s755 + $0x10] sm:$0xff]
      %v769 = vld [vmem:[%s755 + $0x18] sm:$0xff]
      %v770 = vld [vmem:[%s755 + $0x20] sm:$0xff]
      %v771 = vld [vmem:[%s755 + $0x28] sm:$0xff]
      %v772 = vld [vmem:[%s755 + $0x30] sm:$0xff]
      %v773 = vld [vmem:[%s755 + $0x38] sm:$0xff]
      %v774 = vld [vmem:[%s755 + $0x40] sm:$0xff]
      %v775 = vld [vmem:[%s755 + $0x48] sm:$0xff]
      %v776 = vld [vmem:[%s755 + $0x50] sm:$0xff]
      %v777 = vld [vmem:[%s755 + $0x58] sm:$0xff]
      %v778 = vld [vmem:[%s755 + $0x60] sm:$0xff]
      %v779 = vld [vmem:[%s755 + $0x68] sm:$0xff]
      %v780 = vld [vmem:[%s755 + $0x70] sm:$0xff]
      %v781 = vld [vmem:[%s755 + $0x78] sm:$0xff]
      %v782 = vld [vmem:[%s4] sm:$0xff]
      %v783 = vld [vmem:[%s4 + $0x8] sm:$0xff]
      %v784 = vpack.c.bf16 %v765, %v764
      %v785 = vpack.c.bf16 %v783, %v782
      %v786 = vld [vmem:[%s5] sm:$0x1]
      %v788 = vlaneseq
      %v789 = vshrl.u32 %v788, 7
      %v790 = vsub.s32 0, %v789
      %v791 = vrot.slane %v786, %v790
      %vm793 = vcmask 130048
      %v795 = vsel %vm793, %v784, 0
      %797 = vmatprep.subr.bf16.mxu0 0
      %798 = vmatpush1.bf16.msra.mxu0 0
      %799 = vmatprep.subr.bf16.mxu0 0
      %800 = vmatpush1.bf16.msra.mxu0 0
      %801 = vmatprep.subr.bf16.mxu0 0
      %802 = vmatpush1.bf16.msra.mxu0 0
      %803 = vmatprep.subr.bf16.mxu0 0
      %804 = vmatpush1.bf16.msra.mxu0 0
      %805 = vmatprep.subr.bf16.mxu0 0
      %806 = vmatpush1.bf16.msra.mxu0 0
      %807 = vmatprep.subr.bf16.mxu0 0
      %808 = vmatpush1.bf16.msra.mxu0 0
      %809 = vmatprep.subr.bf16.mxu0 0
      %810 = vmatpush1.bf16.msra.mxu0 0
      %811 = vmatprep.subr.bf16.mxu0 0
      %812 = vmatpush1.bf16.msra.mxu0 %v785
      %813 = vmatprep.subr.bf16.mxu0 0
      %814 = vmatpush2.bf16.msra.mxu0 0
      %815 = vmatprep.subr.bf16.mxu0 0
      %816 = vmatpush2.bf16.msra.mxu0 0
      %817 = vmatprep.subr.bf16.mxu0 0
      %818 = vmatpush2.bf16.msra.mxu0 0
      %819 = vmatprep.subr.bf16.mxu0 0
      %820 = vmatpush2.bf16.msra.mxu0 0
      %821 = vmatprep.subr.bf16.mxu0 0
      %822 = vmatpush2.bf16.msra.mxu0 0
      %823 = vmatprep.subr.bf16.mxu0 0
      %824 = vmatpush2.bf16.msra.mxu0 0
      %825 = vmatprep.subr.bf16.mxu0 0
      %826 = vmatpush2.bf16.msra.mxu0 0
      %827 = vmatprep.subr.bf16.mxu0 0
      %828 = vmatpush2.bf16.msra.mxu0 0
      %829 = vmatprep.mubr.bf16.mxu0 0
      %830 = vmatmul.mubr.bf16.gmra.mxu0 %v795
      %v831 = vpop.f32.mrf.mxu0
      %v832 = vadd.f32 %v791, %v831
      %v833 = vpop.f32.mrf.mxu0
      %v834 = vpop.f32.mrf.mxu0
      %v835 = vadd.f32 %v791, %v834
      %v836 = vpop.f32.mrf.mxu0
      %837 = vdwg.mxu0
      %v838 = vld [vmem:[%s2] sm:$0xff]
      %v839 = vld [vmem:[%s2 + $0x8] sm:$0xff]
      %v840 = vld [vmem:[%s6] sm:$0xff]
      %v841 = vld [vmem:[%s6 + $0x8] sm:$0xff]
      %v842 = vpack.c.bf16 %v835, %v832
      %844 = vrot.lane.b32.xlu0 %v842, 112
      %v845 = vpop.permute.xlu0 %844
      %vm846 = vcmask 64512
      %v848 = vsel %vm846, %v842, 0
      %v851 = vsel %vm846, %v845, 0
      %853 = vmatprep.subr.bf16.mxu0 0
      %854 = vmatpush1.bf16.xpose.msra.mxu0 0
      %855 = vmatprep.subr.bf16.mxu0 0
      %856 = vmatpush1.bf16.xpose.msra.mxu0 0
      %857 = vmatprep.subr.bf16.mxu0 0
      %858 = vmatpush1.bf16.xpose.msra.mxu0 0
      %859 = vmatprep.subr.bf16.mxu0 0
      %860 = vmatpush1.bf16.xpose.msra.mxu0 0
      %861 = vmatprep.subr.bf16.mxu0 0
      %862 = vmatpush1.bf16.xpose.msra.mxu0 0
      %863 = vmatprep.subr.bf16.mxu0 0
      %864 = vmatpush1.bf16.xpose.msra.mxu0 0
      %865 = vmatprep.subr.bf16.mxu0 0
      %866 = vmatpush1.bf16.xpose.msra.mxu0 0
      %867 = vmatprep.subr.bf16.mxu0 0
      %868 = vmatpush1.bf16.xpose.msra.mxu0 %v851
      %869 = vmatprep.subr.bf16.mxu0 0
      %870 = vmatpush2.bf16.xpose.msra.mxu0 0
      %871 = vmatprep.subr.bf16.mxu0 0
      %872 = vmatpush2.bf16.xpose.msra.mxu0 0
      %873 = vmatprep.subr.bf16.mxu0 0
      %874 = vmatpush2.bf16.xpose.msra.mxu0 0
      %875 = vmatprep.subr.bf16.mxu0 0
      %876 = vmatpush2.bf16.xpose.msra.mxu0 0
      %877 = vmatprep.subr.bf16.mxu0 0
      %878 = vmatpush2.bf16.xpose.msra.mxu0 0
      %879 = vmatprep.subr.bf16.mxu0 0
      %880 = vmatpush2.bf16.xpose.msra.mxu0 0
      %881 = vmatprep.subr.bf16.mxu0 0
      %882 = vmatpush2.bf16.xpose.msra.mxu0 0
      %883 = vmatprep.subr.bf16.mxu0 0
      %884 = vmatpush2.bf16.xpose.msra.mxu0 0
      %885 = vmatprep.mubr.bf16.mxu0 0
      %886 = vmatmul.mubr.bf16.gmra.mxu0 %v848
      %v887 = vpop.f32.mrf.mxu0
      %v888 = vadd.f32 0.0, %v887
      %v889 = vpop.f32.mrf.mxu0
      %v890 = vpop.f32.mrf.mxu0
      %v891 = vadd.f32 0.0, %v890
      %v892 = vpop.f32.mrf.mxu0
      %893 = vdwg.mxu0
      %v894 = vmul.f32 %v888, 0.35355338
      %v895 = vmul.f32 %v891, 0.35355338
      %v896 = vadd.f32 %v894, %v838
      %v897 = vadd.f32 %v895, %v839
      %v898 = vsel %vm793, %v896, -inf
      %899 = vmax.xlane.f32.xlu0 %v898
      %v900 = vpop.xlane.xlu0 %899
      %v901 = vsel %vm793, %v897, -inf
      %902 = vmax.xlane.f32.xlu0 %v901
      %v903 = vpop.xlane.xlu0 %902
      %v904 = vsub.f32 %v896, %v900
      %v905 = vsub.f32 %v897, %v903
      %v906 = vmul.f32 %v904, 1.442695
      %v907 = vpow.pop %v906
      %v908 = vmul.f32 %v905, 1.442695
      %v909 = vpow.pop %v908
      %v910 = vsel %vm793, %v907, 0.0
      %911 = vadd.xlane.f32.xlu0 %v910
      %v912 = vpop.xlane.xlu0 %911
      %v913 = vsel %vm793, %v909, 0.0
      %914 = vadd.xlane.f32.xlu0 %v913
      %v915 = vpop.xlane.xlu0 %914
      %v916 = vrcp.pop %v912
      %v917 = vrcp.pop %v915
      %v918 = vmul.f32 %v907, %v916
      %v919 = vmul.f32 %v909, %v917
      %v920 = vpack.c.bf16 %v919, %v918
      %921 = vrot.lane.b32.xlu0 %v842, 96
      %v922 = vpop.permute.xlu0 %921
      %v925 = vsel %vm793, %v920, 0
      %927 = vmatprep.subr.bf16.mxu0 0
      %928 = vmatpush1.bf16.msra.mxu0 0
      %929 = vmatprep.subr.bf16.mxu0 0
      %930 = vmatpush1.bf16.msra.mxu0 0
      %931 = vmatprep.subr.bf16.mxu0 0
      %932 = vmatpush1.bf16.msra.mxu0 0
      %933 = vmatprep.subr.bf16.mxu0 0
      %934 = vmatpush1.bf16.msra.mxu0 0
      %935 = vmatprep.subr.bf16.mxu0 0
      %936 = vmatpush1.bf16.msra.mxu0 0
      %937 = vmatprep.subr.bf16.mxu0 0
      %938 = vmatpush1.bf16.msra.mxu0 0
      %939 = vmatprep.subr.bf16.mxu0 0
      %940 = vmatpush1.bf16.msra.mxu0 0
      %941 = vmatprep.subr.bf16.mxu0 0
      %942 = vmatpush1.bf16.msra.mxu0 %v922
      %943 = vmatprep.subr.bf16.mxu0 0
      %944 = vmatpush2.bf16.msra.mxu0 0
      %945 = vmatprep.subr.bf16.mxu0 0
      %946 = vmatpush2.bf16.msra.mxu0 0
      %947 = vmatprep.subr.bf16.mxu0 0
      %948 = vmatpush2.bf16.msra.mxu0 0
      %949 = vmatprep.subr.bf16.mxu0 0
      %950 = vmatpush2.bf16.msra.mxu0 0
      %951 = vmatprep.subr.bf16.mxu0 0
      %952 = vmatpush2.bf16.msra.mxu0 0
      %953 = vmatprep.subr.bf16.mxu0 0
      %954 = vmatpush2.bf16.msra.mxu0 0
      %955 = vmatprep.subr.bf16.mxu0 0
      %956 = vmatpush2.bf16.msra.mxu0 0
      %957 = vmatprep.subr.bf16.mxu0 0
      %958 = vmatpush2.bf16.msra.mxu0 0
      %959 = vmatprep.mubr.bf16.mxu0 0
      %960 = vmatmul.mubr.bf16.gmra.mxu0 %v925
      %v961 = vpop.f32.mrf.mxu0
      %v962 = vadd.f32 0.0, %v961
      %v963 = vpop.f32.mrf.mxu0
      %v964 = vpop.f32.mrf.mxu0
      %v965 = vadd.f32 0.0, %v964
      %v966 = vpop.f32.mrf.mxu0
      %967 = vdwg.mxu0
      %v968 = vpack.c.bf16 %v965, %v962
      %v969 = vpack.c.bf16 %v840, %v840
      %970 = vrot.lane.b32.xlu0 %v842, 120
      %v971 = vpop.permute.xlu0 %970
      %972 = vrot.lane.b32.xlu0 %v842, 104
      %v973 = vpop.permute.xlu0 %972
      %v975 = vsel %vm846, %v971, 0
      %v978 = vsel %vm846, %v973, 0
      %980 = vmatprep.subr.bf16.mxu0 0
      %981 = vmatpush1.bf16.xpose.msra.mxu0 0
      %982 = vmatprep.subr.bf16.mxu0 0
      %983 = vmatpush1.bf16.xpose.msra.mxu0 0
      %984 = vmatprep.subr.bf16.mxu0 0
      %985 = vmatpush1.bf16.xpose.msra.mxu0 0
      %986 = vmatprep.subr.bf16.mxu0 0
      %987 = vmatpush1.bf16.xpose.msra.mxu0 0
      %988 = vmatprep.subr.bf16.mxu0 0
      %989 = vmatpush1.bf16.xpose.msra.mxu0 0
      %990 = vmatprep.subr.bf16.mxu0 0
      %991 = vmatpush1.bf16.xpose.msra.mxu0 0
      %992 = vmatprep.subr.bf16.mxu0 0
      %993 = vmatpush1.bf16.xpose.msra.mxu0 0
      %994 = vmatprep.subr.bf16.mxu0 0
      %995 = vmatpush1.bf16.xpose.msra.mxu0 %v978
      %996 = vmatprep.subr.bf16.mxu0 0
      %997 = vmatpush2.bf16.xpose.msra.mxu0 0
      %998 = vmatprep.subr.bf16.mxu0 0
      %999 = vmatpush2.bf16.xpose.msra.mxu0 0
      %1000 = vmatprep.subr.bf16.mxu0 0
      %1001 = vmatpush2.bf16.xpose.msra.mxu0 0
      %1002 = vmatprep.subr.bf16.mxu0 0
      %1003 = vmatpush2.bf16.xpose.msra.mxu0 0
      %1004 = vmatprep.subr.bf16.mxu0 0
      %1005 = vmatpush2.bf16.xpose.msra.mxu0 0
      %1006 = vmatprep.subr.bf16.mxu0 0
      %1007 = vmatpush2.bf16.xpose.msra.mxu0 0
      %1008 = vmatprep.subr.bf16.mxu0 0
      %1009 = vmatpush2.bf16.xpose.msra.mxu0 0
      %1010 = vmatprep.subr.bf16.mxu0 0
      %1011 = vmatpush2.bf16.xpose.msra.mxu0 0
      %1012 = vmatprep.mubr.bf16.mxu0 0
      %1013 = vmatmul.mubr.bf16.gmra.mxu0 %v975
      %v1014 = vpop.f32.mrf.mxu0
      %v1015 = vadd.f32 0.0, %v1014
      %v1016 = vpop.f32.mrf.mxu0
      %v1017 = vpop.f32.mrf.mxu0
      %v1018 = vadd.f32 0.0, %v1017
      %v1019 = vpop.f32.mrf.mxu0
      %1020 = vdwg.mxu0
      %v1021 = vmul.f32 %v1015, 0.35355338
      %v1022 = vmul.f32 %v1018, 0.35355338
      %v1023 = vadd.f32 %v1021, %v838
      %v1024 = vadd.f32 %v1022, %v839
      %v1025 = vsel %vm793, %v1023, -inf
      %1026 = vmax.xlane.f32.xlu0 %v1025
      %v1027 = vpop.xlane.xlu0 %1026
      %v1028 = vsel %vm793, %v1024, -inf
      %1029 = vmax.xlane.f32.xlu0 %v1028
      %v1030 = vpop.xlane.xlu0 %1029
      %v1031 = vsub.f32 %v1023, %v1027
      %v1032 = vsub.f32 %v1024, %v1030
      %v1033 = vmul.f32 %v1031, 1.442695
      %v1034 = vpow.pop %v1033
      %v1035 = vmul.f32 %v1032, 1.442695
      %v1036 = vpow.pop %v1035
      %v1037 = vsel %vm793, %v1034, 0.0
      %1038 = vadd.xlane.f32.xlu0 %v1037
      %v1039 = vpop.xlane.xlu0 %1038
      %v1040 = vsel %vm793, %v1036, 0.0
      %1041 = vadd.xlane.f32.xlu0 %v1040
      %v1042 = vpop.xlane.xlu0 %1041
      %v1043 = vrcp.pop %v1039
      %v1044 = vrcp.pop %v1042
      %v1045 = vmul.f32 %v1034, %v1043
      %v1046 = vmul.f32 %v1036, %v1044
      %v1047 = vpack.c.bf16 %v1046, %v1045
      %1048 = vrot.lane.b32.xlu0 %v842, 88
      %v1049 = vpop.permute.xlu0 %1048
      %v1052 = vsel %vm793, %v1047, 0
      %1054 = vmatprep.subr.bf16.mxu0 0
      %1055 = vmatpush1.bf16.msra.mxu0 0
      %1056 = vmatprep.subr.bf16.mxu0 0
      %1057 = vmatpush1.bf16.msra.mxu0 0
      %1058 = vmatprep.subr.bf16.mxu0 0
      %1059 = vmatpush1.bf16.msra.mxu0 0
      %1060 = vmatprep.subr.bf16.mxu0 0
      %1061 = vmatpush1.bf16.msra.mxu0 0
      %1062 = vmatprep.subr.bf16.mxu0 0
      %1063 = vmatpush1.bf16.msra.mxu0 0
      %1064 = vmatprep.subr.bf16.mxu0 0
      %1065 = vmatpush1.bf16.msra.mxu0 0
      %1066 = vmatprep.subr.bf16.mxu0 0
      %1067 = vmatpush1.bf16.msra.mxu0 0
      %1068 = vmatprep.subr.bf16.mxu0 0
      %1069 = vmatpush1.bf16.msra.mxu0 %v1049
      %1070 = vmatprep.subr.bf16.mxu0 0
      %1071 = vmatpush2.bf16.msra.mxu0 0
      %1072 = vmatprep.subr.bf16.mxu0 0
      %1073 = vmatpush2.bf16.msra.mxu0 0
      %1074 = vmatprep.subr.bf16.mxu0 0
      %1075 = vmatpush2.bf16.msra.mxu0 0
      %1076 = vmatprep.subr.bf16.mxu0 0
      %1077 = vmatpush2.bf16.msra.mxu0 0
      %1078 = vmatprep.subr.bf16.mxu0 0
      %1079 = vmatpush2.bf16.msra.mxu0 0
      %1080 = vmatprep.subr.bf16.mxu0 0
      %1081 = vmatpush2.bf16.msra.mxu0 0
      %1082 = vmatprep.subr.bf16.mxu0 0
      %1083 = vmatpush2.bf16.msra.mxu0 0
      %1084 = vmatprep.subr.bf16.mxu0 0
      %1085 = vmatpush2.bf16.msra.mxu0 0
      %1086 = vmatprep.mubr.bf16.mxu0 0
      %1087 = vmatmul.mubr.bf16.gmra.mxu0 %v1052
      %v1088 = vpop.f32.mrf.mxu0
      %v1089 = vadd.f32 0.0, %v1088
      %v1090 = vpop.f32.mrf.mxu0
      %v1091 = vpop.f32.mrf.mxu0
      %v1092 = vadd.f32 0.0, %v1091
      %v1093 = vpop.f32.mrf.mxu0
      %1094 = vdwg.mxu0
      %v1095 = vpack.c.bf16 %v1092, %v1089
      %v1096 = vpack.c.bf16 %v841, %v841
      %v1098 = vsel %vm846, %v1095, 0
      %vm1100 = vcmask 1043456
      %v1102 = vsel %vm1100, %v1096, 0
      %1104 = vmatprep.subr.bf16.mxu0 0
      %1105 = vmatpush1.bf16.msra.mxu0 0
      %1106 = vmatprep.subr.bf16.mxu0 0
      %1107 = vmatpush1.bf16.msra.mxu0 0
      %1108 = vmatprep.subr.bf16.mxu0 0
      %1109 = vmatpush1.bf16.msra.mxu0 0
      %1110 = vmatprep.subr.bf16.mxu0 0
      %1111 = vmatpush1.bf16.msra.mxu0 0
      %1112 = vmatprep.subr.bf16.mxu0 0
      %1113 = vmatpush1.bf16.msra.mxu0 0
      %1114 = vmatprep.subr.bf16.mxu0 0
      %1115 = vmatpush1.bf16.msra.mxu0 0
      %1116 = vmatprep.subr.bf16.mxu0 0
      %1117 = vmatpush1.bf16.msra.mxu0 0
      %1118 = vmatprep.subr.bf16.mxu0 0
      %1119 = vmatpush1.bf16.msra.mxu0 %v1102
      %1120 = vmatprep.subr.bf16.mxu0 0
      %1121 = vmatpush2.bf16.msra.mxu0 0
      %1122 = vmatprep.subr.bf16.mxu0 0
      %1123 = vmatpush2.bf16.msra.mxu0 0
      %1124 = vmatprep.subr.bf16.mxu0 0
      %1125 = vmatpush2.bf16.msra.mxu0 0
      %1126 = vmatprep.subr.bf16.mxu0 0
      %1127 = vmatpush2.bf16.msra.mxu0 0
      %1128 = vmatprep.subr.bf16.mxu0 0
      %1129 = vmatpush2.bf16.msra.mxu0 0
      %1130 = vmatprep.subr.bf16.mxu0 0
      %1131 = vmatpush2.bf16.msra.mxu0 0
      %1132 = vmatprep.subr.bf16.mxu0 0
      %1133 = vmatpush2.bf16.msra.mxu0 0
      %1134 = vmatprep.subr.bf16.mxu0 0
      %1135 = vmatpush2.bf16.msra.mxu0 0
      %1136 = vmatprep.mubr.bf16.mxu0 0
      %1137 = vmatmul.mubr.bf16.gmra.mxu0 %v1098
      %v1138 = vpop.f32.mrf.mxu0
      %v1139 = vadd.f32 0.0, %v1138
      %v1140 = vpop.f32.mrf.mxu0
      %v1141 = vpop.f32.mrf.mxu0
      %v1142 = vadd.f32 0.0, %v1141
      %v1143 = vpop.f32.mrf.mxu0
      %1144 = vdwg.mxu0
      %v1146 = vsel %vm846, %v968, 0
      %v1149 = vsel %vm1100, %v969, 0
      %1151 = vmatprep.subr.bf16.mxu0 0
      %1152 = vmatpush1.bf16.msra.mxu0 0
      %1153 = vmatprep.subr.bf16.mxu0 0
      %1154 = vmatpush1.bf16.msra.mxu0 0
      %1155 = vmatprep.subr.bf16.mxu0 0
      %1156 = vmatpush1.bf16.msra.mxu0 0
      %1157 = vmatprep.subr.bf16.mxu0 0
      %1158 = vmatpush1.bf16.msra.mxu0 0
      %1159 = vmatprep.subr.bf16.mxu0 0
      %1160 = vmatpush1.bf16.msra.mxu0 0
      %1161 = vmatprep.subr.bf16.mxu0 0
      %1162 = vmatpush1.bf16.msra.mxu0 0
      %1163 = vmatprep.subr.bf16.mxu0 0
      %1164 = vmatpush1.bf16.msra.mxu0 0
      %1165 = vmatprep.subr.bf16.mxu0 0
      %1166 = vmatpush1.bf16.msra.mxu0 %v1149
      %1167 = vmatprep.subr.bf16.mxu0 0
      %1168 = vmatpush2.bf16.msra.mxu0 0
      %1169 = vmatprep.subr.bf16.mxu0 0
      %1170 = vmatpush2.bf16.msra.mxu0 0
      %1171 = vmatprep.subr.bf16.mxu0 0
      %1172 = vmatpush2.bf16.msra.mxu0 0
      %1173 = vmatprep.subr.bf16.mxu0 0
      %1174 = vmatpush2.bf16.msra.mxu0 0
      %1175 = vmatprep.subr.bf16.mxu0 0
      %1176 = vmatpush2.bf16.msra.mxu0 0
      %1177 = vmatprep.subr.bf16.mxu0 0
      %1178 = vmatpush2.bf16.msra.mxu0 0
      %1179 = vmatprep.subr.bf16.mxu0 0
      %1180 = vmatpush2.bf16.msra.mxu0 0
      %1181 = vmatprep.subr.bf16.mxu0 0
      %1182 = vmatpush2.bf16.msra.mxu0 0
      %1183 = vmatprep.mubr.bf16.mxu0 0
      %1184 = vmatmul.mubr.bf16.gmra.mxu0 %v1146
      %v1185 = vpop.f32.mrf.mxu0
      %v1186 = vadd.f32 %v1139, %v1185
      %v1187 = vpop.f32.mrf.mxu0
      %v1188 = vpop.f32.mrf.mxu0
      %v1189 = vadd.f32 %v1142, %v1188
      %v1190 = vpop.f32.mrf.mxu0
      %1191 = vdwg.mxu0
      %v1192 = vld [vmem:[%s7] sm:$0x1]
      %v1194 = vlaneseq
      %v1195 = vshrl.u32 %v1194, 7
      %v1196 = vsub.s32 0, %v1195
      %v1197 = vrot.slane %v1192, %v1196
      %v1199 = vadd.f32 %v1186, %v1197
      %v1200 = vadd.f32 %v1189, %v1197
      %v1201 = vadd.f32 %v764, %v1199
      %v1202 = vadd.f32 %v765, %v1200
      %v1203 = vld [vmem:[%s8] sm:$0x1]
      %v1204 = vld [vmem:[%s9] sm:$0x1]
      %v1205 = vsel %vm793, %v1201, 0.0
      %1206 = vadd.xlane.f32.xlu0 %v1205
      %v1207 = vpop.xlane.xlu0 %1206
      %v1208 = vsel %vm793, %v1202, 0.0
      %1209 = vadd.xlane.f32.xlu0 %v1208
      %v1210 = vpop.xlane.xlu0 %1209
      %v1211 = vrcp.pop 16.0
      %v1212 = vmul.f32 %v1207, %v1211
      %v1213 = vmul.f32 %v1210, %v1211
      %v1214 = vsub.f32 %v1201, %v1212
      %v1215 = vsub.f32 %v1202, %v1213
      %v1216 = vmul.f32 %v1214, %v1214
      %v1217 = vmul.f32 %v1215, %v1215
      %v1218 = vsel %vm793, %v1216, 0.0
      %1219 = vadd.xlane.f32.xlu0 %v1218
      %v1220 = vpop.xlane.xlu0 %1219
      %v1221 = vsel %vm793, %v1217, 0.0
      %1222 = vadd.xlane.f32.xlu0 %v1221
      %v1223 = vpop.xlane.xlu0 %1222
      %v1224 = vmul.f32 %v1220, %v1211
      %v1225 = vmul.f32 %v1223, %v1211
      %v1226 = vadd.f32 %v1224, 1e-05
      %v1227 = vadd.f32 %v1225, 1e-05
      %v1228 = vrsqrt.pop %v1226
      %v1229 = vrsqrt.pop %v1227
      %v1230 = vmul.f32 %v1214, %v1228
      %v1231 = vmul.f32 %v1215, %v1229
      %v1233 = vlaneseq
      %v1234 = vshrl.u32 %v1233, 7
      %v1235 = vsub.s32 0, %v1234
      %v1236 = vrot.slane %v1203, %v1235
      %v1238 = vmul.f32 %v1230, %v1236
      %v1239 = vmul.f32 %v1231, %v1236
      %v1241 = vlaneseq
      %v1242 = vshrl.u32 %v1241, 7
      %v1243 = vsub.s32 0, %v1242
      %v1244 = vrot.slane %v1204, %v1243
      %v1246 = vadd.f32 %v1238, %v1244
      %v1247 = vadd.f32 %v1239, %v1244
      %v1248 = vld [vmem:[%s10] sm:$0xff]
      %v1249 = vld [vmem:[%s10 + $0x8] sm:$0xff]
      %v1250 = vpack.c.bf16 %v1247, %v1246
      %v1251 = vpack.c.bf16 %v1249, %v1248
      %v1252 = vld [vmem:[%s11] sm:$0x1]
      %v1254 = vlaneseq
      %v1255 = vshrl.u32 %v1254, 7
      %v1256 = vsub.s32 0, %v1255
      %v1257 = vrot.slane %v1252, %v1256
      %v1260 = vsel %vm793, %v1250, 0
      %1262 = vmatprep.subr.bf16.mxu0 0
      %1263 = vmatpush1.bf16.msra.mxu0 0
      %1264 = vmatprep.subr.bf16.mxu0 0
      %1265 = vmatpush1.bf16.msra.mxu0 0
      %1266 = vmatprep.subr.bf16.mxu0 0
      %1267 = vmatpush1.bf16.msra.mxu0 0
      %1268 = vmatprep.subr.bf16.mxu0 0
      %1269 = vmatpush1.bf16.msra.mxu0 0
      %1270 = vmatprep.subr.bf16.mxu0 0
      %1271 = vmatpush1.bf16.msra.mxu0 0
      %1272 = vmatprep.subr.bf16.mxu0 0
      %1273 = vmatpush1.bf16.msra.mxu0 0
      %1274 = vmatprep.subr.bf16.mxu0 0
      %1275 = vmatpush1.bf16.msra.mxu0 0
      %1276 = vmatprep.subr.bf16.mxu0 0
      %1277 = vmatpush1.bf16.msra.mxu0 %v1251
      %1278 = vmatprep.subr.bf16.mxu0 0
      %1279 = vmatpush2.bf16.msra.mxu0 0
      %1280 = vmatprep.subr.bf16.mxu0 0
      %1281 = vmatpush2.bf16.msra.mxu0 0
      %1282 = vmatprep.subr.bf16.mxu0 0
      %1283 = vmatpush2.bf16.msra.mxu0 0
      %1284 = vmatprep.subr.bf16.mxu0 0
      %1285 = vmatpush2.bf16.msra.mxu0 0
      %1286 = vmatprep.subr.bf16.mxu0 0
      %1287 = vmatpush2.bf16.msra.mxu0 0
      %1288 = vmatprep.subr.bf16.mxu0 0
      %1289 = vmatpush2.bf16.msra.mxu0 0
      %1290 = vmatprep.subr.bf16.mxu0 0
      %1291 = vmatpush2.bf16.msra.mxu0 0
      %1292 = vmatprep.subr.bf16.mxu0 0
      %1293 = vmatpush2.bf16.msra.mxu0 0
      %1294 = vmatprep.mubr.bf16.mxu0 0
      %1295 = vmatmul.mubr.bf16.gmra.mxu0 %v1260
      %v1296 = vpop.f32.mrf.mxu0
      %v1297 = vadd.f32 %v1257, %v1296
      %v1298 = vpop.f32.mrf.mxu0
      %v1299 = vpop.f32.mrf.mxu0
      %v1300 = vadd.f32 %v1257, %v1299
      %v1301 = vpop.f32.mrf.mxu0
      %1302 = vdwg.mxu0
      %v1303 = vld [vmem:[%s12] sm:$0xff]
      %v1304 = vld [vmem:[%s12 + $0x8] sm:$0xff]
      %v1305 = vpack.c.bf16 %v767, %v766
      %v1306 = vpack.c.bf16 %v769, %v768
      %v1307 = vpack.c.bf16 %v771, %v770
      %v1308 = vpack.c.bf16 %v773, %v772
      %v1309 = vpack.c.bf16 %v775, %v774
      %v1310 = vpack.c.bf16 %v777, %v776
      %v1311 = vpack.c.bf16 %v779, %v778
      %v1312 = vpack.c.bf16 %v781, %v780
      %v1313 = vpack.c.bf16 %v1304, %v1303
      %v1314 = vld [vmem:[%s13] sm:$0x1]
      %v1316 = vlaneseq
      %v1317 = vshrl.u32 %v1316, 7
      %v1318 = vsub.s32 0, %v1317
      %v1319 = vrot.slane %v1314, %v1318
      %v1322 = vsel %vm793, %v1305, 0
      %v1325 = vsel %vm793, %v1306, 0
      %v1328 = vsel %vm793, %v1307, 0
      %v1331 = vsel %vm793, %v1308, 0
      %v1334 = vsel %vm793, %v1309, 0
      %v1337 = vsel %vm793, %v1310, 0
      %v1340 = vsel %vm793, %v1311, 0
      %v1343 = vsel %vm793, %v1312, 0
      %1345 = vmatprep.subr.bf16.mxu0 0
      %1346 = vmatpush1.bf16.msra.mxu0 0
      %1347 = vmatprep.subr.bf16.mxu0 0
      %1348 = vmatpush1.bf16.msra.mxu0 0
      %1349 = vmatprep.subr.bf16.mxu0 0
      %1350 = vmatpush1.bf16.msra.mxu0 0
      %1351 = vmatprep.subr.bf16.mxu0 0
      %1352 = vmatpush1.bf16.msra.mxu0 0
      %1353 = vmatprep.subr.bf16.mxu0 0
      %1354 = vmatpush1.bf16.msra.mxu0 0
      %1355 = vmatprep.subr.bf16.mxu0 0
      %1356 = vmatpush1.bf16.msra.mxu0 0
      %1357 = vmatprep.subr.bf16.mxu0 0
      %1358 = vmatpush1.bf16.msra.mxu0 0
      %1359 = vmatprep.subr.bf16.mxu0 0
      %1360 = vmatpush1.bf16.msra.mxu0 %v1313
      %1361 = vmatprep.subr.bf16.mxu0 0
      %1362 = vmatpush2.bf16.msra.mxu0 0
      %1363 = vmatprep.subr.bf16.mxu0 0
      %1364 = vmatpush2.bf16.msra.mxu0 0
      %1365 = vmatprep.subr.bf16.mxu0 0
      %1366 = vmatpush2.bf16.msra.mxu0 0
      %1367 = vmatprep.subr.bf16.mxu0 0
      %1368 = vmatpush2.bf16.msra.mxu0 0
      %1369 = vmatprep.subr.bf16.mxu0 0
      %1370 = vmatpush2.bf16.msra.mxu0 0
      %1371 = vmatprep.subr.bf16.mxu0 0
      %1372 = vmatpush2.bf16.msra.mxu0 0
      %1373 = vmatprep.subr.bf16.mxu0 0
      %1374 = vmatpush2.bf16.msra.mxu0 0
      %1375 = vmatprep.subr.bf16.mxu0 0
      %1376 = vmatpush2.bf16.msra.mxu0 0
      %1377 = vmatprep.mubr.bf16.mxu0 0
      %1378 = vmatmul.mubr.bf16.gmra.mxu0 %v1322
      %v1379 = vpop.f32.mrf.mxu0
      %v1380 = vadd.f32 %v1319, %v1379
      %v1381 = vpop.f32.mrf.mxu0
      %v1382 = vpop.f32.mrf.mxu0
      %v1383 = vadd.f32 %v1319, %v1382
      %v1384 = vpop.f32.mrf.mxu0
      %1385 = vmatprep.mubr.bf16.mxu0 0
      %1386 = vmatmul.mubr.bf16.gmra.mxu0 %v1325
      %v1387 = vpop.f32.mrf.mxu0
      %v1388 = vadd.f32 %v1319, %v1387
      %v1389 = vpop.f32.mrf.mxu0
      %v1390 = vpop.f32.mrf.mxu0
      %v1391 = vadd.f32 %v1319, %v1390
      %v1392 = vpop.f32.mrf.mxu0
      %1393 = vmatprep.mubr.bf16.mxu0 0
      %1394 = vmatmul.mubr.bf16.gmra.mxu0 %v1328
      %v1395 = vpop.f32.mrf.mxu0
      %v1396 = vadd.f32 %v1319, %v1395
      %v1397 = vpop.f32.mrf.mxu0
      %v1398 = vpop.f32.mrf.mxu0
      %v1399 = vadd.f32 %v1319, %v1398
      %v1400 = vpop.f32.mrf.mxu0
      %1401 = vmatprep.mubr.bf16.mxu0 0
      %1402 = vmatmul.mubr.bf16.gmra.mxu0 %v1331
      %v1403 = vpop.f32.mrf.mxu0
      %v1404 = vadd.f32 %v1319, %v1403
      %v1405 = vpop.f32.mrf.mxu0
      %v1406 = vpop.f32.mrf.mxu0
      %v1407 = vadd.f32 %v1319, %v1406
      %v1408 = vpop.f32.mrf.mxu0
      %1409 = vmatprep.mubr.bf16.mxu0 0
      %1410 = vmatmul.mubr.bf16.gmra.mxu0 %v1334
      %v1411 = vpop.f32.mrf.mxu0
      %v1412 = vadd.f32 %v1319, %v1411
      %v1413 = vpop.f32.mrf.mxu0
      %v1414 = vpop.f32.mrf.mxu0
      %v1415 = vadd.f32 %v1319, %v1414
      %v1416 = vpop.f32.mrf.mxu0
      %1417 = vmatprep.mubr.bf16.mxu0 0
      %1418 = vmatmul.mubr.bf16.gmra.mxu0 %v1337
      %v1419 = vpop.f32.mrf.mxu0
      %v1420 = vadd.f32 %v1319, %v1419
      %v1421 = vpop.f32.mrf.mxu0
      %v1422 = vpop.f32.mrf.mxu0
      %v1423 = vadd.f32 %v1319, %v1422
      %v1424 = vpop.f32.mrf.mxu0
      %1425 = vmatprep.mubr.bf16.mxu0 0
      %1426 = vmatmul.mubr.bf16.gmra.mxu0 %v1340
      %v1427 = vpop.f32.mrf.mxu0
      %v1428 = vadd.f32 %v1319, %v1427
      %v1429 = vpop.f32.mrf.mxu0
      %v1430 = vpop.f32.mrf.mxu0
      %v1431 = vadd.f32 %v1319, %v1430
      %v1432 = vpop.f32.mrf.mxu0
      %1433 = vmatprep.mubr.bf16.mxu0 0
      %1434 = vmatmul.mubr.bf16.gmra.mxu0 %v1343
      %v1435 = vpop.f32.mrf.mxu0
      %v1436 = vadd.f32 %v1319, %v1435
      %v1437 = vpop.f32.mrf.mxu0
      %v1438 = vpop.f32.mrf.mxu0
      %v1439 = vadd.f32 %v1319, %v1438
      %v1440 = vpop.f32.mrf.mxu0
      %1441 = vdwg.mxu0
      %v1442 = vld [vmem:[%s3] sm:$0xff]
      %v1443 = vld [vmem:[%s3 + $0x8] sm:$0xff]
      %v1444 = vld [vmem:[%s14] sm:$0xff]
      %v1445 = vld [vmem:[%s14 + $0x8] sm:$0xff]
      %v1446 = vpack.c.bf16 %v1300, %v1297
      %v1447 = vpack.c.bf16 %v1383, %v1380
      %v1448 = vpack.c.bf16 %v1391, %v1388
      %v1449 = vpack.c.bf16 %v1399, %v1396
      %v1450 = vpack.c.bf16 %v1407, %v1404
      %v1451 = vpack.c.bf16 %v1415, %v1412
      %v1452 = vpack.c.bf16 %v1423, %v1420
      %v1453 = vpack.c.bf16 %v1431, %v1428
      %v1454 = vpack.c.bf16 %v1439, %v1436
      %v1456 = vsel %vm846, %v1446, 0
      %v1459 = vsel %vm846, %v1447, 0
      %v1462 = vsel %vm846, %v1448, 0
      %v1465 = vsel %vm846, %v1449, 0
      %v1468 = vsel %vm846, %v1450, 0
      %v1471 = vsel %vm846, %v1451, 0
      %v1474 = vsel %vm846, %v1452, 0
      %v1477 = vsel %vm846, %v1453, 0
      %v1480 = vsel %vm846, %v1454, 0
      %1482 = vmatprep.subr.bf16.mxu0 0
      %1483 = vmatpush1.bf16.xpose.msra.mxu0 %v1480
      %1484 = vmatprep.subr.bf16.mxu0 0
      %1485 = vmatpush1.bf16.xpose.msra.mxu0 %v1477
      %1486 = vmatprep.subr.bf16.mxu0 0
      %1487 = vmatpush1.bf16.xpose.msra.mxu0 %v1474
      %1488 = vmatprep.subr.bf16.mxu0 0
      %1489 = vmatpush1.bf16.xpose.msra.mxu0 %v1471
      %1490 = vmatprep.subr.bf16.mxu0 0
      %1491 = vmatpush1.bf16.xpose.msra.mxu0 %v1468
      %1492 = vmatprep.subr.bf16.mxu0 0
      %1493 = vmatpush1.bf16.xpose.msra.mxu0 %v1465
      %1494 = vmatprep.subr.bf16.mxu0 0
      %1495 = vmatpush1.bf16.xpose.msra.mxu0 %v1462
      %1496 = vmatprep.subr.bf16.mxu0 0
      %1497 = vmatpush1.bf16.xpose.msra.mxu0 %v1459
      %1498 = vmatprep.subr.bf16.mxu0 0
      %1499 = vmatpush2.bf16.xpose.msra.mxu0 0
      %1500 = vmatprep.subr.bf16.mxu0 0
      %1501 = vmatpush2.bf16.xpose.msra.mxu0 0
      %1502 = vmatprep.subr.bf16.mxu0 0
      %1503 = vmatpush2.bf16.xpose.msra.mxu0 0
      %1504 = vmatprep.subr.bf16.mxu0 0
      %1505 = vmatpush2.bf16.xpose.msra.mxu0 0
      %1506 = vmatprep.subr.bf16.mxu0 0
      %1507 = vmatpush2.bf16.xpose.msra.mxu0 0
      %1508 = vmatprep.subr.bf16.mxu0 0
      %1509 = vmatpush2.bf16.xpose.msra.mxu0 0
      %1510 = vmatprep.subr.bf16.mxu0 0
      %1511 = vmatpush2.bf16.xpose.msra.mxu0 0
      %1512 = vmatprep.subr.bf16.mxu0 0
      %1513 = vmatpush2.bf16.xpose.msra.mxu0 0
      %1514 = vmatprep.mubr.bf16.mxu0 0
      %1515 = vmatmul.mubr.bf16.gmra.mxu0 %v1456
      %v1516 = vpop.f32.mrf.mxu0
      %v1517 = vadd.f32 0.0, %v1516
      %v1518 = vpop.f32.mrf.mxu0
      %v1519 = vpop.f32.mrf.mxu0
      %v1520 = vadd.f32 0.0, %v1519
      %v1521 = vpop.f32.mrf.mxu0
      %1522 = vdwg.mxu0
      %v1523 = vmul.f32 %v1517, 0.35355338
      %v1524 = vmul.f32 %v1520, 0.35355338
      %v1525 = vadd.f32 %v1523, %v1442
      %v1526 = vadd.f32 %v1524, %v1443
      %1527 = vmax.xlane.f32.xlu0 %v1525
      %v1528 = vpop.xlane.xlu0 %1527
      %1529 = vmax.xlane.f32.xlu0 %v1526
      %v1530 = vpop.xlane.xlu0 %1529
      %v1531 = vsub.f32 %v1525, %v1528
      %v1532 = vsub.f32 %v1526, %v1530
      %v1533 = vmul.f32 %v1531, 1.442695
      %v1534 = vpow.pop %v1533
      %v1535 = vmul.f32 %v1532, 1.442695
      %v1536 = vpow.pop %v1535
      %1537 = vadd.xlane.f32.xlu0 %v1534
      %v1538 = vpop.xlane.xlu0 %1537
      %1539 = vadd.xlane.f32.xlu0 %v1536
      %v1540 = vpop.xlane.xlu0 %1539
      %v1541 = vrcp.pop %v1538
      %v1542 = vrcp.pop %v1540
      %v1543 = vmul.f32 %v1534, %v1541
      %v1544 = vmul.f32 %v1536, %v1542
      %v1545 = vpack.c.bf16 %v1544, %v1543
      %1554 = vrot.lane.b32.xlu0 %v1447, 112
      %v1555 = vpop.permute.xlu0 %1554
      %1556 = vrot.lane.b32.xlu0 %v1448, 112
      %v1557 = vpop.permute.xlu0 %1556
      %1558 = vrot.lane.b32.xlu0 %v1449, 112
      %v1559 = vpop.permute.xlu0 %1558
      %1560 = vrot.lane.b32.xlu0 %v1450, 112
      %v1561 = vpop.permute.xlu0 %1560
      %1562 = vrot.lane.b32.xlu0 %v1451, 112
      %v1563 = vpop.permute.xlu0 %1562
      %1564 = vrot.lane.b32.xlu0 %v1452, 112
      %v1565 = vpop.permute.xlu0 %1564
      %1566 = vrot.lane.b32.xlu0 %v1453, 112
      %v1567 = vpop.permute.xlu0 %1566
      %1568 = vrot.lane.b32.xlu0 %v1454, 112
      %v1569 = vpop.permute.xlu0 %1568
      %1578 = vmatprep.subr.bf16.mxu0 0
      %1579 = vmatpush1.bf16.msra.mxu0 %v1569
      %1580 = vmatprep.subr.bf16.mxu0 0
      %1581 = vmatpush1.bf16.msra.mxu0 %v1567
      %1582 = vmatprep.subr.bf16.mxu0 0
      %1583 = vmatpush1.bf16.msra.mxu0 %v1565
      %1584 = vmatprep.subr.bf16.mxu0 0
      %1585 = vmatpush1.bf16.msra.mxu0 %v1563
      %1586 = vmatprep.subr.bf16.mxu0 0
      %1587 = vmatpush1.bf16.msra.mxu0 %v1561
      %1588 = vmatprep.subr.bf16.mxu0 0
      %1589 = vmatpush1.bf16.msra.mxu0 %v1559
      %1590 = vmatprep.subr.bf16.mxu0 0
      %1591 = vmatpush1.bf16.msra.mxu0 %v1557
      %1592 = vmatprep.subr.bf16.mxu0 0
      %1593 = vmatpush1.bf16.msra.mxu0 %v1555
      %1594 = vmatprep.subr.bf16.mxu0 0
      %1595 = vmatpush2.bf16.msra.mxu0 0
      %1596 = vmatprep.subr.bf16.mxu0 0
      %1597 = vmatpush2.bf16.msra.mxu0 0
      %1598 = vmatprep.subr.bf16.mxu0 0
      %1599 = vmatpush2.bf16.msra.mxu0 0
      %1600 = vmatprep.subr.bf16.mxu0 0
      %1601 = vmatpush2.bf16.msra.mxu0 0
      %1602 = vmatprep.subr.bf16.mxu0 0
      %1603 = vmatpush2.bf16.msra.mxu0 0
      %1604 = vmatprep.subr.bf16.mxu0 0
      %1605 = vmatpush2.bf16.msra.mxu0 0
      %1606 = vmatprep.subr.bf16.mxu0 0
      %1607 = vmatpush2.bf16.msra.mxu0 0
      %1608 = vmatprep.subr.bf16.mxu0 0
      %1609 = vmatpush2.bf16.msra.mxu0 0
      %1610 = vmatprep.mubr.bf16.mxu0 0
      %1611 = vmatmul.mubr.bf16.gmra.mxu0 %v1545
      %v1612 = vpop.f32.mrf.mxu0
      %v1613 = vadd.f32 0.0, %v1612
      %v1614 = vpop.f32.mrf.mxu0
      %v1615 = vpop.f32.mrf.mxu0
      %v1616 = vadd.f32 0.0, %v1615
      %v1617 = vpop.f32.mrf.mxu0
      %1618 = vdwg.mxu0
      %v1619 = vpack.c.bf16 %v1616, %v1613
      %v1620 = vpack.c.bf16 %v1444, %v1444
      %1622 = vrot.lane.b32.xlu0 %v1446, 120
      %v1623 = vpop.permute.xlu0 %1622
      %1624 = vrot.lane.b32.xlu0 %v1447, 120
      %v1625 = vpop.permute.xlu0 %1624
      %1626 = vrot.lane.b32.xlu0 %v1448, 120
      %v1627 = vpop.permute.xlu0 %1626
      %1628 = vrot.lane.b32.xlu0 %v1449, 120
      %v1629 = vpop.permute.xlu0 %1628
      %1630 = vrot.lane.b32.xlu0 %v1450, 120
      %v1631 = vpop.permute.xlu0 %1630
      %1632 = vrot.lane.b32.xlu0 %v1451, 120
      %v1633 = vpop.permute.xlu0 %1632
      %1634 = vrot.lane.b32.xlu0 %v1452, 120
      %v1635 = vpop.permute.xlu0 %1634
      %1636 = vrot.lane.b32.xlu0 %v1453, 120
      %v1637 = vpop.permute.xlu0 %1636
      %1638 = vrot.lane.b32.xlu0 %v1454, 120
      %v1639 = vpop.permute.xlu0 %1638
      %v1641 = vsel %vm846, %v1623, 0
      %v1644 = vsel %vm846, %v1625, 0
      %v1647 = vsel %vm846, %v1627, 0
      %v1650 = vsel %vm846, %v1629, 0
      %v1653 = vsel %vm846, %v1631, 0
      %v1656 = vsel %vm846, %v1633, 0
      %v1659 = vsel %vm846, %v1635, 0
      %v1662 = vsel %vm846, %v1637, 0
      %v1665 = vsel %vm846, %v1639, 0
      %1667 = vmatprep.subr.bf16.mxu0 0
      %1668 = vmatpush1.bf16.xpose.msra.mxu0 %v1665
      %1669 = vmatprep.subr.bf16.mxu0 0
      %1670 = vmatpush1.bf16.xpose.msra.mxu0 %v1662
      %1671 = vmatprep.subr.bf16.mxu0 0
      %1672 = vmatpush1.bf16.xpose.msra.mxu0 %v1659
      %1673 = vmatprep.subr.bf16.mxu0 0
      %1674 = vmatpush1.bf16.xpose.msra.mxu0 %v1656
      %1675 = vmatprep.subr.bf16.mxu0 0
      %1676 = vmatpush1.bf16.xpose.msra.mxu0 %v1653
      %1677 = vmatprep.subr.bf16.mxu0 0
      %1678 = vmatpush1.bf16.xpose.msra.mxu0 %v1650
      %1679 = vmatprep.subr.bf16.mxu0 0
      %1680 = vmatpush1.bf16.xpose.msra.mxu0 %v1647
      %1681 = vmatprep.subr.bf16.mxu0 0
      %1682 = vmatpush1.bf16.xpose.msra.mxu0 %v1644
      %1683 = vmatprep.subr.bf16.mxu0 0
      %1684 = vmatpush2.bf16.xpose.msra.mxu0 0
      %1685 = vmatprep.subr.bf16.mxu0 0
      %1686 = vmatpush2.bf16.xpose.msra.mxu0 0
      %1687 = vmatprep.subr.bf16.mxu0 0
      %1688 = vmatpush2.bf16.xpose.msra.mxu0 0
      %1689 = vmatprep.subr.bf16.mxu0 0
      %1690 = vmatpush2.bf16.xpose.msra.mxu0 0
      %1691 = vmatprep.subr.bf16.mxu0 0
      %1692 = vmatpush2.bf16.xpose.msra.mxu0 0
      %1693 = vmatprep.subr.bf16.mxu0 0
      %1694 = vmatpush2.bf16.xpose.msra.mxu0 0
      %1695 = vmatprep.subr.bf16.mxu0 0
      %1696 = vmatpush2.bf16.xpose.msra.mxu0 0
      %1697 = vmatprep.subr.bf16.mxu0 0
      %1698 = vmatpush2.bf16.xpose.msra.mxu0 0
      %1699 = vmatprep.mubr.bf16.mxu0 0
      %1700 = vmatmul.mubr.bf16.gmra.mxu0 %v1641
      %v1701 = vpop.f32.mrf.mxu0
      %v1702 = vadd.f32 0.0, %v1701
      %v1703 = vpop.f32.mrf.mxu0
      %v1704 = vpop.f32.mrf.mxu0
      %v1705 = vadd.f32 0.0, %v1704
      %v1706 = vpop.f32.mrf.mxu0
      %1707 = vdwg.mxu0
      %v1708 = vmul.f32 %v1702, 0.35355338
      %v1709 = vmul.f32 %v1705, 0.35355338
      %v1710 = vadd.f32 %v1708, %v1442
      %v1711 = vadd.f32 %v1709, %v1443
      %1712 = vmax.xlane.f32.xlu0 %v1710
      %v1713 = vpop.xlane.xlu0 %1712
      %1714 = vmax.xlane.f32.xlu0 %v1711
      %v1715 = vpop.xlane.xlu0 %1714
      %v1716 = vsub.f32 %v1710, %v1713
      %v1717 = vsub.f32 %v1711, %v1715
      %v1718 = vmul.f32 %v1716, 1.442695
      %v1719 = vpow.pop %v1718
      %v1720 = vmul.f32 %v1717, 1.442695
      %v1721 = vpow.pop %v1720
      %1722 = vadd.xlane.f32.xlu0 %v1719
      %v1723 = vpop.xlane.xlu0 %1722
      %1724 = vadd.xlane.f32.xlu0 %v1721
      %v1725 = vpop.xlane.xlu0 %1724
      %v1726 = vrcp.pop %v1723
      %v1727 = vrcp.pop %v1725
      %v1728 = vmul.f32 %v1719, %v1726
      %v1729 = vmul.f32 %v1721, %v1727
      %v1730 = vpack.c.bf16 %v1729, %v1728
      %1731 = vrot.lane.b32.xlu0 %v1447, 104
      %v1732 = vpop.permute.xlu0 %1731
      %1733 = vrot.lane.b32.xlu0 %v1448, 104
      %v1734 = vpop.permute.xlu0 %1733
      %1735 = vrot.lane.b32.xlu0 %v1449, 104
      %v1736 = vpop.permute.xlu0 %1735
      %1737 = vrot.lane.b32.xlu0 %v1450, 104
      %v1738 = vpop.permute.xlu0 %1737
      %1739 = vrot.lane.b32.xlu0 %v1451, 104
      %v1740 = vpop.permute.xlu0 %1739
      %1741 = vrot.lane.b32.xlu0 %v1452, 104
      %v1742 = vpop.permute.xlu0 %1741
      %1743 = vrot.lane.b32.xlu0 %v1453, 104
      %v1744 = vpop.permute.xlu0 %1743
      %1745 = vrot.lane.b32.xlu0 %v1454, 104
      %v1746 = vpop.permute.xlu0 %1745
      %1755 = vmatprep.subr.bf16.mxu0 0
      %1756 = vmatpush1.bf16.msra.mxu0 %v1746
      %1757 = vmatprep.subr.bf16.mxu0 0
      %1758 = vmatpush1.bf16.msra.mxu0 %v1744
      %1759 = vmatprep.subr.bf16.mxu0 0
      %1760 = vmatpush1.bf16.msra.mxu0 %v1742
      %1761 = vmatprep.subr.bf16.mxu0 0
      %1762 = vmatpush1.bf16.msra.mxu0 %v1740
      %1763 = vmatprep.subr.bf16.mxu0 0
      %1764 = vmatpush1.bf16.msra.mxu0 %v1738
      %1765 = vmatprep.subr.bf16.mxu0 0
      %1766 = vmatpush1.bf16.msra.mxu0 %v1736
      %1767 = vmatprep.subr.bf16.mxu0 0
      %1768 = vmatpush1.bf16.msra.mxu0 %v1734
      %1769 = vmatprep.subr.bf16.mxu0 0
      %1770 = vmatpush1.bf16.msra.mxu0 %v1732
      %1771 = vmatprep.subr.bf16.mxu0 0
      %1772 = vmatpush2.bf16.msra.mxu0 0
      %1773 = vmatprep.subr.bf16.mxu0 0
      %1774 = vmatpush2.bf16.msra.mxu0 0
      %1775 = vmatprep.subr.bf16.mxu0 0
      %1776 = vmatpush2.bf16.msra.mxu0 0
      %1777 = vmatprep.subr.bf16.mxu0 0
      %1778 = vmatpush2.bf16.msra.mxu0 0
      %1779 = vmatprep.subr.bf16.mxu0 0
      %1780 = vmatpush2.bf16.msra.mxu0 0
      %1781 = vmatprep.subr.bf16.mxu0 0
      %1782 = vmatpush2.bf16.msra.mxu0 0
      %1783 = vmatprep.subr.bf16.mxu0 0
      %1784 = vmatpush2.bf16.msra.mxu0 0
      %1785 = vmatprep.subr.bf16.mxu0 0
      %1786 = vmatpush2.bf16.msra.mxu0 0
      %1787 = vmatprep.mubr.bf16.mxu0 0
      %1788 = vmatmul.mubr.bf16.gmra.mxu0 %v1730
      %v1789 = vpop.f32.mrf.mxu0
      %v1790 = vadd.f32 0.0, %v1789
      %v1791 = vpop.f32.mrf.mxu0
      %v1792 = vpop.f32.mrf.mxu0
      %v1793 = vadd.f32 0.0, %v1792
      %v1794 = vpop.f32.mrf.mxu0
      %1795 = vdwg.mxu0
      %v1796 = vpack.c.bf16 %v1793, %v1790
      %v1797 = vpack.c.bf16 %v1445, %v1445
      %v1799 = vsel %vm846, %v1796, 0
      %v1802 = vsel %vm1100, %v1797, 0
      %1804 = vmatprep.subr.bf16.mxu0 0
      %1805 = vmatpush1.bf16.msra.mxu0 0
      %1806 = vmatprep.subr.bf16.mxu0 0
      %1807 = vmatpush1.bf16.msra.mxu0 0
      %1808 = vmatprep.subr.bf16.mxu0 0
      %1809 = vmatpush1.bf16.msra.mxu0 0
      %1810 = vmatprep.subr.bf16.mxu0 0
      %1811 = vmatpush1.bf16.msra.mxu0 0
      %1812 = vmatprep.subr.bf16.mxu0 0
      %1813 = vmatpush1.bf16.msra.mxu0 0
      %1814 = vmatprep.subr.bf16.mxu0 0
      %1815 = vmatpush1.bf16.msra.mxu0 0
      %1816 = vmatprep.subr.bf16.mxu0 0
      %1817 = vmatpush1.bf16.msra.mxu0 0
      %1818 = vmatprep.subr.bf16.mxu0 0
      %1819 = vmatpush1.bf16.msra.mxu0 %v1802
      %1820 = vmatprep.subr.bf16.mxu0 0
      %1821 = vmatpush2.bf16.msra.mxu0 0
      %1822 = vmatprep.subr.bf16.mxu0 0
      %1823 = vmatpush2.bf16.msra.mxu0 0
      %1824 = vmatprep.subr.bf16.mxu0 0
      %1825 = vmatpush2.bf16.msra.mxu0 0
      %1826 = vmatprep.subr.bf16.mxu0 0
      %1827 = vmatpush2.bf16.msra.mxu0 0
      %1828 = vmatprep.subr.bf16.mxu0 0
      %1829 = vmatpush2.bf16.msra.mxu0 0
      %1830 = vmatprep.subr.bf16.mxu0 0
      %1831 = vmatpush2.bf16.msra.mxu0 0
      %1832 = vmatprep.subr.bf16.mxu0 0
      %1833 = vmatpush2.bf16.msra.mxu0 0
      %1834 = vmatprep.subr.bf16.mxu0 0
      %1835 = vmatpush2.bf16.msra.mxu0 0
      %1836 = vmatprep.mubr.bf16.mxu0 0
      %1837 = vmatmul.mubr.bf16.gmra.mxu0 %v1799
      %v1838 = vpop.f32.mrf.mxu0
      %v1839 = vadd.f32 0.0, %v1838
      %v1840 = vpop.f32.mrf.mxu0
      %v1841 = vpop.f32.mrf.mxu0
      %v1842 = vadd.f32 0.0, %v1841
      %v1843 = vpop.f32.mrf.mxu0
      %1844 = vdwg.mxu0
      %v1846 = vsel %vm846, %v1619, 0
      %v1849 = vsel %vm1100, %v1620, 0
      %1851 = vmatprep.subr.bf16.mxu0 0
      %1852 = vmatpush1.bf16.msra.mxu0 0
      %1853 = vmatprep.subr.bf16.mxu0 0
      %1854 = vmatpush1.bf16.msra.mxu0 0
      %1855 = vmatprep.subr.bf16.mxu0 0
      %1856 = vmatpush1.bf16.msra.mxu0 0
      %1857 = vmatprep.subr.bf16.mxu0 0
      %1858 = vmatpush1.bf16.msra.mxu0 0
      %1859 = vmatprep.subr.bf16.mxu0 0
      %1860 = vmatpush1.bf16.msra.mxu0 0
      %1861 = vmatprep.subr.bf16.mxu0 0
      %1862 = vmatpush1.bf16.msra.mxu0 0
      %1863 = vmatprep.subr.bf16.mxu0 0
      %1864 = vmatpush1.bf16.msra.mxu0 0
      %1865 = vmatprep.subr.bf16.mxu0 0
      %1866 = vmatpush1.bf16.msra.mxu0 %v1849
      %1867 = vmatprep.subr.bf16.mxu0 0
      %1868 = vmatpush2.bf16.msra.mxu0 0
      %1869 = vmatprep.subr.bf16.mxu0 0
      %1870 = vmatpush2.bf16.msra.mxu0 0
      %1871 = vmatprep.subr.bf16.mxu0 0
      %1872 = vmatpush2.bf16.msra.mxu0 0
      %1873 = vmatprep.subr.bf16.mxu0 0
      %1874 = vmatpush2.bf16.msra.mxu0 0
      %1875 = vmatprep.subr.bf16.mxu0 0
      %1876 = vmatpush2.bf16.msra.mxu0 0
      %1877 = vmatprep.subr.bf16.mxu0 0
      %1878 = vmatpush2.bf16.msra.mxu0 0
      %1879 = vmatprep.subr.bf16.mxu0 0
      %1880 = vmatpush2.bf16.msra.mxu0 0
      %1881 = vmatprep.subr.bf16.mxu0 0
      %1882 = vmatpush2.bf16.msra.mxu0 0
      %1883 = vmatprep.mubr.bf16.mxu0 0
      %1884 = vmatmul.mubr.bf16.gmra.mxu0 %v1846
      %v1885 = vpop.f32.mrf.mxu0
      %v1886 = vadd.f32 %v1839, %v1885
      %v1887 = vpop.f32.mrf.mxu0
      %v1888 = vpop.f32.mrf.mxu0
      %v1889 = vadd.f32 %v1842, %v1888
      %v1890 = vpop.f32.mrf.mxu0
      %1891 = vdwg.mxu0
      %v1892 = vld [vmem:[%s15] sm:$0x1]
      %v1894 = vlaneseq
      %v1895 = vshrl.u32 %v1894, 7
      %v1896 = vsub.s32 0, %v1895
      %v1897 = vrot.slane %v1892, %v1896
      %v1899 = vadd.f32 %v1886, %v1897
      %v1900 = vadd.f32 %v1889, %v1897
      %v1901 = vadd.f32 %v1246, %v1899
      %v1902 = vadd.f32 %v1247, %v1900
      %v1903 = vld [vmem:[%s16] sm:$0x1]
      %v1904 = vld [vmem:[%s17] sm:$0x1]
      %v1905 = vsel %vm793, %v1901, 0.0
      %1906 = vadd.xlane.f32.xlu0 %v1905
      %v1907 = vpop.xlane.xlu0 %1906
      %v1908 = vsel %vm793, %v1902, 0.0
      %1909 = vadd.xlane.f32.xlu0 %v1908
      %v1910 = vpop.xlane.xlu0 %1909
      %v1911 = vmul.f32 %v1907, %v1211
      %v1912 = vmul.f32 %v1910, %v1211
      %v1913 = vsub.f32 %v1901, %v1911
      %v1914 = vsub.f32 %v1902, %v1912
      %v1915 = vmul.f32 %v1913, %v1913
      %v1916 = vmul.f32 %v1914, %v1914
      %v1917 = vsel %vm793, %v1915, 0.0
      %1918 = vadd.xlane.f32.xlu0 %v1917
      %v1919 = vpop.xlane.xlu0 %1918
      %v1920 = vsel %vm793, %v1916, 0.0
      %1921 = vadd.xlane.f32.xlu0 %v1920
      %v1922 = vpop.xlane.xlu0 %1921
      %v1923 = vmul.f32 %v1919, %v1211
      %v1924 = vmul.f32 %v1922, %v1211
      %v1925 = vadd.f32 %v1923, 1e-05
      %v1926 = vadd.f32 %v1924, 1e-05
      %v1927 = vrsqrt.pop %v1925
      %v1928 = vrsqrt.pop %v1926
      %v1929 = vmul.f32 %v1913, %v1927
      %v1930 = vmul.f32 %v1914, %v1928
      %v1932 = vlaneseq
      %v1933 = vshrl.u32 %v1932, 7
      %v1934 = vsub.s32 0, %v1933
      %v1935 = vrot.slane %v1903, %v1934
      %v1937 = vmul.f32 %v1929, %v1935
      %v1938 = vmul.f32 %v1930, %v1935
      %v1940 = vlaneseq
      %v1941 = vshrl.u32 %v1940, 7
      %v1942 = vsub.s32 0, %v1941
      %v1943 = vrot.slane %v1904, %v1942
      %v1945 = vadd.f32 %v1937, %v1943
      %v1946 = vadd.f32 %v1938, %v1943
      %v1947 = vld [vmem:[%s18] sm:$0xff]
      %v1948 = vld [vmem:[%s18 + $0x8] sm:$0xff]
      %v1949 = vpack.c.bf16 %v1946, %v1945
      %v1950 = vpack.c.bf16 %v1948, %v1947
      %v1951 = vld [vmem:[%s19] sm:$0x1]
      %v1953 = vlaneseq
      %v1954 = vshrl.u32 %v1953, 7
      %v1955 = vsub.s32 0, %v1954
      %v1956 = vrot.slane %v1951, %v1955
      %v1959 = vsel %vm793, %v1949, 0
      %1961 = vmatprep.subr.bf16.mxu0 0
      %1962 = vmatpush1.bf16.msra.mxu0 0
      %1963 = vmatprep.subr.bf16.mxu0 0
      %1964 = vmatpush1.bf16.msra.mxu0 0
      %1965 = vmatprep.subr.bf16.mxu0 0
      %1966 = vmatpush1.bf16.msra.mxu0 0
      %1967 = vmatprep.subr.bf16.mxu0 0
      %1968 = vmatpush1.bf16.msra.mxu0 0
      %1969 = vmatprep.subr.bf16.mxu0 0
      %1970 = vmatpush1.bf16.msra.mxu0 0
      %1971 = vmatprep.subr.bf16.mxu0 0
      %1972 = vmatpush1.bf16.msra.mxu0 0
      %1973 = vmatprep.subr.bf16.mxu0 0
      %1974 = vmatpush1.bf16.msra.mxu0 0
      %1975 = vmatprep.subr.bf16.mxu0 0
      %1976 = vmatpush1.bf16.msra.mxu0 %v1950
      %1977 = vmatprep.subr.bf16.mxu0 0
      %1978 = vmatpush2.bf16.msra.mxu0 0
      %1979 = vmatprep.subr.bf16.mxu0 0
      %1980 = vmatpush2.bf16.msra.mxu0 0
      %1981 = vmatprep.subr.bf16.mxu0 0
      %1982 = vmatpush2.bf16.msra.mxu0 0
      %1983 = vmatprep.subr.bf16.mxu0 0
      %1984 = vmatpush2.bf16.msra.mxu0 0
      %1985 = vmatprep.subr.bf16.mxu0 0
      %1986 = vmatpush2.bf16.msra.mxu0 0
      %1987 = vmatprep.subr.bf16.mxu0 0
      %1988 = vmatpush2.bf16.msra.mxu0 0
      %1989 = vmatprep.subr.bf16.mxu0 0
      %1990 = vmatpush2.bf16.msra.mxu0 0
      %1991 = vmatprep.subr.bf16.mxu0 0
      %1992 = vmatpush2.bf16.msra.mxu0 0
      %1993 = vmatprep.mubr.bf16.mxu0 0
      %1994 = vmatmul.mubr.bf16.gmra.mxu0 %v1959
      %v1995 = vpop.f32.mrf.mxu0
      %v1996 = vadd.f32 %v1956, %v1995
      %v1997 = vpop.f32.mrf.mxu0
      %v1998 = vpop.f32.mrf.mxu0
      %v1999 = vadd.f32 %v1956, %v1998
      %v2000 = vpop.f32.mrf.mxu0
      %2001 = vdwg.mxu0
      %v2002 = vmax.f32 %v1996, 0.0
      %v2003 = vmax.f32 %v1999, 0.0
      %v2004 = vld [vmem:[%s20] sm:$0xff]
      %v2005 = vld [vmem:[%s20 + $0x8] sm:$0xff]
      %v2006 = vld [vmem:[%s20 + $0x10] sm:$0xff]
      %v2007 = vld [vmem:[%s20 + $0x18] sm:$0xff]
      %v2008 = vpack.c.bf16 %v2003, %v2002
      %v2009 = vpack.c.bf16 %v2005, %v2004
      %v2010 = vpack.c.bf16 %v2007, %v2006
      %v2011 = vld [vmem:[%s21] sm:$0x1]
      %v2013 = vlaneseq
      %v2014 = vshrl.u32 %v2013, 7
      %v2015 = vsub.s32 0, %v2014
      %v2016 = vrot.slane %v2011, %v2015
      %vm2018 = vcmask 261120
      %v2020 = vsel %vm2018, %v2008, 0
      %2022 = vmatprep.subr.bf16.mxu0 0
      %2023 = vmatpush1.bf16.msra.mxu0 0
      %2024 = vmatprep.subr.bf16.mxu0 0
      %2025 = vmatpush1.bf16.msra.mxu0 0
      %2026 = vmatprep.subr.bf16.mxu0 0
      %2027 = vmatpush1.bf16.msra.mxu0 0
      %2028 = vmatprep.subr.bf16.mxu0 0
      %2029 = vmatpush1.bf16.msra.mxu0 0
      %2030 = vmatprep.subr.bf16.mxu0 0
      %2031 = vmatpush1.bf16.msra.mxu0 0
      %2032 = vmatprep.subr.bf16.mxu0 0
      %2033 = vmatpush1.bf16.msra.mxu0 0
      %2034 = vmatprep.subr.bf16.mxu0 0
      %2035 = vmatpush1.bf16.msra.mxu0 %v2010
      %2036 = vmatprep.subr.bf16.mxu0 0
      %2037 = vmatpush1.bf16.msra.mxu0 %v2009
      %2038 = vmatprep.subr.bf16.mxu0 0
      %2039 = vmatpush2.bf16.msra.mxu0 0
      %2040 = vmatprep.subr.bf16.mxu0 0
      %2041 = vmatpush2.bf16.msra.mxu0 0
      %2042 = vmatprep.subr.bf16.mxu0 0
      %2043 = vmatpush2.bf16.msra.mxu0 0
      %2044 = vmatprep.subr.bf16.mxu0 0
      %2045 = vmatpush2.bf16.msra.mxu0 0
      %2046 = vmatprep.subr.bf16.mxu0 0
      %2047 = vmatpush2.bf16.msra.mxu0 0
      %2048 = vmatprep.subr.bf16.mxu0 0
      %2049 = vmatpush2.bf16.msra.mxu0 0
      %2050 = vmatprep.subr.bf16.mxu0 0
      %2051 = vmatpush2.bf16.msra.mxu0 0
      %2052 = vmatprep.subr.bf16.mxu0 0
      %2053 = vmatpush2.bf16.msra.mxu0 0
      %2054 = vmatprep.mubr.bf16.mxu0 0
      %2055 = vmatmul.mubr.bf16.gmra.mxu0 %v2020
      %v2056 = vpop.f32.mrf.mxu0
      %v2057 = vadd.f32 %v2016, %v2056
      %v2058 = vpop.f32.mrf.mxu0
      %v2059 = vpop.f32.mrf.mxu0
      %v2060 = vadd.f32 %v2016, %v2059
      %v2061 = vpop.f32.mrf.mxu0
      %2062 = vdwg.mxu0
      %v2063 = vadd.f32 %v1945, %v2057
      %v2064 = vadd.f32 %v1946, %v2060
      %v2065 = vld [vmem:[%s22] sm:$0x1]
      %v2066 = vld [vmem:[%s23] sm:$0x1]
      %v2067 = vsel %vm793, %v2063, 0.0
      %2068 = vadd.xlane.f32.xlu0 %v2067
      %v2069 = vpop.xlane.xlu0 %2068
      %v2070 = vsel %vm793, %v2064, 0.0
      %2071 = vadd.xlane.f32.xlu0 %v2070
      %v2072 = vpop.xlane.xlu0 %2071
      %v2073 = vmul.f32 %v2069, %v1211
      %v2074 = vmul.f32 %v2072, %v1211
      %v2075 = vsub.f32 %v2063, %v2073
      %v2076 = vsub.f32 %v2064, %v2074
      %v2077 = vmul.f32 %v2075, %v2075
      %v2078 = vmul.f32 %v2076, %v2076
      %v2079 = vsel %vm793, %v2077, 0.0
      %2080 = vadd.xlane.f32.xlu0 %v2079
      %v2081 = vpop.xlane.xlu0 %2080
      %v2082 = vsel %vm793, %v2078, 0.0
      %2083 = vadd.xlane.f32.xlu0 %v2082
      %v2084 = vpop.xlane.xlu0 %2083
      %v2085 = vmul.f32 %v2081, %v1211
      %v2086 = vmul.f32 %v2084, %v1211
      %v2087 = vadd.f32 %v2085, 1e-05
      %v2088 = vadd.f32 %v2086, 1e-05
      %v2089 = vrsqrt.pop %v2087
      %v2090 = vrsqrt.pop %v2088
      %v2091 = vmul.f32 %v2075, %v2089
      %v2092 = vmul.f32 %v2076, %v2090
      %v2094 = vlaneseq
      %v2095 = vshrl.u32 %v2094, 7
      %v2096 = vsub.s32 0, %v2095
      %v2097 = vrot.slane %v2065, %v2096
      %v2099 = vmul.f32 %v2091, %v2097
      %v2100 = vmul.f32 %v2092, %v2097
      %v2102 = vlaneseq
      %v2103 = vshrl.u32 %v2102, 7
      %v2104 = vsub.s32 0, %v2103
      %v2105 = vrot.slane %v2066, %v2104
      %v2107 = vadd.f32 %v2099, %v2105
      %v2108 = vadd.f32 %v2100, %v2105
      %2109 = vst.msk [vmem:[%s761] sm:$0xff] %vm793, %v2107
      %2110 = vst.msk [vmem:[%s761 + $0x8] sm:$0xff] %vm793, %v2108
      %s2111 = smul.u32 2, %s35
      %p2112 = scmp.lt.s32.totalorder %s2111, 3
      %s2113 = scalar_select %p2112, %s2111, 3
      %s2114 = smul.addr %s2113, 8
      %s2115 = scalar_lea.vmem %s24, %s2114
      // Predicated region
      $region117: #{vct_predictor_forward.6} parent=115 // pred_check
        %p2116 = pneg %p567
      $region118: #{vct_predictor_forward.6} parent=115 // pred_check_branch
        %2118 = sbr.rel (%p2116) target = $region120
      $region119: #{vct_predictor_forward.6} parent=115 // pred_region
        %s2119 = smul.u32 2, %s35
      $region120: #{vct_predictor_forward.6} parent=115 // pred_fallthru
        _
    $region116: #{vct_predictor_forward.6} parent=5 // pred_fallthru
      _
    %p2120 = scmp.le.s32.totalorder 2, %s30
    // Predicated region
    $region121: #{vct_predictor_forward.6} parent=5 // pred_check
      %p2121 = pneg %p2120
    $region122: #{vct_predictor_forward.6} parent=5 // pred_check_branch
      %2123 = sbr.rel (%p2121) target = $region124
    $region123: #{vct_predictor_forward.6} parent=5 // pred_region
      %s2124 = ssub.s32 %s30, 2
      // Predicated region
      $region125: #{vct_predictor_forward.6} parent=123 // pred_check
        %p2125 = pneg %p573
      $region126: #{vct_predictor_forward.6} parent=123 // pred_check_branch
        %2127 = sbr.rel (%p2125) target = $region128
      $region127: #{vct_predictor_forward.6} parent=123 // pred_region
        %s2128 = smul.u32 2, %s36
        %p2129 = scmp.lt.s32.totalorder %s2128, 3
        %s2130 = scalar_select %p2129, %s2128, 3
        %s2131 = smul.addr %s2130, 8
        %s2132 = scalar_lea.vmem %s24, %s2131
      $region128: #{vct_predictor_forward.6} parent=123 // pred_fallthru
        _
    $region124: #{vct_predictor_forward.6} parent=5 // pred_fallthru
      _
  $region6: #{vct_predictor_forward.6} parent=0 // loop_footer
    %s34 = sadd.s32 1, %s30
  $region7: #{vct_predictor_forward.6} parent=0 // loop_footer_branch
    %29 = sbr.rel target = $region3
  $region8: #{vct_predictor_forward.6} parent=0 // loop_exit
    _

// kernel: vct_predictor_forward.4
$region0: #{vct_predictor_forward.4}
  #allocation0 [shape = 'u32[]', space=smem, size = 0x4, offset = 0x4, fixed_abs, tag = 'smem constant byte address 0x4 - core index']
  #allocation1 [shape = 'u32[144,128]{1,0:T(1,128)}', space=vmem, size = 0x12000, scoped, tag = 'internal scratch']
  %s0 = inlined_call_operand.vmem [shape: f32[256,16], index: 0, kind: input, shape index: {}]
  %s1 = inlined_call_operand.vmem [shape: f32[128,128], index: 1, kind: input, shape index: {}]
  %s2 = inlined_call_operand.vmem [shape: f32[16,48], index: 2, kind: input, shape index: {}]
  %s3 = inlined_call_operand.vmem [shape: f32[1,48], index: 3, kind: input, shape index: {}]
  %s4 = inlined_call_operand.vmem [shape: f32[16,16], index: 4, kind: input, shape index: {}]
  %s5 = inlined_call_operand.vmem [shape: f32[1,16], index: 5, kind: input, shape index: {}]
  %s6 = inlined_call_operand.vmem [shape: f32[1,16], index: 6, kind: input, shape index: {}]
  %s7 = inlined_call_operand.vmem [shape: f32[1,16], index: 7, kind: input, shape index: {}]
  %s8 = inlined_call_operand.vmem [shape: f32[16,32], index: 8, kind: input, shape index: {}]
  %s9 = inlined_call_operand.vmem [shape: f32[1,32], index: 9, kind: input, shape index: {}]
  %s10 = inlined_call_operand.vmem [shape: f32[32,16], index: 10, kind: input, shape index: {}]
  %s11 = inlined_call_operand.vmem [shape: f32[1,16], index: 11, kind: input, shape index: {}]
  %s12 = inlined_call_operand.vmem [shape: f32[1,16], index: 12, kind: input, shape index: {}]
  %s13 = inlined_call_operand.vmem [shape: f32[1,16], index: 13, kind: input, shape index: {}]
  %s14 = inlined_call_operand.vmem [shape: f32[256,16], index: 14, kind: output, shape index: {}]
  %s15 = sld [smem:[#allocation0]]
  $region89: #{vct_predictor_forward.4} parent=0
    _
  %s17 = ssub.s32 1, %s15
  %s18 = scalar_select 0, %s17, %s15
  loop: start=0, step=1, limit=4
  $region2: #{vct_predictor_forward.4} parent=0 // loop_pre_header
    _
  $region3: #{vct_predictor_forward.4} parent=0 // loop_header
    %s20 = sphi 0, %s24
    %p21 = scmp.ge.s32.totalorder %s20, 4
    %s30 = sphi 0, %s32
    %s33 = sphi 0, %s30
    %s34 = sphi 0, %s33
    %s50 = sphi 0, %s34
    %s54 = sphi 0, %s54
    %s56 = sphi 0, %s54
    %s57 = sphi 0, %s56
    %s71 = sphi 0, %s57
    %s75 = sphi 0, %s75
    %s77 = sphi 0, %s75
    %s78 = sphi 0, %s77
    %s92 = sphi 0, %s78
    %s96 = sphi 0, %s96
    %s98 = sphi 0, %s96
    %s99 = sphi 0, %s98
    %s113 = sphi 0, %s99
    %s117 = sphi 0, %s117
    %s119 = sphi 0, %s117
    %s120 = sphi 0, %s119
    %s134 = sphi 0, %s120
    %s138 = sphi 0, %s138
    %s140 = sphi 0, %s138
    %s141 = sphi 0, %s140
    %s155 = sphi 0, %s141
    %s159 = sphi 0, %s159
    %s161 = sphi 0, %s159
    %s162 = sphi 0, %s161
    %s176 = sphi 0, %s162
    %s180 = sphi 0, %s180
    %s182 = sphi 0, %s180
    %s183 = sphi 0, %s182
    %s197 = sphi 0, %s183
    %s201 = sphi 0, %s201
    %s203 = sphi 0, %s201
    %s204 = sphi 0, %s203
    %s218 = sphi 0, %s204
    %s222 = sphi 0, %s222
    %s224 = sphi 0, %s222
    %s225 = sphi 0, %s224
    %s239 = sphi 0, %s225
    %s243 = sphi 0, %s243
    %s245 = sphi 0, %s243
    %s246 = sphi 0, %s245
    %s260 = sphi 0, %s246
    %s264 = sphi 0, %s264
    %s266 = sphi 0, %s264
    %s267 = sphi 0, %s266
    %s281 = sphi 0, %s267
    %s285 = sphi 0, %s285
    %s287 = sphi 0, %s285
    %s288 = sphi 0, %s287
    %s302 = sphi 0, %s288
    %s306 = sphi 0, %s306
    %s308 = sphi 0, %s306
    %s309 = sphi 0, %s308
    %s323 = sphi 0, %s309
    %s329 = sphi 0, %s331
    %s332 = sphi 0, %s329
    %s333 = sphi 0, %s332
    %s349 = sphi 0, %s333
  $region4: #{vct_predictor_forward.4} parent=0 // loop_header_branch
    %23 = sbr.rel (%p21) target = $region8
  $region5: #{vct_predictor_forward.4} parent=0 // loop_body
    %s25 = ssub.s32 %s20, 1
    %s26 = ssub.s32 %s20, 2
    %s27 = sadd.s32 %s20, 1
    %s28 = ssub.s32 %s20, %s27
    %p29 = scmp.eq.s32.totalorder %s28, 0
    %s31 = sadd.s32 %s30, 1
    %s32 = scalar_select %p29, %s30, %s31
    %p35 = pneg %p29
    %p36 = scmp.eq.s32.totalorder %s20, 1
    %p37 = por %p35, %p36
    %p38 = scmp.ne.s32.totalorder %s30, %s33
    %p39 = scmp.eq.s32.totalorder %s20, 0
    %p40 = por %p38, %p39
    %p41 = scmp.ne.s32.totalorder %s30, %s33
    %p42 = scmp.eq.s32.totalorder %s25, 1
    %p43 = por %p41, %p42
    %p44 = scmp.ne.s32.totalorder %s33, %s34
    %p45 = scmp.eq.s32.totalorder %s25, 0
    %p46 = por %p44, %p45
    %p47 = scmp.ne.s32.totalorder %s33, %s34
    %p48 = scmp.eq.s32.totalorder %s26, 1
    %p49 = por %p47, %p48
    %p51 = scmp.ne.s32.totalorder %s34, %s50
    %p52 = scmp.eq.s32.totalorder %s26, 0
    %p53 = por %p51, %p52
    %s55 = sadd.s32 %s54, 1
    %p58 = scmp.eq.s32.totalorder %s20, 1
    %p59 = scmp.ne.s32.totalorder %s54, %s56
    %p60 = scmp.eq.s32.totalorder %s20, 0
    %p61 = por %p59, %p60
    %p62 = scmp.ne.s32.totalorder %s54, %s56
    %p63 = scmp.eq.s32.totalorder %s25, 1
    %p64 = por %p62, %p63
    %p65 = scmp.ne.s32.totalorder %s56, %s57
    %p66 = scmp.eq.s32.totalorder %s25, 0
    %p67 = por %p65, %p66
    %p68 = scmp.ne.s32.totalorder %s56, %s57
    %p69 = scmp.eq.s32.totalorder %s26, 1
    %p70 = por %p68, %p69
    %p72 = scmp.ne.s32.totalorder %s57, %s71
    %p73 = scmp.eq.s32.totalorder %s26, 0
    %p74 = por %p72, %p73
    %s76 = sadd.s32 %s75, 1
    %p79 = scmp.eq.s32.totalorder %s20, 1
    %p80 = scmp.ne.s32.totalorder %s75, %s77
    %p81 = scmp.eq.s32.totalorder %s20, 0
    %p82 = por %p80, %p81
    %p83 = scmp.ne.s32.totalorder %s75, %s77
    %p84 = scmp.eq.s32.totalorder %s25, 1
    %p85 = por %p83, %p84
    %p86 = scmp.ne.s32.totalorder %s77, %s78
    %p87 = scmp.eq.s32.totalorder %s25, 0
    %p88 = por %p86, %p87
    %p89 = scmp.ne.s32.totalorder %s77, %s78
    %p90 = scmp.eq.s32.totalorder %s26, 1
    %p91 = por %p89, %p90
    %p93 = scmp.ne.s32.totalorder %s78, %s92
    %p94 = scmp.eq.s32.totalorder %s26, 0
    %p95 = por %p93, %p94
    %s97 = sadd.s32 %s96, 1
    %p100 = scmp.eq.s32.totalorder %s20, 1
    %p101 = scmp.ne.s32.totalorder %s96, %s98
    %p102 = scmp.eq.s32.totalorder %s20, 0
    %p103 = por %p101, %p102
    %p104 = scmp.ne.s32.totalorder %s96, %s98
    %p105 = scmp.eq.s32.totalorder %s25, 1
    %p106 = por %p104, %p105
    %p107 = scmp.ne.s32.totalorder %s98, %s99
    %p108 = scmp.eq.s32.totalorder %s25, 0
    %p109 = por %p107, %p108
    %p110 = scmp.ne.s32.totalorder %s98, %s99
    %p111 = scmp.eq.s32.totalorder %s26, 1
    %p112 = por %p110, %p111
    %p114 = scmp.ne.s32.totalorder %s99, %s113
    %p115 = scmp.eq.s32.totalorder %s26, 0
    %p116 = por %p114, %p115
    %s118 = sadd.s32 %s117, 1
    %p121 = scmp.eq.s32.totalorder %s20, 1
    %p122 = scmp.ne.s32.totalorder %s117, %s119
    %p123 = scmp.eq.s32.totalorder %s20, 0
    %p124 = por %p122, %p123
    %p125 = scmp.ne.s32.totalorder %s117, %s119
    %p126 = scmp.eq.s32.totalorder %s25, 1
    %p127 = por %p125, %p126
    %p128 = scmp.ne.s32.totalorder %s119, %s120
    %p129 = scmp.eq.s32.totalorder %s25, 0
    %p130 = por %p128, %p129
    %p131 = scmp.ne.s32.totalorder %s119, %s120
    %p132 = scmp.eq.s32.totalorder %s26, 1
    %p133 = por %p131, %p132
    %p135 = scmp.ne.s32.totalorder %s120, %s134
    %p136 = scmp.eq.s32.totalorder %s26, 0
    %p137 = por %p135, %p136
    %s139 = sadd.s32 %s138, 1
    %p142 = scmp.eq.s32.totalorder %s20, 1
    %p143 = scmp.ne.s32.totalorder %s138, %s140
    %p144 = scmp.eq.s32.totalorder %s20, 0
    %p145 = por %p143, %p144
    %p146 = scmp.ne.s32.totalorder %s138, %s140
    %p147 = scmp.eq.s32.totalorder %s25, 1
    %p148 = por %p146, %p147
    %p149 = scmp.ne.s32.totalorder %s140, %s141
    %p150 = scmp.eq.s32.totalorder %s25, 0
    %p151 = por %p149, %p150
    %p152 = scmp.ne.s32.totalorder %s140, %s141
    %p153 = scmp.eq.s32.totalorder %s26, 1
    %p154 = por %p152, %p153
    %p156 = scmp.ne.s32.totalorder %s141, %s155
    %p157 = scmp.eq.s32.totalorder %s26, 0
    %p158 = por %p156, %p157
    %s160 = sadd.s32 %s159, 1
    %p163 = scmp.eq.s32.totalorder %s20, 1
    %p164 = scmp.ne.s32.totalorder %s159, %s161
    %p165 = scmp.eq.s32.totalorder %s20, 0
    %p166 = por %p164, %p165
    %p167 = scmp.ne.s32.totalorder %s159, %s161
    %p168 = scmp.eq.s32.totalorder %s25, 1
    %p169 = por %p167, %p168
    %p170 = scmp.ne.s32.totalorder %s161, %s162
    %p171 = scmp.eq.s32.totalorder %s25, 0
    %p172 = por %p170, %p171
    %p173 = scmp.ne.s32.totalorder %s161, %s162
    %p174 = scmp.eq.s32.totalorder %s26, 1
    %p175 = por %p173, %p174
    %p177 = scmp.ne.s32.totalorder %s162, %s176
    %p178 = scmp.eq.s32.totalorder %s26, 0
    %p179 = por %p177, %p178
    %s181 = sadd.s32 %s180, 1
    %p184 = scmp.eq.s32.totalorder %s20, 1
    %p185 = scmp.ne.s32.totalorder %s180, %s182
    %p186 = scmp.eq.s32.totalorder %s20, 0
    %p187 = por %p185, %p186
    %p188 = scmp.ne.s32.totalorder %s180, %s182
    %p189 = scmp.eq.s32.totalorder %s25, 1
    %p190 = por %p188, %p189
    %p191 = scmp.ne.s32.totalorder %s182, %s183
    %p192 = scmp.eq.s32.totalorder %s25, 0
    %p193 = por %p191, %p192
    %p194 = scmp.ne.s32.totalorder %s182, %s183
    %p195 = scmp.eq.s32.totalorder %s26, 1
    %p196 = por %p194, %p195
    %p198 = scmp.ne.s32.totalorder %s183, %s197
    %p199 = scmp.eq.s32.totalorder %s26, 0
    %p200 = por %p198, %p199
    %s202 = sadd.s32 %s201, 1
    %p205 = scmp.eq.s32.totalorder %s20, 1
    %p206 = scmp.ne.s32.totalorder %s201, %s203
    %p207 = scmp.eq.s32.totalorder %s20, 0
    %p208 = por %p206, %p207
    %p209 = scmp.ne.s32.totalorder %s201, %s203
    %p210 = scmp.eq.s32.totalorder %s25, 1
    %p211 = por %p209, %p210
    %p212 = scmp.ne.s32.totalorder %s203, %s204
    %p213 = scmp.eq.s32.totalorder %s25, 0
    %p214 = por %p212, %p213
    %p215 = scmp.ne.s32.totalorder %s203, %s204
    %p216 = scmp.eq.s32.totalorder %s26, 1
    %p217 = por %p215, %p216
    %p219 = scmp.ne.s32.totalorder %s204, %s218
    %p220 = scmp.eq.s32.totalorder %s26, 0
    %p221 = por %p219, %p220
    %s223 = sadd.s32 %s222, 1
    %p226 = scmp.eq.s32.totalorder %s20, 1
    %p227 = scmp.ne.s32.totalorder %s222, %s224
    %p228 = scmp.eq.s32.totalorder %s20, 0
    %p229 = por %p227, %p228
    %p230 = scmp.ne.s32.totalorder %s222, %s224
    %p231 = scmp.eq.s32.totalorder %s25, 1
    %p232 = por %p230, %p231
    %p233 = scmp.ne.s32.totalorder %s224, %s225
    %p234 = scmp.eq.s32.totalorder %s25, 0
    %p235 = por %p233, %p234
    %p236 = scmp.ne.s32.totalorder %s224, %s225
    %p237 = scmp.eq.s32.totalorder %s26, 1
    %p238 = por %p236, %p237
    %p240 = scmp.ne.s32.totalorder %s225, %s239
    %p241 = scmp.eq.s32.totalorder %s26, 0
    %p242 = por %p240, %p241
    %s244 = sadd.s32 %s243, 1
    %p247 = scmp.eq.s32.totalorder %s20, 1
    %p248 = scmp.ne.s32.totalorder %s243, %s245
    %p249 = scmp.eq.s32.totalorder %s20, 0
    %p250 = por %p248, %p249
    %p251 = scmp.ne.s32.totalorder %s243, %s245
    %p252 = scmp.eq.s32.totalorder %s25, 1
    %p253 = por %p251, %p252
    %p254 = scmp.ne.s32.totalorder %s245, %s246
    %p255 = scmp.eq.s32.totalorder %s25, 0
    %p256 = por %p254, %p255
    %p257 = scmp.ne.s32.totalorder %s245, %s246
    %p258 = scmp.eq.s32.totalorder %s26, 1
    %p259 = por %p257, %p258
    %p261 = scmp.ne.s32.totalorder %s246, %s260
    %p262 = scmp.eq.s32.totalorder %s26, 0
    %p263 = por %p261, %p262
    %s265 = sadd.s32 %s264, 1
    %p268 = scmp.eq.s32.totalorder %s20, 1
    %p269 = scmp.ne.s32.totalorder %s264, %s266
    %p270 = scmp.eq.s32.totalorder %s20, 0
    %p271 = por %p269, %p270
    %p272 = scmp.ne.s32.totalorder %s264, %s266
    %p273 = scmp.eq.s32.totalorder %s25, 1
    %p274 = por %p272, %p273
    %p275 = scmp.ne.s32.totalorder %s266, %s267
    %p276 = scmp.eq.s32.totalorder %s25, 0
    %p277 = por %p275, %p276
    %p278 = scmp.ne.s32.totalorder %s266, %s267
    %p279 = scmp.eq.s32.totalorder %s26, 1
    %p280 = por %p278, %p279
    %p282 = scmp.ne.s32.totalorder %s267, %s281
    %p283 = scmp.eq.s32.totalorder %s26, 0
    %p284 = por %p282, %p283
    %s286 = sadd.s32 %s285, 1
    %p289 = scmp.eq.s32.totalorder %s20, 1
    %p290 = scmp.ne.s32.totalorder %s285, %s287
    %p291 = scmp.eq.s32.totalorder %s20, 0
    %p292 = por %p290, %p291
    %p293 = scmp.ne.s32.totalorder %s285, %s287
    %p294 = scmp.eq.s32.totalorder %s25, 1
    %p295 = por %p293, %p294
    %p296 = scmp.ne.s32.totalorder %s287, %s288
    %p297 = scmp.eq.s32.totalorder %s25, 0
    %p298 = por %p296, %p297
    %p299 = scmp.ne.s32.totalorder %s287, %s288
    %p300 = scmp.eq.s32.totalorder %s26, 1
    %p301 = por %p299, %p300
    %p303 = scmp.ne.s32.totalorder %s288, %s302
    %p304 = scmp.eq.s32.totalorder %s26, 0
    %p305 = por %p303, %p304
    %s307 = sadd.s32 %s306, 1
    %p310 = scmp.eq.s32.totalorder %s20, 1
    %p311 = scmp.ne.s32.totalorder %s306, %s308
    %p312 = scmp.eq.s32.totalorder %s20, 0
    %p313 = por %p311, %p312
    %p314 = scmp.ne.s32.totalorder %s306, %s308
    %p315 = scmp.eq.s32.totalorder %s25, 1
    %p316 = por %p314, %p315
    %p317 = scmp.ne.s32.totalorder %s308, %s309
    %p318 = scmp.eq.s32.totalorder %s25, 0
    %p319 = por %p317, %p318
    %p320 = scmp.ne.s32.totalorder %s308, %s309
    %p321 = scmp.eq.s32.totalorder %s26, 1
    %p322 = por %p320, %p321
    %p324 = scmp.ne.s32.totalorder %s309, %s323
    %p325 = scmp.eq.s32.totalorder %s26, 0
    %p326 = por %p324, %p325
    %s327 = ssub.s32 %s20, %s27
    %p328 = scmp.eq.s32.totalorder %s327, 0
    %s330 = sadd.s32 %s329, 1
    %s331 = scalar_select %p328, %s329, %s330
    %p334 = pneg %p328
    %p335 = scmp.eq.s32.totalorder %s20, 1
    %p336 = por %p334, %p335
    %p337 = scmp.ne.s32.totalorder %s329, %s332
    %p338 = scmp.eq.s32.totalorder %s20, 0
    %p339 = por %p337, %p338
    %p340 = scmp.ne.s32.totalorder %s329, %s332
    %p341 = scmp.eq.s32.totalorder %s25, 1
    %p342 = por %p340, %p341
    %p343 = scmp.ne.s32.totalorder %s332, %s333
    %p344 = scmp.eq.s32.totalorder %s25, 0
    %p345 = por %p343, %p344
    %p346 = scmp.ne.s32.totalorder %s332, %s333
    %p347 = scmp.eq.s32.totalorder %s26, 1
    %p348 = por %p346, %p347
    %p350 = scmp.ne.s32.totalorder %s333, %s349
    %p351 = scmp.eq.s32.totalorder %s26, 0
    %p352 = por %p350, %p351
    %p353 = scmp.le.s32.totalorder 1, %s20
    %p354 = scmp.lt.s32.totalorder %s20, 3
    %p355 = pnand %p353, %p354
    %p356 = pneg %p355
    // Predicated region
    $region9: #{vct_predictor_forward.4} parent=5 // pred_check
      _
    $region10: #{vct_predictor_forward.4} parent=5 // pred_check_branch
      %358 = sbr.rel (%p355) target = $region12
    $region11: #{vct_predictor_forward.4} parent=5 // pred_region
      %s359 = ssub.s32 %s20, 1
      // Predicated region
      $region13: #{vct_predictor_forward.4} parent=11 // pred_check
        %p360 = pneg %p67
      $region14: #{vct_predictor_forward.4} parent=11 // pred_check_branch
        %362 = sbr.rel (%p360) target = $region16
      $region15: #{vct_predictor_forward.4} parent=11 // pred_region
        _
      $region16: #{vct_predictor_forward.4} parent=11 // pred_fallthru
        _
      // Predicated region
      $region17: #{vct_predictor_forward.4} parent=11 // pred_check
        %p363 = pneg %p88
      $region18: #{vct_predictor_forward.4} parent=11 // pred_check_branch
        %365 = sbr.rel (%p363) target = $region20
      $region19: #{vct_predictor_forward.4} parent=11 // pred_region
        _
      $region20: #{vct_predictor_forward.4} parent=11 // pred_fallthru
        _
      // Predicated region
      $region21: #{vct_predictor_forward.4} parent=11 // pred_check
        %p366 = pneg %p109
      $region22: #{vct_predictor_forward.4} parent=11 // pred_check_branch
        %368 = sbr.rel (%p366) target = $region24
      $region23: #{vct_predictor_forward.4} parent=11 // pred_region
        _
      $region24: #{vct_predictor_forward.4} parent=11 // pred_fallthru
        _
      // Predicated region
      $region25: #{vct_predictor_forward.4} parent=11 // pred_check
        %p369 = pneg %p130
      $region26: #{vct_predictor_forward.4} parent=11 // pred_check_branch
        %371 = sbr.rel (%p369) target = $region28
      $region27: #{vct_predictor_forward.4} parent=11 // pred_region
        _
      $region28: #{vct_predictor_forward.4} parent=11 // pred_fallthru
        _
      // Predicated region
      $region29: #{vct_predictor_forward.4} parent=11 // pred_check
        %p372 = pneg %p151
      $region30: #{vct_predictor_forward.4} parent=11 // pred_check_branch
        %374 = sbr.rel (%p372) target = $region32
      $region31: #{vct_predictor_forward.4} parent=11 // pred_region
        _
      $region32: #{vct_predictor_forward.4} parent=11 // pred_fallthru
        _
      // Predicated region
      $region33: #{vct_predictor_forward.4} parent=11 // pred_check
        %p375 = pneg %p172
      $region34: #{vct_predictor_forward.4} parent=11 // pred_check_branch
        %377 = sbr.rel (%p375) target = $region36
      $region35: #{vct_predictor_forward.4} parent=11 // pred_region
        _
      $region36: #{vct_predictor_forward.4} parent=11 // pred_fallthru
        _
      // Predicated region
      $region37: #{vct_predictor_forward.4} parent=11 // pred_check
        %p378 = pneg %p193
      $region38: #{vct_predictor_forward.4} parent=11 // pred_check_branch
        %380 = sbr.rel (%p378) target = $region40
      $region39: #{vct_predictor_forward.4} parent=11 // pred_region
        _
      $region40: #{vct_predictor_forward.4} parent=11 // pred_fallthru
        _
      // Predicated region
      $region41: #{vct_predictor_forward.4} parent=11 // pred_check
        %p381 = pneg %p214
      $region42: #{vct_predictor_forward.4} parent=11 // pred_check_branch
        %383 = sbr.rel (%p381) target = $region44
      $region43: #{vct_predictor_forward.4} parent=11 // pred_region
        _
      $region44: #{vct_predictor_forward.4} parent=11 // pred_fallthru
        _
      // Predicated region
      $region45: #{vct_predictor_forward.4} parent=11 // pred_check
        %p384 = pneg %p235
      $region46: #{vct_predictor_forward.4} parent=11 // pred_check_branch
        %386 = sbr.rel (%p384) target = $region48
      $region47: #{vct_predictor_forward.4} parent=11 // pred_region
        _
      $region48: #{vct_predictor_forward.4} parent=11 // pred_fallthru
        _
      // Predicated region
      $region49: #{vct_predictor_forward.4} parent=11 // pred_check
        %p387 = pneg %p256
      $region50: #{vct_predictor_forward.4} parent=11 // pred_check_branch
        %389 = sbr.rel (%p387) target = $region52
      $region51: #{vct_predictor_forward.4} parent=11 // pred_region
        _
      $region52: #{vct_predictor_forward.4} parent=11 // pred_fallthru
        _
      // Predicated region
      $region53: #{vct_predictor_forward.4} parent=11 // pred_check
        %p390 = pneg %p277
      $region54: #{vct_predictor_forward.4} parent=11 // pred_check_branch
        %392 = sbr.rel (%p390) target = $region56
      $region55: #{vct_predictor_forward.4} parent=11 // pred_region
        _
      $region56: #{vct_predictor_forward.4} parent=11 // pred_fallthru
        _
      // Predicated region
      $region57: #{vct_predictor_forward.4} parent=11 // pred_check
        %p393 = pneg %p298
      $region58: #{vct_predictor_forward.4} parent=11 // pred_check_branch
        %395 = sbr.rel (%p393) target = $region60
      $region59: #{vct_predictor_forward.4} parent=11 // pred_region
        _
      $region60: #{vct_predictor_forward.4} parent=11 // pred_fallthru
        _
      // Predicated region
      $region61: #{vct_predictor_forward.4} parent=11 // pred_check
        %p396 = pneg %p319
      $region62: #{vct_predictor_forward.4} parent=11 // pred_check_branch
        %398 = sbr.rel (%p396) target = $region64
      $region63: #{vct_predictor_forward.4} parent=11 // pred_region
        _
      $region64: #{vct_predictor_forward.4} parent=11 // pred_fallthru
        _
    $region12: #{vct_predictor_forward.4} parent=5 // pred_fallthru
      _
    %p399 = scmp.lt.s32.totalorder %s20, 2
    // Predicated region
    $region65: #{vct_predictor_forward.4} parent=5 // pred_check
      %p400 = pneg %p399
    $region66: #{vct_predictor_forward.4} parent=5 // pred_check_branch
      %402 = sbr.rel (%p400) target = $region68
    $region67: #{vct_predictor_forward.4} parent=5 // pred_region
      // Predicated region
      $region69: #{vct_predictor_forward.4} parent=67 // pred_check
        %p403 = pneg %p40
      $region70: #{vct_predictor_forward.4} parent=67 // pred_check_branch
        %405 = sbr.rel (%p403) target = $region72
      $region71: #{vct_predictor_forward.4} parent=67 // pred_region
        %s406 = smul.u32 16, %s20
        %p407 = scmp.lt.s32.totalorder %s406, 31
        %s408 = scalar_select %p407, %s406, 31
        %s409 = smul.addr %s408, 8
        %s410 = scalar_lea.vmem %s0, %s409
        %s411 = smul.u32 16, %s20
      $region72: #{vct_predictor_forward.4} parent=67 // pred_fallthru
        _
    $region68: #{vct_predictor_forward.4} parent=5 // pred_fallthru
      _
    %p412 = scmp.le.s32.totalorder 1, %s20
    %p413 = scmp.lt.s32.totalorder %s20, 3
    %p414 = pnand %p412, %p413
    %p415 = pneg %p414
    // Predicated region
    $region73: #{vct_predictor_forward.4} parent=5 // pred_check
      _
    $region74: #{vct_predictor_forward.4} parent=5 // pred_check_branch
      %417 = sbr.rel (%p414) target = $region76
    $region75: #{vct_predictor_forward.4} parent=5 // pred_region
      %s418 = ssub.s32 %s20, 1
      %s419 = smul.u32 16, %s25
      %p420 = scmp.lt.s32.totalorder %s419, 31
      %s421 = scalar_select %p420, %s419, 31
      %s422 = smul.addr %s421, 8
      %s423 = scalar_lea.vmem %s0, %s422
      %p424 = pneg %p46
      %p425 = pneg %p43
      %p426 = pneg %p67
      %p427 = pneg %p64
      %p428 = pneg %p88
      %p429 = pneg %p85
      %p430 = pneg %p109
      %p431 = pneg %p106
      %p432 = pneg %p130
      %p433 = pneg %p127
      %p434 = pneg %p151
      %p435 = pneg %p148
      %p436 = pneg %p172
      %p437 = pneg %p169
      %p438 = pneg %p193
      %p439 = pneg %p190
      %p440 = pneg %p214
      %p441 = pneg %p211
      %p442 = pneg %p235
      %p443 = pneg %p232
      %p444 = pneg %p256
      %p445 = pneg %p253
      %p446 = pneg %p277
      %p447 = pneg %p274
      %p448 = pneg %p298
      %p449 = pneg %p295
      %p450 = pneg %p319
      %p451 = pneg %p316
      %p452 = pneg %p345
      %p453 = pneg %p342
      %s454 = smul.u32 16, %s25
      %p455 = scmp.lt.s32.totalorder %s454, 31
      %s456 = scalar_select %p455, %s454, 31
      %s457 = smul.addr %s456, 8
      %s458 = scalar_lea.vmem %s14, %s457
      %s459 = smul.u32 16, %s25
      %p460 = scmp.lt.s32.totalorder %s459, 31
      %s461 = scalar_select %p460, %s459, 31
      %s462 = smul.addr %s461, 8
      %s463 = scalar_lea.vmem %s0, %s462
      %s464 = smul.u32 16, %s25
      %s465 = smul.u32 16, %s25
      %p466 = scmp.lt.s32.totalorder %s465, 31
      %s467 = scalar_select %p466, %s465, 31
      %s468 = smul.addr %s467, 8
      %s469 = scalar_lea.vmem %s14, %s468
      %s470 = smul.u32 16, %s25
      %v472 = vld [vmem:[%s463] sm:$0xff]
      %v473 = vld [vmem:[%s463 + $0x8] sm:$0xff]
      %v474 = vld [vmem:[%s463 + $0x10] sm:$0xff]
      %v475 = vld [vmem:[%s463 + $0x18] sm:$0xff]
      %v476 = vld [vmem:[%s463 + $0x20] sm:$0xff]
      %v477 = vld [vmem:[%s463 + $0x28] sm:$0xff]
      %v478 = vld [vmem:[%s463 + $0x30] sm:$0xff]
      %v479 = vld [vmem:[%s463 + $0x38] sm:$0xff]
      %v480 = vld [vmem:[%s463 + $0x40] sm:$0xff]
      %v481 = vld [vmem:[%s463 + $0x48] sm:$0xff]
      %v482 = vld [vmem:[%s463 + $0x50] sm:$0xff]
      %v483 = vld [vmem:[%s463 + $0x58] sm:$0xff]
      %v484 = vld [vmem:[%s463 + $0x60] sm:$0xff]
      %v485 = vld [vmem:[%s463 + $0x68] sm:$0xff]
      %v486 = vld [vmem:[%s463 + $0x70] sm:$0xff]
      %v487 = vld [vmem:[%s463 + $0x78] sm:$0xff]
      %v488 = vld [vmem:[%s2] sm:$0xff]
      %v489 = vld [vmem:[%s2 + $0x8] sm:$0xff]
      %v490 = vpack.c.bf16 %v473, %v472
      %v491 = vpack.c.bf16 %v475, %v474
      %v492 = vpack.c.bf16 %v477, %v476
      %v493 = vpack.c.bf16 %v479, %v478
      %v494 = vpack.c.bf16 %v481, %v480
      %v495 = vpack.c.bf16 %v483, %v482
      %v496 = vpack.c.bf16 %v485, %v484
      %v497 = vpack.c.bf16 %v487, %v486
      %v498 = vpack.c.bf16 %v489, %v488
      %v499 = vld [vmem:[%s3] sm:$0x1]
      %v501 = vlaneseq
      %v502 = vshrl.u32 %v501, 7
      %v503 = vsub.s32 0, %v502
      %v504 = vrot.slane %v499, %v503
      %vm506 = vcmask 130048
      %v508 = vsel %vm506, %v490, 0
      %v511 = vsel %vm506, %v491, 0
      %v514 = vsel %vm506, %v492, 0
      %v517 = vsel %vm506, %v493, 0
      %v520 = vsel %vm506, %v494, 0
      %v523 = vsel %vm506, %v495, 0
      %v526 = vsel %vm506, %v496, 0
      %v529 = vsel %vm506, %v497, 0
      %531 = vmatprep.subr.bf16.mxu0 0
      %532 = vmatpush1.bf16.msra.mxu0 0
      %533 = vmatprep.subr.bf16.mxu0 0
      %534 = vmatpush1.bf16.msra.mxu0 0
      %535 = vmatprep.subr.bf16.mxu0 0
      %536 = vmatpush1.bf16.msra.mxu0 0
      %537 = vmatprep.subr.bf16.mxu0 0
      %538 = vmatpush1.bf16.msra.mxu0 0
      %539 = vmatprep.subr.bf16.mxu0 0
      %540 = vmatpush1.bf16.msra.mxu0 0
      %541 = vmatprep.subr.bf16.mxu0 0
      %542 = vmatpush1.bf16.msra.mxu0 0
      %543 = vmatprep.subr.bf16.mxu0 0
      %544 = vmatpush1.bf16.msra.mxu0 0
      %545 = vmatprep.subr.bf16.mxu0 0
      %546 = vmatpush1.bf16.msra.mxu0 %v498
      %547 = vmatprep.subr.bf16.mxu0 0
      %548 = vmatpush2.bf16.msra.mxu0 0
      %549 = vmatprep.subr.bf16.mxu0 0
      %550 = vmatpush2.bf16.msra.mxu0 0
      %551 = vmatprep.subr.bf16.mxu0 0
      %552 = vmatpush2.bf16.msra.mxu0 0
      %553 = vmatprep.subr.bf16.mxu0 0
      %554 = vmatpush2.bf16.msra.mxu0 0
      %555 = vmatprep.subr.bf16.mxu0 0
      %556 = vmatpush2.bf16.msra.mxu0 0
      %557 = vmatprep.subr.bf16.mxu0 0
      %558 = vmatpush2.bf16.msra.mxu0 0
      %559 = vmatprep.subr.bf16.mxu0 0
      %560 = vmatpush2.bf16.msra.mxu0 0
      %561 = vmatprep.subr.bf16.mxu0 0
      %562 = vmatpush2.bf16.msra.mxu0 0
      %563 = vmatprep.mubr.bf16.mxu0 0
      %564 = vmatmul.mubr.bf16.gmra.mxu0 %v508
      %v565 = vpop.f32.mrf.mxu0
      %v566 = vadd.f32 %v504, %v565
      %v567 = vpop.f32.mrf.mxu0
      %v568 = vpop.f32.mrf.mxu0
      %v569 = vadd.f32 %v504, %v568
      %v570 = vpop.f32.mrf.mxu0
      %571 = vmatprep.mubr.bf16.mxu0 0
      %572 = vmatmul.mubr.bf16.gmra.mxu0 %v511
      %v573 = vpop.f32.mrf.mxu0
      %v574 = vadd.f32 %v504, %v573
      %v575 = vpop.f32.mrf.mxu0
      %v576 = vpop.f32.mrf.mxu0
      %v577 = vadd.f32 %v504, %v576
      %v578 = vpop.f32.mrf.mxu0
      %579 = vmatprep.mubr.bf16.mxu0 0
      %580 = vmatmul.mubr.bf16.gmra.mxu0 %v514
      %v581 = vpop.f32.mrf.mxu0
      %v582 = vadd.f32 %v504, %v581
      %v583 = vpop.f32.mrf.mxu0
      %v584 = vpop.f32.mrf.mxu0
      %v585 = vadd.f32 %v504, %v584
      %v586 = vpop.f32.mrf.mxu0
      %587 = vmatprep.mubr.bf16.mxu0 0
      %588 = vmatmul.mubr.bf16.gmra.mxu0 %v517
      %v589 = vpop.f32.mrf.mxu0
      %v590 = vadd.f32 %v504, %v589
      %v591 = vpop.f32.mrf.mxu0
      %v592 = vpop.f32.mrf.mxu0
      %v593 = vadd.f32 %v504, %v592
      %v594 = vpop.f32.mrf.mxu0
      %595 = vmatprep.mubr.bf16.mxu0 0
      %596 = vmatmul.mubr.bf16.gmra.mxu0 %v520
      %v597 = vpop.f32.mrf.mxu0
      %v598 = vadd.f32 %v504, %v597
      %v599 = vpop.f32.mrf.mxu0
      %v600 = vpop.f32.mrf.mxu0
      %v601 = vadd.f32 %v504, %v600
      %v602 = vpop.f32.mrf.mxu0
      %603 = vmatprep.mubr.bf16.mxu0 0
      %604 = vmatmul.mubr.bf16.gmra.mxu0 %v523
      %v605 = vpop.f32.mrf.mxu0
      %v606 = vadd.f32 %v504, %v605
      %v607 = vpop.f32.mrf.mxu0
      %v608 = vpop.f32.mrf.mxu0
      %v609 = vadd.f32 %v504, %v608
      %v610 = vpop.f32.mrf.mxu0
      %611 = vmatprep.mubr.bf16.mxu0 0
      %612 = vmatmul.mubr.bf16.gmra.mxu0 %v526
      %v613 = vpop.f32.mrf.mxu0
      %v614 = vadd.f32 %v504, %v613
      %v615 = vpop.f32.mrf.mxu0
      %v616 = vpop.f32.mrf.mxu0
      %v617 = vadd.f32 %v504, %v616
      %v618 = vpop.f32.mrf.mxu0
      %619 = vmatprep.mubr.bf16.mxu0 0
      %620 = vmatmul.mubr.bf16.gmra.mxu0 %v529
      %v621 = vpop.f32.mrf.mxu0
      %v622 = vadd.f32 %v504, %v621
      %v623 = vpop.f32.mrf.mxu0
      %v624 = vpop.f32.mrf.mxu0
      %v625 = vadd.f32 %v504, %v624
      %v626 = vpop.f32.mrf.mxu0
      %627 = vdwg.mxu0
      %v628 = vld [vmem:[%s1] sm:$0xff]
      %v629 = vld [vmem:[%s1 + $0x8] sm:$0xff]
      %v630 = vld [vmem:[%s1 + $0x10] sm:$0xff]
      %v631 = vld [vmem:[%s1 + $0x18] sm:$0xff]
      %v632 = vld [vmem:[%s1 + $0x20] sm:$0xff]
      %v633 = vld [vmem:[%s1 + $0x28] sm:$0xff]
      %v634 = vld [vmem:[%s1 + $0x30] sm:$0xff]
      %v635 = vld [vmem:[%s1 + $0x38] sm:$0xff]
      %v636 = vld [vmem:[%s1 + $0x40] sm:$0xff]
      %v637 = vld [vmem:[%s1 + $0x48] sm:$0xff]
      %v638 = vld [vmem:[%s1 + $0x50] sm:$0xff]
      %v639 = vld [vmem:[%s1 + $0x58] sm:$0xff]
      %v640 = vld [vmem:[%s1 + $0x60] sm:$0xff]
      %v641 = vld [vmem:[%s1 + $0x68] sm:$0xff]
      %v642 = vld [vmem:[%s1 + $0x70] sm:$0xff]
      %v643 = vld [vmem:[%s1 + $0x78] sm:$0xff]
      %v644 = vld [vmem:[%s4] sm:$0xff]
      %v645 = vld [vmem:[%s4 + $0x8] sm:$0xff]
      %v646 = vpack.c.bf16 %v569, %v566
      %v647 = vpack.c.bf16 %v577, %v574
      %v648 = vpack.c.bf16 %v585, %v582
      %v649 = vpack.c.bf16 %v593, %v590
      %v650 = vpack.c.bf16 %v601, %v598
      %v651 = vpack.c.bf16 %v609, %v606
      %v652 = vpack.c.bf16 %v617, %v614
      %v653 = vpack.c.bf16 %v625, %v622
      %662 = vrot.lane.b32.xlu0 %v646, 112
      %v663 = vpop.permute.xlu0 %662
      %664 = vrot.lane.b32.xlu0 %v647, 112
      %v665 = vpop.permute.xlu0 %664
      %666 = vrot.lane.b32.xlu0 %v648, 112
      %v667 = vpop.permute.xlu0 %666
      %668 = vrot.lane.b32.xlu0 %v649, 112
      %v669 = vpop.permute.xlu0 %668
      %670 = vrot.lane.b32.xlu0 %v650, 112
      %v671 = vpop.permute.xlu0 %670
      %672 = vrot.lane.b32.xlu0 %v651, 112
      %v673 = vpop.permute.xlu0 %672
      %674 = vrot.lane.b32.xlu0 %v652, 112
      %v675 = vpop.permute.xlu0 %674
      %676 = vrot.lane.b32.xlu0 %v653, 112
      %v677 = vpop.permute.xlu0 %676
      %vm678 = vcmask 64512
      %v680 = vsel %vm678, %v646, 0
      %v683 = vsel %vm678, %v647, 0
      %v686 = vsel %vm678, %v648, 0
      %v689 = vsel %vm678, %v649, 0
      %v692 = vsel %vm678, %v650, 0
      %v695 = vsel %vm678, %v651, 0
      %v698 = vsel %vm678, %v652, 0
      %v701 = vsel %vm678, %v653, 0
      %v704 = vsel %vm678, %v663, 0
      %v707 = vsel %vm678, %v665, 0
      %v710 = vsel %vm678, %v667, 0
      %v713 = vsel %vm678, %v669, 0
      %v716 = vsel %vm678, %v671, 0
      %v719 = vsel %vm678, %v673, 0
      %v722 = vsel %vm678, %v675, 0
      %v725 = vsel %vm678, %v677, 0
      %727 = vmatprep.subr.bf16.mxu0 0
      %728 = vmatpush1.bf16.xpose.msra.mxu0 %v725
      %729 = vmatprep.subr.bf16.mxu0 0
      %730 = vmatpush1.bf16.xpose.msra.mxu0 %v722
      %731 = vmatprep.subr.bf16.mxu0 0
      %732 = vmatpush1.bf16.xpose.msra.mxu0 %v719
      %733 = vmatprep.subr.bf16.mxu0 0
      %734 = vmatpush1.bf16.xpose.msra.mxu0 %v716
      %735 = vmatprep.subr.bf16.mxu0 0
      %736 = vmatpush1.bf16.xpose.msra.mxu0 %v713
      %737 = vmatprep.subr.bf16.mxu0 0
      %738 = vmatpush1.bf16.xpose.msra.mxu0 %v710
      %739 = vmatprep.subr.bf16.mxu0 0
      %740 = vmatpush1.bf16.xpose.msra.mxu0 %v707
      %741 = vmatprep.subr.bf16.mxu0 0
      %742 = vmatpush1.bf16.xpose.msra.mxu0 %v704
      %743 = vmatprep.subr.bf16.mxu0 0
      %744 = vmatpush2.bf16.xpose.msra.mxu0 0
      %745 = vmatprep.subr.bf16.mxu0 0
      %746 = vmatpush2.bf16.xpose.msra.mxu0 0
      %747 = vmatprep.subr.bf16.mxu0 0
      %748 = vmatpush2.bf16.xpose.msra.mxu0 0
      %749 = vmatprep.subr.bf16.mxu0 0
      %750 = vmatpush2.bf16.xpose.msra.mxu0 0
      %751 = vmatprep.subr.bf16.mxu0 0
      %752 = vmatpush2.bf16.xpose.msra.mxu0 0
      %753 = vmatprep.subr.bf16.mxu0 0
      %754 = vmatpush2.bf16.xpose.msra.mxu0 0
      %755 = vmatprep.subr.bf16.mxu0 0
      %756 = vmatpush2.bf16.xpose.msra.mxu0 0
      %757 = vmatprep.subr.bf16.mxu0 0
      %758 = vmatpush2.bf16.xpose.msra.mxu0 0
      %759 = vmatprep.mubr.bf16.mxu0 0
      %760 = vmatmul.mubr.bf16.gmra.mxu0 %v680
      %v761 = vpop.f32.mrf.mxu0
      %v762 = vadd.f32 0.0, %v761
      %v763 = vpop.f32.mrf.mxu0
      %v764 = vpop.f32.mrf.mxu0
      %v765 = vadd.f32 0.0, %v764
      %v766 = vpop.f32.mrf.mxu0
      %767 = vmatprep.mubr.bf16.mxu0 0
      %768 = vmatmul.mubr.bf16.gmra.mxu0 %v683
      %v769 = vpop.f32.mrf.mxu0
      %v770 = vadd.f32 0.0, %v769
      %v771 = vpop.f32.mrf.mxu0
      %v772 = vpop.f32.mrf.mxu0
      %v773 = vadd.f32 0.0, %v772
      %v774 = vpop.f32.mrf.mxu0
      %775 = vmatprep.mubr.bf16.mxu0 0
      %776 = vmatmul.mubr.bf16.gmra.mxu0 %v686
      %v777 = vpop.f32.mrf.mxu0
      %v778 = vadd.f32 0.0, %v777
      %v779 = vpop.f32.mrf.mxu0
      %v780 = vpop.f32.mrf.mxu0
      %v781 = vadd.f32 0.0, %v780
      %v782 = vpop.f32.mrf.mxu0
      %783 = vmatprep.mubr.bf16.mxu0 0
      %784 = vmatmul.mubr.bf16.gmra.mxu0 %v689
      %v785 = vpop.f32.mrf.mxu0
      %v786 = vadd.f32 0.0, %v785
      %v787 = vpop.f32.mrf.mxu0
      %v788 = vpop.f32.mrf.mxu0
      %v789 = vadd.f32 0.0, %v788
      %v790 = vpop.f32.mrf.mxu0
      %791 = vmatprep.mubr.bf16.mxu0 0
      %792 = vmatmul.mubr.bf16.gmra.mxu0 %v692
      %v793 = vpop.f32.mrf.mxu0
      %v794 = vadd.f32 0.0, %v793
      %v795 = vpop.f32.mrf.mxu0
      %v796 = vpop.f32.mrf.mxu0
      %v797 = vadd.f32 0.0, %v796
      %v798 = vpop.f32.mrf.mxu0
      %799 = vmatprep.mubr.bf16.mxu0 0
      %800 = vmatmul.mubr.bf16.gmra.mxu0 %v695
      %v801 = vpop.f32.mrf.mxu0
      %v802 = vadd.f32 0.0, %v801
      %v803 = vpop.f32.mrf.mxu0
      %v804 = vpop.f32.mrf.mxu0
      %v805 = vadd.f32 0.0, %v804
      %v806 = vpop.f32.mrf.mxu0
      %807 = vmatprep.mubr.bf16.mxu0 0
      %808 = vmatmul.mubr.bf16.gmra.mxu0 %v698
      %v809 = vpop.f32.mrf.mxu0
      %v810 = vadd.f32 0.0, %v809
      %v811 = vpop.f32.mrf.mxu0
      %v812 = vpop.f32.mrf.mxu0
      %v813 = vadd.f32 0.0, %v812
      %v814 = vpop.f32.mrf.mxu0
      %815 = vmatprep.mubr.bf16.mxu0 0
      %816 = vmatmul.mubr.bf16.gmra.mxu0 %v701
      %v817 = vpop.f32.mrf.mxu0
      %v818 = vadd.f32 0.0, %v817
      %v819 = vpop.f32.mrf.mxu0
      %v820 = vpop.f32.mrf.mxu0
      %v821 = vadd.f32 0.0, %v820
      %v822 = vpop.f32.mrf.mxu0
      %823 = vdwg.mxu0
      %v824 = vmul.f32 %v762, 0.35355338
      %v825 = vmul.f32 %v765, 0.35355338
      %v826 = vmul.f32 %v770, 0.35355338
      %v827 = vmul.f32 %v773, 0.35355338
      %v828 = vmul.f32 %v778, 0.35355338
      %v829 = vmul.f32 %v781, 0.35355338
      %v830 = vmul.f32 %v786, 0.35355338
      %v831 = vmul.f32 %v789, 0.35355338
      %v832 = vmul.f32 %v794, 0.35355338
      %v833 = vmul.f32 %v797, 0.35355338
      %v834 = vmul.f32 %v802, 0.35355338
      %v835 = vmul.f32 %v805, 0.35355338
      %v836 = vmul.f32 %v810, 0.35355338
      %v837 = vmul.f32 %v813, 0.35355338
      %v838 = vmul.f32 %v818, 0.35355338
      %v839 = vmul.f32 %v821, 0.35355338
      %v840 = vadd.f32 %v824, %v628
      %v841 = vadd.f32 %v825, %v629
      %v842 = vadd.f32 %v826, %v630
      %v843 = vadd.f32 %v827, %v631
      %v844 = vadd.f32 %v828, %v632
      %v845 = vadd.f32 %v829, %v633
      %v846 = vadd.f32 %v830, %v634
      %v847 = vadd.f32 %v831, %v635
      %v848 = vadd.f32 %v832, %v636
      %v849 = vadd.f32 %v833, %v637
      %v850 = vadd.f32 %v834, %v638
      %v851 = vadd.f32 %v835, %v639
      %v852 = vadd.f32 %v836, %v640
      %v853 = vadd.f32 %v837, %v641
      %v854 = vadd.f32 %v838, %v642
      %v855 = vadd.f32 %v839, %v643
      %856 = vmax.xlane.f32.xlu0 %v840
      %v857 = vpop.xlane.xlu0 %856
      %858 = vmax.xlane.f32.xlu0 %v841
      %v859 = vpop.xlane.xlu0 %858
      %860 = vmax.xlane.f32.xlu0 %v842
      %v861 = vpop.xlane.xlu0 %860
      %862 = vmax.xlane.f32.xlu0 %v843
      %v863 = vpop.xlane.xlu0 %862
      %864 = vmax.xlane.f32.xlu0 %v844
      %v865 = vpop.xlane.xlu0 %864
      %866 = vmax.xlane.f32.xlu0 %v845
      %v867 = vpop.xlane.xlu0 %866
      %868 = vmax.xlane.f32.xlu0 %v846
      %v869 = vpop.xlane.xlu0 %868
      %870 = vmax.xlane.f32.xlu0 %v847
      %v871 = vpop.xlane.xlu0 %870
      %872 = vmax.xlane.f32.xlu0 %v848
      %v873 = vpop.xlane.xlu0 %872
      %874 = vmax.xlane.f32.xlu0 %v849
      %v875 = vpop.xlane.xlu0 %874
      %876 = vmax.xlane.f32.xlu0 %v850
      %v877 = vpop.xlane.xlu0 %876
      %878 = vmax.xlane.f32.xlu0 %v851
      %v879 = vpop.xlane.xlu0 %878
      %880 = vmax.xlane.f32.xlu0 %v852
      %v881 = vpop.xlane.xlu0 %880
      %882 = vmax.xlane.f32.xlu0 %v853
      %v883 = vpop.xlane.xlu0 %882
      %884 = vmax.xlane.f32.xlu0 %v854
      %v885 = vpop.xlane.xlu0 %884
      %886 = vmax.xlane.f32.xlu0 %v855
      %v887 = vpop.xlane.xlu0 %886
      %v888 = vsub.f32 %v840, %v857
      %v889 = vsub.f32 %v841, %v859
      %v890 = vsub.f32 %v842, %v861
      %v891 = vsub.f32 %v843, %v863
      %v892 = vsub.f32 %v844, %v865
      %v893 = vsub.f32 %v845, %v867
      %v894 = vsub.f32 %v846, %v869
      %v895 = vsub.f32 %v847, %v871
      %v896 = vsub.f32 %v848, %v873
      %v897 = vsub.f32 %v849, %v875
      %v898 = vsub.f32 %v850, %v877
      %v899 = vsub.f32 %v851, %v879
      %v900 = vsub.f32 %v852, %v881
      %v901 = vsub.f32 %v853, %v883
      %v902 = vsub.f32 %v854, %v885
      %v903 = vsub.f32 %v855, %v887
      %v904 = vmul.f32 %v888, 1.442695
      %v905 = vpow.pop %v904
      %v906 = vmul.f32 %v889, 1.442695
      %v907 = vpow.pop %v906
      %v908 = vmul.f32 %v890, 1.442695
      %v909 = vpow.pop %v908
      %v910 = vmul.f32 %v891, 1.442695
      %v911 = vpow.pop %v910
      %v912 = vmul.f32 %v892, 1.442695
      %v913 = vpow.pop %v912
      %v914 = vmul.f32 %v893, 1.442695
      %v915 = vpow.pop %v914
      %v916 = vmul.f32 %v894, 1.442695
      %v917 = vpow.pop %v916
      %v918 = vmul.f32 %v895, 1.442695
      %v919 = vpow.pop %v918
      %v920 = vmul.f32 %v896, 1.442695
      %v921 = vpow.pop %v920
      %v922 = vmul.f32 %v897, 1.442695
      %v923 = vpow.pop %v922
      %v924 = vmul.f32 %v898, 1.442695
      %v925 = vpow.pop %v924
      %v926 = vmul.f32 %v899, 1.442695
      %v927 = vpow.pop %v926
      %v928 = vmul.f32 %v900, 1.442695
      %v929 = vpow.pop %v928
      %v930 = vmul.f32 %v901, 1.442695
      %v931 = vpow.pop %v930
      %v932 = vmul.f32 %v902, 1.442695
      %v933 = vpow.pop %v932
      %v934 = vmul.f32 %v903, 1.442695
      %v935 = vpow.pop %v934
      %936 = vadd.xlane.f32.xlu0 %v905
      %v937 = vpop.xlane.xlu0 %936
      %938 = vadd.xlane.f32.xlu0 %v907
      %v939 = vpop.xlane.xlu0 %938
      %940 = vadd.xlane.f32.xlu0 %v909
      %v941 = vpop.xlane.xlu0 %940
      %942 = vadd.xlane.f32.xlu0 %v911
      %v943 = vpop.xlane.xlu0 %942
      %944 = vadd.xlane.f32.xlu0 %v913
      %v945 = vpop.xlane.xlu0 %944
      %946 = vadd.xlane.f32.xlu0 %v915
      %v947 = vpop.xlane.xlu0 %946
      %948 = vadd.xlane.f32.xlu0 %v917
      %v949 = vpop.xlane.xlu0 %948
      %950 = vadd.xlane.f32.xlu0 %v919
      %v951 = vpop.xlane.xlu0 %950
      %952 = vadd.xlane.f32.xlu0 %v921
      %v953 = vpop.xlane.xlu0 %952
      %954 = vadd.xlane.f32.xlu0 %v923
      %v955 = vpop.xlane.xlu0 %954
      %956 = vadd.xlane.f32.xlu0 %v925
      %v957 = vpop.xlane.xlu0 %956
      %958 = vadd.xlane.f32.xlu0 %v927
      %v959 = vpop.xlane.xlu0 %958
      %960 = vadd.xlane.f32.xlu0 %v929
      %v961 = vpop.xlane.xlu0 %960
      %962 = vadd.xlane.f32.xlu0 %v931
      %v963 = vpop.xlane.xlu0 %962
      %964 = vadd.xlane.f32.xlu0 %v933
      %v965 = vpop.xlane.xlu0 %964
      %966 = vadd.xlane.f32.xlu0 %v935
      %v967 = vpop.xlane.xlu0 %966
      %v968 = vrcp.pop %v937
      %v969 = vrcp.pop %v939
      %v970 = vrcp.pop %v941
      %v971 = vrcp.pop %v943
      %v972 = vrcp.pop %v945
      %v973 = vrcp.pop %v947
      %v974 = vrcp.pop %v949
      %v975 = vrcp.pop %v951
      %v976 = vrcp.pop %v953
      %v977 = vrcp.pop %v955
      %v978 = vrcp.pop %v957
      %v979 = vrcp.pop %v959
      %v980 = vrcp.pop %v961
      %v981 = vrcp.pop %v963
      %v982 = vrcp.pop %v965
      %v983 = vrcp.pop %v967
      %v984 = vmul.f32 %v905, %v968
      %v985 = vmul.f32 %v907, %v969
      %v986 = vmul.f32 %v909, %v970
      %v987 = vmul.f32 %v911, %v971
      %v988 = vmul.f32 %v913, %v972
      %v989 = vmul.f32 %v915, %v973
      %v990 = vmul.f32 %v917, %v974
      %v991 = vmul.f32 %v919, %v975
      %v992 = vmul.f32 %v921, %v976
      %v993 = vmul.f32 %v923, %v977
      %v994 = vmul.f32 %v925, %v978
      %v995 = vmul.f32 %v927, %v979
      %v996 = vmul.f32 %v929, %v980
      %v997 = vmul.f32 %v931, %v981
      %v998 = vmul.f32 %v933, %v982
      %v999 = vmul.f32 %v935, %v983
      %v1000 = vpack.c.bf16 %v985, %v984
      %v1001 = vpack.c.bf16 %v987, %v986
      %v1002 = vpack.c.bf16 %v989, %v988
      %v1003 = vpack.c.bf16 %v991, %v990
      %v1004 = vpack.c.bf16 %v993, %v992
      %v1005 = vpack.c.bf16 %v995, %v994
      %v1006 = vpack.c.bf16 %v997, %v996
      %v1007 = vpack.c.bf16 %v999, %v998
      %1008 = vrot.lane.b32.xlu0 %v646, 96
      %v1009 = vpop.permute.xlu0 %1008
      %1010 = vrot.lane.b32.xlu0 %v647, 96
      %v1011 = vpop.permute.xlu0 %1010
      %1012 = vrot.lane.b32.xlu0 %v648, 96
      %v1013 = vpop.permute.xlu0 %1012
      %1014 = vrot.lane.b32.xlu0 %v649, 96
      %v1015 = vpop.permute.xlu0 %1014
      %1016 = vrot.lane.b32.xlu0 %v650, 96
      %v1017 = vpop.permute.xlu0 %1016
      %1018 = vrot.lane.b32.xlu0 %v651, 96
      %v1019 = vpop.permute.xlu0 %1018
      %1020 = vrot.lane.b32.xlu0 %v652, 96
      %v1021 = vpop.permute.xlu0 %1020
      %1022 = vrot.lane.b32.xlu0 %v653, 96
      %v1023 = vpop.permute.xlu0 %1022
      %1032 = vmatprep.subr.bf16.mxu0 0
      %1033 = vmatpush1.bf16.msra.mxu0 %v1023
      %1034 = vmatprep.subr.bf16.mxu0 0
      %1035 = vmatpush1.bf16.msra.mxu0 %v1021
      %1036 = vmatprep.subr.bf16.mxu0 0
      %1037 = vmatpush1.bf16.msra.mxu0 %v1019
      %1038 = vmatprep.subr.bf16.mxu0 0
      %1039 = vmatpush1.bf16.msra.mxu0 %v1017
      %1040 = vmatprep.subr.bf16.mxu0 0
      %1041 = vmatpush1.bf16.msra.mxu0 %v1015
      %1042 = vmatprep.subr.bf16.mxu0 0
      %1043 = vmatpush1.bf16.msra.mxu0 %v1013
      %1044 = vmatprep.subr.bf16.mxu0 0
      %1045 = vmatpush1.bf16.msra.mxu0 %v1011
      %1046 = vmatprep.subr.bf16.mxu0 0
      %1047 = vmatpush1.bf16.msra.mxu0 %v1009
      %1048 = vmatprep.subr.bf16.mxu0 0
      %1049 = vmatpush2.bf16.msra.mxu0 0
      %1050 = vmatprep.subr.bf16.mxu0 0
      %1051 = vmatpush2.bf16.msra.mxu0 0
      %1052 = vmatprep.subr.bf16.mxu0 0
      %1053 = vmatpush2.bf16.msra.mxu0 0
      %1054 = vmatprep.subr.bf16.mxu0 0
      %1055 = vmatpush2.bf16.msra.mxu0 0
      %1056 = vmatprep.subr.bf16.mxu0 0
      %1057 = vmatpush2.bf16.msra.mxu0 0
      %1058 = vmatprep.subr.bf16.mxu0 0
      %1059 = vmatpush2.bf16.msra.mxu0 0
      %1060 = vmatprep.subr.bf16.mxu0 0
      %1061 = vmatpush2.bf16.msra.mxu0 0
      %1062 = vmatprep.subr.bf16.mxu0 0
      %1063 = vmatpush2.bf16.msra.mxu0 0
      %1064 = vmatprep.mubr.bf16.mxu0 0
      %1065 = vmatmul.mubr.bf16.gmra.mxu0 %v1000
      %v1066 = vpop.f32.mrf.mxu0
      %v1067 = vadd.f32 0.0, %v1066
      %v1068 = vpop.f32.mrf.mxu0
      %v1069 = vpop.f32.mrf.mxu0
      %v1070 = vadd.f32 0.0, %v1069
      %v1071 = vpop.f32.mrf.mxu0
      %1072 = vmatprep.mubr.bf16.mxu0 0
      %1073 = vmatmul.mubr.bf16.gmra.mxu0 %v1001
      %v1074 = vpop.f32.mrf.mxu0
      %v1075 = vadd.f32 0.0, %v1074
      %v1076 = vpop.f32.mrf.mxu0
      %v1077 = vpop.f32.mrf.mxu0
      %v1078 = vadd.f32 0.0, %v1077
      %v1079 = vpop.f32.mrf.mxu0
      %1080 = vmatprep.mubr.bf16.mxu0 0
      %1081 = vmatmul.mubr.bf16.gmra.mxu0 %v1002
      %v1082 = vpop.f32.mrf.mxu0
      %v1083 = vadd.f32 0.0, %v1082
      %v1084 = vpop.f32.mrf.mxu0
      %v1085 = vpop.f32.mrf.mxu0
      %v1086 = vadd.f32 0.0, %v1085
      %v1087 = vpop.f32.mrf.mxu0
      %1088 = vmatprep.mubr.bf16.mxu0 0
      %1089 = vmatmul.mubr.bf16.gmra.mxu0 %v1003
      %v1090 = vpop.f32.mrf.mxu0
      %v1091 = vadd.f32 0.0, %v1090
      %v1092 = vpop.f32.mrf.mxu0
      %v1093 = vpop.f32.mrf.mxu0
      %v1094 = vadd.f32 0.0, %v1093
      %v1095 = vpop.f32.mrf.mxu0
      %1096 = vmatprep.mubr.bf16.mxu0 0
      %1097 = vmatmul.mubr.bf16.gmra.mxu0 %v1004
      %v1098 = vpop.f32.mrf.mxu0
      %v1099 = vadd.f32 0.0, %v1098
      %v1100 = vpop.f32.mrf.mxu0
      %v1101 = vpop.f32.mrf.mxu0
      %v1102 = vadd.f32 0.0, %v1101
      %v1103 = vpop.f32.mrf.mxu0
      %1104 = vmatprep.mubr.bf16.mxu0 0
      %1105 = vmatmul.mubr.bf16.gmra.mxu0 %v1005
      %v1106 = vpop.f32.mrf.mxu0
      %v1107 = vadd.f32 0.0, %v1106
      %v1108 = vpop.f32.mrf.mxu0
      %v1109 = vpop.f32.mrf.mxu0
      %v1110 = vadd.f32 0.0, %v1109
      %v1111 = vpop.f32.mrf.mxu0
      %1112 = vmatprep.mubr.bf16.mxu0 0
      %1113 = vmatmul.mubr.bf16.gmra.mxu0 %v1006
      %v1114 = vpop.f32.mrf.mxu0
      %v1115 = vadd.f32 0.0, %v1114
      %v1116 = vpop.f32.mrf.mxu0
      %v1117 = vpop.f32.mrf.mxu0
      %v1118 = vadd.f32 0.0, %v1117
      %v1119 = vpop.f32.mrf.mxu0
      %1120 = vmatprep.mubr.bf16.mxu0 0
      %1121 = vmatmul.mubr.bf16.gmra.mxu0 %v1007
      %v1122 = vpop.f32.mrf.mxu0
      %v1123 = vadd.f32 0.0, %v1122
      %v1124 = vpop.f32.mrf.mxu0
      %v1125 = vpop.f32.mrf.mxu0
      %v1126 = vadd.f32 0.0, %v1125
      %v1127 = vpop.f32.mrf.mxu0
      %1128 = vdwg.mxu0
      %v1129 = vpack.c.bf16 %v1070, %v1067
      %v1130 = vpack.c.bf16 %v1078, %v1075
      %v1131 = vpack.c.bf16 %v1086, %v1083
      %v1132 = vpack.c.bf16 %v1094, %v1091
      %v1133 = vpack.c.bf16 %v1102, %v1099
      %v1134 = vpack.c.bf16 %v1110, %v1107
      %v1135 = vpack.c.bf16 %v1118, %v1115
      %v1136 = vpack.c.bf16 %v1126, %v1123
      %v1137 = vpack.c.bf16 %v644, %v644
      %1138 = vrot.lane.b32.xlu0 %v646, 120
      %v1139 = vpop.permute.xlu0 %1138
      %1140 = vrot.lane.b32.xlu0 %v647, 120
      %v1141 = vpop.permute.xlu0 %1140
      %1142 = vrot.lane.b32.xlu0 %v648, 120
      %v1143 = vpop.permute.xlu0 %1142
      %1144 = vrot.lane.b32.xlu0 %v649, 120
      %v1145 = vpop.permute.xlu0 %1144
      %1146 = vrot.lane.b32.xlu0 %v650, 120
      %v1147 = vpop.permute.xlu0 %1146
      %1148 = vrot.lane.b32.xlu0 %v651, 120
      %v1149 = vpop.permute.xlu0 %1148
      %1150 = vrot.lane.b32.xlu0 %v652, 120
      %v1151 = vpop.permute.xlu0 %1150
      %1152 = vrot.lane.b32.xlu0 %v653, 120
      %v1153 = vpop.permute.xlu0 %1152
      %1154 = vrot.lane.b32.xlu0 %v646, 104
      %v1155 = vpop.permute.xlu0 %1154
      %1156 = vrot.lane.b32.xlu0 %v647, 104
      %v1157 = vpop.permute.xlu0 %1156
      %1158 = vrot.lane.b32.xlu0 %v648, 104
      %v1159 = vpop.permute.xlu0 %1158
      %1160 = vrot.lane.b32.xlu0 %v649, 104
      %v1161 = vpop.permute.xlu0 %1160
      %1162 = vrot.lane.b32.xlu0 %v650, 104
      %v1163 = vpop.permute.xlu0 %1162
      %1164 = vrot.lane.b32.xlu0 %v651, 104
      %v1165 = vpop.permute.xlu0 %1164
      %1166 = vrot.lane.b32.xlu0 %v652, 104
      %v1167 = vpop.permute.xlu0 %1166
      %1168 = vrot.lane.b32.xlu0 %v653, 104
      %v1169 = vpop.permute.xlu0 %1168
      %v1171 = vsel %vm678, %v1139, 0
      %v1174 = vsel %vm678, %v1141, 0
      %v1177 = vsel %vm678, %v1143, 0
      %v1180 = vsel %vm678, %v1145, 0
      %v1183 = vsel %vm678, %v1147, 0
      %v1186 = vsel %vm678, %v1149, 0
      %v1189 = vsel %vm678, %v1151, 0
      %v1192 = vsel %vm678, %v1153, 0
      %v1195 = vsel %vm678, %v1155, 0
      %v1198 = vsel %vm678, %v1157, 0
      %v1201 = vsel %vm678, %v1159, 0
      %v1204 = vsel %vm678, %v1161, 0
      %v1207 = vsel %vm678, %v1163, 0
      %v1210 = vsel %vm678, %v1165, 0
      %v1213 = vsel %vm678, %v1167, 0
      %v1216 = vsel %vm678, %v1169, 0
      %1218 = vmatprep.subr.bf16.mxu0 0
      %1219 = vmatpush1.bf16.xpose.msra.mxu0 %v1216
      %1220 = vmatprep.subr.bf16.mxu0 0
      %1221 = vmatpush1.bf16.xpose.msra.mxu0 %v1213
      %1222 = vmatprep.subr.bf16.mxu0 0
      %1223 = vmatpush1.bf16.xpose.msra.mxu0 %v1210
      %1224 = vmatprep.subr.bf16.mxu0 0
      %1225 = vmatpush1.bf16.xpose.msra.mxu0 %v1207
      %1226 = vmatprep.subr.bf16.mxu0 0
      %1227 = vmatpush1.bf16.xpose.msra.mxu0 %v1204
      %1228 = vmatprep.subr.bf16.mxu0 0
      %1229 = vmatpush1.bf16.xpose.msra.mxu0 %v1201
      %1230 = vmatprep.subr.bf16.mxu0 0
      %1231 = vmatpush1.bf16.xpose.msra.mxu0 %v1198
      %1232 = vmatprep.subr.bf16.mxu0 0
      %1233 = vmatpush1.bf16.xpose.msra.mxu0 %v1195
      %1234 = vmatprep.subr.bf16.mxu0 0
      %1235 = vmatpush2.bf16.xpose.msra.mxu0 0
      %1236 = vmatprep.subr.bf16.mxu0 0
      %1237 = vmatpush2.bf16.xpose.msra.mxu0 0
      %1238 = vmatprep.subr.bf16.mxu0 0
      %1239 = vmatpush2.bf16.xpose.msra.mxu0 0
      %1240 = vmatprep.subr.bf16.mxu0 0
      %1241 = vmatpush2.bf16.xpose.msra.mxu0 0
      %1242 = vmatprep.subr.bf16.mxu0 0
      %1243 = vmatpush2.bf16.xpose.msra.mxu0 0
      %1244 = vmatprep.subr.bf16.mxu0 0
      %1245 = vmatpush2.bf16.xpose.msra.mxu0 0
      %1246 = vmatprep.subr.bf16.mxu0 0
      %1247 = vmatpush2.bf16.xpose.msra.mxu0 0
      %1248 = vmatprep.subr.bf16.mxu0 0
      %1249 = vmatpush2.bf16.xpose.msra.mxu0 0
      %1250 = vmatprep.mubr.bf16.mxu0 0
      %1251 = vmatmul.mubr.bf16.gmra.mxu0 %v1171
      %v1252 = vpop.f32.mrf.mxu0
      %v1253 = vadd.f32 0.0, %v1252
      %v1254 = vpop.f32.mrf.mxu0
      %v1255 = vpop.f32.mrf.mxu0
      %v1256 = vadd.f32 0.0, %v1255
      %v1257 = vpop.f32.mrf.mxu0
      %1258 = vmatprep.mubr.bf16.mxu0 0
      %1259 = vmatmul.mubr.bf16.gmra.mxu0 %v1174
      %v1260 = vpop.f32.mrf.mxu0
      %v1261 = vadd.f32 0.0, %v1260
      %v1262 = vpop.f32.mrf.mxu0
      %v1263 = vpop.f32.mrf.mxu0
      %v1264 = vadd.f32 0.0, %v1263
      %v1265 = vpop.f32.mrf.mxu0
      %1266 = vmatprep.mubr.bf16.mxu0 0
      %1267 = vmatmul.mubr.bf16.gmra.mxu0 %v1177
      %v1268 = vpop.f32.mrf.mxu0
      %v1269 = vadd.f32 0.0, %v1268
      %v1270 = vpop.f32.mrf.mxu0
      %v1271 = vpop.f32.mrf.mxu0
      %v1272 = vadd.f32 0.0, %v1271
      %v1273 = vpop.f32.mrf.mxu0
      %1274 = vmatprep.mubr.bf16.mxu0 0
      %1275 = vmatmul.mubr.bf16.gmra.mxu0 %v1180
      %v1276 = vpop.f32.mrf.mxu0
      %v1277 = vadd.f32 0.0, %v1276
      %v1278 = vpop.f32.mrf.mxu0
      %v1279 = vpop.f32.mrf.mxu0
      %v1280 = vadd.f32 0.0, %v1279
      %v1281 = vpop.f32.mrf.mxu0
      %1282 = vmatprep.mubr.bf16.mxu0 0
      %1283 = vmatmul.mubr.bf16.gmra.mxu0 %v1183
      %v1284 = vpop.f32.mrf.mxu0
      %v1285 = vadd.f32 0.0, %v1284
      %v1286 = vpop.f32.mrf.mxu0
      %v1287 = vpop.f32.mrf.mxu0
      %v1288 = vadd.f32 0.0, %v1287
      %v1289 = vpop.f32.mrf.mxu0
      %1290 = vmatprep.mubr.bf16.mxu0 0
      %1291 = vmatmul.mubr.bf16.gmra.mxu0 %v1186
      %v1292 = vpop.f32.mrf.mxu0
      %v1293 = vadd.f32 0.0, %v1292
      %v1294 = vpop.f32.mrf.mxu0
      %v1295 = vpop.f32.mrf.mxu0
      %v1296 = vadd.f32 0.0, %v1295
      %v1297 = vpop.f32.mrf.mxu0
      %1298 = vmatprep.mubr.bf16.mxu0 0
      %1299 = vmatmul.mubr.bf16.gmra.mxu0 %v1189
      %v1300 = vpop.f32.mrf.mxu0
      %v1301 = vadd.f32 0.0, %v1300
      %v1302 = vpop.f32.mrf.mxu0
      %v1303 = vpop.f32.mrf.mxu0
      %v1304 = vadd.f32 0.0, %v1303
      %v1305 = vpop.f32.mrf.mxu0
      %1306 = vmatprep.mubr.bf16.mxu0 0
      %1307 = vmatmul.mubr.bf16.gmra.mxu0 %v1192
      %v1308 = vpop.f32.mrf.mxu0
      %v1309 = vadd.f32 0.0, %v1308
      %v1310 = vpop.f32.mrf.mxu0
      %v1311 = vpop.f32.mrf.mxu0
      %v1312 = vadd.f32 0.0, %v1311
      %v1313 = vpop.f32.mrf.mxu0
      %1314 = vdwg.mxu0
      %v1315 = vmul.f32 %v1253, 0.35355338
      %v1316 = vmul.f32 %v1256, 0.35355338
      %v1317 = vmul.f32 %v1261, 0.35355338
      %v1318 = vmul.f32 %v1264, 0.35355338
      %v1319 = vmul.f32 %v1269, 0.35355338
      %v1320 = vmul.f32 %v1272, 0.35355338
      %v1321 = vmul.f32 %v1277, 0.35355338
      %v1322 = vmul.f32 %v1280, 0.35355338
      %v1323 = vmul.f32 %v1285, 0.35355338
      %v1324 = vmul.f32 %v1288, 0.35355338
      %v1325 = vmul.f32 %v1293, 0.35355338
      %v1326 = vmul.f32 %v1296, 0.35355338
      %v1327 = vmul.f32 %v1301, 0.35355338
      %v1328 = vmul.f32 %v1304, 0.35355338
      %v1329 = vmul.f32 %v1309, 0.35355338
      %v1330 = vmul.f32 %v1312, 0.35355338
      %v1331 = vadd.f32 %v1315, %v628
      %v1332 = vadd.f32 %v1316, %v629
      %v1333 = vadd.f32 %v1317, %v630
      %v1334 = vadd.f32 %v1318, %v631
      %v1335 = vadd.f32 %v1319, %v632
      %v1336 = vadd.f32 %v1320, %v633
      %v1337 = vadd.f32 %v1321, %v634
      %v1338 = vadd.f32 %v1322, %v635
      %v1339 = vadd.f32 %v1323, %v636
      %v1340 = vadd.f32 %v1324, %v637
      %v1341 = vadd.f32 %v1325, %v638
      %v1342 = vadd.f32 %v1326, %v639
      %v1343 = vadd.f32 %v1327, %v640
      %v1344 = vadd.f32 %v1328, %v641
      %v1345 = vadd.f32 %v1329, %v642
      %v1346 = vadd.f32 %v1330, %v643
      %1347 = vmax.xlane.f32.xlu0 %v1331
      %v1348 = vpop.xlane.xlu0 %1347
      %1349 = vmax.xlane.f32.xlu0 %v1332
      %v1350 = vpop.xlane.xlu0 %1349
      %1351 = vmax.xlane.f32.xlu0 %v1333
      %v1352 = vpop.xlane.xlu0 %1351
      %1353 = vmax.xlane.f32.xlu0 %v1334
      %v1354 = vpop.xlane.xlu0 %1353
      %1355 = vmax.xlane.f32.xlu0 %v1335
      %v1356 = vpop.xlane.xlu0 %1355
      %1357 = vmax.xlane.f32.xlu0 %v1336
      %v1358 = vpop.xlane.xlu0 %1357
      %1359 = vmax.xlane.f32.xlu0 %v1337
      %v1360 = vpop.xlane.xlu0 %1359
      %1361 = vmax.xlane.f32.xlu0 %v1338
      %v1362 = vpop.xlane.xlu0 %1361
      %1363 = vmax.xlane.f32.xlu0 %v1339
      %v1364 = vpop.xlane.xlu0 %1363
      %1365 = vmax.xlane.f32.xlu0 %v1340
      %v1366 = vpop.xlane.xlu0 %1365
      %1367 = vmax.xlane.f32.xlu0 %v1341
      %v1368 = vpop.xlane.xlu0 %1367
      %1369 = vmax.xlane.f32.xlu0 %v1342
      %v1370 = vpop.xlane.xlu0 %1369
      %1371 = vmax.xlane.f32.xlu0 %v1343
      %v1372 = vpop.xlane.xlu0 %1371
      %1373 = vmax.xlane.f32.xlu0 %v1344
      %v1374 = vpop.xlane.xlu0 %1373
      %1375 = vmax.xlane.f32.xlu0 %v1345
      %v1376 = vpop.xlane.xlu0 %1375
      %1377 = vmax.xlane.f32.xlu0 %v1346
      %v1378 = vpop.xlane.xlu0 %1377
      %v1379 = vsub.f32 %v1331, %v1348
      %v1380 = vsub.f32 %v1332, %v1350
      %v1381 = vsub.f32 %v1333, %v1352
      %v1382 = vsub.f32 %v1334, %v1354
      %v1383 = vsub.f32 %v1335, %v1356
      %v1384 = vsub.f32 %v1336, %v1358
      %v1385 = vsub.f32 %v1337, %v1360
      %v1386 = vsub.f32 %v1338, %v1362
      %v1387 = vsub.f32 %v1339, %v1364
      %v1388 = vsub.f32 %v1340, %v1366
      %v1389 = vsub.f32 %v1341, %v1368
      %v1390 = vsub.f32 %v1342, %v1370
      %v1391 = vsub.f32 %v1343, %v1372
      %v1392 = vsub.f32 %v1344, %v1374
      %v1393 = vsub.f32 %v1345, %v1376
      %v1394 = vsub.f32 %v1346, %v1378
      %v1395 = vmul.f32 %v1379, 1.442695
      %v1396 = vpow.pop %v1395
      %v1397 = vmul.f32 %v1380, 1.442695
      %v1398 = vpow.pop %v1397
      %v1399 = vmul.f32 %v1381, 1.442695
      %v1400 = vpow.pop %v1399
      %v1401 = vmul.f32 %v1382, 1.442695
      %v1402 = vpow.pop %v1401
      %v1403 = vmul.f32 %v1383, 1.442695
      %v1404 = vpow.pop %v1403
      %v1405 = vmul.f32 %v1384, 1.442695
      %v1406 = vpow.pop %v1405
      %v1407 = vmul.f32 %v1385, 1.442695
      %v1408 = vpow.pop %v1407
      %v1409 = vmul.f32 %v1386, 1.442695
      %v1410 = vpow.pop %v1409
      %v1411 = vmul.f32 %v1387, 1.442695
      %v1412 = vpow.pop %v1411
      %v1413 = vmul.f32 %v1388, 1.442695
      %v1414 = vpow.pop %v1413
      %v1415 = vmul.f32 %v1389, 1.442695
      %v1416 = vpow.pop %v1415
      %v1417 = vmul.f32 %v1390, 1.442695
      %v1418 = vpow.pop %v1417
      %v1419 = vmul.f32 %v1391, 1.442695
      %v1420 = vpow.pop %v1419
      %v1421 = vmul.f32 %v1392, 1.442695
      %v1422 = vpow.pop %v1421
      %v1423 = vmul.f32 %v1393, 1.442695
      %v1424 = vpow.pop %v1423
      %v1425 = vmul.f32 %v1394, 1.442695
      %v1426 = vpow.pop %v1425
      %1427 = vadd.xlane.f32.xlu0 %v1396
      %v1428 = vpop.xlane.xlu0 %1427
      %1429 = vadd.xlane.f32.xlu0 %v1398
      %v1430 = vpop.xlane.xlu0 %1429
      %1431 = vadd.xlane.f32.xlu0 %v1400
      %v1432 = vpop.xlane.xlu0 %1431
      %1433 = vadd.xlane.f32.xlu0 %v1402
      %v1434 = vpop.xlane.xlu0 %1433
      %1435 = vadd.xlane.f32.xlu0 %v1404
      %v1436 = vpop.xlane.xlu0 %1435
      %1437 = vadd.xlane.f32.xlu0 %v1406
      %v1438 = vpop.xlane.xlu0 %1437
      %1439 = vadd.xlane.f32.xlu0 %v1408
      %v1440 = vpop.xlane.xlu0 %1439
      %1441 = vadd.xlane.f32.xlu0 %v1410
      %v1442 = vpop.xlane.xlu0 %1441
      %1443 = vadd.xlane.f32.xlu0 %v1412
      %v1444 = vpop.xlane.xlu0 %1443
      %1445 = vadd.xlane.f32.xlu0 %v1414
      %v1446 = vpop.xlane.xlu0 %1445
      %1447 = vadd.xlane.f32.xlu0 %v1416
      %v1448 = vpop.xlane.xlu0 %1447
      %1449 = vadd.xlane.f32.xlu0 %v1418
      %v1450 = vpop.xlane.xlu0 %1449
      %1451 = vadd.xlane.f32.xlu0 %v1420
      %v1452 = vpop.xlane.xlu0 %1451
      %1453 = vadd.xlane.f32.xlu0 %v1422
      %v1454 = vpop.xlane.xlu0 %1453
      %1455 = vadd.xlane.f32.xlu0 %v1424
      %v1456 = vpop.xlane.xlu0 %1455
      %1457 = vadd.xlane.f32.xlu0 %v1426
      %v1458 = vpop.xlane.xlu0 %1457
      %v1459 = vrcp.pop %v1428
      %v1460 = vrcp.pop %v1430
      %v1461 = vrcp.pop %v1432
      %v1462 = vrcp.pop %v1434
      %v1463 = vrcp.pop %v1436
      %v1464 = vrcp.pop %v1438
      %v1465 = vrcp.pop %v1440
      %v1466 = vrcp.pop %v1442
      %v1467 = vrcp.pop %v1444
      %v1468 = vrcp.pop %v1446
      %v1469 = vrcp.pop %v1448
      %v1470 = vrcp.pop %v1450
      %v1471 = vrcp.pop %v1452
      %v1472 = vrcp.pop %v1454
      %v1473 = vrcp.pop %v1456
      %v1474 = vrcp.pop %v1458
      %v1475 = vmul.f32 %v1396, %v1459
      %v1476 = vmul.f32 %v1398, %v1460
      %v1477 = vmul.f32 %v1400, %v1461
      %v1478 = vmul.f32 %v1402, %v1462
      %v1479 = vmul.f32 %v1404, %v1463
      %v1480 = vmul.f32 %v1406, %v1464
      %v1481 = vmul.f32 %v1408, %v1465
      %v1482 = vmul.f32 %v1410, %v1466
      %v1483 = vmul.f32 %v1412, %v1467
      %v1484 = vmul.f32 %v1414, %v1468
      %v1485 = vmul.f32 %v1416, %v1469
      %v1486 = vmul.f32 %v1418, %v1470
      %v1487 = vmul.f32 %v1420, %v1471
      %v1488 = vmul.f32 %v1422, %v1472
      %v1489 = vmul.f32 %v1424, %v1473
      %v1490 = vmul.f32 %v1426, %v1474
      %v1491 = vpack.c.bf16 %v1476, %v1475
      %v1492 = vpack.c.bf16 %v1478, %v1477
      %v1493 = vpack.c.bf16 %v1480, %v1479
      %v1494 = vpack.c.bf16 %v1482, %v1481
      %v1495 = vpack.c.bf16 %v1484, %v1483
      %v1496 = vpack.c.bf16 %v1486, %v1485
      %v1497 = vpack.c.bf16 %v1488, %v1487
      %v1498 = vpack.c.bf16 %v1490, %v1489
      %1499 = vrot.lane.b32.xlu0 %v646, 88
      %v1500 = vpop.permute.xlu0 %1499
      %1501 = vrot.lane.b32.xlu0 %v647, 88
      %v1502 = vpop.permute.xlu0 %1501
      %1503 = vrot.lane.b32.xlu0 %v648, 88
      %v1504 = vpop.permute.xlu0 %1503
      %1505 = vrot.lane.b32.xlu0 %v649, 88
      %v1506 = vpop.permute.xlu0 %1505
      %1507 = vrot.lane.b32.xlu0 %v650, 88
      %v1508 = vpop.permute.xlu0 %1507
      %1509 = vrot.lane.b32.xlu0 %v651, 88
      %v1510 = vpop.permute.xlu0 %1509
      %1511 = vrot.lane.b32.xlu0 %v652, 88
      %v1512 = vpop.permute.xlu0 %1511
      %1513 = vrot.lane.b32.xlu0 %v653, 88
      %v1514 = vpop.permute.xlu0 %1513
      %1523 = vmatprep.subr.bf16.mxu0 0
      %1524 = vmatpush1.bf16.msra.mxu0 %v1514
      %1525 = vmatprep.subr.bf16.mxu0 0
      %1526 = vmatpush1.bf16.msra.mxu0 %v1512
      %1527 = vmatprep.subr.bf16.mxu0 0
      %1528 = vmatpush1.bf16.msra.mxu0 %v1510
      %1529 = vmatprep.subr.bf16.mxu0 0
      %1530 = vmatpush1.bf16.msra.mxu0 %v1508
      %1531 = vmatprep.subr.bf16.mxu0 0
      %1532 = vmatpush1.bf16.msra.mxu0 %v1506
      %1533 = vmatprep.subr.bf16.mxu0 0
      %1534 = vmatpush1.bf16.msra.mxu0 %v1504
      %1535 = vmatprep.subr.bf16.mxu0 0
      %1536 = vmatpush1.bf16.msra.mxu0 %v1502
      %1537 = vmatprep.subr.bf16.mxu0 0
      %1538 = vmatpush1.bf16.msra.mxu0 %v1500
      %1539 = vmatprep.subr.bf16.mxu0 0
      %1540 = vmatpush2.bf16.msra.mxu0 0
      %1541 = vmatprep.subr.bf16.mxu0 0
      %1542 = vmatpush2.bf16.msra.mxu0 0
      %1543 = vmatprep.subr.bf16.mxu0 0
      %1544 = vmatpush2.bf16.msra.mxu0 0
      %1545 = vmatprep.subr.bf16.mxu0 0
      %1546 = vmatpush2.bf16.msra.mxu0 0
      %1547 = vmatprep.subr.bf16.mxu0 0
      %1548 = vmatpush2.bf16.msra.mxu0 0
      %1549 = vmatprep.subr.bf16.mxu0 0
      %1550 = vmatpush2.bf16.msra.mxu0 0
      %1551 = vmatprep.subr.bf16.mxu0 0
      %1552 = vmatpush2.bf16.msra.mxu0 0
      %1553 = vmatprep.subr.bf16.mxu0 0
      %1554 = vmatpush2.bf16.msra.mxu0 0
      %1555 = vmatprep.mubr.bf16.mxu0 0
      %1556 = vmatmul.mubr.bf16.gmra.mxu0 %v1491
      %v1557 = vpop.f32.mrf.mxu0
      %v1558 = vadd.f32 0.0, %v1557
      %v1559 = vpop.f32.mrf.mxu0
      %v1560 = vpop.f32.mrf.mxu0
      %v1561 = vadd.f32 0.0, %v1560
      %v1562 = vpop.f32.mrf.mxu0
      %1563 = vmatprep.mubr.bf16.mxu0 0
      %1564 = vmatmul.mubr.bf16.gmra.mxu0 %v1492
      %v1565 = vpop.f32.mrf.mxu0
      %v1566 = vadd.f32 0.0, %v1565
      %v1567 = vpop.f32.mrf.mxu0
      %v1568 = vpop.f32.mrf.mxu0
      %v1569 = vadd.f32 0.0, %v1568
      %v1570 = vpop.f32.mrf.mxu0
      %1571 = vmatprep.mubr.bf16.mxu0 0
      %1572 = vmatmul.mubr.bf16.gmra.mxu0 %v1493
      %v1573 = vpop.f32.mrf.mxu0
      %v1574 = vadd.f32 0.0, %v1573
      %v1575 = vpop.f32.mrf.mxu0
      %v1576 = vpop.f32.mrf.mxu0
      %v1577 = vadd.f32 0.0, %v1576
      %v1578 = vpop.f32.mrf.mxu0
      %1579 = vmatprep.mubr.bf16.mxu0 0
      %1580 = vmatmul.mubr.bf16.gmra.mxu0 %v1494
      %v1581 = vpop.f32.mrf.mxu0
      %v1582 = vadd.f32 0.0, %v1581
      %v1583 = vpop.f32.mrf.mxu0
      %v1584 = vpop.f32.mrf.mxu0
      %v1585 = vadd.f32 0.0, %v1584
      %v1586 = vpop.f32.mrf.mxu0
      %1587 = vmatprep.mubr.bf16.mxu0 0
      %1588 = vmatmul.mubr.bf16.gmra.mxu0 %v1495
      %v1589 = vpop.f32.mrf.mxu0
      %v1590 = vadd.f32 0.0, %v1589
      %v1591 = vpop.f32.mrf.mxu0
      %v1592 = vpop.f32.mrf.mxu0
      %v1593 = vadd.f32 0.0, %v1592
      %v1594 = vpop.f32.mrf.mxu0
      %1595 = vmatprep.mubr.bf16.mxu0 0
      %1596 = vmatmul.mubr.bf16.gmra.mxu0 %v1496
      %v1597 = vpop.f32.mrf.mxu0
      %v1598 = vadd.f32 0.0, %v1597
      %v1599 = vpop.f32.mrf.mxu0
      %v1600 = vpop.f32.mrf.mxu0
      %v1601 = vadd.f32 0.0, %v1600
      %v1602 = vpop.f32.mrf.mxu0
      %1603 = vmatprep.mubr.bf16.mxu0 0
      %1604 = vmatmul.mubr.bf16.gmra.mxu0 %v1497
      %v1605 = vpop.f32.mrf.mxu0
      %v1606 = vadd.f32 0.0, %v1605
      %v1607 = vpop.f32.mrf.mxu0
      %v1608 = vpop.f32.mrf.mxu0
      %v1609 = vadd.f32 0.0, %v1608
      %v1610 = vpop.f32.mrf.mxu0
      %1611 = vmatprep.mubr.bf16.mxu0 0
      %1612 = vmatmul.mubr.bf16.gmra.mxu0 %v1498
      %v1613 = vpop.f32.mrf.mxu0
      %v1614 = vadd.f32 0.0, %v1613
      %v1615 = vpop.f32.mrf.mxu0
      %v1616 = vpop.f32.mrf.mxu0
      %v1617 = vadd.f32 0.0, %v1616
      %v1618 = vpop.f32.mrf.mxu0
      %1619 = vdwg.mxu0
      %v1620 = vpack.c.bf16 %v1561, %v1558
      %v1621 = vpack.c.bf16 %v1569, %v1566
      %v1622 = vpack.c.bf16 %v1577, %v1574
      %v1623 = vpack.c.bf16 %v1585, %v1582
      %v1624 = vpack.c.bf16 %v1593, %v1590
      %v1625 = vpack.c.bf16 %v1601, %v1598
      %v1626 = vpack.c.bf16 %v1609, %v1606
      %v1627 = vpack.c.bf16 %v1617, %v1614
      %v1628 = vpack.c.bf16 %v645, %v645
      %v1630 = vsel %vm678, %v1620, 0
      %v1633 = vsel %vm678, %v1621, 0
      %v1636 = vsel %vm678, %v1622, 0
      %v1639 = vsel %vm678, %v1623, 0
      %v1642 = vsel %vm678, %v1624, 0
      %v1645 = vsel %vm678, %v1625, 0
      %v1648 = vsel %vm678, %v1626, 0
      %v1651 = vsel %vm678, %v1627, 0
      %vm1653 = vcmask 1043456
      %v1655 = vsel %vm1653, %v1628, 0
      %1657 = vmatprep.subr.bf16.mxu0 0
      %1658 = vmatpush1.bf16.msra.mxu0 0
      %1659 = vmatprep.subr.bf16.mxu0 0
      %1660 = vmatpush1.bf16.msra.mxu0 0
      %1661 = vmatprep.subr.bf16.mxu0 0
      %1662 = vmatpush1.bf16.msra.mxu0 0
      %1663 = vmatprep.subr.bf16.mxu0 0
      %1664 = vmatpush1.bf16.msra.mxu0 0
      %1665 = vmatprep.subr.bf16.mxu0 0
      %1666 = vmatpush1.bf16.msra.mxu0 0
      %1667 = vmatprep.subr.bf16.mxu0 0
      %1668 = vmatpush1.bf16.msra.mxu0 0
      %1669 = vmatprep.subr.bf16.mxu0 0
      %1670 = vmatpush1.bf16.msra.mxu0 0
      %1671 = vmatprep.subr.bf16.mxu0 0
      %1672 = vmatpush1.bf16.msra.mxu0 %v1655
      %1673 = vmatprep.subr.bf16.mxu0 0
      %1674 = vmatpush2.bf16.msra.mxu0 0
      %1675 = vmatprep.subr.bf16.mxu0 0
      %1676 = vmatpush2.bf16.msra.mxu0 0
      %1677 = vmatprep.subr.bf16.mxu0 0
      %1678 = vmatpush2.bf16.msra.mxu0 0
      %1679 = vmatprep.subr.bf16.mxu0 0
      %1680 = vmatpush2.bf16.msra.mxu0 0
      %1681 = vmatprep.subr.bf16.mxu0 0
      %1682 = vmatpush2.bf16.msra.mxu0 0
      %1683 = vmatprep.subr.bf16.mxu0 0
      %1684 = vmatpush2.bf16.msra.mxu0 0
      %1685 = vmatprep.subr.bf16.mxu0 0
      %1686 = vmatpush2.bf16.msra.mxu0 0
      %1687 = vmatprep.subr.bf16.mxu0 0
      %1688 = vmatpush2.bf16.msra.mxu0 0
      %1689 = vmatprep.mubr.bf16.mxu0 0
      %1690 = vmatmul.mubr.bf16.gmra.mxu0 %v1630
      %v1691 = vpop.f32.mrf.mxu0
      %v1692 = vadd.f32 0.0, %v1691
      %v1693 = vpop.f32.mrf.mxu0
      %v1694 = vpop.f32.mrf.mxu0
      %v1695 = vadd.f32 0.0, %v1694
      %v1696 = vpop.f32.mrf.mxu0
      %1697 = vmatprep.mubr.bf16.mxu0 0
      %1698 = vmatmul.mubr.bf16.gmra.mxu0 %v1633
      %v1699 = vpop.f32.mrf.mxu0
      %v1700 = vadd.f32 0.0, %v1699
      %v1701 = vpop.f32.mrf.mxu0
      %v1702 = vpop.f32.mrf.mxu0
      %v1703 = vadd.f32 0.0, %v1702
      %v1704 = vpop.f32.mrf.mxu0
      %1705 = vmatprep.mubr.bf16.mxu0 0
      %1706 = vmatmul.mubr.bf16.gmra.mxu0 %v1636
      %v1707 = vpop.f32.mrf.mxu0
      %v1708 = vadd.f32 0.0, %v1707
      %v1709 = vpop.f32.mrf.mxu0
      %v1710 = vpop.f32.mrf.mxu0
      %v1711 = vadd.f32 0.0, %v1710
      %v1712 = vpop.f32.mrf.mxu0
      %1713 = vmatprep.mubr.bf16.mxu0 0
      %1714 = vmatmul.mubr.bf16.gmra.mxu0 %v1639
      %v1715 = vpop.f32.mrf.mxu0
      %v1716 = vadd.f32 0.0, %v1715
      %v1717 = vpop.f32.mrf.mxu0
      %v1718 = vpop.f32.mrf.mxu0
      %v1719 = vadd.f32 0.0, %v1718
      %v1720 = vpop.f32.mrf.mxu0
      %1721 = vmatprep.mubr.bf16.mxu0 0
      %1722 = vmatmul.mubr.bf16.gmra.mxu0 %v1642
      %v1723 = vpop.f32.mrf.mxu0
      %v1724 = vadd.f32 0.0, %v1723
      %v1725 = vpop.f32.mrf.mxu0
      %v1726 = vpop.f32.mrf.mxu0
      %v1727 = vadd.f32 0.0, %v1726
      %v1728 = vpop.f32.mrf.mxu0
      %1729 = vmatprep.mubr.bf16.mxu0 0
      %1730 = vmatmul.mubr.bf16.gmra.mxu0 %v1645
      %v1731 = vpop.f32.mrf.mxu0
      %v1732 = vadd.f32 0.0, %v1731
      %v1733 = vpop.f32.mrf.mxu0
      %v1734 = vpop.f32.mrf.mxu0
      %v1735 = vadd.f32 0.0, %v1734
      %v1736 = vpop.f32.mrf.mxu0
      %1737 = vmatprep.mubr.bf16.mxu0 0
      %1738 = vmatmul.mubr.bf16.gmra.mxu0 %v1648
      %v1739 = vpop.f32.mrf.mxu0
      %v1740 = vadd.f32 0.0, %v1739
      %v1741 = vpop.f32.mrf.mxu0
      %v1742 = vpop.f32.mrf.mxu0
      %v1743 = vadd.f32 0.0, %v1742
      %v1744 = vpop.f32.mrf.mxu0
      %1745 = vmatprep.mubr.bf16.mxu0 0
      %1746 = vmatmul.mubr.bf16.gmra.mxu0 %v1651
      %v1747 = vpop.f32.mrf.mxu0
      %v1748 = vadd.f32 0.0, %v1747
      %v1749 = vpop.f32.mrf.mxu0
      %v1750 = vpop.f32.mrf.mxu0
      %v1751 = vadd.f32 0.0, %v1750
      %v1752 = vpop.f32.mrf.mxu0
      %1753 = vdwg.mxu0
      %v1755 = vsel %vm678, %v1129, 0
      %v1758 = vsel %vm678, %v1130, 0
      %v1761 = vsel %vm678, %v1131, 0
      %v1764 = vsel %vm678, %v1132, 0
      %v1767 = vsel %vm678, %v1133, 0
      %v1770 = vsel %vm678, %v1134, 0
      %v1773 = vsel %vm678, %v1135, 0
      %v1776 = vsel %vm678, %v1136, 0
      %v1779 = vsel %vm1653, %v1137, 0
      %1781 = vmatprep.subr.bf16.mxu0 0
      %1782 = vmatpush1.bf16.msra.mxu0 0
      %1783 = vmatprep.subr.bf16.mxu0 0
      %1784 = vmatpush1.bf16.msra.mxu0 0
      %1785 = vmatprep.subr.bf16.mxu0 0
      %1786 = vmatpush1.bf16.msra.mxu0 0
      %1787 = vmatprep.subr.bf16.mxu0 0
      %1788 = vmatpush1.bf16.msra.mxu0 0
      %1789 = vmatprep.subr.bf16.mxu0 0
      %1790 = vmatpush1.bf16.msra.mxu0 0
      %1791 = vmatprep.subr.bf16.mxu0 0
      %1792 = vmatpush1.bf16.msra.mxu0 0
      %1793 = vmatprep.subr.bf16.mxu0 0
      %1794 = vmatpush1.bf16.msra.mxu0 0
      %1795 = vmatprep.subr.bf16.mxu0 0
      %1796 = vmatpush1.bf16.msra.mxu0 %v1779
      %1797 = vmatprep.subr.bf16.mxu0 0
      %1798 = vmatpush2.bf16.msra.mxu0 0
      %1799 = vmatprep.subr.bf16.mxu0 0
      %1800 = vmatpush2.bf16.msra.mxu0 0
      %1801 = vmatprep.subr.bf16.mxu0 0
      %1802 = vmatpush2.bf16.msra.mxu0 0
      %1803 = vmatprep.subr.bf16.mxu0 0
      %1804 = vmatpush2.bf16.msra.mxu0 0
      %1805 = vmatprep.subr.bf16.mxu0 0
      %1806 = vmatpush2.bf16.msra.mxu0 0
      %1807 = vmatprep.subr.bf16.mxu0 0
      %1808 = vmatpush2.bf16.msra.mxu0 0
      %1809 = vmatprep.subr.bf16.mxu0 0
      %1810 = vmatpush2.bf16.msra.mxu0 0
      %1811 = vmatprep.subr.bf16.mxu0 0
      %1812 = vmatpush2.bf16.msra.mxu0 0
      %1813 = vmatprep.mubr.bf16.mxu0 0
      %1814 = vmatmul.mubr.bf16.gmra.mxu0 %v1755
      %v1815 = vpop.f32.mrf.mxu0
      %v1816 = vadd.f32 %v1692, %v1815
      %v1817 = vpop.f32.mrf.mxu0
      %v1818 = vpop.f32.mrf.mxu0
      %v1819 = vadd.f32 %v1695, %v1818
      %v1820 = vpop.f32.mrf.mxu0
      %1821 = vmatprep.mubr.bf16.mxu0 0
      %1822 = vmatmul.mubr.bf16.gmra.mxu0 %v1758
      %v1823 = vpop.f32.mrf.mxu0
      %v1824 = vadd.f32 %v1700, %v1823
      %v1825 = vpop.f32.mrf.mxu0
      %v1826 = vpop.f32.mrf.mxu0
      %v1827 = vadd.f32 %v1703, %v1826
      %v1828 = vpop.f32.mrf.mxu0
      %1829 = vmatprep.mubr.bf16.mxu0 0
      %1830 = vmatmul.mubr.bf16.gmra.mxu0 %v1761
      %v1831 = vpop.f32.mrf.mxu0
      %v1832 = vadd.f32 %v1708, %v1831
      %v1833 = vpop.f32.mrf.mxu0
      %v1834 = vpop.f32.mrf.mxu0
      %v1835 = vadd.f32 %v1711, %v1834
      %v1836 = vpop.f32.mrf.mxu0
      %1837 = vmatprep.mubr.bf16.mxu0 0
      %1838 = vmatmul.mubr.bf16.gmra.mxu0 %v1764
      %v1839 = vpop.f32.mrf.mxu0
      %v1840 = vadd.f32 %v1716, %v1839
      %v1841 = vpop.f32.mrf.mxu0
      %v1842 = vpop.f32.mrf.mxu0
      %v1843 = vadd.f32 %v1719, %v1842
      %v1844 = vpop.f32.mrf.mxu0
      %1845 = vmatprep.mubr.bf16.mxu0 0
      %1846 = vmatmul.mubr.bf16.gmra.mxu0 %v1767
      %v1847 = vpop.f32.mrf.mxu0
      %v1848 = vadd.f32 %v1724, %v1847
      %v1849 = vpop.f32.mrf.mxu0
      %v1850 = vpop.f32.mrf.mxu0
      %v1851 = vadd.f32 %v1727, %v1850
      %v1852 = vpop.f32.mrf.mxu0
      %1853 = vmatprep.mubr.bf16.mxu0 0
      %1854 = vmatmul.mubr.bf16.gmra.mxu0 %v1770
      %v1855 = vpop.f32.mrf.mxu0
      %v1856 = vadd.f32 %v1732, %v1855
      %v1857 = vpop.f32.mrf.mxu0
      %v1858 = vpop.f32.mrf.mxu0
      %v1859 = vadd.f32 %v1735, %v1858
      %v1860 = vpop.f32.mrf.mxu0
      %1861 = vmatprep.mubr.bf16.mxu0 0
      %1862 = vmatmul.mubr.bf16.gmra.mxu0 %v1773
      %v1863 = vpop.f32.mrf.mxu0
      %v1864 = vadd.f32 %v1740, %v1863
      %v1865 = vpop.f32.mrf.mxu0
      %v1866 = vpop.f32.mrf.mxu0
      %v1867 = vadd.f32 %v1743, %v1866
      %v1868 = vpop.f32.mrf.mxu0
      %1869 = vmatprep.mubr.bf16.mxu0 0
      %1870 = vmatmul.mubr.bf16.gmra.mxu0 %v1776
      %v1871 = vpop.f32.mrf.mxu0
      %v1872 = vadd.f32 %v1748, %v1871
      %v1873 = vpop.f32.mrf.mxu0
      %v1874 = vpop.f32.mrf.mxu0
      %v1875 = vadd.f32 %v1751, %v1874
      %v1876 = vpop.f32.mrf.mxu0
      %1877 = vdwg.mxu0
      %v1878 = vld [vmem:[%s5] sm:$0x1]
      %v1880 = vlaneseq
      %v1881 = vshrl.u32 %v1880, 7
      %v1882 = vsub.s32 0, %v1881
      %v1883 = vrot.slane %v1878, %v1882
      %v1885 = vadd.f32 %v1816, %v1883
      %v1886 = vadd.f32 %v1819, %v1883
      %v1887 = vadd.f32 %v1824, %v1883
      %v1888 = vadd.f32 %v1827, %v1883
      %v1889 = vadd.f32 %v1832, %v1883
      %v1890 = vadd.f32 %v1835, %v1883
      %v1891 = vadd.f32 %v1840, %v1883
      %v1892 = vadd.f32 %v1843, %v1883
      %v1893 = vadd.f32 %v1848, %v1883
      %v1894 = vadd.f32 %v1851, %v1883
      %v1895 = vadd.f32 %v1856, %v1883
      %v1896 = vadd.f32 %v1859, %v1883
      %v1897 = vadd.f32 %v1864, %v1883
      %v1898 = vadd.f32 %v1867, %v1883
      %v1899 = vadd.f32 %v1872, %v1883
      %v1900 = vadd.f32 %v1875, %v1883
      %v1901 = vadd.f32 %v472, %v1885
      %v1902 = vadd.f32 %v473, %v1886
      %v1903 = vadd.f32 %v474, %v1887
      %v1904 = vadd.f32 %v475, %v1888
      %v1905 = vadd.f32 %v476, %v1889
      %v1906 = vadd.f32 %v477, %v1890
      %v1907 = vadd.f32 %v478, %v1891
      %v1908 = vadd.f32 %v479, %v1892
      %v1909 = vadd.f32 %v480, %v1893
      %v1910 = vadd.f32 %v481, %v1894
      %v1911 = vadd.f32 %v482, %v1895
      %v1912 = vadd.f32 %v483, %v1896
      %v1913 = vadd.f32 %v484, %v1897
      %v1914 = vadd.f32 %v485, %v1898
      %v1915 = vadd.f32 %v486, %v1899
      %v1916 = vadd.f32 %v487, %v1900
      %v1917 = vld [vmem:[%s6] sm:$0x1]
      %v1918 = vld [vmem:[%s7] sm:$0x1]
      %v1919 = vsel %vm506, %v1901, 0.0
      %1920 = vadd.xlane.f32.xlu0 %v1919
      %v1921 = vpop.xlane.xlu0 %1920
      %v1922 = vsel %vm506, %v1902, 0.0
      %1923 = vadd.xlane.f32.xlu0 %v1922
      %v1924 = vpop.xlane.xlu0 %1923
      %v1925 = vsel %vm506, %v1903, 0.0
      %1926 = vadd.xlane.f32.xlu0 %v1925
      %v1927 = vpop.xlane.xlu0 %1926
      %v1928 = vsel %vm506, %v1904, 0.0
      %1929 = vadd.xlane.f32.xlu0 %v1928
      %v1930 = vpop.xlane.xlu0 %1929
      %v1931 = vsel %vm506, %v1905, 0.0
      %1932 = vadd.xlane.f32.xlu0 %v1931
      %v1933 = vpop.xlane.xlu0 %1932
      %v1934 = vsel %vm506, %v1906, 0.0
      %1935 = vadd.xlane.f32.xlu0 %v1934
      %v1936 = vpop.xlane.xlu0 %1935
      %v1937 = vsel %vm506, %v1907, 0.0
      %1938 = vadd.xlane.f32.xlu0 %v1937
      %v1939 = vpop.xlane.xlu0 %1938
      %v1940 = vsel %vm506, %v1908, 0.0
      %1941 = vadd.xlane.f32.xlu0 %v1940
      %v1942 = vpop.xlane.xlu0 %1941
      %v1943 = vsel %vm506, %v1909, 0.0
      %1944 = vadd.xlane.f32.xlu0 %v1943
      %v1945 = vpop.xlane.xlu0 %1944
      %v1946 = vsel %vm506, %v1910, 0.0
      %1947 = vadd.xlane.f32.xlu0 %v1946
      %v1948 = vpop.xlane.xlu0 %1947
      %v1949 = vsel %vm506, %v1911, 0.0
      %1950 = vadd.xlane.f32.xlu0 %v1949
      %v1951 = vpop.xlane.xlu0 %1950
      %v1952 = vsel %vm506, %v1912, 0.0
      %1953 = vadd.xlane.f32.xlu0 %v1952
      %v1954 = vpop.xlane.xlu0 %1953
      %v1955 = vsel %vm506, %v1913, 0.0
      %1956 = vadd.xlane.f32.xlu0 %v1955
      %v1957 = vpop.xlane.xlu0 %1956
      %v1958 = vsel %vm506, %v1914, 0.0
      %1959 = vadd.xlane.f32.xlu0 %v1958
      %v1960 = vpop.xlane.xlu0 %1959
      %v1961 = vsel %vm506, %v1915, 0.0
      %1962 = vadd.xlane.f32.xlu0 %v1961
      %v1963 = vpop.xlane.xlu0 %1962
      %v1964 = vsel %vm506, %v1916, 0.0
      %1965 = vadd.xlane.f32.xlu0 %v1964
      %v1966 = vpop.xlane.xlu0 %1965
      %v1967 = vrcp.pop 16.0
      %v1968 = vmul.f32 %v1921, %v1967
      %v1969 = vmul.f32 %v1924, %v1967
      %v1970 = vmul.f32 %v1927, %v1967
      %v1971 = vmul.f32 %v1930, %v1967
      %v1972 = vmul.f32 %v1933, %v1967
      %v1973 = vmul.f32 %v1936, %v1967
      %v1974 = vmul.f32 %v1939, %v1967
      %v1975 = vmul.f32 %v1942, %v1967
      %v1976 = vmul.f32 %v1945, %v1967
      %v1977 = vmul.f32 %v1948, %v1967
      %v1978 = vmul.f32 %v1951, %v1967
      %v1979 = vmul.f32 %v1954, %v1967
      %v1980 = vmul.f32 %v1957, %v1967
      %v1981 = vmul.f32 %v1960, %v1967
      %v1982 = vmul.f32 %v1963, %v1967
      %v1983 = vmul.f32 %v1966, %v1967
      %v1984 = vsub.f32 %v1901, %v1968
      %v1985 = vsub.f32 %v1902, %v1969
      %v1986 = vsub.f32 %v1903, %v1970
      %v1987 = vsub.f32 %v1904, %v1971
      %v1988 = vsub.f32 %v1905, %v1972
      %v1989 = vsub.f32 %v1906, %v1973
      %v1990 = vsub.f32 %v1907, %v1974
      %v1991 = vsub.f32 %v1908, %v1975
      %v1992 = vsub.f32 %v1909, %v1976
      %v1993 = vsub.f32 %v1910, %v1977
      %v1994 = vsub.f32 %v1911, %v1978
      %v1995 = vsub.f32 %v1912, %v1979
      %v1996 = vsub.f32 %v1913, %v1980
      %v1997 = vsub.f32 %v1914, %v1981
      %v1998 = vsub.f32 %v1915, %v1982
      %v1999 = vsub.f32 %v1916, %v1983
      %v2000 = vmul.f32 %v1984, %v1984
      %v2001 = vmul.f32 %v1985, %v1985
      %v2002 = vmul.f32 %v1986, %v1986
      %v2003 = vmul.f32 %v1987, %v1987
      %v2004 = vmul.f32 %v1988, %v1988
      %v2005 = vmul.f32 %v1989, %v1989
      %v2006 = vmul.f32 %v1990, %v1990
      %v2007 = vmul.f32 %v1991, %v1991
      %v2008 = vmul.f32 %v1992, %v1992
      %v2009 = vmul.f32 %v1993, %v1993
      %v2010 = vmul.f32 %v1994, %v1994
      %v2011 = vmul.f32 %v1995, %v1995
      %v2012 = vmul.f32 %v1996, %v1996
      %v2013 = vmul.f32 %v1997, %v1997
      %v2014 = vmul.f32 %v1998, %v1998
      %v2015 = vmul.f32 %v1999, %v1999
      %v2016 = vsel %vm506, %v2000, 0.0
      %2017 = vadd.xlane.f32.xlu0 %v2016
      %v2018 = vpop.xlane.xlu0 %2017
      %v2019 = vsel %vm506, %v2001, 0.0
      %2020 = vadd.xlane.f32.xlu0 %v2019
      %v2021 = vpop.xlane.xlu0 %2020
      %v2022 = vsel %vm506, %v2002, 0.0
      %2023 = vadd.xlane.f32.xlu0 %v2022
      %v2024 = vpop.xlane.xlu0 %2023
      %v2025 = vsel %vm506, %v2003, 0.0
      %2026 = vadd.xlane.f32.xlu0 %v2025
      %v2027 = vpop.xlane.xlu0 %2026
      %v2028 = vsel %vm506, %v2004, 0.0
      %2029 = vadd.xlane.f32.xlu0 %v2028
      %v2030 = vpop.xlane.xlu0 %2029
      %v2031 = vsel %vm506, %v2005, 0.0
      %2032 = vadd.xlane.f32.xlu0 %v2031
      %v2033 = vpop.xlane.xlu0 %2032
      %v2034 = vsel %vm506, %v2006, 0.0
      %2035 = vadd.xlane.f32.xlu0 %v2034
      %v2036 = vpop.xlane.xlu0 %2035
      %v2037 = vsel %vm506, %v2007, 0.0
      %2038 = vadd.xlane.f32.xlu0 %v2037
      %v2039 = vpop.xlane.xlu0 %2038
      %v2040 = vsel %vm506, %v2008, 0.0
      %2041 = vadd.xlane.f32.xlu0 %v2040
      %v2042 = vpop.xlane.xlu0 %2041
      %v2043 = vsel %vm506, %v2009, 0.0
      %2044 = vadd.xlane.f32.xlu0 %v2043
      %v2045 = vpop.xlane.xlu0 %2044
      %v2046 = vsel %vm506, %v2010, 0.0
      %2047 = vadd.xlane.f32.xlu0 %v2046
      %v2048 = vpop.xlane.xlu0 %2047
      %v2049 = vsel %vm506, %v2011, 0.0
      %2050 = vadd.xlane.f32.xlu0 %v2049
      %v2051 = vpop.xlane.xlu0 %2050
      %v2052 = vsel %vm506, %v2012, 0.0
      %2053 = vadd.xlane.f32.xlu0 %v2052
      %v2054 = vpop.xlane.xlu0 %2053
      %v2055 = vsel %vm506, %v2013, 0.0
      %2056 = vadd.xlane.f32.xlu0 %v2055
      %v2057 = vpop.xlane.xlu0 %2056
      %v2058 = vsel %vm506, %v2014, 0.0
      %2059 = vadd.xlane.f32.xlu0 %v2058
      %v2060 = vpop.xlane.xlu0 %2059
      %v2061 = vsel %vm506, %v2015, 0.0
      %2062 = vadd.xlane.f32.xlu0 %v2061
      %v2063 = vpop.xlane.xlu0 %2062
      %v2064 = vmul.f32 %v2018, %v1967
      %v2065 = vmul.f32 %v2021, %v1967
      %v2066 = vmul.f32 %v2024, %v1967
      %v2067 = vmul.f32 %v2027, %v1967
      %v2068 = vmul.f32 %v2030, %v1967
      %v2069 = vmul.f32 %v2033, %v1967
      %v2070 = vmul.f32 %v2036, %v1967
      %v2071 = vmul.f32 %v2039, %v1967
      %v2072 = vmul.f32 %v2042, %v1967
      %v2073 = vmul.f32 %v2045, %v1967
      %v2074 = vmul.f32 %v2048, %v1967
      %v2075 = vmul.f32 %v2051, %v1967
      %v2076 = vmul.f32 %v2054, %v1967
      %v2077 = vmul.f32 %v2057, %v1967
      %v2078 = vmul.f32 %v2060, %v1967
      %v2079 = vmul.f32 %v2063, %v1967
      %v2080 = vadd.f32 %v2064, 1e-05
      %v2081 = vadd.f32 %v2065, 1e-05
      %v2082 = vadd.f32 %v2066, 1e-05
      %v2083 = vadd.f32 %v2067, 1e-05
      %v2084 = vadd.f32 %v2068, 1e-05
      %v2085 = vadd.f32 %v2069, 1e-05
      %v2086 = vadd.f32 %v2070, 1e-05
      %v2087 = vadd.f32 %v2071, 1e-05
      %v2088 = vadd.f32 %v2072, 1e-05
      %v2089 = vadd.f32 %v2073, 1e-05
      %v2090 = vadd.f32 %v2074, 1e-05
      %v2091 = vadd.f32 %v2075, 1e-05
      %v2092 = vadd.f32 %v2076, 1e-05
      %v2093 = vadd.f32 %v2077, 1e-05
      %v2094 = vadd.f32 %v2078, 1e-05
      %v2095 = vadd.f32 %v2079, 1e-05
      %v2096 = vrsqrt.pop %v2080
      %v2097 = vrsqrt.pop %v2081
      %v2098 = vrsqrt.pop %v2082
      %v2099 = vrsqrt.pop %v2083
      %v2100 = vrsqrt.pop %v2084
      %v2101 = vrsqrt.pop %v2085
      %v2102 = vrsqrt.pop %v2086
      %v2103 = vrsqrt.pop %v2087
      %v2104 = vrsqrt.pop %v2088
      %v2105 = vrsqrt.pop %v2089
      %v2106 = vrsqrt.pop %v2090
      %v2107 = vrsqrt.pop %v2091
      %v2108 = vrsqrt.pop %v2092
      %v2109 = vrsqrt.pop %v2093
      %v2110 = vrsqrt.pop %v2094
      %v2111 = vrsqrt.pop %v2095
      %v2112 = vmul.f32 %v1984, %v2096
      %v2113 = vmul.f32 %v1985, %v2097
      %v2114 = vmul.f32 %v1986, %v2098
      %v2115 = vmul.f32 %v1987, %v2099
      %v2116 = vmul.f32 %v1988, %v2100
      %v2117 = vmul.f32 %v1989, %v2101
      %v2118 = vmul.f32 %v1990, %v2102
      %v2119 = vmul.f32 %v1991, %v2103
      %v2120 = vmul.f32 %v1992, %v2104
      %v2121 = vmul.f32 %v1993, %v2105
      %v2122 = vmul.f32 %v1994, %v2106
      %v2123 = vmul.f32 %v1995, %v2107
      %v2124 = vmul.f32 %v1996, %v2108
      %v2125 = vmul.f32 %v1997, %v2109
      %v2126 = vmul.f32 %v1998, %v2110
      %v2127 = vmul.f32 %v1999, %v2111
      %v2129 = vlaneseq
      %v2130 = vshrl.u32 %v2129, 7
      %v2131 = vsub.s32 0, %v2130
      %v2132 = vrot.slane %v1917, %v2131
      %v2134 = vmul.f32 %v2112, %v2132
      %v2135 = vmul.f32 %v2113, %v2132
      %v2136 = vmul.f32 %v2114, %v2132
      %v2137 = vmul.f32 %v2115, %v2132
      %v2138 = vmul.f32 %v2116, %v2132
      %v2139 = vmul.f32 %v2117, %v2132
      %v2140 = vmul.f32 %v2118, %v2132
      %v2141 = vmul.f32 %v2119, %v2132
      %v2142 = vmul.f32 %v2120, %v2132
      %v2143 = vmul.f32 %v2121, %v2132
      %v2144 = vmul.f32 %v2122, %v2132
      %v2145 = vmul.f32 %v2123, %v2132
      %v2146 = vmul.f32 %v2124, %v2132
      %v2147 = vmul.f32 %v2125, %v2132
      %v2148 = vmul.f32 %v2126, %v2132
      %v2149 = vmul.f32 %v2127, %v2132
      %v2151 = vlaneseq
      %v2152 = vshrl.u32 %v2151, 7
      %v2153 = vsub.s32 0, %v2152
      %v2154 = vrot.slane %v1918, %v2153
      %v2156 = vadd.f32 %v2134, %v2154
      %v2157 = vadd.f32 %v2135, %v2154
      %v2158 = vadd.f32 %v2136, %v2154
      %v2159 = vadd.f32 %v2137, %v2154
      %v2160 = vadd.f32 %v2138, %v2154
      %v2161 = vadd.f32 %v2139, %v2154
      %v2162 = vadd.f32 %v2140, %v2154
      %v2163 = vadd.f32 %v2141, %v2154
      %v2164 = vadd.f32 %v2142, %v2154
      %v2165 = vadd.f32 %v2143, %v2154
      %v2166 = vadd.f32 %v2144, %v2154
      %v2167 = vadd.f32 %v2145, %v2154
      %v2168 = vadd.f32 %v2146, %v2154
      %v2169 = vadd.f32 %v2147, %v2154
      %v2170 = vadd.f32 %v2148, %v2154
      %v2171 = vadd.f32 %v2149, %v2154
      %v2172 = vld [vmem:[%s8] sm:$0xff]
      %v2173 = vld [vmem:[%s8 + $0x8] sm:$0xff]
      %v2174 = vpack.c.bf16 %v2157, %v2156
      %v2175 = vpack.c.bf16 %v2159, %v2158
      %v2176 = vpack.c.bf16 %v2161, %v2160
      %v2177 = vpack.c.bf16 %v2163, %v2162
      %v2178 = vpack.c.bf16 %v2165, %v2164
      %v2179 = vpack.c.bf16 %v2167, %v2166
      %v2180 = vpack.c.bf16 %v2169, %v2168
      %v2181 = vpack.c.bf16 %v2171, %v2170
      %v2182 = vpack.c.bf16 %v2173, %v2172
      %v2183 = vld [vmem:[%s9] sm:$0x1]
      %v2185 = vlaneseq
      %v2186 = vshrl.u32 %v2185, 7
      %v2187 = vsub.s32 0, %v2186
      %v2188 = vrot.slane %v2183, %v2187
      %v2191 = vsel %vm506, %v2174, 0
      %v2194 = vsel %vm506, %v2175, 0
      %v2197 = vsel %vm506, %v2176, 0
      %v2200 = vsel %vm506, %v2177, 0
      %v2203 = vsel %vm506, %v2178, 0
      %v2206 = vsel %vm506, %v2179, 0
      %v2209 = vsel %vm506, %v2180, 0
      %v2212 = vsel %vm506, %v2181, 0
      %2214 = vmatprep.subr.bf16.mxu0 0
      %2215 = vmatpush1.bf16.msra.mxu0 0
      %2216 = vmatprep.subr.bf16.mxu0 0
      %2217 = vmatpush1.bf16.msra.mxu0 0
      %2218 = vmatprep.subr.bf16.mxu0 0
      %2219 = vmatpush1.bf16.msra.mxu0 0
      %2220 = vmatprep.subr.bf16.mxu0 0
      %2221 = vmatpush1.bf16.msra.mxu0 0
      %2222 = vmatprep.subr.bf16.mxu0 0
      %2223 = vmatpush1.bf16.msra.mxu0 0
      %2224 = vmatprep.subr.bf16.mxu0 0
      %2225 = vmatpush1.bf16.msra.mxu0 0
      %2226 = vmatprep.subr.bf16.mxu0 0
      %2227 = vmatpush1.bf16.msra.mxu0 0
      %2228 = vmatprep.subr.bf16.mxu0 0
      %2229 = vmatpush1.bf16.msra.mxu0 %v2182
      %2230 = vmatprep.subr.bf16.mxu0 0
      %2231 = vmatpush2.bf16.msra.mxu0 0
      %2232 = vmatprep.subr.bf16.mxu0 0
      %2233 = vmatpush2.bf16.msra.mxu0 0
      %2234 = vmatprep.subr.bf16.mxu0 0
      %2235 = vmatpush2.bf16.msra.mxu0 0
      %2236 = vmatprep.subr.bf16.mxu0 0
      %2237 = vmatpush2.bf16.msra.mxu0 0
      %2238 = vmatprep.subr.bf16.mxu0 0
      %2239 = vmatpush2.bf16.msra.mxu0 0
      %2240 = vmatprep.subr.bf16.mxu0 0
      %2241 = vmatpush2.bf16.msra.mxu0 0
      %2242 = vmatprep.subr.bf16.mxu0 0
      %2243 = vmatpush2.bf16.msra.mxu0 0
      %2244 = vmatprep.subr.bf16.mxu0 0
      %2245 = vmatpush2.bf16.msra.mxu0 0
      %2246 = vmatprep.mubr.bf16.mxu0 0
      %2247 = vmatmul.mubr.bf16.gmra.mxu0 %v2191
      %v2248 = vpop.f32.mrf.mxu0
      %v2249 = vadd.f32 %v2188, %v2248
      %v2250 = vpop.f32.mrf.mxu0
      %v2251 = vpop.f32.mrf.mxu0
      %v2252 = vadd.f32 %v2188, %v2251
      %v2253 = vpop.f32.mrf.mxu0
      %2254 = vmatprep.mubr.bf16.mxu0 0
      %2255 = vmatmul.mubr.bf16.gmra.mxu0 %v2194
      %v2256 = vpop.f32.mrf.mxu0
      %v2257 = vadd.f32 %v2188, %v2256
      %v2258 = vpop.f32.mrf.mxu0
      %v2259 = vpop.f32.mrf.mxu0
      %v2260 = vadd.f32 %v2188, %v2259
      %v2261 = vpop.f32.mrf.mxu0
      %2262 = vmatprep.mubr.bf16.mxu0 0
      %2263 = vmatmul.mubr.bf16.gmra.mxu0 %v2197
      %v2264 = vpop.f32.mrf.mxu0
      %v2265 = vadd.f32 %v2188, %v2264
      %v2266 = vpop.f32.mrf.mxu0
      %v2267 = vpop.f32.mrf.mxu0
      %v2268 = vadd.f32 %v2188, %v2267
      %v2269 = vpop.f32.mrf.mxu0
      %2270 = vmatprep.mubr.bf16.mxu0 0
      %2271 = vmatmul.mubr.bf16.gmra.mxu0 %v2200
      %v2272 = vpop.f32.mrf.mxu0
      %v2273 = vadd.f32 %v2188, %v2272
      %v2274 = vpop.f32.mrf.mxu0
      %v2275 = vpop.f32.mrf.mxu0
      %v2276 = vadd.f32 %v2188, %v2275
      %v2277 = vpop.f32.mrf.mxu0
      %2278 = vmatprep.mubr.bf16.mxu0 0
      %2279 = vmatmul.mubr.bf16.gmra.mxu0 %v2203
      %v2280 = vpop.f32.mrf.mxu0
      %v2281 = vadd.f32 %v2188, %v2280
      %v2282 = vpop.f32.mrf.mxu0
      %v2283 = vpop.f32.mrf.mxu0
      %v2284 = vadd.f32 %v2188, %v2283
      %v2285 = vpop.f32.mrf.mxu0
      %2286 = vmatprep.mubr.bf16.mxu0 0
      %2287 = vmatmul.mubr.bf16.gmra.mxu0 %v2206
      %v2288 = vpop.f32.mrf.mxu0
      %v2289 = vadd.f32 %v2188, %v2288
      %v2290 = vpop.f32.mrf.mxu0
      %v2291 = vpop.f32.mrf.mxu0
      %v2292 = vadd.f32 %v2188, %v2291
      %v2293 = vpop.f32.mrf.mxu0
      %2294 = vmatprep.mubr.bf16.mxu0 0
      %2295 = vmatmul.mubr.bf16.gmra.mxu0 %v2209
      %v2296 = vpop.f32.mrf.mxu0
      %v2297 = vadd.f32 %v2188, %v2296
      %v2298 = vpop.f32.mrf.mxu0
      %v2299 = vpop.f32.mrf.mxu0
      %v2300 = vadd.f32 %v2188, %v2299
      %v2301 = vpop.f32.mrf.mxu0
      %2302 = vmatprep.mubr.bf16.mxu0 0
      %2303 = vmatmul.mubr.bf16.gmra.mxu0 %v2212
      %v2304 = vpop.f32.mrf.mxu0
      %v2305 = vadd.f32 %v2188, %v2304
      %v2306 = vpop.f32.mrf.mxu0
      %v2307 = vpop.f32.mrf.mxu0
      %v2308 = vadd.f32 %v2188, %v2307
      %v2309 = vpop.f32.mrf.mxu0
      %2310 = vdwg.mxu0
      %v2311 = vmax.f32 %v2249, 0.0
      %v2312 = vmax.f32 %v2252, 0.0
      %v2313 = vmax.f32 %v2257, 0.0
      %v2314 = vmax.f32 %v2260, 0.0
      %v2315 = vmax.f32 %v2265, 0.0
      %v2316 = vmax.f32 %v2268, 0.0
      %v2317 = vmax.f32 %v2273, 0.0
      %v2318 = vmax.f32 %v2276, 0.0
      %v2319 = vmax.f32 %v2281, 0.0
      %v2320 = vmax.f32 %v2284, 0.0
      %v2321 = vmax.f32 %v2289, 0.0
      %v2322 = vmax.f32 %v2292, 0.0
      %v2323 = vmax.f32 %v2297, 0.0
      %v2324 = vmax.f32 %v2300, 0.0
      %v2325 = vmax.f32 %v2305, 0.0
      %v2326 = vmax.f32 %v2308, 0.0
      %v2327 = vld [vmem:[%s10] sm:$0xff]
      %v2328 = vld [vmem:[%s10 + $0x8] sm:$0xff]
      %v2329 = vld [vmem:[%s10 + $0x10] sm:$0xff]
      %v2330 = vld [vmem:[%s10 + $0x18] sm:$0xff]
      %v2331 = vpack.c.bf16 %v2312, %v2311
      %v2332 = vpack.c.bf16 %v2314, %v2313
      %v2333 = vpack.c.bf16 %v2316, %v2315
      %v2334 = vpack.c.bf16 %v2318, %v2317
      %v2335 = vpack.c.bf16 %v2320, %v2319
      %v2336 = vpack.c.bf16 %v2322, %v2321
      %v2337 = vpack.c.bf16 %v2324, %v2323
      %v2338 = vpack.c.bf16 %v2326, %v2325
      %v2339 = vpack.c.bf16 %v2328, %v2327
      %v2340 = vpack.c.bf16 %v2330, %v2329
      %v2341 = vld [vmem:[%s11] sm:$0x1]
      %v2343 = vlaneseq
      %v2344 = vshrl.u32 %v2343, 7
      %v2345 = vsub.s32 0, %v2344
      %v2346 = vrot.slane %v2341, %v2345
      %vm2348 = vcmask 261120
      %v2350 = vsel %vm2348, %v2331, 0
      %v2353 = vsel %vm2348, %v2332, 0
      %v2356 = vsel %vm2348, %v2333, 0
      %v2359 = vsel %vm2348, %v2334, 0
      %v2362 = vsel %vm2348, %v2335, 0
      %v2365 = vsel %vm2348, %v2336, 0
      %v2368 = vsel %vm2348, %v2337, 0
      %v2371 = vsel %vm2348, %v2338, 0
      %2373 = vmatprep.subr.bf16.mxu0 0
      %2374 = vmatpush1.bf16.msra.mxu0 0
      %2375 = vmatprep.subr.bf16.mxu0 0
      %2376 = vmatpush1.bf16.msra.mxu0 0
      %2377 = vmatprep.subr.bf16.mxu0 0
      %2378 = vmatpush1.bf16.msra.mxu0 0
      %2379 = vmatprep.subr.bf16.mxu0 0
      %2380 = vmatpush1.bf16.msra.mxu0 0
      %2381 = vmatprep.subr.bf16.mxu0 0
      %2382 = vmatpush1.bf16.msra.mxu0 0
      %2383 = vmatprep.subr.bf16.mxu0 0
      %2384 = vmatpush1.bf16.msra.mxu0 0
      %2385 = vmatprep.subr.bf16.mxu0 0
      %2386 = vmatpush1.bf16.msra.mxu0 %v2340
      %2387 = vmatprep.subr.bf16.mxu0 0
      %2388 = vmatpush1.bf16.msra.mxu0 %v2339
      %2389 = vmatprep.subr.bf16.mxu0 0
      %2390 = vmatpush2.bf16.msra.mxu0 0
      %2391 = vmatprep.subr.bf16.mxu0 0
      %2392 = vmatpush2.bf16.msra.mxu0 0
      %2393 = vmatprep.subr.bf16.mxu0 0
      %2394 = vmatpush2.bf16.msra.mxu0 0
      %2395 = vmatprep.subr.bf16.mxu0 0
      %2396 = vmatpush2.bf16.msra.mxu0 0
      %2397 = vmatprep.subr.bf16.mxu0 0
      %2398 = vmatpush2.bf16.msra.mxu0 0
      %2399 = vmatprep.subr.bf16.mxu0 0
      %2400 = vmatpush2.bf16.msra.mxu0 0
      %2401 = vmatprep.subr.bf16.mxu0 0
      %2402 = vmatpush2.bf16.msra.mxu0 0
      %2403 = vmatprep.subr.bf16.mxu0 0
      %2404 = vmatpush2.bf16.msra.mxu0 0
      %2405 = vmatprep.mubr.bf16.mxu0 0
      %2406 = vmatmul.mubr.bf16.gmra.mxu0 %v2350
      %v2407 = vpop.f32.mrf.mxu0
      %v2408 = vadd.f32 %v2346, %v2407
      %v2409 = vpop.f32.mrf.mxu0
      %v2410 = vpop.f32.mrf.mxu0
      %v2411 = vadd.f32 %v2346, %v2410
      %v2412 = vpop.f32.mrf.mxu0
      %2413 = vmatprep.mubr.bf16.mxu0 0
      %2414 = vmatmul.mubr.bf16.gmra.mxu0 %v2353
      %v2415 = vpop.f32.mrf.mxu0
      %v2416 = vadd.f32 %v2346, %v2415
      %v2417 = vpop.f32.mrf.mxu0
      %v2418 = vpop.f32.mrf.mxu0
      %v2419 = vadd.f32 %v2346, %v2418
      %v2420 = vpop.f32.mrf.mxu0
      %2421 = vmatprep.mubr.bf16.mxu0 0
      %2422 = vmatmul.mubr.bf16.gmra.mxu0 %v2356
      %v2423 = vpop.f32.mrf.mxu0
      %v2424 = vadd.f32 %v2346, %v2423
      %v2425 = vpop.f32.mrf.mxu0
      %v2426 = vpop.f32.mrf.mxu0
      %v2427 = vadd.f32 %v2346, %v2426
      %v2428 = vpop.f32.mrf.mxu0
      %2429 = vmatprep.mubr.bf16.mxu0 0
      %2430 = vmatmul.mubr.bf16.gmra.mxu0 %v2359
      %v2431 = vpop.f32.mrf.mxu0
      %v2432 = vadd.f32 %v2346, %v2431
      %v2433 = vpop.f32.mrf.mxu0
      %v2434 = vpop.f32.mrf.mxu0
      %v2435 = vadd.f32 %v2346, %v2434
      %v2436 = vpop.f32.mrf.mxu0
      %2437 = vmatprep.mubr.bf16.mxu0 0
      %2438 = vmatmul.mubr.bf16.gmra.mxu0 %v2362
      %v2439 = vpop.f32.mrf.mxu0
      %v2440 = vadd.f32 %v2346, %v2439
      %v2441 = vpop.f32.mrf.mxu0
      %v2442 = vpop.f32.mrf.mxu0
      %v2443 = vadd.f32 %v2346, %v2442
      %v2444 = vpop.f32.mrf.mxu0
      %2445 = vmatprep.mubr.bf16.mxu0 0
      %2446 = vmatmul.mubr.bf16.gmra.mxu0 %v2365
      %v2447 = vpop.f32.mrf.mxu0
      %v2448 = vadd.f32 %v2346, %v2447
      %v2449 = vpop.f32.mrf.mxu0
      %v2450 = vpop.f32.mrf.mxu0
      %v2451 = vadd.f32 %v2346, %v2450
      %v2452 = vpop.f32.mrf.mxu0
      %2453 = vmatprep.mubr.bf16.mxu0 0
      %2454 = vmatmul.mubr.bf16.gmra.mxu0 %v2368
      %v2455 = vpop.f32.mrf.mxu0
      %v2456 = vadd.f32 %v2346, %v2455
      %v2457 = vpop.f32.mrf.mxu0
      %v2458 = vpop.f32.mrf.mxu0
      %v2459 = vadd.f32 %v2346, %v2458
      %v2460 = vpop.f32.mrf.mxu0
      %2461 = vmatprep.mubr.bf16.mxu0 0
      %2462 = vmatmul.mubr.bf16.gmra.mxu0 %v2371
      %v2463 = vpop.f32.mrf.mxu0
      %v2464 = vadd.f32 %v2346, %v2463
      %v2465 = vpop.f32.mrf.mxu0
      %v2466 = vpop.f32.mrf.mxu0
      %v2467 = vadd.f32 %v2346, %v2466
      %v2468 = vpop.f32.mrf.mxu0
      %2469 = vdwg.mxu0
      %v2470 = vadd.f32 %v2156, %v2408
      %v2471 = vadd.f32 %v2157, %v2411
      %v2472 = vadd.f32 %v2158, %v2416
      %v2473 = vadd.f32 %v2159, %v2419
      %v2474 = vadd.f32 %v2160, %v2424
      %v2475 = vadd.f32 %v2161, %v2427
      %v2476 = vadd.f32 %v2162, %v2432
      %v2477 = vadd.f32 %v2163, %v2435
      %v2478 = vadd.f32 %v2164, %v2440
      %v2479 = vadd.f32 %v2165, %v2443
      %v2480 = vadd.f32 %v2166, %v2448
      %v2481 = vadd.f32 %v2167, %v2451
      %v2482 = vadd.f32 %v2168, %v2456
      %v2483 = vadd.f32 %v2169, %v2459
      %v2484 = vadd.f32 %v2170, %v2464
      %v2485 = vadd.f32 %v2171, %v2467
      %v2486 = vld [vmem:[%s12] sm:$0x1]
      %v2487 = vld [vmem:[%s13] sm:$0x1]
      %v2488 = vsel %vm506, %v2470, 0.0
      %2489 = vadd.xlane.f32.xlu0 %v2488
      %v2490 = vpop.xlane.xlu0 %2489
      %v2491 = vsel %vm506, %v2471, 0.0
      %2492 = vadd.xlane.f32.xlu0 %v2491
      %v2493 = vpop.xlane.xlu0 %2492
      %v2494 = vsel %vm506, %v2472, 0.0
      %2495 = vadd.xlane.f32.xlu0 %v2494
      %v2496 = vpop.xlane.xlu0 %2495
      %v2497 = vsel %vm506, %v2473, 0.0
      %2498 = vadd.xlane.f32.xlu0 %v2497
      %v2499 = vpop.xlane.xlu0 %2498
      %v2500 = vsel %vm506, %v2474, 0.0
      %2501 = vadd.xlane.f32.xlu0 %v2500
      %v2502 = vpop.xlane.xlu0 %2501
      %v2503 = vsel %vm506, %v2475, 0.0
      %2504 = vadd.xlane.f32.xlu0 %v2503
      %v2505 = vpop.xlane.xlu0 %2504
      %v2506 = vsel %vm506, %v2476, 0.0
      %2507 = vadd.xlane.f32.xlu0 %v2506
      %v2508 = vpop.xlane.xlu0 %2507
      %v2509 = vsel %vm506, %v2477, 0.0
      %2510 = vadd.xlane.f32.xlu0 %v2509
      %v2511 = vpop.xlane.xlu0 %2510
      %v2512 = vsel %vm506, %v2478, 0.0
      %2513 = vadd.xlane.f32.xlu0 %v2512
      %v2514 = vpop.xlane.xlu0 %2513
      %v2515 = vsel %vm506, %v2479, 0.0
      %2516 = vadd.xlane.f32.xlu0 %v2515
      %v2517 = vpop.xlane.xlu0 %2516
      %v2518 = vsel %vm506, %v2480, 0.0
      %2519 = vadd.xlane.f32.xlu0 %v2518
      %v2520 = vpop.xlane.xlu0 %2519
      %v2521 = vsel %vm506, %v2481, 0.0
      %2522 = vadd.xlane.f32.xlu0 %v2521
      %v2523 = vpop.xlane.xlu0 %2522
      %v2524 = vsel %vm506, %v2482, 0.0
      %2525 = vadd.xlane.f32.xlu0 %v2524
      %v2526 = vpop.xlane.xlu0 %2525
      %v2527 = vsel %vm506, %v2483, 0.0
      %2528 = vadd.xlane.f32.xlu0 %v2527
      %v2529 = vpop.xlane.xlu0 %2528
      %v2530 = vsel %vm506, %v2484, 0.0
      %2531 = vadd.xlane.f32.xlu0 %v2530
      %v2532 = vpop.xlane.xlu0 %2531
      %v2533 = vsel %vm506, %v2485, 0.0
      %2534 = vadd.xlane.f32.xlu0 %v2533
      %v2535 = vpop.xlane.xlu0 %2534
      %v2536 = vmul.f32 %v2490, %v1967
      %v2537 = vmul.f32 %v2493, %v1967
      %v2538 = vmul.f32 %v2496, %v1967
      %v2539 = vmul.f32 %v2499, %v1967
      %v2540 = vmul.f32 %v2502, %v1967
      %v2541 = vmul.f32 %v2505, %v1967
      %v2542 = vmul.f32 %v2508, %v1967
      %v2543 = vmul.f32 %v2511, %v1967
      %v2544 = vmul.f32 %v2514, %v1967
      %v2545 = vmul.f32 %v2517, %v1967
      %v2546 = vmul.f32 %v2520, %v1967
      %v2547 = vmul.f32 %v2523, %v1967
      %v2548 = vmul.f32 %v2526, %v1967
      %v2549 = vmul.f32 %v2529, %v1967
      %v2550 = vmul.f32 %v2532, %v1967
      %v2551 = vmul.f32 %v2535, %v1967
      %v2552 = vsub.f32 %v2470, %v2536
      %v2553 = vsub.f32 %v2471, %v2537
      %v2554 = vsub.f32 %v2472, %v2538
      %v2555 = vsub.f32 %v2473, %v2539
      %v2556 = vsub.f32 %v2474, %v2540
      %v2557 = vsub.f32 %v2475, %v2541
      %v2558 = vsub.f32 %v2476, %v2542
      %v2559 = vsub.f32 %v2477, %v2543
      %v2560 = vsub.f32 %v2478, %v2544
      %v2561 = vsub.f32 %v2479, %v2545
      %v2562 = vsub.f32 %v2480, %v2546
      %v2563 = vsub.f32 %v2481, %v2547
      %v2564 = vsub.f32 %v2482, %v2548
      %v2565 = vsub.f32 %v2483, %v2549
      %v2566 = vsub.f32 %v2484, %v2550
      %v2567 = vsub.f32 %v2485, %v2551
      %v2568 = vmul.f32 %v2552, %v2552
      %v2569 = vmul.f32 %v2553, %v2553
      %v2570 = vmul.f32 %v2554, %v2554
      %v2571 = vmul.f32 %v2555, %v2555
      %v2572 = vmul.f32 %v2556, %v2556
      %v2573 = vmul.f32 %v2557, %v2557
      %v2574 = vmul.f32 %v2558, %v2558
      %v2575 = vmul.f32 %v2559, %v2559
      %v2576 = vmul.f32 %v2560, %v2560
      %v2577 = vmul.f32 %v2561, %v2561
      %v2578 = vmul.f32 %v2562, %v2562
      %v2579 = vmul.f32 %v2563, %v2563
      %v2580 = vmul.f32 %v2564, %v2564
      %v2581 = vmul.f32 %v2565, %v2565
      %v2582 = vmul.f32 %v2566, %v2566
      %v2583 = vmul.f32 %v2567, %v2567
      %v2584 = vsel %vm506, %v2568, 0.0
      %2585 = vadd.xlane.f32.xlu0 %v2584
      %v2586 = vpop.xlane.xlu0 %2585
      %v2587 = vsel %vm506, %v2569, 0.0
      %2588 = vadd.xlane.f32.xlu0 %v2587
      %v2589 = vpop.xlane.xlu0 %2588
      %v2590 = vsel %vm506, %v2570, 0.0
      %2591 = vadd.xlane.f32.xlu0 %v2590
      %v2592 = vpop.xlane.xlu0 %2591
      %v2593 = vsel %vm506, %v2571, 0.0
      %2594 = vadd.xlane.f32.xlu0 %v2593
      %v2595 = vpop.xlane.xlu0 %2594
      %v2596 = vsel %vm506, %v2572, 0.0
      %2597 = vadd.xlane.f32.xlu0 %v2596
      %v2598 = vpop.xlane.xlu0 %2597
      %v2599 = vsel %vm506, %v2573, 0.0
      %2600 = vadd.xlane.f32.xlu0 %v2599
      %v2601 = vpop.xlane.xlu0 %2600
      %v2602 = vsel %vm506, %v2574, 0.0
      %2603 = vadd.xlane.f32.xlu0 %v2602
      %v2604 = vpop.xlane.xlu0 %2603
      %v2605 = vsel %vm506, %v2575, 0.0
      %2606 = vadd.xlane.f32.xlu0 %v2605
      %v2607 = vpop.xlane.xlu0 %2606
      %v2608 = vsel %vm506, %v2576, 0.0
      %2609 = vadd.xlane.f32.xlu0 %v2608
      %v2610 = vpop.xlane.xlu0 %2609
      %v2611 = vsel %vm506, %v2577, 0.0
      %2612 = vadd.xlane.f32.xlu0 %v2611
      %v2613 = vpop.xlane.xlu0 %2612
      %v2614 = vsel %vm506, %v2578, 0.0
      %2615 = vadd.xlane.f32.xlu0 %v2614
      %v2616 = vpop.xlane.xlu0 %2615
      %v2617 = vsel %vm506, %v2579, 0.0
      %2618 = vadd.xlane.f32.xlu0 %v2617
      %v2619 = vpop.xlane.xlu0 %2618
      %v2620 = vsel %vm506, %v2580, 0.0
      %2621 = vadd.xlane.f32.xlu0 %v2620
      %v2622 = vpop.xlane.xlu0 %2621
      %v2623 = vsel %vm506, %v2581, 0.0
      %2624 = vadd.xlane.f32.xlu0 %v2623
      %v2625 = vpop.xlane.xlu0 %2624
      %v2626 = vsel %vm506, %v2582, 0.0
      %2627 = vadd.xlane.f32.xlu0 %v2626
      %v2628 = vpop.xlane.xlu0 %2627
      %v2629 = vsel %vm506, %v2583, 0.0
      %2630 = vadd.xlane.f32.xlu0 %v2629
      %v2631 = vpop.xlane.xlu0 %2630
      %v2632 = vmul.f32 %v2586, %v1967
      %v2633 = vmul.f32 %v2589, %v1967
      %v2634 = vmul.f32 %v2592, %v1967
      %v2635 = vmul.f32 %v2595, %v1967
      %v2636 = vmul.f32 %v2598, %v1967
      %v2637 = vmul.f32 %v2601, %v1967
      %v2638 = vmul.f32 %v2604, %v1967
      %v2639 = vmul.f32 %v2607, %v1967
      %v2640 = vmul.f32 %v2610, %v1967
      %v2641 = vmul.f32 %v2613, %v1967
      %v2642 = vmul.f32 %v2616, %v1967
      %v2643 = vmul.f32 %v2619, %v1967
      %v2644 = vmul.f32 %v2622, %v1967
      %v2645 = vmul.f32 %v2625, %v1967
      %v2646 = vmul.f32 %v2628, %v1967
      %v2647 = vmul.f32 %v2631, %v1967
      %v2648 = vadd.f32 %v2632, 1e-05
      %v2649 = vadd.f32 %v2633, 1e-05
      %v2650 = vadd.f32 %v2634, 1e-05
      %v2651 = vadd.f32 %v2635, 1e-05
      %v2652 = vadd.f32 %v2636, 1e-05
      %v2653 = vadd.f32 %v2637, 1e-05
      %v2654 = vadd.f32 %v2638, 1e-05
      %v2655 = vadd.f32 %v2639, 1e-05
      %v2656 = vadd.f32 %v2640, 1e-05
      %v2657 = vadd.f32 %v2641, 1e-05
      %v2658 = vadd.f32 %v2642, 1e-05
      %v2659 = vadd.f32 %v2643, 1e-05
      %v2660 = vadd.f32 %v2644, 1e-05
      %v2661 = vadd.f32 %v2645, 1e-05
      %v2662 = vadd.f32 %v2646, 1e-05
      %v2663 = vadd.f32 %v2647, 1e-05
      %v2664 = vrsqrt.pop %v2648
      %v2665 = vrsqrt.pop %v2649
      %v2666 = vrsqrt.pop %v2650
      %v2667 = vrsqrt.pop %v2651
      %v2668 = vrsqrt.pop %v2652
      %v2669 = vrsqrt.pop %v2653
      %v2670 = vrsqrt.pop %v2654
      %v2671 = vrsqrt.pop %v2655
      %v2672 = vrsqrt.pop %v2656
      %v2673 = vrsqrt.pop %v2657
      %v2674 = vrsqrt.pop %v2658
      %v2675 = vrsqrt.pop %v2659
      %v2676 = vrsqrt.pop %v2660
      %v2677 = vrsqrt.pop %v2661
      %v2678 = vrsqrt.pop %v2662
      %v2679 = vrsqrt.pop %v2663
      %v2680 = vmul.f32 %v2552, %v2664
      %v2681 = vmul.f32 %v2553, %v2665
      %v2682 = vmul.f32 %v2554, %v2666
      %v2683 = vmul.f32 %v2555, %v2667
      %v2684 = vmul.f32 %v2556, %v2668
      %v2685 = vmul.f32 %v2557, %v2669
      %v2686 = vmul.f32 %v2558, %v2670
      %v2687 = vmul.f32 %v2559, %v2671
      %v2688 = vmul.f32 %v2560, %v2672
      %v2689 = vmul.f32 %v2561, %v2673
      %v2690 = vmul.f32 %v2562, %v2674
      %v2691 = vmul.f32 %v2563, %v2675
      %v2692 = vmul.f32 %v2564, %v2676
      %v2693 = vmul.f32 %v2565, %v2677
      %v2694 = vmul.f32 %v2566, %v2678
      %v2695 = vmul.f32 %v2567, %v2679
      %v2697 = vlaneseq
      %v2698 = vshrl.u32 %v2697, 7
      %v2699 = vsub.s32 0, %v2698
      %v2700 = vrot.slane %v2486, %v2699
      %v2702 = vmul.f32 %v2680, %v2700
      %v2703 = vmul.f32 %v2681, %v2700
      %v2704 = vmul.f32 %v2682, %v2700
      %v2705 = vmul.f32 %v2683, %v2700
      %v2706 = vmul.f32 %v2684, %v2700
      %v2707 = vmul.f32 %v2685, %v2700
      %v2708 = vmul.f32 %v2686, %v2700
      %v2709 = vmul.f32 %v2687, %v2700
      %v2710 = vmul.f32 %v2688, %v2700
      %v2711 = vmul.f32 %v2689, %v2700
      %v2712 = vmul.f32 %v2690, %v2700
      %v2713 = vmul.f32 %v2691, %v2700
      %v2714 = vmul.f32 %v2692, %v2700
      %v2715 = vmul.f32 %v2693, %v2700
      %v2716 = vmul.f32 %v2694, %v2700
      %v2717 = vmul.f32 %v2695, %v2700
      %v2719 = vlaneseq
      %v2720 = vshrl.u32 %v2719, 7
      %v2721 = vsub.s32 0, %v2720
      %v2722 = vrot.slane %v2487, %v2721
      %v2724 = vadd.f32 %v2702, %v2722
      %v2725 = vadd.f32 %v2703, %v2722
      %v2726 = vadd.f32 %v2704, %v2722
      %v2727 = vadd.f32 %v2705, %v2722
      %v2728 = vadd.f32 %v2706, %v2722
      %v2729 = vadd.f32 %v2707, %v2722
      %v2730 = vadd.f32 %v2708, %v2722
      %v2731 = vadd.f32 %v2709, %v2722
      %v2732 = vadd.f32 %v2710, %v2722
      %v2733 = vadd.f32 %v2711, %v2722
      %v2734 = vadd.f32 %v2712, %v2722
      %v2735 = vadd.f32 %v2713, %v2722
      %v2736 = vadd.f32 %v2714, %v2722
      %v2737 = vadd.f32 %v2715, %v2722
      %v2738 = vadd.f32 %v2716, %v2722
      %v2739 = vadd.f32 %v2717, %v2722
      %2740 = vst.msk [vmem:[%s469] sm:$0xff] %vm506, %v2724
      %2741 = vst.msk [vmem:[%s469 + $0x8] sm:$0xff] %vm506, %v2725
      %2742 = vst.msk [vmem:[%s469 + $0x10] sm:$0xff] %vm506, %v2726
      %2743 = vst.msk [vmem:[%s469 + $0x18] sm:$0xff] %vm506, %v2727
      %2744 = vst.msk [vmem:[%s469 + $0x20] sm:$0xff] %vm506, %v2728
      %2745 = vst.msk [vmem:[%s469 + $0x28] sm:$0xff] %vm506, %v2729
      %2746 = vst.msk [vmem:[%s469 + $0x30] sm:$0xff] %vm506, %v2730
      %2747 = vst.msk [vmem:[%s469 + $0x38] sm:$0xff] %vm506, %v2731
      %2748 = vst.msk [vmem:[%s469 + $0x40] sm:$0xff] %vm506, %v2732
      %2749 = vst.msk [vmem:[%s469 + $0x48] sm:$0xff] %vm506, %v2733
      %2750 = vst.msk [vmem:[%s469 + $0x50] sm:$0xff] %vm506, %v2734
      %2751 = vst.msk [vmem:[%s469 + $0x58] sm:$0xff] %vm506, %v2735
      %2752 = vst.msk [vmem:[%s469 + $0x60] sm:$0xff] %vm506, %v2736
      %2753 = vst.msk [vmem:[%s469 + $0x68] sm:$0xff] %vm506, %v2737
      %2754 = vst.msk [vmem:[%s469 + $0x70] sm:$0xff] %vm506, %v2738
      %2755 = vst.msk [vmem:[%s469 + $0x78] sm:$0xff] %vm506, %v2739
      %s2756 = smul.u32 16, %s25
      %p2757 = scmp.lt.s32.totalorder %s2756, 31
      %s2758 = scalar_select %p2757, %s2756, 31
      %s2759 = smul.addr %s2758, 8
      %s2760 = scalar_lea.vmem %s14, %s2759
      // Predicated region
      $region77: #{vct_predictor_forward.4} parent=75 // pred_check
        %p2761 = pneg %p342
      $region78: #{vct_predictor_forward.4} parent=75 // pred_check_branch
        %2763 = sbr.rel (%p2761) target = $region80
      $region79: #{vct_predictor_forward.4} parent=75 // pred_region
        %s2764 = smul.u32 16, %s25
      $region80: #{vct_predictor_forward.4} parent=75 // pred_fallthru
        _
    $region76: #{vct_predictor_forward.4} parent=5 // pred_fallthru
      _
    %p2765 = scmp.le.s32.totalorder 2, %s20
    // Predicated region
    $region81: #{vct_predictor_forward.4} parent=5 // pred_check
      %p2766 = pneg %p2765
    $region82: #{vct_predictor_forward.4} parent=5 // pred_check_branch
      %2768 = sbr.rel (%p2766) target = $region84
    $region83: #{vct_predictor_forward.4} parent=5 // pred_region
      %s2769 = ssub.s32 %s20, 2
      // Predicated region
      $region85: #{vct_predictor_forward.4} parent=83 // pred_check
        %p2770 = pneg %p348
      $region86: #{vct_predictor_forward.4} parent=83 // pred_check_branch
        %2772 = sbr.rel (%p2770) target = $region88
      $region87: #{vct_predictor_forward.4} parent=83 // pred_region
        %s2773 = smul.u32 16, %s26
        %p2774 = scmp.lt.s32.totalorder %s2773, 31
        %s2775 = scalar_select %p2774, %s2773, 31
        %s2776 = smul.addr %s2775, 8
        %s2777 = scalar_lea.vmem %s14, %s2776
      $region88: #{vct_predictor_forward.4} parent=83 // pred_fallthru
        _
    $region84: #{vct_predictor_forward.4} parent=5 // pred_fallthru
      _
  $region6: #{vct_predictor_forward.4} parent=0 // loop_footer
    %s24 = sadd.s32 1, %s20
  $region7: #{vct_predictor_forward.4} parent=0 // loop_footer_branch
    %19 = sbr.rel target = $region3
  $region8: #{vct_predictor_forward.4} parent=0 // loop_exit
    _

</llo_original>
